<compile_context>
chip_gen: v6e
topology: v6e:2x2x1
jax: 0.10.0
libtpu: 0.0.40
codegen_flags: <defaults>
</compile_context>

<pallas_src>
import functools

import jax
import jax.numpy as jnp
from jax import lax
from jax.experimental import pallas as pl
from jax.experimental.pallas import tpu as pltpu

LANE = 128


def fcu_kernel(x_ref, w_ref, vec_ref, o_ref, *,
               ksize, dil, pad1, pad2, width, hw, rows):
    """x_ref/o_ref: (rows, Cp) bf16, rows = nb*H*W (whole images stacked along
    rows).  w_ref: (4, K, Cp, Cp) bf16 per-tap weights for
    [conv3x1_1, conv1x3_1, conv3x1_2, conv1x3_2].  vec_ref: (8, Cp) f32 rows
    [b3x1_1, b3x1_2, g1, s1', g2, s2', 0, 0] (biases of the (1,k) convs folded
    into the BN shifts s1', s2' in the wrapper)."""
    # Hoisted index vectors for the boundary masks (built once, (rows, 1)).
    idx = lax.broadcasted_iota(jnp.int32, (rows, 1), 0)
    img_idx = idx % hw          # row position inside its own image (batch-safe)
    w_idx = idx % width         # w coordinate

    def shift_h(v, r):
        # out[b, h, w] = v[b, h - r, w], zero-filled outside the image
        # (H padding).  The mask also kills cross-image / circular-wrap bleed.
        if r == 0:
            return v
        y = pltpu.roll(v, (r * width) % rows, axis=0)
        m = (img_idx >= r * width) if r > 0 else (img_idx < hw + r * width)
        return y * m.astype(v.dtype)

    def shift_w(v, r):
        # out[b, h, w] = v[b, h, w - r], zero-filled outside the row (W padding).
        if r == 0:
            return v
        y = pltpu.roll(v, r % rows, axis=0)
        m = (w_idx >= r) if r > 0 else (w_idx < width + r)
        return y * m.astype(v.dtype)

    def conv(v, wi, pad, d, shift_fn):
        # Asymmetric k-tap conv: K per-tap MXU matmuls accumulated in f32.
        # Shifts/masks stay in f32 (v5e has no bf16 VALU and packed-sublane
        # rotates are avoided); each shifted tap is cast to bf16 for the MXU.
        acc = None
        for t in range(ksize):
            tap = shift_fn(v, pad - t * d).astype(jnp.bfloat16)
            part = jnp.dot(tap, w_ref[wi, t],
                           preferred_element_type=jnp.float32)
            acc = part if acc is None else acc + part
        return acc

    b1v = vec_ref[0:1, :]
    b2v = vec_ref[1:2, :]
    g1 = vec_ref[2:3, :]
    s1 = vec_ref[3:4, :]
    g2 = vec_ref[4:5, :]
    s2 = vec_ref[5:6, :]

    x = x_ref[...].astype(jnp.float32)
    # conv3x1_1 + bias + ReLU
    y = jnp.maximum(conv(x, 0, pad1, 1, shift_h) + b1v, 0.0)
    # conv1x3_1 + BN1 (conv bias folded into shift) + ReLU
    y = jnp.maximum(conv(y, 1, pad1, 1, shift_w) * g1 + s1, 0.0)
    # conv3x1_2 (dilated) + bias + ReLU
    y = jnp.maximum(conv(y, 2, pad2, dil, shift_h) + b2v, 0.0)
    # conv1x3_2 (dilated) + BN2 (conv bias folded into shift), no activation
    y = conv(y, 3, pad2, dil, shift_w) * g2 + s2

    # TODO(synk): nn.Dropout2d is treated as inference-mode identity (no RNG mask).
    # Residual add + ReLU in f32; lane-dense bf16 writeback.
    o_ref[...] = jnp.maximum(y + x_ref[...].astype(jnp.float32), 0.0
                             ).astype(o_ref.dtype)


def prepare_fcu_params(params, channels, kernel_size):
    """One-time packing (hoisted out of the per-call path): pad channels to
    Cp=128, stack the four conv weights per-tap, cast to bf16, and fold the
    (1,k)-conv biases into the BN scale/shift."""
    (w1v, b1v, w1h, b1h, g1, s1, w2v, b2v, w2h, b2h, g2, s2) = params
    c = channels
    cp = max(LANE, ((c + LANE - 1) // LANE) * LANE)

    def pad_weight(wt):                  # (K, Cin, Cout) -> (K, Cp, Cp)
        wp = jnp.zeros((kernel_size, cp, cp), jnp.float32)
        return wp.at[:, :c, :c].set(wt.astype(jnp.float32))

    w_all = jnp.stack([pad_weight(w1v), pad_weight(w1h),
                       pad_weight(w2v), pad_weight(w2h)],
                      axis=0).astype(jnp.bfloat16)     # (4, K, Cp, Cp)

    def padv(v):
        return jnp.zeros((cp,), jnp.float32).at[:c].set(v.astype(jnp.float32))

    # BN(z + b) = g*z + (s + g*b): fold 1x3-conv biases into the shifts.
    s1f = s1 + g1 * b1h
    s2f = s2 + g2 * b2h
    zero = jnp.zeros((cp,), jnp.float32)
    vecs = jnp.stack([padv(b1v), padv(b2v), padv(g1), padv(s1f),
                      padv(g2), padv(s2f), zero, zero], axis=0)   # (8, Cp)
    return w_all, vecs, cp


def fcu_forward(x_nchw, w_all, vecs, cp, *, kernel_size, dilation,
                max_rows_per_step=4096):
    n, c, h, w = x_nchw.shape
    hw = h * w
    pad1 = (kernel_size - 1) // 2
    pad2 = pad1 * dilation
    # The roll+mask shift scheme requires the shift to stay inside one image.
    assert pad2 < w and pad2 < h, "dilation too large for this H/W"

    # Batch blocking: stream as many whole images per grid step as fit the row
    # budget (amortizes the per-conv RHS push on the MXU).
    nb = 1
    for d in range(n, 0, -1):
        if n % d == 0 and d * hw <= max_rows_per_step:
            nb = d
            break
    rows = nb * hw

    # NCHW -> (N*H*W, Cp) bf16, channels lane-dense (zero-padded to 128).
    # bf16 HBM layout halves input/output DMA vs the old f32 slab.
    x_nhwc = jnp.transpose(x_nchw, (0, 2, 3, 1)).astype(jnp.bfloat16)
    x_flat = jnp.zeros((n * hw, cp), jnp.bfloat16).at[:, :c].set(
        x_nhwc.reshape(n * hw, c))

    kern = functools.partial(fcu_kernel, ksize=kernel_size, dil=dilation,
                             pad1=pad1, pad2=pad2, width=w, hw=hw, rows=rows)

    flops = 4 * 2 * n * hw * kernel_size * cp * cp
    bytes_accessed = (2 * n * hw * cp * 2               # x in + out (bf16)
                      + 4 * kernel_size * cp * cp * 2   # stacked weights (bf16)
                      + 8 * cp * 4)                     # per-channel vectors

    out = pl.pallas_call(
        kern,
        out_shape=jax.ShapeDtypeStruct((n * hw, cp), jnp.bfloat16),
        grid_spec=pltpu.PrefetchScalarGridSpec(
            num_scalar_prefetch=0,
            grid=(n // nb,),
            in_specs=[pl.BlockSpec((rows, cp), lambda i: (i, 0)),
                      pl.BlockSpec((4, kernel_size, cp, cp),
                                   lambda i: (0, 0, 0, 0)),
                      pl.BlockSpec((8, cp), lambda i: (0, 0))],
            out_specs=pl.BlockSpec((rows, cp), lambda i: (i, 0))),
        compiler_params=pltpu.CompilerParams(
            dimension_semantics=("parallel",)),
        cost_estimate=pl.CostEstimate(flops=flops, transcendentals=0,
                                      bytes_accessed=bytes_accessed),
        input_output_aliases={0: 0},     # output reuses x_flat's HBM buffer
    )(x_flat, w_all, vecs)

    out = out[:, :c].reshape(n, h, w, c)
    return jnp.transpose(out, (0, 3, 1, 2)).astype(jnp.float32)


def fcu_reference(x, params, *, kernel_size, dilation):
    """Pure-JAX NCHW reference using lax.conv_general_dilated (f32, HIGHEST)."""
    w1v, b1v, w1h, b1h, g1, s1, w2v, b2v, w2h, b2h, g2, s2 = params
    pad1 = (kernel_size - 1) // 2
    pad2 = pad1 * dilation
    cv = lambda t: t.reshape(1, -1, 1, 1)

    def conv_v(v, wt, b, pad, dil):
        kern = jnp.transpose(wt, (2, 1, 0))[:, :, :, None]     # OIHW, (k,1)
        y = lax.conv_general_dilated(v, kern, (1, 1), ((pad, pad), (0, 0)),
                                     rhs_dilation=(dil, 1),
                                     dimension_numbers=("NCHW", "OIHW", "NCHW"),
                                     precision=lax.Precision.HIGHEST)
        return y + cv(b)

    def conv_h(v, wt, b, pad, dil):
        kern = jnp.transpose(wt, (2, 1, 0))[:, :, None, :]      # OIHW, (1,k)
        y = lax.conv_general_dilated(v, kern, (1, 1), ((0, 0), (pad, pad)),
                                     rhs_dilation=(1, dil),
                                     dimension_numbers=("NCHW", "OIHW", "NCHW"),
                                     precision=lax.Precision.HIGHEST)
        return y + cv(b)

    y = jax.nn.relu(conv_v(x, w1v, b1v, pad1, 1))
    y = jax.nn.relu(conv_h(y, w1h, b1h, pad1, 1) * cv(g1) + cv(s1))
    y = jax.nn.relu(conv_v(y, w2v, b2v, pad2, dilation))
    y = conv_h(y, w2h, b2h, pad2, dilation) * cv(g2) + cv(s2)
    return jax.nn.relu(y + x)


if __name__ == "__main__":
    N, C, H, W = 2, 16, 16, 16
    kernel_size, dilation, bn_eps = 3, 2, 1e-3

    keys = jax.random.split(jax.random.PRNGKey(0), 20)
    x = jax.random.normal(keys[0], (N, C, H, W), jnp.float32)

    def conv_w(k):  # kernel-friendly layout (K, Cin, Cout) == torch W[co,ci,t].T
        return 0.15 * jax.random.normal(k, (kernel_size, C, C), jnp.float32)

    def vecp(k, scale=0.05, base=0.0):
        return base + scale * jax.random.normal(k, (C,), jnp.float32)

    w1v, w1h, w2v, w2h = (conv_w(keys[i]) for i in range(1, 5))
    b1v, b1h, b2v, b2h = (vecp(keys[i]) for i in range(5, 9))

    # BatchNorm (eval mode) params, folded into per-channel scale/shift.
    gamma1, beta1 = vecp(keys[9], 0.1, 1.0), vecp(keys[10])
    mean1, var1 = vecp(keys[11]), 1.0 + 0.2 * jax.random.uniform(keys[12], (C,))
    gamma2, beta2 = vecp(keys[13], 0.1, 1.0), vecp(keys[14])
    mean2, var2 = vecp(keys[15]), 1.0 + 0.2 * jax.random.uniform(keys[16], (C,))
    g1 = gamma1 / jnp.sqrt(var1 + bn_eps); s1 = beta1 - mean1 * g1
    g2 = gamma2 / jnp.sqrt(var2 + bn_eps); s2 = beta2 - mean2 * g2

    params = (w1v, b1v, w1h, b1h, g1, s1, w2v, b2v, w2h, b2h, g2, s2)

    # Weight / vector packing is done once (hoisted out of the per-call path).
    w_all, vecs, cp = prepare_fcu_params(params, C, kernel_size)
    w_all, vecs = jax.block_until_ready((w_all, vecs))

    out = fcu_forward(x, w_all, vecs, cp,
                      kernel_size=kernel_size, dilation=dilation)
    out = jax.block_until_ready(out)

    ref = fcu_reference(x, params, kernel_size=kernel_size, dilation=dilation)
    err = float(jnp.max(jnp.abs(out - ref)))
    scale = float(jnp.max(jnp.abs(ref)))
    tol = 2e-2 + 2e-2 * scale   # bf16 MXU operands + bf16 activation storage
    if out.shape != ref.shape or err > tol:
        raise AssertionError(f"Pallas FCU mismatch: max abs err = {err} (tol {tol})")

    print("KERNEL_OK")
</pallas_src>

<mosaic_0001>
module attributes {stable_mosaic.version = 11 : i64} {
  func.func @fcu_kernel(%arg0: i32, %arg1: memref<512x128xbf16, #tpu.memory_space<vmem>>, %arg2: memref<4x3x128x128xbf16, #tpu.memory_space<vmem>>, %arg3: memref<8x128xf32, #tpu.memory_space<vmem>>, %arg4: memref<512x128xbf16, #tpu.memory_space<vmem>>) attributes {dimension_semantics = [#tpu.dimension_semantics<parallel>], iteration_bounds = array<i64: 1>, scalar_prefetch = 0 : i64, scratch_operands = 0 : i64, tpu.core_type = #tpu.core_type<tc>, window_params = [{transform_indices = @transform_0, window_bounds = array<i64: 512, 128>}, {pipeline_mode = #tpu.pipeline_mode<synchronous>, transform_indices = @transform_1, window_bounds = array<i64: 4, 3, 128, 128>}, {pipeline_mode = #tpu.pipeline_mode<synchronous>, transform_indices = @transform_2, window_bounds = array<i64: 8, 128>}, {transform_indices = @transform_3, window_bounds = array<i64: 512, 128>}]} {
    %0 = tpu.iota {dimensions = array<i32: 0>} : vector<512x1xi32>
    %c256_i32 = arith.constant 256 : i32
    %c0_i32 = arith.constant 0 : i32
    %1 = arith.cmpi eq, %c256_i32, %c0_i32 : i32
    %c1_i32 = arith.constant 1 : i32
    %2 = arith.select %1, %c1_i32, %c256_i32 : i32
    %3 = vector.broadcast %2 : i32 to vector<512x1xi32>
    %4 = arith.remsi %0, %3 : vector<512x1xi32>
    %c0_i32_0 = arith.constant 0 : i32
    %5 = vector.broadcast %c0_i32_0 : i32 to vector<512x1xi32>
    %6 = arith.cmpi ne, %4, %5 : vector<512x1xi32>
    %c0_i32_1 = arith.constant 0 : i32
    %7 = vector.broadcast %c0_i32_1 : i32 to vector<512x1xi32>
    %8 = arith.cmpi slt, %4, %7 : vector<512x1xi32>
    %c0_i32_2 = arith.constant 0 : i32
    %9 = arith.cmpi slt, %2, %c0_i32_2 : i32
    %10 = vector.broadcast %9 : i1 to vector<512x1xi1>
    %11 = vector.broadcast %10 : vector<512x1xi1> to vector<512x1xi1>
    %12 = arith.xori %8, %11 : vector<512x1xi1>
    %13 = arith.andi %12, %6 : vector<512x1xi1>
    %14 = vector.broadcast %2 : i32 to vector<512x1xi32>
    %15 = arith.addi %4, %14 : vector<512x1xi32>
    %16 = arith.select %13, %15, %4 : vector<512x1xi1>, vector<512x1xi32>
    %c16_i32 = arith.constant 16 : i32
    %c0_i32_3 = arith.constant 0 : i32
    %17 = arith.cmpi eq, %c16_i32, %c0_i32_3 : i32
    %c1_i32_4 = arith.constant 1 : i32
    %18 = arith.select %17, %c1_i32_4, %c16_i32 : i32
    %19 = vector.broadcast %18 : i32 to vector<512x1xi32>
    %20 = arith.remsi %0, %19 : vector<512x1xi32>
    %c0_i32_5 = arith.constant 0 : i32
    %21 = vector.broadcast %c0_i32_5 : i32 to vector<512x1xi32>
    %22 = arith.cmpi ne, %20, %21 : vector<512x1xi32>
    %c0_i32_6 = arith.constant 0 : i32
    %23 = vector.broadcast %c0_i32_6 : i32 to vector<512x1xi32>
    %24 = arith.cmpi slt, %20, %23 : vector<512x1xi32>
    %c0_i32_7 = arith.constant 0 : i32
    %25 = arith.cmpi slt, %18, %c0_i32_7 : i32
    %26 = vector.broadcast %25 : i1 to vector<512x1xi1>
    %27 = vector.broadcast %26 : vector<512x1xi1> to vector<512x1xi1>
    %28 = arith.xori %24, %27 : vector<512x1xi1>
    %29 = arith.andi %28, %22 : vector<512x1xi1>
    %30 = vector.broadcast %18 : i32 to vector<512x1xi32>
    %31 = arith.addi %20, %30 : vector<512x1xi32>
    %32 = arith.select %29, %31, %20 : vector<512x1xi1>, vector<512x1xi32>
    %c0 = arith.constant 0 : index
    %c0_8 = arith.constant 0 : index
    %33 = vector.load %arg3[%c0, %c0_8] : memref<8x128xf32, #tpu.memory_space<vmem>>, vector<1x128xf32>
    %c1 = arith.constant 1 : index
    %c0_9 = arith.constant 0 : index
    %34 = vector.load %arg3[%c1, %c0_9] : memref<8x128xf32, #tpu.memory_space<vmem>>, vector<1x128xf32>
    %c2 = arith.constant 2 : index
    %c0_10 = arith.constant 0 : index
    %35 = vector.load %arg3[%c2, %c0_10] : memref<8x128xf32, #tpu.memory_space<vmem>>, vector<1x128xf32>
    %c3 = arith.constant 3 : index
    %c0_11 = arith.constant 0 : index
    %36 = vector.load %arg3[%c3, %c0_11] : memref<8x128xf32, #tpu.memory_space<vmem>>, vector<1x128xf32>
    %c4 = arith.constant 4 : index
    %c0_12 = arith.constant 0 : index
    %37 = vector.load %arg3[%c4, %c0_12] : memref<8x128xf32, #tpu.memory_space<vmem>>, vector<1x128xf32>
    %c5 = arith.constant 5 : index
    %c0_13 = arith.constant 0 : index
    %38 = vector.load %arg3[%c5, %c0_13] : memref<8x128xf32, #tpu.memory_space<vmem>>, vector<1x128xf32>
    %c0_14 = arith.constant 0 : index
    %c0_15 = arith.constant 0 : index
    %39 = vector.load %arg1[%c0_14, %c0_15] : memref<512x128xbf16, #tpu.memory_space<vmem>>, vector<512x128xbf16>
    %40 = arith.extf %39 : vector<512x128xbf16> to vector<512x128xf32>
    %c16_i32_16 = arith.constant 16 : i32
    %41 = tpu.dynamic_rotate %40 by %c16_i32_16 dim 0 : vector<512x128xf32>, i32 -> vector<512x128xf32>
    %c16_i32_17 = arith.constant 16 : i32
    %42 = vector.broadcast %c16_i32_17 : i32 to vector<512x1xi32>
    %43 = arith.cmpi sge, %16, %42 : vector<512x1xi32>
    %44 = arith.extui %43 : vector<512x1xi1> to vector<512x1xi32>
    %45 = arith.sitofp %44 : vector<512x1xi32> to vector<512x1xf32>
    %46 = vector.broadcast %45 : vector<512x1xf32> to vector<512x128xf32>
    %47 = arith.mulf %41, %46 : vector<512x128xf32>
    %48 = arith.truncf %47 : vector<512x128xf32> to vector<512x128xbf16>
    %c0_18 = arith.constant 0 : index
    %c0_19 = arith.constant 0 : index
    %c0_20 = arith.constant 0 : index
    %c0_21 = arith.constant 0 : index
    %49 = vector.load %arg2[%c0_18, %c0_19, %c0_20, %c0_21] : memref<4x3x128x128xbf16, #tpu.memory_space<vmem>>, vector<1x1x128x128xbf16>
    %50 = vector.shape_cast %49 : vector<1x1x128x128xbf16> to vector<128x128xbf16>
    %cst = arith.constant dense<0.000000e+00> : vector<512x128xf32>
    %51 = tpu.matmul %48, %50, %cst {dimension_numbers = #tpu.dot_dimension_numbers<[1], [0], [0], [1], [0, 0, 1, 1], [], []>} : vector<512x128xbf16>, vector<128x128xbf16>, vector<512x128xf32> -> vector<512x128xf32>
    %52 = arith.truncf %40 : vector<512x128xf32> to vector<512x128xbf16>
    %c0_22 = arith.constant 0 : index
    %c1_23 = arith.constant 1 : index
    %c0_24 = arith.constant 0 : index
    %c0_25 = arith.constant 0 : index
    %53 = vector.load %arg2[%c0_22, %c1_23, %c0_24, %c0_25] : memref<4x3x128x128xbf16, #tpu.memory_space<vmem>>, vector<1x1x128x128xbf16>
    %54 = vector.shape_cast %53 : vector<1x1x128x128xbf16> to vector<128x128xbf16>
    %cst_26 = arith.constant dense<0.000000e+00> : vector<512x128xf32>
    %55 = tpu.matmul %52, %54, %cst_26 {dimension_numbers = #tpu.dot_dimension_numbers<[1], [0], [0], [1], [0, 0, 1, 1], [], []>} : vector<512x128xbf16>, vector<128x128xbf16>, vector<512x128xf32> -> vector<512x128xf32>
    %56 = arith.addf %51, %55 : vector<512x128xf32>
    %c496_i32 = arith.constant 496 : i32
    %57 = tpu.dynamic_rotate %40 by %c496_i32 dim 0 : vector<512x128xf32>, i32 -> vector<512x128xf32>
    %c240_i32 = arith.constant 240 : i32
    %58 = vector.broadcast %c240_i32 : i32 to vector<512x1xi32>
    %59 = arith.cmpi slt, %16, %58 : vector<512x1xi32>
    %60 = arith.extui %59 : vector<512x1xi1> to vector<512x1xi32>
    %61 = arith.sitofp %60 : vector<512x1xi32> to vector<512x1xf32>
    %62 = vector.broadcast %61 : vector<512x1xf32> to vector<512x128xf32>
    %63 = arith.mulf %57, %62 : vector<512x128xf32>
    %64 = arith.truncf %63 : vector<512x128xf32> to vector<512x128xbf16>
    %c0_27 = arith.constant 0 : index
    %c2_28 = arith.constant 2 : index
    %c0_29 = arith.constant 0 : index
    %c0_30 = arith.constant 0 : index
    %65 = vector.load %arg2[%c0_27, %c2_28, %c0_29, %c0_30] : memref<4x3x128x128xbf16, #tpu.memory_space<vmem>>, vector<1x1x128x128xbf16>
    %66 = vector.shape_cast %65 : vector<1x1x128x128xbf16> to vector<128x128xbf16>
    %cst_31 = arith.constant dense<0.000000e+00> : vector<512x128xf32>
    %67 = tpu.matmul %64, %66, %cst_31 {dimension_numbers = #tpu.dot_dimension_numbers<[1], [0], [0], [1], [0, 0, 1, 1], [], []>} : vector<512x128xbf16>, vector<128x128xbf16>, vector<512x128xf32> -> vector<512x128xf32>
    %68 = arith.addf %56, %67 : vector<512x128xf32>
    %69 = vector.broadcast %33 : vector<1x128xf32> to vector<512x128xf32>
    %70 = arith.addf %68, %69 : vector<512x128xf32>
    %cst_32 = arith.constant 0.000000e+00 : f32
    %71 = vector.broadcast %cst_32 : f32 to vector<512x128xf32>
    %72 = arith.maximumf %70, %71 : vector<512x128xf32>
    %c1_i32_33 = arith.constant 1 : i32
    %73 = tpu.dynamic_rotate %72 by %c1_i32_33 dim 0 : vector<512x128xf32>, i32 -> vector<512x128xf32>
    %c1_i32_34 = arith.constant 1 : i32
    %74 = vector.broadcast %c1_i32_34 : i32 to vector<512x1xi32>
    %75 = arith.cmpi sge, %32, %74 : vector<512x1xi32>
    %76 = arith.extui %75 : vector<512x1xi1> to vector<512x1xi32>
    %77 = arith.sitofp %76 : vector<512x1xi32> to vector<512x1xf32>
    %78 = vector.broadcast %77 : vector<512x1xf32> to vector<512x128xf32>
    %79 = arith.mulf %73, %78 : vector<512x128xf32>
    %80 = arith.truncf %79 : vector<512x128xf32> to vector<512x128xbf16>
    %c1_35 = arith.constant 1 : index
    %c0_36 = arith.constant 0 : index
    %c0_37 = arith.constant 0 : index
    %c0_38 = arith.constant 0 : index
    %81 = vector.load %arg2[%c1_35, %c0_36, %c0_37, %c0_38] : memref<4x3x128x128xbf16, #tpu.memory_space<vmem>>, vector<1x1x128x128xbf16>
    %82 = vector.shape_cast %81 : vector<1x1x128x128xbf16> to vector<128x128xbf16>
    %cst_39 = arith.constant dense<0.000000e+00> : vector<512x128xf32>
    %83 = tpu.matmul %80, %82, %cst_39 {dimension_numbers = #tpu.dot_dimension_numbers<[1], [0], [0], [1], [0, 0, 1, 1], [], []>} : vector<512x128xbf16>, vector<128x128xbf16>, vector<512x128xf32> -> vector<512x128xf32>
    %84 = arith.truncf %72 : vector<512x128xf32> to vector<512x128xbf16>
    %c1_40 = arith.constant 1 : index
    %c1_41 = arith.constant 1 : index
    %c0_42 = arith.constant 0 : index
    %c0_43 = arith.constant 0 : index
    %85 = vector.load %arg2[%c1_40, %c1_41, %c0_42, %c0_43] : memref<4x3x128x128xbf16, #tpu.memory_space<vmem>>, vector<1x1x128x128xbf16>
    %86 = vector.shape_cast %85 : vector<1x1x128x128xbf16> to vector<128x128xbf16>
    %cst_44 = arith.constant dense<0.000000e+00> : vector<512x128xf32>
    %87 = tpu.matmul %84, %86, %cst_44 {dimension_numbers = #tpu.dot_dimension_numbers<[1], [0], [0], [1], [0, 0, 1, 1], [], []>} : vector<512x128xbf16>, vector<128x128xbf16>, vector<512x128xf32> -> vector<512x128xf32>
    %88 = arith.addf %83, %87 : vector<512x128xf32>
    %c511_i32 = arith.constant 511 : i32
    %89 = tpu.dynamic_rotate %72 by %c511_i32 dim 0 : vector<512x128xf32>, i32 -> vector<512x128xf32>
    %c15_i32 = arith.constant 15 : i32
    %90 = vector.broadcast %c15_i32 : i32 to vector<512x1xi32>
    %91 = arith.cmpi slt, %32, %90 : vector<512x1xi32>
    %92 = arith.extui %91 : vector<512x1xi1> to vector<512x1xi32>
    %93 = arith.sitofp %92 : vector<512x1xi32> to vector<512x1xf32>
    %94 = vector.broadcast %93 : vector<512x1xf32> to vector<512x128xf32>
    %95 = arith.mulf %89, %94 : vector<512x128xf32>
    %96 = arith.truncf %95 : vector<512x128xf32> to vector<512x128xbf16>
    %c1_45 = arith.constant 1 : index
    %c2_46 = arith.constant 2 : index
    %c0_47 = arith.constant 0 : index
    %c0_48 = arith.constant 0 : index
    %97 = vector.load %arg2[%c1_45, %c2_46, %c0_47, %c0_48] : memref<4x3x128x128xbf16, #tpu.memory_space<vmem>>, vector<1x1x128x128xbf16>
    %98 = vector.shape_cast %97 : vector<1x1x128x128xbf16> to vector<128x128xbf16>
    %cst_49 = arith.constant dense<0.000000e+00> : vector<512x128xf32>
    %99 = tpu.matmul %96, %98, %cst_49 {dimension_numbers = #tpu.dot_dimension_numbers<[1], [0], [0], [1], [0, 0, 1, 1], [], []>} : vector<512x128xbf16>, vector<128x128xbf16>, vector<512x128xf32> -> vector<512x128xf32>
    %100 = arith.addf %88, %99 : vector<512x128xf32>
    %101 = vector.broadcast %35 : vector<1x128xf32> to vector<512x128xf32>
    %102 = arith.mulf %100, %101 : vector<512x128xf32>
    %103 = vector.broadcast %36 : vector<1x128xf32> to vector<512x128xf32>
    %104 = arith.addf %102, %103 : vector<512x128xf32>
    %cst_50 = arith.constant 0.000000e+00 : f32
    %105 = vector.broadcast %cst_50 : f32 to vector<512x128xf32>
    %106 = arith.maximumf %104, %105 : vector<512x128xf32>
    %c32_i32 = arith.constant 32 : i32
    %107 = tpu.dynamic_rotate %106 by %c32_i32 dim 0 : vector<512x128xf32>, i32 -> vector<512x128xf32>
    %c32_i32_51 = arith.constant 32 : i32
    %108 = vector.broadcast %c32_i32_51 : i32 to vector<512x1xi32>
    %109 = arith.cmpi sge, %16, %108 : vector<512x1xi32>
    %110 = arith.extui %109 : vector<512x1xi1> to vector<512x1xi32>
    %111 = arith.sitofp %110 : vector<512x1xi32> to vector<512x1xf32>
    %112 = vector.broadcast %111 : vector<512x1xf32> to vector<512x128xf32>
    %113 = arith.mulf %107, %112 : vector<512x128xf32>
    %114 = arith.truncf %113 : vector<512x128xf32> to vector<512x128xbf16>
    %c2_52 = arith.constant 2 : index
    %c0_53 = arith.constant 0 : index
    %c0_54 = arith.constant 0 : index
    %c0_55 = arith.constant 0 : index
    %115 = vector.load %arg2[%c2_52, %c0_53, %c0_54, %c0_55] : memref<4x3x128x128xbf16, #tpu.memory_space<vmem>>, vector<1x1x128x128xbf16>
    %116 = vector.shape_cast %115 : vector<1x1x128x128xbf16> to vector<128x128xbf16>
    %cst_56 = arith.constant dense<0.000000e+00> : vector<512x128xf32>
    %117 = tpu.matmul %114, %116, %cst_56 {dimension_numbers = #tpu.dot_dimension_numbers<[1], [0], [0], [1], [0, 0, 1, 1], [], []>} : vector<512x128xbf16>, vector<128x128xbf16>, vector<512x128xf32> -> vector<512x128xf32>
    %118 = arith.truncf %106 : vector<512x128xf32> to vector<512x128xbf16>
    %c2_57 = arith.constant 2 : index
    %c1_58 = arith.constant 1 : index
    %c0_59 = arith.constant 0 : index
    %c0_60 = arith.constant 0 : index
    %119 = vector.load %arg2[%c2_57, %c1_58, %c0_59, %c0_60] : memref<4x3x128x128xbf16, #tpu.memory_space<vmem>>, vector<1x1x128x128xbf16>
    %120 = vector.shape_cast %119 : vector<1x1x128x128xbf16> to vector<128x128xbf16>
    %cst_61 = arith.constant dense<0.000000e+00> : vector<512x128xf32>
    %121 = tpu.matmul %118, %120, %cst_61 {dimension_numbers = #tpu.dot_dimension_numbers<[1], [0], [0], [1], [0, 0, 1, 1], [], []>} : vector<512x128xbf16>, vector<128x128xbf16>, vector<512x128xf32> -> vector<512x128xf32>
    %122 = arith.addf %117, %121 : vector<512x128xf32>
    %c480_i32 = arith.constant 480 : i32
    %123 = tpu.dynamic_rotate %106 by %c480_i32 dim 0 : vector<512x128xf32>, i32 -> vector<512x128xf32>
    %c224_i32 = arith.constant 224 : i32
    %124 = vector.broadcast %c224_i32 : i32 to vector<512x1xi32>
    %125 = arith.cmpi slt, %16, %124 : vector<512x1xi32>
    %126 = arith.extui %125 : vector<512x1xi1> to vector<512x1xi32>
    %127 = arith.sitofp %126 : vector<512x1xi32> to vector<512x1xf32>
    %128 = vector.broadcast %127 : vector<512x1xf32> to vector<512x128xf32>
    %129 = arith.mulf %123, %128 : vector<512x128xf32>
    %130 = arith.truncf %129 : vector<512x128xf32> to vector<512x128xbf16>
    %c2_62 = arith.constant 2 : index
    %c2_63 = arith.constant 2 : index
    %c0_64 = arith.constant 0 : index
    %c0_65 = arith.constant 0 : index
    %131 = vector.load %arg2[%c2_62, %c2_63, %c0_64, %c0_65] : memref<4x3x128x128xbf16, #tpu.memory_space<vmem>>, vector<1x1x128x128xbf16>
    %132 = vector.shape_cast %131 : vector<1x1x128x128xbf16> to vector<128x128xbf16>
    %cst_66 = arith.constant dense<0.000000e+00> : vector<512x128xf32>
    %133 = tpu.matmul %130, %132, %cst_66 {dimension_numbers = #tpu.dot_dimension_numbers<[1], [0], [0], [1], [0, 0, 1, 1], [], []>} : vector<512x128xbf16>, vector<128x128xbf16>, vector<512x128xf32> -> vector<512x128xf32>
    %134 = arith.addf %122, %133 : vector<512x128xf32>
    %135 = vector.broadcast %34 : vector<1x128xf32> to vector<512x128xf32>
    %136 = arith.addf %134, %135 : vector<512x128xf32>
    %cst_67 = arith.constant 0.000000e+00 : f32
    %137 = vector.broadcast %cst_67 : f32 to vector<512x128xf32>
    %138 = arith.maximumf %136, %137 : vector<512x128xf32>
    %c2_i32 = arith.constant 2 : i32
    %139 = tpu.dynamic_rotate %138 by %c2_i32 dim 0 : vector<512x128xf32>, i32 -> vector<512x128xf32>
    %c2_i32_68 = arith.constant 2 : i32
    %140 = vector.broadcast %c2_i32_68 : i32 to vector<512x1xi32>
    %141 = arith.cmpi sge, %32, %140 : vector<512x1xi32>
    %142 = arith.extui %141 : vector<512x1xi1> to vector<512x1xi32>
    %143 = arith.sitofp %142 : vector<512x1xi32> to vector<512x1xf32>
    %144 = vector.broadcast %143 : vector<512x1xf32> to vector<512x128xf32>
    %145 = arith.mulf %139, %144 : vector<512x128xf32>
    %146 = arith.truncf %145 : vector<512x128xf32> to vector<512x128xbf16>
    %c3_69 = arith.constant 3 : index
    %c0_70 = arith.constant 0 : index
    %c0_71 = arith.constant 0 : index
    %c0_72 = arith.constant 0 : index
    %147 = vector.load %arg2[%c3_69, %c0_70, %c0_71, %c0_72] : memref<4x3x128x128xbf16, #tpu.memory_space<vmem>>, vector<1x1x128x128xbf16>
    %148 = vector.shape_cast %147 : vector<1x1x128x128xbf16> to vector<128x128xbf16>
    %cst_73 = arith.constant dense<0.000000e+00> : vector<512x128xf32>
    %149 = tpu.matmul %146, %148, %cst_73 {dimension_numbers = #tpu.dot_dimension_numbers<[1], [0], [0], [1], [0, 0, 1, 1], [], []>} : vector<512x128xbf16>, vector<128x128xbf16>, vector<512x128xf32> -> vector<512x128xf32>
    %150 = arith.truncf %138 : vector<512x128xf32> to vector<512x128xbf16>
    %c3_74 = arith.constant 3 : index
    %c1_75 = arith.constant 1 : index
    %c0_76 = arith.constant 0 : index
    %c0_77 = arith.constant 0 : index
    %151 = vector.load %arg2[%c3_74, %c1_75, %c0_76, %c0_77] : memref<4x3x128x128xbf16, #tpu.memory_space<vmem>>, vector<1x1x128x128xbf16>
    %152 = vector.shape_cast %151 : vector<1x1x128x128xbf16> to vector<128x128xbf16>
    %cst_78 = arith.constant dense<0.000000e+00> : vector<512x128xf32>
    %153 = tpu.matmul %150, %152, %cst_78 {dimension_numbers = #tpu.dot_dimension_numbers<[1], [0], [0], [1], [0, 0, 1, 1], [], []>} : vector<512x128xbf16>, vector<128x128xbf16>, vector<512x128xf32> -> vector<512x128xf32>
    %154 = arith.addf %149, %153 : vector<512x128xf32>
    %c510_i32 = arith.constant 510 : i32
    %155 = tpu.dynamic_rotate %138 by %c510_i32 dim 0 : vector<512x128xf32>, i32 -> vector<512x128xf32>
    %c14_i32 = arith.constant 14 : i32
    %156 = vector.broadcast %c14_i32 : i32 to vector<512x1xi32>
    %157 = arith.cmpi slt, %32, %156 : vector<512x1xi32>
    %158 = arith.extui %157 : vector<512x1xi1> to vector<512x1xi32>
    %159 = arith.sitofp %158 : vector<512x1xi32> to vector<512x1xf32>
    %160 = vector.broadcast %159 : vector<512x1xf32> to vector<512x128xf32>
    %161 = arith.mulf %155, %160 : vector<512x128xf32>
    %162 = arith.truncf %161 : vector<512x128xf32> to vector<512x128xbf16>
    %c3_79 = arith.constant 3 : index
    %c2_80 = arith.constant 2 : index
    %c0_81 = arith.constant 0 : index
    %c0_82 = arith.constant 0 : index
    %163 = vector.load %arg2[%c3_79, %c2_80, %c0_81, %c0_82] : memref<4x3x128x128xbf16, #tpu.memory_space<vmem>>, vector<1x1x128x128xbf16>
    %164 = vector.shape_cast %163 : vector<1x1x128x128xbf16> to vector<128x128xbf16>
    %cst_83 = arith.constant dense<0.000000e+00> : vector<512x128xf32>
    %165 = tpu.matmul %162, %164, %cst_83 {dimension_numbers = #tpu.dot_dimension_numbers<[1], [0], [0], [1], [0, 0, 1, 1], [], []>} : vector<512x128xbf16>, vector<128x128xbf16>, vector<512x128xf32> -> vector<512x128xf32>
    %166 = arith.addf %154, %165 : vector<512x128xf32>
    %167 = vector.broadcast %37 : vector<1x128xf32> to vector<512x128xf32>
    %168 = arith.mulf %166, %167 : vector<512x128xf32>
    %169 = vector.broadcast %38 : vector<1x128xf32> to vector<512x128xf32>
    %170 = arith.addf %168, %169 : vector<512x128xf32>
    %c0_84 = arith.constant 0 : index
    %c0_85 = arith.constant 0 : index
    %171 = vector.load %arg1[%c0_84, %c0_85] : memref<512x128xbf16, #tpu.memory_space<vmem>>, vector<512x128xbf16>
    %172 = arith.extf %171 : vector<512x128xbf16> to vector<512x128xf32>
    %173 = arith.addf %170, %172 : vector<512x128xf32>
    %cst_86 = arith.constant 0.000000e+00 : f32
    %174 = vector.broadcast %cst_86 : f32 to vector<512x128xf32>
    %175 = arith.maximumf %173, %174 : vector<512x128xf32>
    %176 = arith.truncf %175 : vector<512x128xf32> to vector<512x128xbf16>
    %c0_87 = arith.constant 0 : index
    %c0_88 = arith.constant 0 : index
    %177 = vector.load %arg4[%c0_87, %c0_88] : memref<512x128xbf16, #tpu.memory_space<vmem>>, vector<512x128xbf16>
    tpu.vector_store %arg4[%c0_87, %c0_88], %176 {strides = array<i32>} : memref<512x128xbf16, #tpu.memory_space<vmem>>, vector<512x128xbf16>,
    return
  }
  func.func @transform_0(%arg0: i32) -> (i32, i32) {
    %c0_i32 = arith.constant 0 : i32
    %c0_i32_0 = arith.constant 0 : i32
    return %arg0, %c0_i32 : i32, i32
  }
  func.func @transform_1(%arg0: i32) -> (i32, i32, i32, i32) {
    %c0_i32 = arith.constant 0 : i32
    %c0_i32_0 = arith.constant 0 : i32
    %c0_i32_1 = arith.constant 0 : i32
    %c0_i32_2 = arith.constant 0 : i32
    %c0_i32_3 = arith.constant 0 : i32
    return %c0_i32, %c0_i32_0, %c0_i32_1, %c0_i32_2 : i32, i32, i32, i32
  }
  func.func @transform_2(%arg0: i32) -> (i32, i32) {
    %c0_i32 = arith.constant 0 : i32
    %c0_i32_0 = arith.constant 0 : i32
    %c0_i32_1 = arith.constant 0 : i32
    return %c0_i32, %c0_i32_0 : i32, i32
  }
  func.func @transform_3(%arg0: i32) -> (i32, i32) {
    %c0_i32 = arith.constant 0 : i32
    %c0_i32_0 = arith.constant 0 : i32
    return %arg0, %c0_i32 : i32, i32
  }
}

</mosaic_0001>

<llo_original>
// kernel: tpu_custom_call.1
$region0: #{tpu_custom_call.1}
  #allocation0 [shape = 'u32[]', space=smem, size = 0x4, offset = 0x4, fixed_abs, tag = 'smem constant byte address 0x4 - core index']
  #allocation1 [shape = 'u32[144,128]{1,0:T(1,128)}', space=vmem, size = 0x12000, scoped, tag = 'internal scratch']
  %s0 = inlined_call_operand.hbm [shape: bf16[512,128], index: 0, kind: input, shape index: {}, may-alias: {0,3}]
  %s1 = inlined_call_operand.hbm [shape: bf16[4,3,128,128], index: 1, kind: input, shape index: {}]
  %s2 = inlined_call_operand.vmem [shape: f32[8,128], index: 2, kind: input, shape index: {}]
  %s3 = inlined_call_operand.hbm [shape: bf16[512,128], index: 3, kind: output, shape index: {}, may-alias: {0,3}]
  %s4 = sld [smem:[#allocation0]]
  $region30: #{tpu_custom_call.1} parent=0
    _
  %s6 = ssub.s32 1, %s4
  %s7 = scalar_select 0, %s6, %s4
  $region1: #{tpu_custom_call.1} parent=0
    #allocation2 [shape = 'u8[131072]{0}', space=vmem, size = 0x20000, scoped, tag = 'input window, operand 0, single buffered']
    #allocation3 [shape = 's32[1]{0}', space=sflag, size = 0x4, scoped, tag = 'scoped memory for tpu_custom_call.1']
    #allocation4 [shape = 's32[1]{0}', space=sflag, size = 0x4, scoped, tag = 'scoped memory for tpu_custom_call.1']
    #allocation5 [shape = 'u8[393216]{0}', space=vmem, size = 0x60000, scoped, tag = 'input window, operand 1, single buffered']
    #allocation6 [shape = 's32[1]{0}', space=sflag, size = 0x4, scoped, tag = 'scoped memory for tpu_custom_call.1']
    #allocation7 [shape = 'u8[131072]{0}', space=vmem, size = 0x20000, scoped, tag = 'output window, operand 0, single buffered']
    %8 = vsyncpa [#allocation3], 0
    %9 = vsyncpa [#allocation6], 0
    %10 = vsyncpa [#allocation4], 0
    // Predicated region
    $region2: #{tpu_custom_call.1} parent=1 // pred_check
      _
    $region3: #{tpu_custom_call.1} parent=1 // pred_check_branch
      %12 = sbr.rel (0) target = $region5
    $region4: #{tpu_custom_call.1} parent=1 // pred_region
      %s14 = ssub.s32 4096, 4096
      %15 = vsyncadd [#allocation3], %s14
      %s16 = sshll.u32 [#allocation2], 4
      %s17 = int_to_ptr.vmem [resolvable:$true] %s16
      %22 = dma.hbm_to_vmem [thread:$0]  %s0, 4096, %s17, [#allocation3], 64, 64, 4
    $region5: #{tpu_custom_call.1} parent=1 // pred_fallthru
      _
    // Predicated region
    $region6: #{tpu_custom_call.1} parent=1 // pred_check
      _
    $region7: #{tpu_custom_call.1} parent=1 // pred_check_branch
      %24 = sbr.rel (0) target = $region9
    $region8: #{tpu_custom_call.1} parent=1 // pred_region
      %s26 = ssub.s32 12288, 12288
      %27 = vsyncadd [#allocation6], %s26
      %s28 = sshll.u32 [#allocation5], 4
      %s29 = int_to_ptr.vmem [resolvable:$true] %s28
      %34 = dma.hbm_to_vmem [thread:$0]  %s1, 12288, %s29, [#allocation6], 64, 64, 4
    $region9: #{tpu_custom_call.1} parent=1 // pred_fallthru
      _
    // Predicated region
    $region10: #{tpu_custom_call.1} parent=1 // pred_check
      _
    $region11: #{tpu_custom_call.1} parent=1 // pred_check_branch
      %36 = sbr.rel (0) target = $region13
    $region12: #{tpu_custom_call.1} parent=1 // pred_region
      _
    $region13: #{tpu_custom_call.1} parent=1 // pred_fallthru
      _
    // Predicated region
    $region14: #{tpu_custom_call.1} parent=1 // pred_check
      _
    $region15: #{tpu_custom_call.1} parent=1 // pred_check_branch
      %38 = sbr.rel (0) target = $region17
    $region16: #{tpu_custom_call.1} parent=1 // pred_region
      %39 = dma.done [#allocation3], 4096
    $region17: #{tpu_custom_call.1} parent=1 // pred_fallthru
      _
    // Predicated region
    $region18: #{tpu_custom_call.1} parent=1 // pred_check
      _
    $region19: #{tpu_custom_call.1} parent=1 // pred_check_branch
      %41 = sbr.rel (0) target = $region21
    $region20: #{tpu_custom_call.1} parent=1 // pred_region
      %42 = dma.done [#allocation6], 12288
    $region21: #{tpu_custom_call.1} parent=1 // pred_fallthru
      _
    %v44 = vlaneseq
    %v45 = vshrl.u32 %v44, 7
    %v46 = vadd.s32 %v45, 8
    %v47 = vadd.s32 %v45, 16
    %v48 = vadd.s32 %v45, 24
    %v49 = vadd.s32 %v45, 32
    %v50 = vadd.s32 %v45, 40
    %v51 = vadd.s32 %v45, 48
    %v52 = vadd.s32 %v45, 56
    %v53 = vadd.s32 %v45, 64
    %v54 = vadd.s32 %v45, 72
    %v55 = vadd.s32 %v45, 80
    %v56 = vadd.s32 %v45, 88
    %v57 = vadd.s32 %v45, 96
    %v58 = vadd.s32 %v45, 104
    %v59 = vadd.s32 %v45, 112
    %v60 = vadd.s32 %v45, 120
    %v61 = vadd.s32 %v45, 128
    %v62 = vadd.s32 %v45, 136
    %v63 = vadd.s32 %v45, 144
    %v64 = vadd.s32 %v45, 152
    %v65 = vadd.s32 %v45, 160
    %v66 = vadd.s32 %v45, 168
    %v67 = vadd.s32 %v45, 176
    %v68 = vadd.s32 %v45, 184
    %v69 = vadd.s32 %v45, 192
    %v70 = vadd.s32 %v45, 200
    %v71 = vadd.s32 %v45, 208
    %v72 = vadd.s32 %v45, 216
    %v73 = vadd.s32 %v45, 224
    %v74 = vadd.s32 %v45, 232
    %v75 = vadd.s32 %v45, 240
    %v76 = vadd.s32 %v45, 248
    %v77 = vadd.s32 %v45, 256
    %v78 = vadd.s32 %v45, 264
    %v79 = vadd.s32 %v45, 272
    %v80 = vadd.s32 %v45, 280
    %v81 = vadd.s32 %v45, 288
    %v82 = vadd.s32 %v45, 296
    %v83 = vadd.s32 %v45, 304
    %v84 = vadd.s32 %v45, 312
    %v85 = vadd.s32 %v45, 320
    %v86 = vadd.s32 %v45, 328
    %v87 = vadd.s32 %v45, 336
    %v88 = vadd.s32 %v45, 344
    %v89 = vadd.s32 %v45, 352
    %v90 = vadd.s32 %v45, 360
    %v91 = vadd.s32 %v45, 368
    %v92 = vadd.s32 %v45, 376
    %v93 = vadd.s32 %v45, 384
    %v94 = vadd.s32 %v45, 392
    %v95 = vadd.s32 %v45, 400
    %v96 = vadd.s32 %v45, 408
    %v97 = vadd.s32 %v45, 416
    %v98 = vadd.s32 %v45, 424
    %v99 = vadd.s32 %v45, 432
    %v100 = vadd.s32 %v45, 440
    %v101 = vadd.s32 %v45, 448
    %v102 = vadd.s32 %v45, 456
    %v103 = vadd.s32 %v45, 464
    %v104 = vadd.s32 %v45, 472
    %v105 = vadd.s32 %v45, 480
    %v106 = vadd.s32 %v45, 488
    %v107 = vadd.s32 %v45, 496
    %v108 = vadd.s32 %v45, 504
    %vm109 = vcmp.lt.s32.totalorder %v45, 0
    %v110 = vsub.s32 0, %v45
    %v111 = vsel %vm109, %v110, %v45
    %v112 = vshrl.u32 %v111, 8
    %v113 = vand.u32 %v111, 255
    %v114 = vsub.s32 0, %v113
    %v115 = vsel %vm109, %v114, %v113
    %vm116 = vcmp.lt.s32.totalorder %v46, 0
    %v117 = vsub.s32 0, %v46
    %v118 = vsel %vm116, %v117, %v46
    %v119 = vshrl.u32 %v118, 8
    %v120 = vand.u32 %v118, 255
    %v121 = vsub.s32 0, %v120
    %v122 = vsel %vm116, %v121, %v120
    %vm123 = vcmp.lt.s32.totalorder %v47, 0
    %v124 = vsub.s32 0, %v47
    %v125 = vsel %vm123, %v124, %v47
    %v126 = vshrl.u32 %v125, 8
    %v127 = vand.u32 %v125, 255
    %v128 = vsub.s32 0, %v127
    %v129 = vsel %vm123, %v128, %v127
    %vm130 = vcmp.lt.s32.totalorder %v48, 0
    %v131 = vsub.s32 0, %v48
    %v132 = vsel %vm130, %v131, %v48
    %v133 = vshrl.u32 %v132, 8
    %v134 = vand.u32 %v132, 255
    %v135 = vsub.s32 0, %v134
    %v136 = vsel %vm130, %v135, %v134
    %vm137 = vcmp.lt.s32.totalorder %v49, 0
    %v138 = vsub.s32 0, %v49
    %v139 = vsel %vm137, %v138, %v49
    %v140 = vshrl.u32 %v139, 8
    %v141 = vand.u32 %v139, 255
    %v142 = vsub.s32 0, %v141
    %v143 = vsel %vm137, %v142, %v141
    %vm144 = vcmp.lt.s32.totalorder %v50, 0
    %v145 = vsub.s32 0, %v50
    %v146 = vsel %vm144, %v145, %v50
    %v147 = vshrl.u32 %v146, 8
    %v148 = vand.u32 %v146, 255
    %v149 = vsub.s32 0, %v148
    %v150 = vsel %vm144, %v149, %v148
    %vm151 = vcmp.lt.s32.totalorder %v51, 0
    %v152 = vsub.s32 0, %v51
    %v153 = vsel %vm151, %v152, %v51
    %v154 = vshrl.u32 %v153, 8
    %v155 = vand.u32 %v153, 255
    %v156 = vsub.s32 0, %v155
    %v157 = vsel %vm151, %v156, %v155
    %vm158 = vcmp.lt.s32.totalorder %v52, 0
    %v159 = vsub.s32 0, %v52
    %v160 = vsel %vm158, %v159, %v52
    %v161 = vshrl.u32 %v160, 8
    %v162 = vand.u32 %v160, 255
    %v163 = vsub.s32 0, %v162
    %v164 = vsel %vm158, %v163, %v162
    %vm165 = vcmp.lt.s32.totalorder %v53, 0
    %v166 = vsub.s32 0, %v53
    %v167 = vsel %vm165, %v166, %v53
    %v168 = vshrl.u32 %v167, 8
    %v169 = vand.u32 %v167, 255
    %v170 = vsub.s32 0, %v169
    %v171 = vsel %vm165, %v170, %v169
    %vm172 = vcmp.lt.s32.totalorder %v54, 0
    %v173 = vsub.s32 0, %v54
    %v174 = vsel %vm172, %v173, %v54
    %v175 = vshrl.u32 %v174, 8
    %v176 = vand.u32 %v174, 255
    %v177 = vsub.s32 0, %v176
    %v178 = vsel %vm172, %v177, %v176
    %vm179 = vcmp.lt.s32.totalorder %v55, 0
    %v180 = vsub.s32 0, %v55
    %v181 = vsel %vm179, %v180, %v55
    %v182 = vshrl.u32 %v181, 8
    %v183 = vand.u32 %v181, 255
    %v184 = vsub.s32 0, %v183
    %v185 = vsel %vm179, %v184, %v183
    %vm186 = vcmp.lt.s32.totalorder %v56, 0
    %v187 = vsub.s32 0, %v56
    %v188 = vsel %vm186, %v187, %v56
    %v189 = vshrl.u32 %v188, 8
    %v190 = vand.u32 %v188, 255
    %v191 = vsub.s32 0, %v190
    %v192 = vsel %vm186, %v191, %v190
    %vm193 = vcmp.lt.s32.totalorder %v57, 0
    %v194 = vsub.s32 0, %v57
    %v195 = vsel %vm193, %v194, %v57
    %v196 = vshrl.u32 %v195, 8
    %v197 = vand.u32 %v195, 255
    %v198 = vsub.s32 0, %v197
    %v199 = vsel %vm193, %v198, %v197
    %vm200 = vcmp.lt.s32.totalorder %v58, 0
    %v201 = vsub.s32 0, %v58
    %v202 = vsel %vm200, %v201, %v58
    %v203 = vshrl.u32 %v202, 8
    %v204 = vand.u32 %v202, 255
    %v205 = vsub.s32 0, %v204
    %v206 = vsel %vm200, %v205, %v204
    %vm207 = vcmp.lt.s32.totalorder %v59, 0
    %v208 = vsub.s32 0, %v59
    %v209 = vsel %vm207, %v208, %v59
    %v210 = vshrl.u32 %v209, 8
    %v211 = vand.u32 %v209, 255
    %v212 = vsub.s32 0, %v211
    %v213 = vsel %vm207, %v212, %v211
    %vm214 = vcmp.lt.s32.totalorder %v60, 0
    %v215 = vsub.s32 0, %v60
    %v216 = vsel %vm214, %v215, %v60
    %v217 = vshrl.u32 %v216, 8
    %v218 = vand.u32 %v216, 255
    %v219 = vsub.s32 0, %v218
    %v220 = vsel %vm214, %v219, %v218
    %vm221 = vcmp.lt.s32.totalorder %v61, 0
    %v222 = vsub.s32 0, %v61
    %v223 = vsel %vm221, %v222, %v61
    %v224 = vshrl.u32 %v223, 8
    %v225 = vand.u32 %v223, 255
    %v226 = vsub.s32 0, %v225
    %v227 = vsel %vm221, %v226, %v225
    %vm228 = vcmp.lt.s32.totalorder %v62, 0
    %v229 = vsub.s32 0, %v62
    %v230 = vsel %vm228, %v229, %v62
    %v231 = vshrl.u32 %v230, 8
    %v232 = vand.u32 %v230, 255
    %v233 = vsub.s32 0, %v232
    %v234 = vsel %vm228, %v233, %v232
    %vm235 = vcmp.lt.s32.totalorder %v63, 0
    %v236 = vsub.s32 0, %v63
    %v237 = vsel %vm235, %v236, %v63
    %v238 = vshrl.u32 %v237, 8
    %v239 = vand.u32 %v237, 255
    %v240 = vsub.s32 0, %v239
    %v241 = vsel %vm235, %v240, %v239
    %vm242 = vcmp.lt.s32.totalorder %v64, 0
    %v243 = vsub.s32 0, %v64
    %v244 = vsel %vm242, %v243, %v64
    %v245 = vshrl.u32 %v244, 8
    %v246 = vand.u32 %v244, 255
    %v247 = vsub.s32 0, %v246
    %v248 = vsel %vm242, %v247, %v246
    %vm249 = vcmp.lt.s32.totalorder %v65, 0
    %v250 = vsub.s32 0, %v65
    %v251 = vsel %vm249, %v250, %v65
    %v252 = vshrl.u32 %v251, 8
    %v253 = vand.u32 %v251, 255
    %v254 = vsub.s32 0, %v253
    %v255 = vsel %vm249, %v254, %v253
    %vm256 = vcmp.lt.s32.totalorder %v66, 0
    %v257 = vsub.s32 0, %v66
    %v258 = vsel %vm256, %v257, %v66
    %v259 = vshrl.u32 %v258, 8
    %v260 = vand.u32 %v258, 255
    %v261 = vsub.s32 0, %v260
    %v262 = vsel %vm256, %v261, %v260
    %vm263 = vcmp.lt.s32.totalorder %v67, 0
    %v264 = vsub.s32 0, %v67
    %v265 = vsel %vm263, %v264, %v67
    %v266 = vshrl.u32 %v265, 8
    %v267 = vand.u32 %v265, 255
    %v268 = vsub.s32 0, %v267
    %v269 = vsel %vm263, %v268, %v267
    %vm270 = vcmp.lt.s32.totalorder %v68, 0
    %v271 = vsub.s32 0, %v68
    %v272 = vsel %vm270, %v271, %v68
    %v273 = vshrl.u32 %v272, 8
    %v274 = vand.u32 %v272, 255
    %v275 = vsub.s32 0, %v274
    %v276 = vsel %vm270, %v275, %v274
    %vm277 = vcmp.lt.s32.totalorder %v69, 0
    %v278 = vsub.s32 0, %v69
    %v279 = vsel %vm277, %v278, %v69
    %v280 = vshrl.u32 %v279, 8
    %v281 = vand.u32 %v279, 255
    %v282 = vsub.s32 0, %v281
    %v283 = vsel %vm277, %v282, %v281
    %vm284 = vcmp.lt.s32.totalorder %v70, 0
    %v285 = vsub.s32 0, %v70
    %v286 = vsel %vm284, %v285, %v70
    %v287 = vshrl.u32 %v286, 8
    %v288 = vand.u32 %v286, 255
    %v289 = vsub.s32 0, %v288
    %v290 = vsel %vm284, %v289, %v288
    %vm291 = vcmp.lt.s32.totalorder %v71, 0
    %v292 = vsub.s32 0, %v71
    %v293 = vsel %vm291, %v292, %v71
    %v294 = vshrl.u32 %v293, 8
    %v295 = vand.u32 %v293, 255
    %v296 = vsub.s32 0, %v295
    %v297 = vsel %vm291, %v296, %v295
    %vm298 = vcmp.lt.s32.totalorder %v72, 0
    %v299 = vsub.s32 0, %v72
    %v300 = vsel %vm298, %v299, %v72
    %v301 = vshrl.u32 %v300, 8
    %v302 = vand.u32 %v300, 255
    %v303 = vsub.s32 0, %v302
    %v304 = vsel %vm298, %v303, %v302
    %vm305 = vcmp.lt.s32.totalorder %v73, 0
    %v306 = vsub.s32 0, %v73
    %v307 = vsel %vm305, %v306, %v73
    %v308 = vshrl.u32 %v307, 8
    %v309 = vand.u32 %v307, 255
    %v310 = vsub.s32 0, %v309
    %v311 = vsel %vm305, %v310, %v309
    %vm312 = vcmp.lt.s32.totalorder %v74, 0
    %v313 = vsub.s32 0, %v74
    %v314 = vsel %vm312, %v313, %v74
    %v315 = vshrl.u32 %v314, 8
    %v316 = vand.u32 %v314, 255
    %v317 = vsub.s32 0, %v316
    %v318 = vsel %vm312, %v317, %v316
    %vm319 = vcmp.lt.s32.totalorder %v75, 0
    %v320 = vsub.s32 0, %v75
    %v321 = vsel %vm319, %v320, %v75
    %v322 = vshrl.u32 %v321, 8
    %v323 = vand.u32 %v321, 255
    %v324 = vsub.s32 0, %v323
    %v325 = vsel %vm319, %v324, %v323
    %vm326 = vcmp.lt.s32.totalorder %v76, 0
    %v327 = vsub.s32 0, %v76
    %v328 = vsel %vm326, %v327, %v76
    %v329 = vshrl.u32 %v328, 8
    %v330 = vand.u32 %v328, 255
    %v331 = vsub.s32 0, %v330
    %v332 = vsel %vm326, %v331, %v330
    %vm333 = vcmp.lt.s32.totalorder %v77, 0
    %v334 = vsub.s32 0, %v77
    %v335 = vsel %vm333, %v334, %v77
    %v336 = vshrl.u32 %v335, 8
    %v337 = vand.u32 %v335, 255
    %v338 = vsub.s32 0, %v337
    %v339 = vsel %vm333, %v338, %v337
    %vm340 = vcmp.lt.s32.totalorder %v78, 0
    %v341 = vsub.s32 0, %v78
    %v342 = vsel %vm340, %v341, %v78
    %v343 = vshrl.u32 %v342, 8
    %v344 = vand.u32 %v342, 255
    %v345 = vsub.s32 0, %v344
    %v346 = vsel %vm340, %v345, %v344
    %vm347 = vcmp.lt.s32.totalorder %v79, 0
    %v348 = vsub.s32 0, %v79
    %v349 = vsel %vm347, %v348, %v79
    %v350 = vshrl.u32 %v349, 8
    %v351 = vand.u32 %v349, 255
    %v352 = vsub.s32 0, %v351
    %v353 = vsel %vm347, %v352, %v351
    %vm354 = vcmp.lt.s32.totalorder %v80, 0
    %v355 = vsub.s32 0, %v80
    %v356 = vsel %vm354, %v355, %v80
    %v357 = vshrl.u32 %v356, 8
    %v358 = vand.u32 %v356, 255
    %v359 = vsub.s32 0, %v358
    %v360 = vsel %vm354, %v359, %v358
    %vm361 = vcmp.lt.s32.totalorder %v81, 0
    %v362 = vsub.s32 0, %v81
    %v363 = vsel %vm361, %v362, %v81
    %v364 = vshrl.u32 %v363, 8
    %v365 = vand.u32 %v363, 255
    %v366 = vsub.s32 0, %v365
    %v367 = vsel %vm361, %v366, %v365
    %vm368 = vcmp.lt.s32.totalorder %v82, 0
    %v369 = vsub.s32 0, %v82
    %v370 = vsel %vm368, %v369, %v82
    %v371 = vshrl.u32 %v370, 8
    %v372 = vand.u32 %v370, 255
    %v373 = vsub.s32 0, %v372
    %v374 = vsel %vm368, %v373, %v372
    %vm375 = vcmp.lt.s32.totalorder %v83, 0
    %v376 = vsub.s32 0, %v83
    %v377 = vsel %vm375, %v376, %v83
    %v378 = vshrl.u32 %v377, 8
    %v379 = vand.u32 %v377, 255
    %v380 = vsub.s32 0, %v379
    %v381 = vsel %vm375, %v380, %v379
    %vm382 = vcmp.lt.s32.totalorder %v84, 0
    %v383 = vsub.s32 0, %v84
    %v384 = vsel %vm382, %v383, %v84
    %v385 = vshrl.u32 %v384, 8
    %v386 = vand.u32 %v384, 255
    %v387 = vsub.s32 0, %v386
    %v388 = vsel %vm382, %v387, %v386
    %vm389 = vcmp.lt.s32.totalorder %v85, 0
    %v390 = vsub.s32 0, %v85
    %v391 = vsel %vm389, %v390, %v85
    %v392 = vshrl.u32 %v391, 8
    %v393 = vand.u32 %v391, 255
    %v394 = vsub.s32 0, %v393
    %v395 = vsel %vm389, %v394, %v393
    %vm396 = vcmp.lt.s32.totalorder %v86, 0
    %v397 = vsub.s32 0, %v86
    %v398 = vsel %vm396, %v397, %v86
    %v399 = vshrl.u32 %v398, 8
    %v400 = vand.u32 %v398, 255
    %v401 = vsub.s32 0, %v400
    %v402 = vsel %vm396, %v401, %v400
    %vm403 = vcmp.lt.s32.totalorder %v87, 0
    %v404 = vsub.s32 0, %v87
    %v405 = vsel %vm403, %v404, %v87
    %v406 = vshrl.u32 %v405, 8
    %v407 = vand.u32 %v405, 255
    %v408 = vsub.s32 0, %v407
    %v409 = vsel %vm403, %v408, %v407
    %vm410 = vcmp.lt.s32.totalorder %v88, 0
    %v411 = vsub.s32 0, %v88
    %v412 = vsel %vm410, %v411, %v88
    %v413 = vshrl.u32 %v412, 8
    %v414 = vand.u32 %v412, 255
    %v415 = vsub.s32 0, %v414
    %v416 = vsel %vm410, %v415, %v414
    %vm417 = vcmp.lt.s32.totalorder %v89, 0
    %v418 = vsub.s32 0, %v89
    %v419 = vsel %vm417, %v418, %v89
    %v420 = vshrl.u32 %v419, 8
    %v421 = vand.u32 %v419, 255
    %v422 = vsub.s32 0, %v421
    %v423 = vsel %vm417, %v422, %v421
    %vm424 = vcmp.lt.s32.totalorder %v90, 0
    %v425 = vsub.s32 0, %v90
    %v426 = vsel %vm424, %v425, %v90
    %v427 = vshrl.u32 %v426, 8
    %v428 = vand.u32 %v426, 255
    %v429 = vsub.s32 0, %v428
    %v430 = vsel %vm424, %v429, %v428
    %vm431 = vcmp.lt.s32.totalorder %v91, 0
    %v432 = vsub.s32 0, %v91
    %v433 = vsel %vm431, %v432, %v91
    %v434 = vshrl.u32 %v433, 8
    %v435 = vand.u32 %v433, 255
    %v436 = vsub.s32 0, %v435
    %v437 = vsel %vm431, %v436, %v435
    %vm438 = vcmp.lt.s32.totalorder %v92, 0
    %v439 = vsub.s32 0, %v92
    %v440 = vsel %vm438, %v439, %v92
    %v441 = vshrl.u32 %v440, 8
    %v442 = vand.u32 %v440, 255
    %v443 = vsub.s32 0, %v442
    %v444 = vsel %vm438, %v443, %v442
    %vm445 = vcmp.lt.s32.totalorder %v93, 0
    %v446 = vsub.s32 0, %v93
    %v447 = vsel %vm445, %v446, %v93
    %v448 = vshrl.u32 %v447, 8
    %v449 = vand.u32 %v447, 255
    %v450 = vsub.s32 0, %v449
    %v451 = vsel %vm445, %v450, %v449
    %vm452 = vcmp.lt.s32.totalorder %v94, 0
    %v453 = vsub.s32 0, %v94
    %v454 = vsel %vm452, %v453, %v94
    %v455 = vshrl.u32 %v454, 8
    %v456 = vand.u32 %v454, 255
    %v457 = vsub.s32 0, %v456
    %v458 = vsel %vm452, %v457, %v456
    %vm459 = vcmp.lt.s32.totalorder %v95, 0
    %v460 = vsub.s32 0, %v95
    %v461 = vsel %vm459, %v460, %v95
    %v462 = vshrl.u32 %v461, 8
    %v463 = vand.u32 %v461, 255
    %v464 = vsub.s32 0, %v463
    %v465 = vsel %vm459, %v464, %v463
    %vm466 = vcmp.lt.s32.totalorder %v96, 0
    %v467 = vsub.s32 0, %v96
    %v468 = vsel %vm466, %v467, %v96
    %v469 = vshrl.u32 %v468, 8
    %v470 = vand.u32 %v468, 255
    %v471 = vsub.s32 0, %v470
    %v472 = vsel %vm466, %v471, %v470
    %vm473 = vcmp.lt.s32.totalorder %v97, 0
    %v474 = vsub.s32 0, %v97
    %v475 = vsel %vm473, %v474, %v97
    %v476 = vshrl.u32 %v475, 8
    %v477 = vand.u32 %v475, 255
    %v478 = vsub.s32 0, %v477
    %v479 = vsel %vm473, %v478, %v477
    %vm480 = vcmp.lt.s32.totalorder %v98, 0
    %v481 = vsub.s32 0, %v98
    %v482 = vsel %vm480, %v481, %v98
    %v483 = vshrl.u32 %v482, 8
    %v484 = vand.u32 %v482, 255
    %v485 = vsub.s32 0, %v484
    %v486 = vsel %vm480, %v485, %v484
    %vm487 = vcmp.lt.s32.totalorder %v99, 0
    %v488 = vsub.s32 0, %v99
    %v489 = vsel %vm487, %v488, %v99
    %v490 = vshrl.u32 %v489, 8
    %v491 = vand.u32 %v489, 255
    %v492 = vsub.s32 0, %v491
    %v493 = vsel %vm487, %v492, %v491
    %vm494 = vcmp.lt.s32.totalorder %v100, 0
    %v495 = vsub.s32 0, %v100
    %v496 = vsel %vm494, %v495, %v100
    %v497 = vshrl.u32 %v496, 8
    %v498 = vand.u32 %v496, 255
    %v499 = vsub.s32 0, %v498
    %v500 = vsel %vm494, %v499, %v498
    %vm501 = vcmp.lt.s32.totalorder %v101, 0
    %v502 = vsub.s32 0, %v101
    %v503 = vsel %vm501, %v502, %v101
    %v504 = vshrl.u32 %v503, 8
    %v505 = vand.u32 %v503, 255
    %v506 = vsub.s32 0, %v505
    %v507 = vsel %vm501, %v506, %v505
    %vm508 = vcmp.lt.s32.totalorder %v102, 0
    %v509 = vsub.s32 0, %v102
    %v510 = vsel %vm508, %v509, %v102
    %v511 = vshrl.u32 %v510, 8
    %v512 = vand.u32 %v510, 255
    %v513 = vsub.s32 0, %v512
    %v514 = vsel %vm508, %v513, %v512
    %vm515 = vcmp.lt.s32.totalorder %v103, 0
    %v516 = vsub.s32 0, %v103
    %v517 = vsel %vm515, %v516, %v103
    %v518 = vshrl.u32 %v517, 8
    %v519 = vand.u32 %v517, 255
    %v520 = vsub.s32 0, %v519
    %v521 = vsel %vm515, %v520, %v519
    %vm522 = vcmp.lt.s32.totalorder %v104, 0
    %v523 = vsub.s32 0, %v104
    %v524 = vsel %vm522, %v523, %v104
    %v525 = vshrl.u32 %v524, 8
    %v526 = vand.u32 %v524, 255
    %v527 = vsub.s32 0, %v526
    %v528 = vsel %vm522, %v527, %v526
    %vm529 = vcmp.lt.s32.totalorder %v105, 0
    %v530 = vsub.s32 0, %v105
    %v531 = vsel %vm529, %v530, %v105
    %v532 = vshrl.u32 %v531, 8
    %v533 = vand.u32 %v531, 255
    %v534 = vsub.s32 0, %v533
    %v535 = vsel %vm529, %v534, %v533
    %vm536 = vcmp.lt.s32.totalorder %v106, 0
    %v537 = vsub.s32 0, %v106
    %v538 = vsel %vm536, %v537, %v106
    %v539 = vshrl.u32 %v538, 8
    %v540 = vand.u32 %v538, 255
    %v541 = vsub.s32 0, %v540
    %v542 = vsel %vm536, %v541, %v540
    %vm543 = vcmp.lt.s32.totalorder %v107, 0
    %v544 = vsub.s32 0, %v107
    %v545 = vsel %vm543, %v544, %v107
    %v546 = vshrl.u32 %v545, 8
    %v547 = vand.u32 %v545, 255
    %v548 = vsub.s32 0, %v547
    %v549 = vsel %vm543, %v548, %v547
    %vm550 = vcmp.lt.s32.totalorder %v108, 0
    %v551 = vsub.s32 0, %v108
    %v552 = vsel %vm550, %v551, %v108
    %v553 = vshrl.u32 %v552, 8
    %v554 = vand.u32 %v552, 255
    %v555 = vsub.s32 0, %v554
    %v556 = vsel %vm550, %v555, %v554
    %vm557 = vcmp.ne.s32.totalorder %v115, 0
    %vm558 = vcmp.ne.s32.totalorder %v122, 0
    %vm559 = vcmp.ne.s32.totalorder %v129, 0
    %vm560 = vcmp.ne.s32.totalorder %v136, 0
    %vm561 = vcmp.ne.s32.totalorder %v143, 0
    %vm562 = vcmp.ne.s32.totalorder %v150, 0
    %vm563 = vcmp.ne.s32.totalorder %v157, 0
    %vm564 = vcmp.ne.s32.totalorder %v164, 0
    %vm565 = vcmp.ne.s32.totalorder %v171, 0
    %vm566 = vcmp.ne.s32.totalorder %v178, 0
    %vm567 = vcmp.ne.s32.totalorder %v185, 0
    %vm568 = vcmp.ne.s32.totalorder %v192, 0
    %vm569 = vcmp.ne.s32.totalorder %v199, 0
    %vm570 = vcmp.ne.s32.totalorder %v206, 0
    %vm571 = vcmp.ne.s32.totalorder %v213, 0
    %vm572 = vcmp.ne.s32.totalorder %v220, 0
    %vm573 = vcmp.ne.s32.totalorder %v227, 0
    %vm574 = vcmp.ne.s32.totalorder %v234, 0
    %vm575 = vcmp.ne.s32.totalorder %v241, 0
    %vm576 = vcmp.ne.s32.totalorder %v248, 0
    %vm577 = vcmp.ne.s32.totalorder %v255, 0
    %vm578 = vcmp.ne.s32.totalorder %v262, 0
    %vm579 = vcmp.ne.s32.totalorder %v269, 0
    %vm580 = vcmp.ne.s32.totalorder %v276, 0
    %vm581 = vcmp.ne.s32.totalorder %v283, 0
    %vm582 = vcmp.ne.s32.totalorder %v290, 0
    %vm583 = vcmp.ne.s32.totalorder %v297, 0
    %vm584 = vcmp.ne.s32.totalorder %v304, 0
    %vm585 = vcmp.ne.s32.totalorder %v311, 0
    %vm586 = vcmp.ne.s32.totalorder %v318, 0
    %vm587 = vcmp.ne.s32.totalorder %v325, 0
    %vm588 = vcmp.ne.s32.totalorder %v332, 0
    %vm589 = vcmp.ne.s32.totalorder %v339, 0
    %vm590 = vcmp.ne.s32.totalorder %v346, 0
    %vm591 = vcmp.ne.s32.totalorder %v353, 0
    %vm592 = vcmp.ne.s32.totalorder %v360, 0
    %vm593 = vcmp.ne.s32.totalorder %v367, 0
    %vm594 = vcmp.ne.s32.totalorder %v374, 0
    %vm595 = vcmp.ne.s32.totalorder %v381, 0
    %vm596 = vcmp.ne.s32.totalorder %v388, 0
    %vm597 = vcmp.ne.s32.totalorder %v395, 0
    %vm598 = vcmp.ne.s32.totalorder %v402, 0
    %vm599 = vcmp.ne.s32.totalorder %v409, 0
    %vm600 = vcmp.ne.s32.totalorder %v416, 0
    %vm601 = vcmp.ne.s32.totalorder %v423, 0
    %vm602 = vcmp.ne.s32.totalorder %v430, 0
    %vm603 = vcmp.ne.s32.totalorder %v437, 0
    %vm604 = vcmp.ne.s32.totalorder %v444, 0
    %vm605 = vcmp.ne.s32.totalorder %v451, 0
    %vm606 = vcmp.ne.s32.totalorder %v458, 0
    %vm607 = vcmp.ne.s32.totalorder %v465, 0
    %vm608 = vcmp.ne.s32.totalorder %v472, 0
    %vm609 = vcmp.ne.s32.totalorder %v479, 0
    %vm610 = vcmp.ne.s32.totalorder %v486, 0
    %vm611 = vcmp.ne.s32.totalorder %v493, 0
    %vm612 = vcmp.ne.s32.totalorder %v500, 0
    %vm613 = vcmp.ne.s32.totalorder %v507, 0
    %vm614 = vcmp.ne.s32.totalorder %v514, 0
    %vm615 = vcmp.ne.s32.totalorder %v521, 0
    %vm616 = vcmp.ne.s32.totalorder %v528, 0
    %vm617 = vcmp.ne.s32.totalorder %v535, 0
    %vm618 = vcmp.ne.s32.totalorder %v542, 0
    %vm619 = vcmp.ne.s32.totalorder %v549, 0
    %vm620 = vcmp.ne.s32.totalorder %v556, 0
    %vm621 = vcmp.lt.s32.totalorder %v115, 0
    %vm622 = vcmp.lt.s32.totalorder %v122, 0
    %vm623 = vcmp.lt.s32.totalorder %v129, 0
    %vm624 = vcmp.lt.s32.totalorder %v136, 0
    %vm625 = vcmp.lt.s32.totalorder %v143, 0
    %vm626 = vcmp.lt.s32.totalorder %v150, 0
    %vm627 = vcmp.lt.s32.totalorder %v157, 0
    %vm628 = vcmp.lt.s32.totalorder %v164, 0
    %vm629 = vcmp.lt.s32.totalorder %v171, 0
    %vm630 = vcmp.lt.s32.totalorder %v178, 0
    %vm631 = vcmp.lt.s32.totalorder %v185, 0
    %vm632 = vcmp.lt.s32.totalorder %v192, 0
    %vm633 = vcmp.lt.s32.totalorder %v199, 0
    %vm634 = vcmp.lt.s32.totalorder %v206, 0
    %vm635 = vcmp.lt.s32.totalorder %v213, 0
    %vm636 = vcmp.lt.s32.totalorder %v220, 0
    %vm637 = vcmp.lt.s32.totalorder %v227, 0
    %vm638 = vcmp.lt.s32.totalorder %v234, 0
    %vm639 = vcmp.lt.s32.totalorder %v241, 0
    %vm640 = vcmp.lt.s32.totalorder %v248, 0
    %vm641 = vcmp.lt.s32.totalorder %v255, 0
    %vm642 = vcmp.lt.s32.totalorder %v262, 0
    %vm643 = vcmp.lt.s32.totalorder %v269, 0
    %vm644 = vcmp.lt.s32.totalorder %v276, 0
    %vm645 = vcmp.lt.s32.totalorder %v283, 0
    %vm646 = vcmp.lt.s32.totalorder %v290, 0
    %vm647 = vcmp.lt.s32.totalorder %v297, 0
    %vm648 = vcmp.lt.s32.totalorder %v304, 0
    %vm649 = vcmp.lt.s32.totalorder %v311, 0
    %vm650 = vcmp.lt.s32.totalorder %v318, 0
    %vm651 = vcmp.lt.s32.totalorder %v325, 0
    %vm652 = vcmp.lt.s32.totalorder %v332, 0
    %vm653 = vcmp.lt.s32.totalorder %v339, 0
    %vm654 = vcmp.lt.s32.totalorder %v346, 0
    %vm655 = vcmp.lt.s32.totalorder %v353, 0
    %vm656 = vcmp.lt.s32.totalorder %v360, 0
    %vm657 = vcmp.lt.s32.totalorder %v367, 0
    %vm658 = vcmp.lt.s32.totalorder %v374, 0
    %vm659 = vcmp.lt.s32.totalorder %v381, 0
    %vm660 = vcmp.lt.s32.totalorder %v388, 0
    %vm661 = vcmp.lt.s32.totalorder %v395, 0
    %vm662 = vcmp.lt.s32.totalorder %v402, 0
    %vm663 = vcmp.lt.s32.totalorder %v409, 0
    %vm664 = vcmp.lt.s32.totalorder %v416, 0
    %vm665 = vcmp.lt.s32.totalorder %v423, 0
    %vm666 = vcmp.lt.s32.totalorder %v430, 0
    %vm667 = vcmp.lt.s32.totalorder %v437, 0
    %vm668 = vcmp.lt.s32.totalorder %v444, 0
    %vm669 = vcmp.lt.s32.totalorder %v451, 0
    %vm670 = vcmp.lt.s32.totalorder %v458, 0
    %vm671 = vcmp.lt.s32.totalorder %v465, 0
    %vm672 = vcmp.lt.s32.totalorder %v472, 0
    %vm673 = vcmp.lt.s32.totalorder %v479, 0
    %vm674 = vcmp.lt.s32.totalorder %v486, 0
    %vm675 = vcmp.lt.s32.totalorder %v493, 0
    %vm676 = vcmp.lt.s32.totalorder %v500, 0
    %vm677 = vcmp.lt.s32.totalorder %v507, 0
    %vm678 = vcmp.lt.s32.totalorder %v514, 0
    %vm679 = vcmp.lt.s32.totalorder %v521, 0
    %vm680 = vcmp.lt.s32.totalorder %v528, 0
    %vm681 = vcmp.lt.s32.totalorder %v535, 0
    %vm682 = vcmp.lt.s32.totalorder %v542, 0
    %vm683 = vcmp.lt.s32.totalorder %v549, 0
    %vm684 = vcmp.lt.s32.totalorder %v556, 0
    %vm685 = vmand %vm621, %vm557
    %vm686 = vmand %vm622, %vm558
    %vm687 = vmand %vm623, %vm559
    %vm688 = vmand %vm624, %vm560
    %vm689 = vmand %vm625, %vm561
    %vm690 = vmand %vm626, %vm562
    %vm691 = vmand %vm627, %vm563
    %vm692 = vmand %vm628, %vm564
    %vm693 = vmand %vm629, %vm565
    %vm694 = vmand %vm630, %vm566
    %vm695 = vmand %vm631, %vm567
    %vm696 = vmand %vm632, %vm568
    %vm697 = vmand %vm633, %vm569
    %vm698 = vmand %vm634, %vm570
    %vm699 = vmand %vm635, %vm571
    %vm700 = vmand %vm636, %vm572
    %vm701 = vmand %vm637, %vm573
    %vm702 = vmand %vm638, %vm574
    %vm703 = vmand %vm639, %vm575
    %vm704 = vmand %vm640, %vm576
    %vm705 = vmand %vm641, %vm577
    %vm706 = vmand %vm642, %vm578
    %vm707 = vmand %vm643, %vm579
    %vm708 = vmand %vm644, %vm580
    %vm709 = vmand %vm645, %vm581
    %vm710 = vmand %vm646, %vm582
    %vm711 = vmand %vm647, %vm583
    %vm712 = vmand %vm648, %vm584
    %vm713 = vmand %vm649, %vm585
    %vm714 = vmand %vm650, %vm586
    %vm715 = vmand %vm651, %vm587
    %vm716 = vmand %vm652, %vm588
    %vm717 = vmand %vm653, %vm589
    %vm718 = vmand %vm654, %vm590
    %vm719 = vmand %vm655, %vm591
    %vm720 = vmand %vm656, %vm592
    %vm721 = vmand %vm657, %vm593
    %vm722 = vmand %vm658, %vm594
    %vm723 = vmand %vm659, %vm595
    %vm724 = vmand %vm660, %vm596
    %vm725 = vmand %vm661, %vm597
    %vm726 = vmand %vm662, %vm598
    %vm727 = vmand %vm663, %vm599
    %vm728 = vmand %vm664, %vm600
    %vm729 = vmand %vm665, %vm601
    %vm730 = vmand %vm666, %vm602
    %vm731 = vmand %vm667, %vm603
    %vm732 = vmand %vm668, %vm604
    %vm733 = vmand %vm669, %vm605
    %vm734 = vmand %vm670, %vm606
    %vm735 = vmand %vm671, %vm607
    %vm736 = vmand %vm672, %vm608
    %vm737 = vmand %vm673, %vm609
    %vm738 = vmand %vm674, %vm610
    %vm739 = vmand %vm675, %vm611
    %vm740 = vmand %vm676, %vm612
    %vm741 = vmand %vm677, %vm613
    %vm742 = vmand %vm678, %vm614
    %vm743 = vmand %vm679, %vm615
    %vm744 = vmand %vm680, %vm616
    %vm745 = vmand %vm681, %vm617
    %vm746 = vmand %vm682, %vm618
    %vm747 = vmand %vm683, %vm619
    %vm748 = vmand %vm684, %vm620
    %v749 = vadd.s32 %v115, 256
    %v750 = vadd.s32 %v122, 256
    %v751 = vadd.s32 %v129, 256
    %v752 = vadd.s32 %v136, 256
    %v753 = vadd.s32 %v143, 256
    %v754 = vadd.s32 %v150, 256
    %v755 = vadd.s32 %v157, 256
    %v756 = vadd.s32 %v164, 256
    %v757 = vadd.s32 %v171, 256
    %v758 = vadd.s32 %v178, 256
    %v759 = vadd.s32 %v185, 256
    %v760 = vadd.s32 %v192, 256
    %v761 = vadd.s32 %v199, 256
    %v762 = vadd.s32 %v206, 256
    %v763 = vadd.s32 %v213, 256
    %v764 = vadd.s32 %v220, 256
    %v765 = vadd.s32 %v227, 256
    %v766 = vadd.s32 %v234, 256
    %v767 = vadd.s32 %v241, 256
    %v768 = vadd.s32 %v248, 256
    %v769 = vadd.s32 %v255, 256
    %v770 = vadd.s32 %v262, 256
    %v771 = vadd.s32 %v269, 256
    %v772 = vadd.s32 %v276, 256
    %v773 = vadd.s32 %v283, 256
    %v774 = vadd.s32 %v290, 256
    %v775 = vadd.s32 %v297, 256
    %v776 = vadd.s32 %v304, 256
    %v777 = vadd.s32 %v311, 256
    %v778 = vadd.s32 %v318, 256
    %v779 = vadd.s32 %v325, 256
    %v780 = vadd.s32 %v332, 256
    %v781 = vadd.s32 %v339, 256
    %v782 = vadd.s32 %v346, 256
    %v783 = vadd.s32 %v353, 256
    %v784 = vadd.s32 %v360, 256
    %v785 = vadd.s32 %v367, 256
    %v786 = vadd.s32 %v374, 256
    %v787 = vadd.s32 %v381, 256
    %v788 = vadd.s32 %v388, 256
    %v789 = vadd.s32 %v395, 256
    %v790 = vadd.s32 %v402, 256
    %v791 = vadd.s32 %v409, 256
    %v792 = vadd.s32 %v416, 256
    %v793 = vadd.s32 %v423, 256
    %v794 = vadd.s32 %v430, 256
    %v795 = vadd.s32 %v437, 256
    %v796 = vadd.s32 %v444, 256
    %v797 = vadd.s32 %v451, 256
    %v798 = vadd.s32 %v458, 256
    %v799 = vadd.s32 %v465, 256
    %v800 = vadd.s32 %v472, 256
    %v801 = vadd.s32 %v479, 256
    %v802 = vadd.s32 %v486, 256
    %v803 = vadd.s32 %v493, 256
    %v804 = vadd.s32 %v500, 256
    %v805 = vadd.s32 %v507, 256
    %v806 = vadd.s32 %v514, 256
    %v807 = vadd.s32 %v521, 256
    %v808 = vadd.s32 %v528, 256
    %v809 = vadd.s32 %v535, 256
    %v810 = vadd.s32 %v542, 256
    %v811 = vadd.s32 %v549, 256
    %v812 = vadd.s32 %v556, 256
    %v813 = vsel %vm685, %v749, %v115
    %v814 = vsel %vm686, %v750, %v122
    %v815 = vsel %vm687, %v751, %v129
    %v816 = vsel %vm688, %v752, %v136
    %v817 = vsel %vm689, %v753, %v143
    %v818 = vsel %vm690, %v754, %v150
    %v819 = vsel %vm691, %v755, %v157
    %v820 = vsel %vm692, %v756, %v164
    %v821 = vsel %vm693, %v757, %v171
    %v822 = vsel %vm694, %v758, %v178
    %v823 = vsel %vm695, %v759, %v185
    %v824 = vsel %vm696, %v760, %v192
    %v825 = vsel %vm697, %v761, %v199
    %v826 = vsel %vm698, %v762, %v206
    %v827 = vsel %vm699, %v763, %v213
    %v828 = vsel %vm700, %v764, %v220
    %v829 = vsel %vm701, %v765, %v227
    %v830 = vsel %vm702, %v766, %v234
    %v831 = vsel %vm703, %v767, %v241
    %v832 = vsel %vm704, %v768, %v248
    %v833 = vsel %vm705, %v769, %v255
    %v834 = vsel %vm706, %v770, %v262
    %v835 = vsel %vm707, %v771, %v269
    %v836 = vsel %vm708, %v772, %v276
    %v837 = vsel %vm709, %v773, %v283
    %v838 = vsel %vm710, %v774, %v290
    %v839 = vsel %vm711, %v775, %v297
    %v840 = vsel %vm712, %v776, %v304
    %v841 = vsel %vm713, %v777, %v311
    %v842 = vsel %vm714, %v778, %v318
    %v843 = vsel %vm715, %v779, %v325
    %v844 = vsel %vm716, %v780, %v332
    %v845 = vsel %vm717, %v781, %v339
    %v846 = vsel %vm718, %v782, %v346
    %v847 = vsel %vm719, %v783, %v353
    %v848 = vsel %vm720, %v784, %v360
    %v849 = vsel %vm721, %v785, %v367
    %v850 = vsel %vm722, %v786, %v374
    %v851 = vsel %vm723, %v787, %v381
    %v852 = vsel %vm724, %v788, %v388
    %v853 = vsel %vm725, %v789, %v395
    %v854 = vsel %vm726, %v790, %v402
    %v855 = vsel %vm727, %v791, %v409
    %v856 = vsel %vm728, %v792, %v416
    %v857 = vsel %vm729, %v793, %v423
    %v858 = vsel %vm730, %v794, %v430
    %v859 = vsel %vm731, %v795, %v437
    %v860 = vsel %vm732, %v796, %v444
    %v861 = vsel %vm733, %v797, %v451
    %v862 = vsel %vm734, %v798, %v458
    %v863 = vsel %vm735, %v799, %v465
    %v864 = vsel %vm736, %v800, %v472
    %v865 = vsel %vm737, %v801, %v479
    %v866 = vsel %vm738, %v802, %v486
    %v867 = vsel %vm739, %v803, %v493
    %v868 = vsel %vm740, %v804, %v500
    %v869 = vsel %vm741, %v805, %v507
    %v870 = vsel %vm742, %v806, %v514
    %v871 = vsel %vm743, %v807, %v521
    %v872 = vsel %vm744, %v808, %v528
    %v873 = vsel %vm745, %v809, %v535
    %v874 = vsel %vm746, %v810, %v542
    %v875 = vsel %vm747, %v811, %v549
    %v876 = vsel %vm748, %v812, %v556
    %vm877 = vcmp.lt.s32.totalorder %v45, 0
    %v878 = vsub.s32 0, %v45
    %v879 = vsel %vm877, %v878, %v45
    %v880 = vshrl.u32 %v879, 4
    %v881 = vand.u32 %v879, 15
    %v882 = vsub.s32 0, %v881
    %v883 = vsel %vm877, %v882, %v881
    %vm884 = vcmp.lt.s32.totalorder %v46, 0
    %v885 = vsub.s32 0, %v46
    %v886 = vsel %vm884, %v885, %v46
    %v887 = vshrl.u32 %v886, 4
    %v888 = vand.u32 %v886, 15
    %v889 = vsub.s32 0, %v888
    %v890 = vsel %vm884, %v889, %v888
    %vm891 = vcmp.lt.s32.totalorder %v47, 0
    %v892 = vsub.s32 0, %v47
    %v893 = vsel %vm891, %v892, %v47
    %v894 = vshrl.u32 %v893, 4
    %v895 = vand.u32 %v893, 15
    %v896 = vsub.s32 0, %v895
    %v897 = vsel %vm891, %v896, %v895
    %vm898 = vcmp.lt.s32.totalorder %v48, 0
    %v899 = vsub.s32 0, %v48
    %v900 = vsel %vm898, %v899, %v48
    %v901 = vshrl.u32 %v900, 4
    %v902 = vand.u32 %v900, 15
    %v903 = vsub.s32 0, %v902
    %v904 = vsel %vm898, %v903, %v902
    %vm905 = vcmp.lt.s32.totalorder %v49, 0
    %v906 = vsub.s32 0, %v49
    %v907 = vsel %vm905, %v906, %v49
    %v908 = vshrl.u32 %v907, 4
    %v909 = vand.u32 %v907, 15
    %v910 = vsub.s32 0, %v909
    %v911 = vsel %vm905, %v910, %v909
    %vm912 = vcmp.lt.s32.totalorder %v50, 0
    %v913 = vsub.s32 0, %v50
    %v914 = vsel %vm912, %v913, %v50
    %v915 = vshrl.u32 %v914, 4
    %v916 = vand.u32 %v914, 15
    %v917 = vsub.s32 0, %v916
    %v918 = vsel %vm912, %v917, %v916
    %vm919 = vcmp.lt.s32.totalorder %v51, 0
    %v920 = vsub.s32 0, %v51
    %v921 = vsel %vm919, %v920, %v51
    %v922 = vshrl.u32 %v921, 4
    %v923 = vand.u32 %v921, 15
    %v924 = vsub.s32 0, %v923
    %v925 = vsel %vm919, %v924, %v923
    %vm926 = vcmp.lt.s32.totalorder %v52, 0
    %v927 = vsub.s32 0, %v52
    %v928 = vsel %vm926, %v927, %v52
    %v929 = vshrl.u32 %v928, 4
    %v930 = vand.u32 %v928, 15
    %v931 = vsub.s32 0, %v930
    %v932 = vsel %vm926, %v931, %v930
    %vm933 = vcmp.lt.s32.totalorder %v53, 0
    %v934 = vsub.s32 0, %v53
    %v935 = vsel %vm933, %v934, %v53
    %v936 = vshrl.u32 %v935, 4
    %v937 = vand.u32 %v935, 15
    %v938 = vsub.s32 0, %v937
    %v939 = vsel %vm933, %v938, %v937
    %vm940 = vcmp.lt.s32.totalorder %v54, 0
    %v941 = vsub.s32 0, %v54
    %v942 = vsel %vm940, %v941, %v54
    %v943 = vshrl.u32 %v942, 4
    %v944 = vand.u32 %v942, 15
    %v945 = vsub.s32 0, %v944
    %v946 = vsel %vm940, %v945, %v944
    %vm947 = vcmp.lt.s32.totalorder %v55, 0
    %v948 = vsub.s32 0, %v55
    %v949 = vsel %vm947, %v948, %v55
    %v950 = vshrl.u32 %v949, 4
    %v951 = vand.u32 %v949, 15
    %v952 = vsub.s32 0, %v951
    %v953 = vsel %vm947, %v952, %v951
    %vm954 = vcmp.lt.s32.totalorder %v56, 0
    %v955 = vsub.s32 0, %v56
    %v956 = vsel %vm954, %v955, %v56
    %v957 = vshrl.u32 %v956, 4
    %v958 = vand.u32 %v956, 15
    %v959 = vsub.s32 0, %v958
    %v960 = vsel %vm954, %v959, %v958
    %vm961 = vcmp.lt.s32.totalorder %v57, 0
    %v962 = vsub.s32 0, %v57
    %v963 = vsel %vm961, %v962, %v57
    %v964 = vshrl.u32 %v963, 4
    %v965 = vand.u32 %v963, 15
    %v966 = vsub.s32 0, %v965
    %v967 = vsel %vm961, %v966, %v965
    %vm968 = vcmp.lt.s32.totalorder %v58, 0
    %v969 = vsub.s32 0, %v58
    %v970 = vsel %vm968, %v969, %v58
    %v971 = vshrl.u32 %v970, 4
    %v972 = vand.u32 %v970, 15
    %v973 = vsub.s32 0, %v972
    %v974 = vsel %vm968, %v973, %v972
    %vm975 = vcmp.lt.s32.totalorder %v59, 0
    %v976 = vsub.s32 0, %v59
    %v977 = vsel %vm975, %v976, %v59
    %v978 = vshrl.u32 %v977, 4
    %v979 = vand.u32 %v977, 15
    %v980 = vsub.s32 0, %v979
    %v981 = vsel %vm975, %v980, %v979
    %vm982 = vcmp.lt.s32.totalorder %v60, 0
    %v983 = vsub.s32 0, %v60
    %v984 = vsel %vm982, %v983, %v60
    %v985 = vshrl.u32 %v984, 4
    %v986 = vand.u32 %v984, 15
    %v987 = vsub.s32 0, %v986
    %v988 = vsel %vm982, %v987, %v986
    %vm989 = vcmp.lt.s32.totalorder %v61, 0
    %v990 = vsub.s32 0, %v61
    %v991 = vsel %vm989, %v990, %v61
    %v992 = vshrl.u32 %v991, 4
    %v993 = vand.u32 %v991, 15
    %v994 = vsub.s32 0, %v993
    %v995 = vsel %vm989, %v994, %v993
    %vm996 = vcmp.lt.s32.totalorder %v62, 0
    %v997 = vsub.s32 0, %v62
    %v998 = vsel %vm996, %v997, %v62
    %v999 = vshrl.u32 %v998, 4
    %v1000 = vand.u32 %v998, 15
    %v1001 = vsub.s32 0, %v1000
    %v1002 = vsel %vm996, %v1001, %v1000
    %vm1003 = vcmp.lt.s32.totalorder %v63, 0
    %v1004 = vsub.s32 0, %v63
    %v1005 = vsel %vm1003, %v1004, %v63
    %v1006 = vshrl.u32 %v1005, 4
    %v1007 = vand.u32 %v1005, 15
    %v1008 = vsub.s32 0, %v1007
    %v1009 = vsel %vm1003, %v1008, %v1007
    %vm1010 = vcmp.lt.s32.totalorder %v64, 0
    %v1011 = vsub.s32 0, %v64
    %v1012 = vsel %vm1010, %v1011, %v64
    %v1013 = vshrl.u32 %v1012, 4
    %v1014 = vand.u32 %v1012, 15
    %v1015 = vsub.s32 0, %v1014
    %v1016 = vsel %vm1010, %v1015, %v1014
    %vm1017 = vcmp.lt.s32.totalorder %v65, 0
    %v1018 = vsub.s32 0, %v65
    %v1019 = vsel %vm1017, %v1018, %v65
    %v1020 = vshrl.u32 %v1019, 4
    %v1021 = vand.u32 %v1019, 15
    %v1022 = vsub.s32 0, %v1021
    %v1023 = vsel %vm1017, %v1022, %v1021
    %vm1024 = vcmp.lt.s32.totalorder %v66, 0
    %v1025 = vsub.s32 0, %v66
    %v1026 = vsel %vm1024, %v1025, %v66
    %v1027 = vshrl.u32 %v1026, 4
    %v1028 = vand.u32 %v1026, 15
    %v1029 = vsub.s32 0, %v1028
    %v1030 = vsel %vm1024, %v1029, %v1028
    %vm1031 = vcmp.lt.s32.totalorder %v67, 0
    %v1032 = vsub.s32 0, %v67
    %v1033 = vsel %vm1031, %v1032, %v67
    %v1034 = vshrl.u32 %v1033, 4
    %v1035 = vand.u32 %v1033, 15
    %v1036 = vsub.s32 0, %v1035
    %v1037 = vsel %vm1031, %v1036, %v1035
    %vm1038 = vcmp.lt.s32.totalorder %v68, 0
    %v1039 = vsub.s32 0, %v68
    %v1040 = vsel %vm1038, %v1039, %v68
    %v1041 = vshrl.u32 %v1040, 4
    %v1042 = vand.u32 %v1040, 15
    %v1043 = vsub.s32 0, %v1042
    %v1044 = vsel %vm1038, %v1043, %v1042
    %vm1045 = vcmp.lt.s32.totalorder %v69, 0
    %v1046 = vsub.s32 0, %v69
    %v1047 = vsel %vm1045, %v1046, %v69
    %v1048 = vshrl.u32 %v1047, 4
    %v1049 = vand.u32 %v1047, 15
    %v1050 = vsub.s32 0, %v1049
    %v1051 = vsel %vm1045, %v1050, %v1049
    %vm1052 = vcmp.lt.s32.totalorder %v70, 0
    %v1053 = vsub.s32 0, %v70
    %v1054 = vsel %vm1052, %v1053, %v70
    %v1055 = vshrl.u32 %v1054, 4
    %v1056 = vand.u32 %v1054, 15
    %v1057 = vsub.s32 0, %v1056
    %v1058 = vsel %vm1052, %v1057, %v1056
    %vm1059 = vcmp.lt.s32.totalorder %v71, 0
    %v1060 = vsub.s32 0, %v71
    %v1061 = vsel %vm1059, %v1060, %v71
    %v1062 = vshrl.u32 %v1061, 4
    %v1063 = vand.u32 %v1061, 15
    %v1064 = vsub.s32 0, %v1063
    %v1065 = vsel %vm1059, %v1064, %v1063
    %vm1066 = vcmp.lt.s32.totalorder %v72, 0
    %v1067 = vsub.s32 0, %v72
    %v1068 = vsel %vm1066, %v1067, %v72
    %v1069 = vshrl.u32 %v1068, 4
    %v1070 = vand.u32 %v1068, 15
    %v1071 = vsub.s32 0, %v1070
    %v1072 = vsel %vm1066, %v1071, %v1070
    %vm1073 = vcmp.lt.s32.totalorder %v73, 0
    %v1074 = vsub.s32 0, %v73
    %v1075 = vsel %vm1073, %v1074, %v73
    %v1076 = vshrl.u32 %v1075, 4
    %v1077 = vand.u32 %v1075, 15
    %v1078 = vsub.s32 0, %v1077
    %v1079 = vsel %vm1073, %v1078, %v1077
    %vm1080 = vcmp.lt.s32.totalorder %v74, 0
    %v1081 = vsub.s32 0, %v74
    %v1082 = vsel %vm1080, %v1081, %v74
    %v1083 = vshrl.u32 %v1082, 4
    %v1084 = vand.u32 %v1082, 15
    %v1085 = vsub.s32 0, %v1084
    %v1086 = vsel %vm1080, %v1085, %v1084
    %vm1087 = vcmp.lt.s32.totalorder %v75, 0
    %v1088 = vsub.s32 0, %v75
    %v1089 = vsel %vm1087, %v1088, %v75
    %v1090 = vshrl.u32 %v1089, 4
    %v1091 = vand.u32 %v1089, 15
    %v1092 = vsub.s32 0, %v1091
    %v1093 = vsel %vm1087, %v1092, %v1091
    %vm1094 = vcmp.lt.s32.totalorder %v76, 0
    %v1095 = vsub.s32 0, %v76
    %v1096 = vsel %vm1094, %v1095, %v76
    %v1097 = vshrl.u32 %v1096, 4
    %v1098 = vand.u32 %v1096, 15
    %v1099 = vsub.s32 0, %v1098
    %v1100 = vsel %vm1094, %v1099, %v1098
    %vm1101 = vcmp.lt.s32.totalorder %v77, 0
    %v1102 = vsub.s32 0, %v77
    %v1103 = vsel %vm1101, %v1102, %v77
    %v1104 = vshrl.u32 %v1103, 4
    %v1105 = vand.u32 %v1103, 15
    %v1106 = vsub.s32 0, %v1105
    %v1107 = vsel %vm1101, %v1106, %v1105
    %vm1108 = vcmp.lt.s32.totalorder %v78, 0
    %v1109 = vsub.s32 0, %v78
    %v1110 = vsel %vm1108, %v1109, %v78
    %v1111 = vshrl.u32 %v1110, 4
    %v1112 = vand.u32 %v1110, 15
    %v1113 = vsub.s32 0, %v1112
    %v1114 = vsel %vm1108, %v1113, %v1112
    %vm1115 = vcmp.lt.s32.totalorder %v79, 0
    %v1116 = vsub.s32 0, %v79
    %v1117 = vsel %vm1115, %v1116, %v79
    %v1118 = vshrl.u32 %v1117, 4
    %v1119 = vand.u32 %v1117, 15
    %v1120 = vsub.s32 0, %v1119
    %v1121 = vsel %vm1115, %v1120, %v1119
    %vm1122 = vcmp.lt.s32.totalorder %v80, 0
    %v1123 = vsub.s32 0, %v80
    %v1124 = vsel %vm1122, %v1123, %v80
    %v1125 = vshrl.u32 %v1124, 4
    %v1126 = vand.u32 %v1124, 15
    %v1127 = vsub.s32 0, %v1126
    %v1128 = vsel %vm1122, %v1127, %v1126
    %vm1129 = vcmp.lt.s32.totalorder %v81, 0
    %v1130 = vsub.s32 0, %v81
    %v1131 = vsel %vm1129, %v1130, %v81
    %v1132 = vshrl.u32 %v1131, 4
    %v1133 = vand.u32 %v1131, 15
    %v1134 = vsub.s32 0, %v1133
    %v1135 = vsel %vm1129, %v1134, %v1133
    %vm1136 = vcmp.lt.s32.totalorder %v82, 0
    %v1137 = vsub.s32 0, %v82
    %v1138 = vsel %vm1136, %v1137, %v82
    %v1139 = vshrl.u32 %v1138, 4
    %v1140 = vand.u32 %v1138, 15
    %v1141 = vsub.s32 0, %v1140
    %v1142 = vsel %vm1136, %v1141, %v1140
    %vm1143 = vcmp.lt.s32.totalorder %v83, 0
    %v1144 = vsub.s32 0, %v83
    %v1145 = vsel %vm1143, %v1144, %v83
    %v1146 = vshrl.u32 %v1145, 4
    %v1147 = vand.u32 %v1145, 15
    %v1148 = vsub.s32 0, %v1147
    %v1149 = vsel %vm1143, %v1148, %v1147
    %vm1150 = vcmp.lt.s32.totalorder %v84, 0
    %v1151 = vsub.s32 0, %v84
    %v1152 = vsel %vm1150, %v1151, %v84
    %v1153 = vshrl.u32 %v1152, 4
    %v1154 = vand.u32 %v1152, 15
    %v1155 = vsub.s32 0, %v1154
    %v1156 = vsel %vm1150, %v1155, %v1154
    %vm1157 = vcmp.lt.s32.totalorder %v85, 0
    %v1158 = vsub.s32 0, %v85
    %v1159 = vsel %vm1157, %v1158, %v85
    %v1160 = vshrl.u32 %v1159, 4
    %v1161 = vand.u32 %v1159, 15
    %v1162 = vsub.s32 0, %v1161
    %v1163 = vsel %vm1157, %v1162, %v1161
    %vm1164 = vcmp.lt.s32.totalorder %v86, 0
    %v1165 = vsub.s32 0, %v86
    %v1166 = vsel %vm1164, %v1165, %v86
    %v1167 = vshrl.u32 %v1166, 4
    %v1168 = vand.u32 %v1166, 15
    %v1169 = vsub.s32 0, %v1168
    %v1170 = vsel %vm1164, %v1169, %v1168
    %vm1171 = vcmp.lt.s32.totalorder %v87, 0
    %v1172 = vsub.s32 0, %v87
    %v1173 = vsel %vm1171, %v1172, %v87
    %v1174 = vshrl.u32 %v1173, 4
    %v1175 = vand.u32 %v1173, 15
    %v1176 = vsub.s32 0, %v1175
    %v1177 = vsel %vm1171, %v1176, %v1175
    %vm1178 = vcmp.lt.s32.totalorder %v88, 0
    %v1179 = vsub.s32 0, %v88
    %v1180 = vsel %vm1178, %v1179, %v88
    %v1181 = vshrl.u32 %v1180, 4
    %v1182 = vand.u32 %v1180, 15
    %v1183 = vsub.s32 0, %v1182
    %v1184 = vsel %vm1178, %v1183, %v1182
    %vm1185 = vcmp.lt.s32.totalorder %v89, 0
    %v1186 = vsub.s32 0, %v89
    %v1187 = vsel %vm1185, %v1186, %v89
    %v1188 = vshrl.u32 %v1187, 4
    %v1189 = vand.u32 %v1187, 15
    %v1190 = vsub.s32 0, %v1189
    %v1191 = vsel %vm1185, %v1190, %v1189
    %vm1192 = vcmp.lt.s32.totalorder %v90, 0
    %v1193 = vsub.s32 0, %v90
    %v1194 = vsel %vm1192, %v1193, %v90
    %v1195 = vshrl.u32 %v1194, 4
    %v1196 = vand.u32 %v1194, 15
    %v1197 = vsub.s32 0, %v1196
    %v1198 = vsel %vm1192, %v1197, %v1196
    %vm1199 = vcmp.lt.s32.totalorder %v91, 0
    %v1200 = vsub.s32 0, %v91
    %v1201 = vsel %vm1199, %v1200, %v91
    %v1202 = vshrl.u32 %v1201, 4
    %v1203 = vand.u32 %v1201, 15
    %v1204 = vsub.s32 0, %v1203
    %v1205 = vsel %vm1199, %v1204, %v1203
    %vm1206 = vcmp.lt.s32.totalorder %v92, 0
    %v1207 = vsub.s32 0, %v92
    %v1208 = vsel %vm1206, %v1207, %v92
    %v1209 = vshrl.u32 %v1208, 4
    %v1210 = vand.u32 %v1208, 15
    %v1211 = vsub.s32 0, %v1210
    %v1212 = vsel %vm1206, %v1211, %v1210
    %vm1213 = vcmp.lt.s32.totalorder %v93, 0
    %v1214 = vsub.s32 0, %v93
    %v1215 = vsel %vm1213, %v1214, %v93
    %v1216 = vshrl.u32 %v1215, 4
    %v1217 = vand.u32 %v1215, 15
    %v1218 = vsub.s32 0, %v1217
    %v1219 = vsel %vm1213, %v1218, %v1217
    %vm1220 = vcmp.lt.s32.totalorder %v94, 0
    %v1221 = vsub.s32 0, %v94
    %v1222 = vsel %vm1220, %v1221, %v94
    %v1223 = vshrl.u32 %v1222, 4
    %v1224 = vand.u32 %v1222, 15
    %v1225 = vsub.s32 0, %v1224
    %v1226 = vsel %vm1220, %v1225, %v1224
    %vm1227 = vcmp.lt.s32.totalorder %v95, 0
    %v1228 = vsub.s32 0, %v95
    %v1229 = vsel %vm1227, %v1228, %v95
    %v1230 = vshrl.u32 %v1229, 4
    %v1231 = vand.u32 %v1229, 15
    %v1232 = vsub.s32 0, %v1231
    %v1233 = vsel %vm1227, %v1232, %v1231
    %vm1234 = vcmp.lt.s32.totalorder %v96, 0
    %v1235 = vsub.s32 0, %v96
    %v1236 = vsel %vm1234, %v1235, %v96
    %v1237 = vshrl.u32 %v1236, 4
    %v1238 = vand.u32 %v1236, 15
    %v1239 = vsub.s32 0, %v1238
    %v1240 = vsel %vm1234, %v1239, %v1238
    %vm1241 = vcmp.lt.s32.totalorder %v97, 0
    %v1242 = vsub.s32 0, %v97
    %v1243 = vsel %vm1241, %v1242, %v97
    %v1244 = vshrl.u32 %v1243, 4
    %v1245 = vand.u32 %v1243, 15
    %v1246 = vsub.s32 0, %v1245
    %v1247 = vsel %vm1241, %v1246, %v1245
    %vm1248 = vcmp.lt.s32.totalorder %v98, 0
    %v1249 = vsub.s32 0, %v98
    %v1250 = vsel %vm1248, %v1249, %v98
    %v1251 = vshrl.u32 %v1250, 4
    %v1252 = vand.u32 %v1250, 15
    %v1253 = vsub.s32 0, %v1252
    %v1254 = vsel %vm1248, %v1253, %v1252
    %vm1255 = vcmp.lt.s32.totalorder %v99, 0
    %v1256 = vsub.s32 0, %v99
    %v1257 = vsel %vm1255, %v1256, %v99
    %v1258 = vshrl.u32 %v1257, 4
    %v1259 = vand.u32 %v1257, 15
    %v1260 = vsub.s32 0, %v1259
    %v1261 = vsel %vm1255, %v1260, %v1259
    %vm1262 = vcmp.lt.s32.totalorder %v100, 0
    %v1263 = vsub.s32 0, %v100
    %v1264 = vsel %vm1262, %v1263, %v100
    %v1265 = vshrl.u32 %v1264, 4
    %v1266 = vand.u32 %v1264, 15
    %v1267 = vsub.s32 0, %v1266
    %v1268 = vsel %vm1262, %v1267, %v1266
    %vm1269 = vcmp.lt.s32.totalorder %v101, 0
    %v1270 = vsub.s32 0, %v101
    %v1271 = vsel %vm1269, %v1270, %v101
    %v1272 = vshrl.u32 %v1271, 4
    %v1273 = vand.u32 %v1271, 15
    %v1274 = vsub.s32 0, %v1273
    %v1275 = vsel %vm1269, %v1274, %v1273
    %vm1276 = vcmp.lt.s32.totalorder %v102, 0
    %v1277 = vsub.s32 0, %v102
    %v1278 = vsel %vm1276, %v1277, %v102
    %v1279 = vshrl.u32 %v1278, 4
    %v1280 = vand.u32 %v1278, 15
    %v1281 = vsub.s32 0, %v1280
    %v1282 = vsel %vm1276, %v1281, %v1280
    %vm1283 = vcmp.lt.s32.totalorder %v103, 0
    %v1284 = vsub.s32 0, %v103
    %v1285 = vsel %vm1283, %v1284, %v103
    %v1286 = vshrl.u32 %v1285, 4
    %v1287 = vand.u32 %v1285, 15
    %v1288 = vsub.s32 0, %v1287
    %v1289 = vsel %vm1283, %v1288, %v1287
    %vm1290 = vcmp.lt.s32.totalorder %v104, 0
    %v1291 = vsub.s32 0, %v104
    %v1292 = vsel %vm1290, %v1291, %v104
    %v1293 = vshrl.u32 %v1292, 4
    %v1294 = vand.u32 %v1292, 15
    %v1295 = vsub.s32 0, %v1294
    %v1296 = vsel %vm1290, %v1295, %v1294
    %vm1297 = vcmp.lt.s32.totalorder %v105, 0
    %v1298 = vsub.s32 0, %v105
    %v1299 = vsel %vm1297, %v1298, %v105
    %v1300 = vshrl.u32 %v1299, 4
    %v1301 = vand.u32 %v1299, 15
    %v1302 = vsub.s32 0, %v1301
    %v1303 = vsel %vm1297, %v1302, %v1301
    %vm1304 = vcmp.lt.s32.totalorder %v106, 0
    %v1305 = vsub.s32 0, %v106
    %v1306 = vsel %vm1304, %v1305, %v106
    %v1307 = vshrl.u32 %v1306, 4
    %v1308 = vand.u32 %v1306, 15
    %v1309 = vsub.s32 0, %v1308
    %v1310 = vsel %vm1304, %v1309, %v1308
    %vm1311 = vcmp.lt.s32.totalorder %v107, 0
    %v1312 = vsub.s32 0, %v107
    %v1313 = vsel %vm1311, %v1312, %v107
    %v1314 = vshrl.u32 %v1313, 4
    %v1315 = vand.u32 %v1313, 15
    %v1316 = vsub.s32 0, %v1315
    %v1317 = vsel %vm1311, %v1316, %v1315
    %vm1318 = vcmp.lt.s32.totalorder %v108, 0
    %v1319 = vsub.s32 0, %v108
    %v1320 = vsel %vm1318, %v1319, %v108
    %v1321 = vshrl.u32 %v1320, 4
    %v1322 = vand.u32 %v1320, 15
    %v1323 = vsub.s32 0, %v1322
    %v1324 = vsel %vm1318, %v1323, %v1322
    %vm1325 = vcmp.ne.s32.totalorder %v883, 0
    %vm1326 = vcmp.ne.s32.totalorder %v890, 0
    %vm1327 = vcmp.ne.s32.totalorder %v897, 0
    %vm1328 = vcmp.ne.s32.totalorder %v904, 0
    %vm1329 = vcmp.ne.s32.totalorder %v911, 0
    %vm1330 = vcmp.ne.s32.totalorder %v918, 0
    %vm1331 = vcmp.ne.s32.totalorder %v925, 0
    %vm1332 = vcmp.ne.s32.totalorder %v932, 0
    %vm1333 = vcmp.ne.s32.totalorder %v939, 0
    %vm1334 = vcmp.ne.s32.totalorder %v946, 0
    %vm1335 = vcmp.ne.s32.totalorder %v953, 0
    %vm1336 = vcmp.ne.s32.totalorder %v960, 0
    %vm1337 = vcmp.ne.s32.totalorder %v967, 0
    %vm1338 = vcmp.ne.s32.totalorder %v974, 0
    %vm1339 = vcmp.ne.s32.totalorder %v981, 0
    %vm1340 = vcmp.ne.s32.totalorder %v988, 0
    %vm1341 = vcmp.ne.s32.totalorder %v995, 0
    %vm1342 = vcmp.ne.s32.totalorder %v1002, 0
    %vm1343 = vcmp.ne.s32.totalorder %v1009, 0
    %vm1344 = vcmp.ne.s32.totalorder %v1016, 0
    %vm1345 = vcmp.ne.s32.totalorder %v1023, 0
    %vm1346 = vcmp.ne.s32.totalorder %v1030, 0
    %vm1347 = vcmp.ne.s32.totalorder %v1037, 0
    %vm1348 = vcmp.ne.s32.totalorder %v1044, 0
    %vm1349 = vcmp.ne.s32.totalorder %v1051, 0
    %vm1350 = vcmp.ne.s32.totalorder %v1058, 0
    %vm1351 = vcmp.ne.s32.totalorder %v1065, 0
    %vm1352 = vcmp.ne.s32.totalorder %v1072, 0
    %vm1353 = vcmp.ne.s32.totalorder %v1079, 0
    %vm1354 = vcmp.ne.s32.totalorder %v1086, 0
    %vm1355 = vcmp.ne.s32.totalorder %v1093, 0
    %vm1356 = vcmp.ne.s32.totalorder %v1100, 0
    %vm1357 = vcmp.ne.s32.totalorder %v1107, 0
    %vm1358 = vcmp.ne.s32.totalorder %v1114, 0
    %vm1359 = vcmp.ne.s32.totalorder %v1121, 0
    %vm1360 = vcmp.ne.s32.totalorder %v1128, 0
    %vm1361 = vcmp.ne.s32.totalorder %v1135, 0
    %vm1362 = vcmp.ne.s32.totalorder %v1142, 0
    %vm1363 = vcmp.ne.s32.totalorder %v1149, 0
    %vm1364 = vcmp.ne.s32.totalorder %v1156, 0
    %vm1365 = vcmp.ne.s32.totalorder %v1163, 0
    %vm1366 = vcmp.ne.s32.totalorder %v1170, 0
    %vm1367 = vcmp.ne.s32.totalorder %v1177, 0
    %vm1368 = vcmp.ne.s32.totalorder %v1184, 0
    %vm1369 = vcmp.ne.s32.totalorder %v1191, 0
    %vm1370 = vcmp.ne.s32.totalorder %v1198, 0
    %vm1371 = vcmp.ne.s32.totalorder %v1205, 0
    %vm1372 = vcmp.ne.s32.totalorder %v1212, 0
    %vm1373 = vcmp.ne.s32.totalorder %v1219, 0
    %vm1374 = vcmp.ne.s32.totalorder %v1226, 0
    %vm1375 = vcmp.ne.s32.totalorder %v1233, 0
    %vm1376 = vcmp.ne.s32.totalorder %v1240, 0
    %vm1377 = vcmp.ne.s32.totalorder %v1247, 0
    %vm1378 = vcmp.ne.s32.totalorder %v1254, 0
    %vm1379 = vcmp.ne.s32.totalorder %v1261, 0
    %vm1380 = vcmp.ne.s32.totalorder %v1268, 0
    %vm1381 = vcmp.ne.s32.totalorder %v1275, 0
    %vm1382 = vcmp.ne.s32.totalorder %v1282, 0
    %vm1383 = vcmp.ne.s32.totalorder %v1289, 0
    %vm1384 = vcmp.ne.s32.totalorder %v1296, 0
    %vm1385 = vcmp.ne.s32.totalorder %v1303, 0
    %vm1386 = vcmp.ne.s32.totalorder %v1310, 0
    %vm1387 = vcmp.ne.s32.totalorder %v1317, 0
    %vm1388 = vcmp.ne.s32.totalorder %v1324, 0
    %vm1389 = vcmp.lt.s32.totalorder %v883, 0
    %vm1390 = vcmp.lt.s32.totalorder %v890, 0
    %vm1391 = vcmp.lt.s32.totalorder %v897, 0
    %vm1392 = vcmp.lt.s32.totalorder %v904, 0
    %vm1393 = vcmp.lt.s32.totalorder %v911, 0
    %vm1394 = vcmp.lt.s32.totalorder %v918, 0
    %vm1395 = vcmp.lt.s32.totalorder %v925, 0
    %vm1396 = vcmp.lt.s32.totalorder %v932, 0
    %vm1397 = vcmp.lt.s32.totalorder %v939, 0
    %vm1398 = vcmp.lt.s32.totalorder %v946, 0
    %vm1399 = vcmp.lt.s32.totalorder %v953, 0
    %vm1400 = vcmp.lt.s32.totalorder %v960, 0
    %vm1401 = vcmp.lt.s32.totalorder %v967, 0
    %vm1402 = vcmp.lt.s32.totalorder %v974, 0
    %vm1403 = vcmp.lt.s32.totalorder %v981, 0
    %vm1404 = vcmp.lt.s32.totalorder %v988, 0
    %vm1405 = vcmp.lt.s32.totalorder %v995, 0
    %vm1406 = vcmp.lt.s32.totalorder %v1002, 0
    %vm1407 = vcmp.lt.s32.totalorder %v1009, 0
    %vm1408 = vcmp.lt.s32.totalorder %v1016, 0
    %vm1409 = vcmp.lt.s32.totalorder %v1023, 0
    %vm1410 = vcmp.lt.s32.totalorder %v1030, 0
    %vm1411 = vcmp.lt.s32.totalorder %v1037, 0
    %vm1412 = vcmp.lt.s32.totalorder %v1044, 0
    %vm1413 = vcmp.lt.s32.totalorder %v1051, 0
    %vm1414 = vcmp.lt.s32.totalorder %v1058, 0
    %vm1415 = vcmp.lt.s32.totalorder %v1065, 0
    %vm1416 = vcmp.lt.s32.totalorder %v1072, 0
    %vm1417 = vcmp.lt.s32.totalorder %v1079, 0
    %vm1418 = vcmp.lt.s32.totalorder %v1086, 0
    %vm1419 = vcmp.lt.s32.totalorder %v1093, 0
    %vm1420 = vcmp.lt.s32.totalorder %v1100, 0
    %vm1421 = vcmp.lt.s32.totalorder %v1107, 0
    %vm1422 = vcmp.lt.s32.totalorder %v1114, 0
    %vm1423 = vcmp.lt.s32.totalorder %v1121, 0
    %vm1424 = vcmp.lt.s32.totalorder %v1128, 0
    %vm1425 = vcmp.lt.s32.totalorder %v1135, 0
    %vm1426 = vcmp.lt.s32.totalorder %v1142, 0
    %vm1427 = vcmp.lt.s32.totalorder %v1149, 0
    %vm1428 = vcmp.lt.s32.totalorder %v1156, 0
    %vm1429 = vcmp.lt.s32.totalorder %v1163, 0
    %vm1430 = vcmp.lt.s32.totalorder %v1170, 0
    %vm1431 = vcmp.lt.s32.totalorder %v1177, 0
    %vm1432 = vcmp.lt.s32.totalorder %v1184, 0
    %vm1433 = vcmp.lt.s32.totalorder %v1191, 0
    %vm1434 = vcmp.lt.s32.totalorder %v1198, 0
    %vm1435 = vcmp.lt.s32.totalorder %v1205, 0
    %vm1436 = vcmp.lt.s32.totalorder %v1212, 0
    %vm1437 = vcmp.lt.s32.totalorder %v1219, 0
    %vm1438 = vcmp.lt.s32.totalorder %v1226, 0
    %vm1439 = vcmp.lt.s32.totalorder %v1233, 0
    %vm1440 = vcmp.lt.s32.totalorder %v1240, 0
    %vm1441 = vcmp.lt.s32.totalorder %v1247, 0
    %vm1442 = vcmp.lt.s32.totalorder %v1254, 0
    %vm1443 = vcmp.lt.s32.totalorder %v1261, 0
    %vm1444 = vcmp.lt.s32.totalorder %v1268, 0
    %vm1445 = vcmp.lt.s32.totalorder %v1275, 0
    %vm1446 = vcmp.lt.s32.totalorder %v1282, 0
    %vm1447 = vcmp.lt.s32.totalorder %v1289, 0
    %vm1448 = vcmp.lt.s32.totalorder %v1296, 0
    %vm1449 = vcmp.lt.s32.totalorder %v1303, 0
    %vm1450 = vcmp.lt.s32.totalorder %v1310, 0
    %vm1451 = vcmp.lt.s32.totalorder %v1317, 0
    %vm1452 = vcmp.lt.s32.totalorder %v1324, 0
    %vm1453 = vmand %vm1389, %vm1325
    %vm1454 = vmand %vm1390, %vm1326
    %vm1455 = vmand %vm1391, %vm1327
    %vm1456 = vmand %vm1392, %vm1328
    %vm1457 = vmand %vm1393, %vm1329
    %vm1458 = vmand %vm1394, %vm1330
    %vm1459 = vmand %vm1395, %vm1331
    %vm1460 = vmand %vm1396, %vm1332
    %vm1461 = vmand %vm1397, %vm1333
    %vm1462 = vmand %vm1398, %vm1334
    %vm1463 = vmand %vm1399, %vm1335
    %vm1464 = vmand %vm1400, %vm1336
    %vm1465 = vmand %vm1401, %vm1337
    %vm1466 = vmand %vm1402, %vm1338
    %vm1467 = vmand %vm1403, %vm1339
    %vm1468 = vmand %vm1404, %vm1340
    %vm1469 = vmand %vm1405, %vm1341
    %vm1470 = vmand %vm1406, %vm1342
    %vm1471 = vmand %vm1407, %vm1343
    %vm1472 = vmand %vm1408, %vm1344
    %vm1473 = vmand %vm1409, %vm1345
    %vm1474 = vmand %vm1410, %vm1346
    %vm1475 = vmand %vm1411, %vm1347
    %vm1476 = vmand %vm1412, %vm1348
    %vm1477 = vmand %vm1413, %vm1349
    %vm1478 = vmand %vm1414, %vm1350
    %vm1479 = vmand %vm1415, %vm1351
    %vm1480 = vmand %vm1416, %vm1352
    %vm1481 = vmand %vm1417, %vm1353
    %vm1482 = vmand %vm1418, %vm1354
    %vm1483 = vmand %vm1419, %vm1355
    %vm1484 = vmand %vm1420, %vm1356
    %vm1485 = vmand %vm1421, %vm1357
    %vm1486 = vmand %vm1422, %vm1358
    %vm1487 = vmand %vm1423, %vm1359
    %vm1488 = vmand %vm1424, %vm1360
    %vm1489 = vmand %vm1425, %vm1361
    %vm1490 = vmand %vm1426, %vm1362
    %vm1491 = vmand %vm1427, %vm1363
    %vm1492 = vmand %vm1428, %vm1364
    %vm1493 = vmand %vm1429, %vm1365
    %vm1494 = vmand %vm1430, %vm1366
    %vm1495 = vmand %vm1431, %vm1367
    %vm1496 = vmand %vm1432, %vm1368
    %vm1497 = vmand %vm1433, %vm1369
    %vm1498 = vmand %vm1434, %vm1370
    %vm1499 = vmand %vm1435, %vm1371
    %vm1500 = vmand %vm1436, %vm1372
    %vm1501 = vmand %vm1437, %vm1373
    %vm1502 = vmand %vm1438, %vm1374
    %vm1503 = vmand %vm1439, %vm1375
    %vm1504 = vmand %vm1440, %vm1376
    %vm1505 = vmand %vm1441, %vm1377
    %vm1506 = vmand %vm1442, %vm1378
    %vm1507 = vmand %vm1443, %vm1379
    %vm1508 = vmand %vm1444, %vm1380
    %vm1509 = vmand %vm1445, %vm1381
    %vm1510 = vmand %vm1446, %vm1382
    %vm1511 = vmand %vm1447, %vm1383
    %vm1512 = vmand %vm1448, %vm1384
    %vm1513 = vmand %vm1449, %vm1385
    %vm1514 = vmand %vm1450, %vm1386
    %vm1515 = vmand %vm1451, %vm1387
    %vm1516 = vmand %vm1452, %vm1388
    %v1517 = vadd.s32 %v883, 16
    %v1518 = vadd.s32 %v890, 16
    %v1519 = vadd.s32 %v897, 16
    %v1520 = vadd.s32 %v904, 16
    %v1521 = vadd.s32 %v911, 16
    %v1522 = vadd.s32 %v918, 16
    %v1523 = vadd.s32 %v925, 16
    %v1524 = vadd.s32 %v932, 16
    %v1525 = vadd.s32 %v939, 16
    %v1526 = vadd.s32 %v946, 16
    %v1527 = vadd.s32 %v953, 16
    %v1528 = vadd.s32 %v960, 16
    %v1529 = vadd.s32 %v967, 16
    %v1530 = vadd.s32 %v974, 16
    %v1531 = vadd.s32 %v981, 16
    %v1532 = vadd.s32 %v988, 16
    %v1533 = vadd.s32 %v995, 16
    %v1534 = vadd.s32 %v1002, 16
    %v1535 = vadd.s32 %v1009, 16
    %v1536 = vadd.s32 %v1016, 16
    %v1537 = vadd.s32 %v1023, 16
    %v1538 = vadd.s32 %v1030, 16
    %v1539 = vadd.s32 %v1037, 16
    %v1540 = vadd.s32 %v1044, 16
    %v1541 = vadd.s32 %v1051, 16
    %v1542 = vadd.s32 %v1058, 16
    %v1543 = vadd.s32 %v1065, 16
    %v1544 = vadd.s32 %v1072, 16
    %v1545 = vadd.s32 %v1079, 16
    %v1546 = vadd.s32 %v1086, 16
    %v1547 = vadd.s32 %v1093, 16
    %v1548 = vadd.s32 %v1100, 16
    %v1549 = vadd.s32 %v1107, 16
    %v1550 = vadd.s32 %v1114, 16
    %v1551 = vadd.s32 %v1121, 16
    %v1552 = vadd.s32 %v1128, 16
    %v1553 = vadd.s32 %v1135, 16
    %v1554 = vadd.s32 %v1142, 16
    %v1555 = vadd.s32 %v1149, 16
    %v1556 = vadd.s32 %v1156, 16
    %v1557 = vadd.s32 %v1163, 16
    %v1558 = vadd.s32 %v1170, 16
    %v1559 = vadd.s32 %v1177, 16
    %v1560 = vadd.s32 %v1184, 16
    %v1561 = vadd.s32 %v1191, 16
    %v1562 = vadd.s32 %v1198, 16
    %v1563 = vadd.s32 %v1205, 16
    %v1564 = vadd.s32 %v1212, 16
    %v1565 = vadd.s32 %v1219, 16
    %v1566 = vadd.s32 %v1226, 16
    %v1567 = vadd.s32 %v1233, 16
    %v1568 = vadd.s32 %v1240, 16
    %v1569 = vadd.s32 %v1247, 16
    %v1570 = vadd.s32 %v1254, 16
    %v1571 = vadd.s32 %v1261, 16
    %v1572 = vadd.s32 %v1268, 16
    %v1573 = vadd.s32 %v1275, 16
    %v1574 = vadd.s32 %v1282, 16
    %v1575 = vadd.s32 %v1289, 16
    %v1576 = vadd.s32 %v1296, 16
    %v1577 = vadd.s32 %v1303, 16
    %v1578 = vadd.s32 %v1310, 16
    %v1579 = vadd.s32 %v1317, 16
    %v1580 = vadd.s32 %v1324, 16
    %v1581 = vsel %vm1453, %v1517, %v883
    %v1582 = vsel %vm1454, %v1518, %v890
    %v1583 = vsel %vm1455, %v1519, %v897
    %v1584 = vsel %vm1456, %v1520, %v904
    %v1585 = vsel %vm1457, %v1521, %v911
    %v1586 = vsel %vm1458, %v1522, %v918
    %v1587 = vsel %vm1459, %v1523, %v925
    %v1588 = vsel %vm1460, %v1524, %v932
    %v1589 = vsel %vm1461, %v1525, %v939
    %v1590 = vsel %vm1462, %v1526, %v946
    %v1591 = vsel %vm1463, %v1527, %v953
    %v1592 = vsel %vm1464, %v1528, %v960
    %v1593 = vsel %vm1465, %v1529, %v967
    %v1594 = vsel %vm1466, %v1530, %v974
    %v1595 = vsel %vm1467, %v1531, %v981
    %v1596 = vsel %vm1468, %v1532, %v988
    %v1597 = vsel %vm1469, %v1533, %v995
    %v1598 = vsel %vm1470, %v1534, %v1002
    %v1599 = vsel %vm1471, %v1535, %v1009
    %v1600 = vsel %vm1472, %v1536, %v1016
    %v1601 = vsel %vm1473, %v1537, %v1023
    %v1602 = vsel %vm1474, %v1538, %v1030
    %v1603 = vsel %vm1475, %v1539, %v1037
    %v1604 = vsel %vm1476, %v1540, %v1044
    %v1605 = vsel %vm1477, %v1541, %v1051
    %v1606 = vsel %vm1478, %v1542, %v1058
    %v1607 = vsel %vm1479, %v1543, %v1065
    %v1608 = vsel %vm1480, %v1544, %v1072
    %v1609 = vsel %vm1481, %v1545, %v1079
    %v1610 = vsel %vm1482, %v1546, %v1086
    %v1611 = vsel %vm1483, %v1547, %v1093
    %v1612 = vsel %vm1484, %v1548, %v1100
    %v1613 = vsel %vm1485, %v1549, %v1107
    %v1614 = vsel %vm1486, %v1550, %v1114
    %v1615 = vsel %vm1487, %v1551, %v1121
    %v1616 = vsel %vm1488, %v1552, %v1128
    %v1617 = vsel %vm1489, %v1553, %v1135
    %v1618 = vsel %vm1490, %v1554, %v1142
    %v1619 = vsel %vm1491, %v1555, %v1149
    %v1620 = vsel %vm1492, %v1556, %v1156
    %v1621 = vsel %vm1493, %v1557, %v1163
    %v1622 = vsel %vm1494, %v1558, %v1170
    %v1623 = vsel %vm1495, %v1559, %v1177
    %v1624 = vsel %vm1496, %v1560, %v1184
    %v1625 = vsel %vm1497, %v1561, %v1191
    %v1626 = vsel %vm1498, %v1562, %v1198
    %v1627 = vsel %vm1499, %v1563, %v1205
    %v1628 = vsel %vm1500, %v1564, %v1212
    %v1629 = vsel %vm1501, %v1565, %v1219
    %v1630 = vsel %vm1502, %v1566, %v1226
    %v1631 = vsel %vm1503, %v1567, %v1233
    %v1632 = vsel %vm1504, %v1568, %v1240
    %v1633 = vsel %vm1505, %v1569, %v1247
    %v1634 = vsel %vm1506, %v1570, %v1254
    %v1635 = vsel %vm1507, %v1571, %v1261
    %v1636 = vsel %vm1508, %v1572, %v1268
    %v1637 = vsel %vm1509, %v1573, %v1275
    %v1638 = vsel %vm1510, %v1574, %v1282
    %v1639 = vsel %vm1511, %v1575, %v1289
    %v1640 = vsel %vm1512, %v1576, %v1296
    %v1641 = vsel %vm1513, %v1577, %v1303
    %v1642 = vsel %vm1514, %v1578, %v1310
    %v1643 = vsel %vm1515, %v1579, %v1317
    %v1644 = vsel %vm1516, %v1580, %v1324
    %v1645 = vld [vmem:[%s2] sm:$0x1]
    %v1646 = vld [vmem:[%s2 + $0x1] sm:$0x1]
    %v1647 = vld [vmem:[%s2 + $0x2] sm:$0x1]
    %v1648 = vld [vmem:[%s2 + $0x3] sm:$0x1]
    %v1649 = vld [vmem:[%s2 + $0x4] sm:$0x1]
    %v1650 = vld [vmem:[%s2 + $0x5] sm:$0x1]
    %v1651 = vld [vmem:[#allocation2] sm:$0xf]
    %v1652 = vld [vmem:[#allocation2 + $0x4] sm:$0xf]
    %v1653 = vld [vmem:[#allocation2 + $0x8] sm:$0xf]
    %v1654 = vld [vmem:[#allocation2 + $0xc] sm:$0xf]
    %v1655 = vld [vmem:[#allocation2 + $0x10] sm:$0xf]
    %v1656 = vld [vmem:[#allocation2 + $0x14] sm:$0xf]
    %v1657 = vld [vmem:[#allocation2 + $0x18] sm:$0xf]
    %v1658 = vld [vmem:[#allocation2 + $0x1c] sm:$0xf]
    %v1659 = vld [vmem:[#allocation2 + $0x20] sm:$0xf]
    %v1660 = vld [vmem:[#allocation2 + $0x24] sm:$0xf]
    %v1661 = vld [vmem:[#allocation2 + $0x28] sm:$0xf]
    %v1662 = vld [vmem:[#allocation2 + $0x2c] sm:$0xf]
    %v1663 = vld [vmem:[#allocation2 + $0x30] sm:$0xf]
    %v1664 = vld [vmem:[#allocation2 + $0x34] sm:$0xf]
    %v1665 = vld [vmem:[#allocation2 + $0x38] sm:$0xf]
    %v1666 = vld [vmem:[#allocation2 + $0x3c] sm:$0xf]
    %v1667 = vld [vmem:[#allocation2 + $0x40] sm:$0xf]
    %v1668 = vld [vmem:[#allocation2 + $0x44] sm:$0xf]
    %v1669 = vld [vmem:[#allocation2 + $0x48] sm:$0xf]
    %v1670 = vld [vmem:[#allocation2 + $0x4c] sm:$0xf]
    %v1671 = vld [vmem:[#allocation2 + $0x50] sm:$0xf]
    %v1672 = vld [vmem:[#allocation2 + $0x54] sm:$0xf]
    %v1673 = vld [vmem:[#allocation2 + $0x58] sm:$0xf]
    %v1674 = vld [vmem:[#allocation2 + $0x5c] sm:$0xf]
    %v1675 = vld [vmem:[#allocation2 + $0x60] sm:$0xf]
    %v1676 = vld [vmem:[#allocation2 + $0x64] sm:$0xf]
    %v1677 = vld [vmem:[#allocation2 + $0x68] sm:$0xf]
    %v1678 = vld [vmem:[#allocation2 + $0x6c] sm:$0xf]
    %v1679 = vld [vmem:[#allocation2 + $0x70] sm:$0xf]
    %v1680 = vld [vmem:[#allocation2 + $0x74] sm:$0xf]
    %v1681 = vld [vmem:[#allocation2 + $0x78] sm:$0xf]
    %v1682 = vld [vmem:[#allocation2 + $0x7c] sm:$0xf]
    %v1683 = vld [vmem:[#allocation2 + $0x80] sm:$0xf]
    %v1684 = vld [vmem:[#allocation2 + $0x84] sm:$0xf]
    %v1685 = vld [vmem:[#allocation2 + $0x88] sm:$0xf]
    %v1686 = vld [vmem:[#allocation2 + $0x8c] sm:$0xf]
    %v1687 = vld [vmem:[#allocation2 + $0x90] sm:$0xf]
    %v1688 = vld [vmem:[#allocation2 + $0x94] sm:$0xf]
    %v1689 = vld [vmem:[#allocation2 + $0x98] sm:$0xf]
    %v1690 = vld [vmem:[#allocation2 + $0x9c] sm:$0xf]
    %v1691 = vld [vmem:[#allocation2 + $0xa0] sm:$0xf]
    %v1692 = vld [vmem:[#allocation2 + $0xa4] sm:$0xf]
    %v1693 = vld [vmem:[#allocation2 + $0xa8] sm:$0xf]
    %v1694 = vld [vmem:[#allocation2 + $0xac] sm:$0xf]
    %v1695 = vld [vmem:[#allocation2 + $0xb0] sm:$0xf]
    %v1696 = vld [vmem:[#allocation2 + $0xb4] sm:$0xf]
    %v1697 = vld [vmem:[#allocation2 + $0xb8] sm:$0xf]
    %v1698 = vld [vmem:[#allocation2 + $0xbc] sm:$0xf]
    %v1699 = vld [vmem:[#allocation2 + $0xc0] sm:$0xf]
    %v1700 = vld [vmem:[#allocation2 + $0xc4] sm:$0xf]
    %v1701 = vld [vmem:[#allocation2 + $0xc8] sm:$0xf]
    %v1702 = vld [vmem:[#allocation2 + $0xcc] sm:$0xf]
    %v1703 = vld [vmem:[#allocation2 + $0xd0] sm:$0xf]
    %v1704 = vld [vmem:[#allocation2 + $0xd4] sm:$0xf]
    %v1705 = vld [vmem:[#allocation2 + $0xd8] sm:$0xf]
    %v1706 = vld [vmem:[#allocation2 + $0xdc] sm:$0xf]
    %v1707 = vld [vmem:[#allocation2 + $0xe0] sm:$0xf]
    %v1708 = vld [vmem:[#allocation2 + $0xe4] sm:$0xf]
    %v1709 = vld [vmem:[#allocation2 + $0xe8] sm:$0xf]
    %v1710 = vld [vmem:[#allocation2 + $0xec] sm:$0xf]
    %v1711 = vld [vmem:[#allocation2 + $0xf0] sm:$0xf]
    %v1712 = vld [vmem:[#allocation2 + $0xf4] sm:$0xf]
    %v1713 = vld [vmem:[#allocation2 + $0xf8] sm:$0xf]
    %v1714 = vld [vmem:[#allocation2 + $0xfc] sm:$0xf]
    %v1715 = vunpack.c.l.bf16 %v1651
    %v1716 = vunpack.c.l.bf16 %v1652
    %v1717 = vunpack.c.l.bf16 %v1653
    %v1718 = vunpack.c.l.bf16 %v1654
    %v1719 = vunpack.c.l.bf16 %v1655
    %v1720 = vunpack.c.l.bf16 %v1656
    %v1721 = vunpack.c.l.bf16 %v1657
    %v1722 = vunpack.c.l.bf16 %v1658
    %v1723 = vunpack.c.l.bf16 %v1659
    %v1724 = vunpack.c.l.bf16 %v1660
    %v1725 = vunpack.c.l.bf16 %v1661
    %v1726 = vunpack.c.l.bf16 %v1662
    %v1727 = vunpack.c.l.bf16 %v1663
    %v1728 = vunpack.c.l.bf16 %v1664
    %v1729 = vunpack.c.l.bf16 %v1665
    %v1730 = vunpack.c.l.bf16 %v1666
    %v1731 = vunpack.c.l.bf16 %v1667
    %v1732 = vunpack.c.l.bf16 %v1668
    %v1733 = vunpack.c.l.bf16 %v1669
    %v1734 = vunpack.c.l.bf16 %v1670
    %v1735 = vunpack.c.l.bf16 %v1671
    %v1736 = vunpack.c.l.bf16 %v1672
    %v1737 = vunpack.c.l.bf16 %v1673
    %v1738 = vunpack.c.l.bf16 %v1674
    %v1739 = vunpack.c.l.bf16 %v1675
    %v1740 = vunpack.c.l.bf16 %v1676
    %v1741 = vunpack.c.l.bf16 %v1677
    %v1742 = vunpack.c.l.bf16 %v1678
    %v1743 = vunpack.c.l.bf16 %v1679
    %v1744 = vunpack.c.l.bf16 %v1680
    %v1745 = vunpack.c.l.bf16 %v1681
    %v1746 = vunpack.c.l.bf16 %v1682
    %v1747 = vunpack.c.l.bf16 %v1683
    %v1748 = vunpack.c.l.bf16 %v1684
    %v1749 = vunpack.c.l.bf16 %v1685
    %v1750 = vunpack.c.l.bf16 %v1686
    %v1751 = vunpack.c.l.bf16 %v1687
    %v1752 = vunpack.c.l.bf16 %v1688
    %v1753 = vunpack.c.l.bf16 %v1689
    %v1754 = vunpack.c.l.bf16 %v1690
    %v1755 = vunpack.c.l.bf16 %v1691
    %v1756 = vunpack.c.l.bf16 %v1692
    %v1757 = vunpack.c.l.bf16 %v1693
    %v1758 = vunpack.c.l.bf16 %v1694
    %v1759 = vunpack.c.l.bf16 %v1695
    %v1760 = vunpack.c.l.bf16 %v1696
    %v1761 = vunpack.c.l.bf16 %v1697
    %v1762 = vunpack.c.l.bf16 %v1698
    %v1763 = vunpack.c.l.bf16 %v1699
    %v1764 = vunpack.c.l.bf16 %v1700
    %v1765 = vunpack.c.l.bf16 %v1701
    %v1766 = vunpack.c.l.bf16 %v1702
    %v1767 = vunpack.c.l.bf16 %v1703
    %v1768 = vunpack.c.l.bf16 %v1704
    %v1769 = vunpack.c.l.bf16 %v1705
    %v1770 = vunpack.c.l.bf16 %v1706
    %v1771 = vunpack.c.l.bf16 %v1707
    %v1772 = vunpack.c.l.bf16 %v1708
    %v1773 = vunpack.c.l.bf16 %v1709
    %v1774 = vunpack.c.l.bf16 %v1710
    %v1775 = vunpack.c.l.bf16 %v1711
    %v1776 = vunpack.c.l.bf16 %v1712
    %v1777 = vunpack.c.l.bf16 %v1713
    %v1778 = vunpack.c.l.bf16 %v1714
    %vm1779 = vcmp.ge.s32.totalorder %v813, 16
    %vm1780 = vcmp.ge.s32.totalorder %v814, 16
    %vm1781 = vcmp.ge.s32.totalorder %v815, 16
    %vm1782 = vcmp.ge.s32.totalorder %v816, 16
    %vm1783 = vcmp.ge.s32.totalorder %v817, 16
    %vm1784 = vcmp.ge.s32.totalorder %v818, 16
    %vm1785 = vcmp.ge.s32.totalorder %v819, 16
    %vm1786 = vcmp.ge.s32.totalorder %v820, 16
    %vm1787 = vcmp.ge.s32.totalorder %v821, 16
    %vm1788 = vcmp.ge.s32.totalorder %v822, 16
    %vm1789 = vcmp.ge.s32.totalorder %v823, 16
    %vm1790 = vcmp.ge.s32.totalorder %v824, 16
    %vm1791 = vcmp.ge.s32.totalorder %v825, 16
    %vm1792 = vcmp.ge.s32.totalorder %v826, 16
    %vm1793 = vcmp.ge.s32.totalorder %v827, 16
    %vm1794 = vcmp.ge.s32.totalorder %v828, 16
    %vm1795 = vcmp.ge.s32.totalorder %v829, 16
    %vm1796 = vcmp.ge.s32.totalorder %v830, 16
    %vm1797 = vcmp.ge.s32.totalorder %v831, 16
    %vm1798 = vcmp.ge.s32.totalorder %v832, 16
    %vm1799 = vcmp.ge.s32.totalorder %v833, 16
    %vm1800 = vcmp.ge.s32.totalorder %v834, 16
    %vm1801 = vcmp.ge.s32.totalorder %v835, 16
    %vm1802 = vcmp.ge.s32.totalorder %v836, 16
    %vm1803 = vcmp.ge.s32.totalorder %v837, 16
    %vm1804 = vcmp.ge.s32.totalorder %v838, 16
    %vm1805 = vcmp.ge.s32.totalorder %v839, 16
    %vm1806 = vcmp.ge.s32.totalorder %v840, 16
    %vm1807 = vcmp.ge.s32.totalorder %v841, 16
    %vm1808 = vcmp.ge.s32.totalorder %v842, 16
    %vm1809 = vcmp.ge.s32.totalorder %v843, 16
    %vm1810 = vcmp.ge.s32.totalorder %v844, 16
    %vm1811 = vcmp.ge.s32.totalorder %v845, 16
    %vm1812 = vcmp.ge.s32.totalorder %v846, 16
    %vm1813 = vcmp.ge.s32.totalorder %v847, 16
    %vm1814 = vcmp.ge.s32.totalorder %v848, 16
    %vm1815 = vcmp.ge.s32.totalorder %v849, 16
    %vm1816 = vcmp.ge.s32.totalorder %v850, 16
    %vm1817 = vcmp.ge.s32.totalorder %v851, 16
    %vm1818 = vcmp.ge.s32.totalorder %v852, 16
    %vm1819 = vcmp.ge.s32.totalorder %v853, 16
    %vm1820 = vcmp.ge.s32.totalorder %v854, 16
    %vm1821 = vcmp.ge.s32.totalorder %v855, 16
    %vm1822 = vcmp.ge.s32.totalorder %v856, 16
    %vm1823 = vcmp.ge.s32.totalorder %v857, 16
    %vm1824 = vcmp.ge.s32.totalorder %v858, 16
    %vm1825 = vcmp.ge.s32.totalorder %v859, 16
    %vm1826 = vcmp.ge.s32.totalorder %v860, 16
    %vm1827 = vcmp.ge.s32.totalorder %v861, 16
    %vm1828 = vcmp.ge.s32.totalorder %v862, 16
    %vm1829 = vcmp.ge.s32.totalorder %v863, 16
    %vm1830 = vcmp.ge.s32.totalorder %v864, 16
    %vm1831 = vcmp.ge.s32.totalorder %v865, 16
    %vm1832 = vcmp.ge.s32.totalorder %v866, 16
    %vm1833 = vcmp.ge.s32.totalorder %v867, 16
    %vm1834 = vcmp.ge.s32.totalorder %v868, 16
    %vm1835 = vcmp.ge.s32.totalorder %v869, 16
    %vm1836 = vcmp.ge.s32.totalorder %v870, 16
    %vm1837 = vcmp.ge.s32.totalorder %v871, 16
    %vm1838 = vcmp.ge.s32.totalorder %v872, 16
    %vm1839 = vcmp.ge.s32.totalorder %v873, 16
    %vm1840 = vcmp.ge.s32.totalorder %v874, 16
    %vm1841 = vcmp.ge.s32.totalorder %v875, 16
    %vm1842 = vcmp.ge.s32.totalorder %v876, 16
    %v1843 = vsel %vm1779, 1, 0
    %v1844 = vsel %vm1780, 1, 0
    %v1845 = vsel %vm1781, 1, 0
    %v1846 = vsel %vm1782, 1, 0
    %v1847 = vsel %vm1783, 1, 0
    %v1848 = vsel %vm1784, 1, 0
    %v1849 = vsel %vm1785, 1, 0
    %v1850 = vsel %vm1786, 1, 0
    %v1851 = vsel %vm1787, 1, 0
    %v1852 = vsel %vm1788, 1, 0
    %v1853 = vsel %vm1789, 1, 0
    %v1854 = vsel %vm1790, 1, 0
    %v1855 = vsel %vm1791, 1, 0
    %v1856 = vsel %vm1792, 1, 0
    %v1857 = vsel %vm1793, 1, 0
    %v1858 = vsel %vm1794, 1, 0
    %v1859 = vsel %vm1795, 1, 0
    %v1860 = vsel %vm1796, 1, 0
    %v1861 = vsel %vm1797, 1, 0
    %v1862 = vsel %vm1798, 1, 0
    %v1863 = vsel %vm1799, 1, 0
    %v1864 = vsel %vm1800, 1, 0
    %v1865 = vsel %vm1801, 1, 0
    %v1866 = vsel %vm1802, 1, 0
    %v1867 = vsel %vm1803, 1, 0
    %v1868 = vsel %vm1804, 1, 0
    %v1869 = vsel %vm1805, 1, 0
    %v1870 = vsel %vm1806, 1, 0
    %v1871 = vsel %vm1807, 1, 0
    %v1872 = vsel %vm1808, 1, 0
    %v1873 = vsel %vm1809, 1, 0
    %v1874 = vsel %vm1810, 1, 0
    %v1875 = vsel %vm1811, 1, 0
    %v1876 = vsel %vm1812, 1, 0
    %v1877 = vsel %vm1813, 1, 0
    %v1878 = vsel %vm1814, 1, 0
    %v1879 = vsel %vm1815, 1, 0
    %v1880 = vsel %vm1816, 1, 0
    %v1881 = vsel %vm1817, 1, 0
    %v1882 = vsel %vm1818, 1, 0
    %v1883 = vsel %vm1819, 1, 0
    %v1884 = vsel %vm1820, 1, 0
    %v1885 = vsel %vm1821, 1, 0
    %v1886 = vsel %vm1822, 1, 0
    %v1887 = vsel %vm1823, 1, 0
    %v1888 = vsel %vm1824, 1, 0
    %v1889 = vsel %vm1825, 1, 0
    %v1890 = vsel %vm1826, 1, 0
    %v1891 = vsel %vm1827, 1, 0
    %v1892 = vsel %vm1828, 1, 0
    %v1893 = vsel %vm1829, 1, 0
    %v1894 = vsel %vm1830, 1, 0
    %v1895 = vsel %vm1831, 1, 0
    %v1896 = vsel %vm1832, 1, 0
    %v1897 = vsel %vm1833, 1, 0
    %v1898 = vsel %vm1834, 1, 0
    %v1899 = vsel %vm1835, 1, 0
    %v1900 = vsel %vm1836, 1, 0
    %v1901 = vsel %vm1837, 1, 0
    %v1902 = vsel %vm1838, 1, 0
    %v1903 = vsel %vm1839, 1, 0
    %v1904 = vsel %vm1840, 1, 0
    %v1905 = vsel %vm1841, 1, 0
    %v1906 = vsel %vm1842, 1, 0
    %v1907 = vcvt.s32.f32 %v1843
    %v1908 = vcvt.s32.f32 %v1844
    %v1909 = vcvt.s32.f32 %v1845
    %v1910 = vcvt.s32.f32 %v1846
    %v1911 = vcvt.s32.f32 %v1847
    %v1912 = vcvt.s32.f32 %v1848
    %v1913 = vcvt.s32.f32 %v1849
    %v1914 = vcvt.s32.f32 %v1850
    %v1915 = vcvt.s32.f32 %v1851
    %v1916 = vcvt.s32.f32 %v1852
    %v1917 = vcvt.s32.f32 %v1853
    %v1918 = vcvt.s32.f32 %v1854
    %v1919 = vcvt.s32.f32 %v1855
    %v1920 = vcvt.s32.f32 %v1856
    %v1921 = vcvt.s32.f32 %v1857
    %v1922 = vcvt.s32.f32 %v1858
    %v1923 = vcvt.s32.f32 %v1859
    %v1924 = vcvt.s32.f32 %v1860
    %v1925 = vcvt.s32.f32 %v1861
    %v1926 = vcvt.s32.f32 %v1862
    %v1927 = vcvt.s32.f32 %v1863
    %v1928 = vcvt.s32.f32 %v1864
    %v1929 = vcvt.s32.f32 %v1865
    %v1930 = vcvt.s32.f32 %v1866
    %v1931 = vcvt.s32.f32 %v1867
    %v1932 = vcvt.s32.f32 %v1868
    %v1933 = vcvt.s32.f32 %v1869
    %v1934 = vcvt.s32.f32 %v1870
    %v1935 = vcvt.s32.f32 %v1871
    %v1936 = vcvt.s32.f32 %v1872
    %v1937 = vcvt.s32.f32 %v1873
    %v1938 = vcvt.s32.f32 %v1874
    %v1939 = vcvt.s32.f32 %v1875
    %v1940 = vcvt.s32.f32 %v1876
    %v1941 = vcvt.s32.f32 %v1877
    %v1942 = vcvt.s32.f32 %v1878
    %v1943 = vcvt.s32.f32 %v1879
    %v1944 = vcvt.s32.f32 %v1880
    %v1945 = vcvt.s32.f32 %v1881
    %v1946 = vcvt.s32.f32 %v1882
    %v1947 = vcvt.s32.f32 %v1883
    %v1948 = vcvt.s32.f32 %v1884
    %v1949 = vcvt.s32.f32 %v1885
    %v1950 = vcvt.s32.f32 %v1886
    %v1951 = vcvt.s32.f32 %v1887
    %v1952 = vcvt.s32.f32 %v1888
    %v1953 = vcvt.s32.f32 %v1889
    %v1954 = vcvt.s32.f32 %v1890
    %v1955 = vcvt.s32.f32 %v1891
    %v1956 = vcvt.s32.f32 %v1892
    %v1957 = vcvt.s32.f32 %v1893
    %v1958 = vcvt.s32.f32 %v1894
    %v1959 = vcvt.s32.f32 %v1895
    %v1960 = vcvt.s32.f32 %v1896
    %v1961 = vcvt.s32.f32 %v1897
    %v1962 = vcvt.s32.f32 %v1898
    %v1963 = vcvt.s32.f32 %v1899
    %v1964 = vcvt.s32.f32 %v1900
    %v1965 = vcvt.s32.f32 %v1901
    %v1966 = vcvt.s32.f32 %v1902
    %v1967 = vcvt.s32.f32 %v1903
    %v1968 = vcvt.s32.f32 %v1904
    %v1969 = vcvt.s32.f32 %v1905
    %v1970 = vcvt.s32.f32 %v1906
    %v1971 = vmul.f32 %v1777, %v1907
    %v1972 = vmul.f32 %v1778, %v1908
    %v1973 = vmul.f32 %v1715, %v1909
    %v1974 = vmul.f32 %v1716, %v1910
    %v1975 = vmul.f32 %v1717, %v1911
    %v1976 = vmul.f32 %v1718, %v1912
    %v1977 = vmul.f32 %v1719, %v1913
    %v1978 = vmul.f32 %v1720, %v1914
    %v1979 = vmul.f32 %v1721, %v1915
    %v1980 = vmul.f32 %v1722, %v1916
    %v1981 = vmul.f32 %v1723, %v1917
    %v1982 = vmul.f32 %v1724, %v1918
    %v1983 = vmul.f32 %v1725, %v1919
    %v1984 = vmul.f32 %v1726, %v1920
    %v1985 = vmul.f32 %v1727, %v1921
    %v1986 = vmul.f32 %v1728, %v1922
    %v1987 = vmul.f32 %v1729, %v1923
    %v1988 = vmul.f32 %v1730, %v1924
    %v1989 = vmul.f32 %v1731, %v1925
    %v1990 = vmul.f32 %v1732, %v1926
    %v1991 = vmul.f32 %v1733, %v1927
    %v1992 = vmul.f32 %v1734, %v1928
    %v1993 = vmul.f32 %v1735, %v1929
    %v1994 = vmul.f32 %v1736, %v1930
    %v1995 = vmul.f32 %v1737, %v1931
    %v1996 = vmul.f32 %v1738, %v1932
    %v1997 = vmul.f32 %v1739, %v1933
    %v1998 = vmul.f32 %v1740, %v1934
    %v1999 = vmul.f32 %v1741, %v1935
    %v2000 = vmul.f32 %v1742, %v1936
    %v2001 = vmul.f32 %v1743, %v1937
    %v2002 = vmul.f32 %v1744, %v1938
    %v2003 = vmul.f32 %v1745, %v1939
    %v2004 = vmul.f32 %v1746, %v1940
    %v2005 = vmul.f32 %v1747, %v1941
    %v2006 = vmul.f32 %v1748, %v1942
    %v2007 = vmul.f32 %v1749, %v1943
    %v2008 = vmul.f32 %v1750, %v1944
    %v2009 = vmul.f32 %v1751, %v1945
    %v2010 = vmul.f32 %v1752, %v1946
    %v2011 = vmul.f32 %v1753, %v1947
    %v2012 = vmul.f32 %v1754, %v1948
    %v2013 = vmul.f32 %v1755, %v1949
    %v2014 = vmul.f32 %v1756, %v1950
    %v2015 = vmul.f32 %v1757, %v1951
    %v2016 = vmul.f32 %v1758, %v1952
    %v2017 = vmul.f32 %v1759, %v1953
    %v2018 = vmul.f32 %v1760, %v1954
    %v2019 = vmul.f32 %v1761, %v1955
    %v2020 = vmul.f32 %v1762, %v1956
    %v2021 = vmul.f32 %v1763, %v1957
    %v2022 = vmul.f32 %v1764, %v1958
    %v2023 = vmul.f32 %v1765, %v1959
    %v2024 = vmul.f32 %v1766, %v1960
    %v2025 = vmul.f32 %v1767, %v1961
    %v2026 = vmul.f32 %v1768, %v1962
    %v2027 = vmul.f32 %v1769, %v1963
    %v2028 = vmul.f32 %v1770, %v1964
    %v2029 = vmul.f32 %v1771, %v1965
    %v2030 = vmul.f32 %v1772, %v1966
    %v2031 = vmul.f32 %v1773, %v1967
    %v2032 = vmul.f32 %v1774, %v1968
    %v2033 = vmul.f32 %v1775, %v1969
    %v2034 = vmul.f32 %v1776, %v1970
    %v2035 = vpack.c.bf16 %v1972, %v1971
    %v2036 = vpack.c.bf16 %v1974, %v1973
    %v2037 = vpack.c.bf16 %v1976, %v1975
    %v2038 = vpack.c.bf16 %v1978, %v1977
    %v2039 = vpack.c.bf16 %v1980, %v1979
    %v2040 = vpack.c.bf16 %v1982, %v1981
    %v2041 = vpack.c.bf16 %v1984, %v1983
    %v2042 = vpack.c.bf16 %v1986, %v1985
    %v2043 = vpack.c.bf16 %v1988, %v1987
    %v2044 = vpack.c.bf16 %v1990, %v1989
    %v2045 = vpack.c.bf16 %v1992, %v1991
    %v2046 = vpack.c.bf16 %v1994, %v1993
    %v2047 = vpack.c.bf16 %v1996, %v1995
    %v2048 = vpack.c.bf16 %v1998, %v1997
    %v2049 = vpack.c.bf16 %v2000, %v1999
    %v2050 = vpack.c.bf16 %v2002, %v2001
    %v2051 = vpack.c.bf16 %v2004, %v2003
    %v2052 = vpack.c.bf16 %v2006, %v2005
    %v2053 = vpack.c.bf16 %v2008, %v2007
    %v2054 = vpack.c.bf16 %v2010, %v2009
    %v2055 = vpack.c.bf16 %v2012, %v2011
    %v2056 = vpack.c.bf16 %v2014, %v2013
    %v2057 = vpack.c.bf16 %v2016, %v2015
    %v2058 = vpack.c.bf16 %v2018, %v2017
    %v2059 = vpack.c.bf16 %v2020, %v2019
    %v2060 = vpack.c.bf16 %v2022, %v2021
    %v2061 = vpack.c.bf16 %v2024, %v2023
    %v2062 = vpack.c.bf16 %v2026, %v2025
    %v2063 = vpack.c.bf16 %v2028, %v2027
    %v2064 = vpack.c.bf16 %v2030, %v2029
    %v2065 = vpack.c.bf16 %v2032, %v2031
    %v2066 = vpack.c.bf16 %v2034, %v2033
    %v2067 = vld [vmem:[#allocation5] sm:$0xf]
    %v2068 = vld [vmem:[#allocation5 + $0x4] sm:$0xf]
    %v2069 = vld [vmem:[#allocation5 + $0x8] sm:$0xf]
    %v2070 = vld [vmem:[#allocation5 + $0xc] sm:$0xf]
    %v2071 = vld [vmem:[#allocation5 + $0x10] sm:$0xf]
    %v2072 = vld [vmem:[#allocation5 + $0x14] sm:$0xf]
    %v2073 = vld [vmem:[#allocation5 + $0x18] sm:$0xf]
    %v2074 = vld [vmem:[#allocation5 + $0x1c] sm:$0xf]
    %v2075 = vld [vmem:[#allocation5 + $0x20] sm:$0xf]
    %v2076 = vld [vmem:[#allocation5 + $0x24] sm:$0xf]
    %v2077 = vld [vmem:[#allocation5 + $0x28] sm:$0xf]
    %v2078 = vld [vmem:[#allocation5 + $0x2c] sm:$0xf]
    %v2079 = vld [vmem:[#allocation5 + $0x30] sm:$0xf]
    %v2080 = vld [vmem:[#allocation5 + $0x34] sm:$0xf]
    %v2081 = vld [vmem:[#allocation5 + $0x38] sm:$0xf]
    %v2082 = vld [vmem:[#allocation5 + $0x3c] sm:$0xf]
    %s2083 = scalar_lea.vmem [#allocation5], 64
    %v2084 = vld [vmem:[%s2083] sm:$0xf]
    %v2085 = vld [vmem:[%s2083 + $0x4] sm:$0xf]
    %v2086 = vld [vmem:[%s2083 + $0x8] sm:$0xf]
    %v2087 = vld [vmem:[%s2083 + $0xc] sm:$0xf]
    %v2088 = vld [vmem:[%s2083 + $0x10] sm:$0xf]
    %v2089 = vld [vmem:[%s2083 + $0x14] sm:$0xf]
    %v2090 = vld [vmem:[%s2083 + $0x18] sm:$0xf]
    %v2091 = vld [vmem:[%s2083 + $0x1c] sm:$0xf]
    %v2092 = vld [vmem:[%s2083 + $0x20] sm:$0xf]
    %v2093 = vld [vmem:[%s2083 + $0x24] sm:$0xf]
    %v2094 = vld [vmem:[%s2083 + $0x28] sm:$0xf]
    %v2095 = vld [vmem:[%s2083 + $0x2c] sm:$0xf]
    %v2096 = vld [vmem:[%s2083 + $0x30] sm:$0xf]
    %v2097 = vld [vmem:[%s2083 + $0x34] sm:$0xf]
    %v2098 = vld [vmem:[%s2083 + $0x38] sm:$0xf]
    %v2099 = vld [vmem:[%s2083 + $0x3c] sm:$0xf]
    %v2164 = vunpack.c.l.b16 %v1651
    %v2165 = vunpack.c.l.b16 %v1652
    %v2166 = vunpack.c.l.b16 %v1653
    %v2167 = vunpack.c.l.b16 %v1654
    %v2168 = vunpack.c.l.b16 %v1655
    %v2169 = vunpack.c.l.b16 %v1656
    %v2170 = vunpack.c.l.b16 %v1657
    %v2171 = vunpack.c.l.b16 %v1658
    %v2172 = vunpack.c.l.b16 %v1659
    %v2173 = vunpack.c.l.b16 %v1660
    %v2174 = vunpack.c.l.b16 %v1661
    %v2175 = vunpack.c.l.b16 %v1662
    %v2176 = vunpack.c.l.b16 %v1663
    %v2177 = vunpack.c.l.b16 %v1664
    %v2178 = vunpack.c.l.b16 %v1665
    %v2179 = vunpack.c.l.b16 %v1666
    %v2180 = vunpack.c.l.b16 %v1667
    %v2181 = vunpack.c.l.b16 %v1668
    %v2182 = vunpack.c.l.b16 %v1669
    %v2183 = vunpack.c.l.b16 %v1670
    %v2184 = vunpack.c.l.b16 %v1671
    %v2185 = vunpack.c.l.b16 %v1672
    %v2186 = vunpack.c.l.b16 %v1673
    %v2187 = vunpack.c.l.b16 %v1674
    %v2188 = vunpack.c.l.b16 %v1675
    %v2189 = vunpack.c.l.b16 %v1676
    %v2190 = vunpack.c.l.b16 %v1677
    %v2191 = vunpack.c.l.b16 %v1678
    %v2192 = vunpack.c.l.b16 %v1679
    %v2193 = vunpack.c.l.b16 %v1680
    %v2194 = vunpack.c.l.b16 %v1681
    %v2195 = vunpack.c.l.b16 %v1682
    %v2196 = vunpack.c.l.b16 %v1683
    %v2197 = vunpack.c.l.b16 %v1684
    %v2198 = vunpack.c.l.b16 %v1685
    %v2199 = vunpack.c.l.b16 %v1686
    %v2200 = vunpack.c.l.b16 %v1687
    %v2201 = vunpack.c.l.b16 %v1688
    %v2202 = vunpack.c.l.b16 %v1689
    %v2203 = vunpack.c.l.b16 %v1690
    %v2204 = vunpack.c.l.b16 %v1691
    %v2205 = vunpack.c.l.b16 %v1692
    %v2206 = vunpack.c.l.b16 %v1693
    %v2207 = vunpack.c.l.b16 %v1694
    %v2208 = vunpack.c.l.b16 %v1695
    %v2209 = vunpack.c.l.b16 %v1696
    %v2210 = vunpack.c.l.b16 %v1697
    %v2211 = vunpack.c.l.b16 %v1698
    %v2212 = vunpack.c.l.b16 %v1699
    %v2213 = vunpack.c.l.b16 %v1700
    %v2214 = vunpack.c.l.b16 %v1701
    %v2215 = vunpack.c.l.b16 %v1702
    %v2216 = vunpack.c.l.b16 %v1703
    %v2217 = vunpack.c.l.b16 %v1704
    %v2218 = vunpack.c.l.b16 %v1705
    %v2219 = vunpack.c.l.b16 %v1706
    %v2220 = vunpack.c.l.b16 %v1707
    %v2221 = vunpack.c.l.b16 %v1708
    %v2222 = vunpack.c.l.b16 %v1709
    %v2223 = vunpack.c.l.b16 %v1710
    %v2224 = vunpack.c.l.b16 %v1711
    %v2225 = vunpack.c.l.b16 %v1712
    %v2226 = vunpack.c.l.b16 %v1713
    %v2227 = vunpack.c.l.b16 %v1714
    %v2228 = vpack.c.b16 %v2165, %v2164
    %v2229 = vpack.c.b16 %v2167, %v2166
    %v2230 = vpack.c.b16 %v2169, %v2168
    %v2231 = vpack.c.b16 %v2171, %v2170
    %v2232 = vpack.c.b16 %v2173, %v2172
    %v2233 = vpack.c.b16 %v2175, %v2174
    %v2234 = vpack.c.b16 %v2177, %v2176
    %v2235 = vpack.c.b16 %v2179, %v2178
    %v2236 = vpack.c.b16 %v2181, %v2180
    %v2237 = vpack.c.b16 %v2183, %v2182
    %v2238 = vpack.c.b16 %v2185, %v2184
    %v2239 = vpack.c.b16 %v2187, %v2186
    %v2240 = vpack.c.b16 %v2189, %v2188
    %v2241 = vpack.c.b16 %v2191, %v2190
    %v2242 = vpack.c.b16 %v2193, %v2192
    %v2243 = vpack.c.b16 %v2195, %v2194
    %v2244 = vpack.c.b16 %v2197, %v2196
    %v2245 = vpack.c.b16 %v2199, %v2198
    %v2246 = vpack.c.b16 %v2201, %v2200
    %v2247 = vpack.c.b16 %v2203, %v2202
    %v2248 = vpack.c.b16 %v2205, %v2204
    %v2249 = vpack.c.b16 %v2207, %v2206
    %v2250 = vpack.c.b16 %v2209, %v2208
    %v2251 = vpack.c.b16 %v2211, %v2210
    %v2252 = vpack.c.b16 %v2213, %v2212
    %v2253 = vpack.c.b16 %v2215, %v2214
    %v2254 = vpack.c.b16 %v2217, %v2216
    %v2255 = vpack.c.b16 %v2219, %v2218
    %v2256 = vpack.c.b16 %v2221, %v2220
    %v2257 = vpack.c.b16 %v2223, %v2222
    %v2258 = vpack.c.b16 %v2225, %v2224
    %v2259 = vpack.c.b16 %v2227, %v2226
    %v2308 = vunpack.c.l.b16 %v2084
    %v2309 = vunpack.c.l.b16 %v2085
    %v2310 = vunpack.c.l.b16 %v2086
    %v2311 = vunpack.c.l.b16 %v2087
    %v2312 = vunpack.c.l.b16 %v2088
    %v2313 = vunpack.c.l.b16 %v2089
    %v2314 = vunpack.c.l.b16 %v2090
    %v2315 = vunpack.c.l.b16 %v2091
    %v2316 = vunpack.c.l.b16 %v2092
    %v2317 = vunpack.c.l.b16 %v2093
    %v2318 = vunpack.c.l.b16 %v2094
    %v2319 = vunpack.c.l.b16 %v2095
    %v2320 = vunpack.c.l.b16 %v2096
    %v2321 = vunpack.c.l.b16 %v2097
    %v2322 = vunpack.c.l.b16 %v2098
    %v2323 = vunpack.c.l.b16 %v2099
    %v2324 = vpack.c.b16 %v2309, %v2308
    %v2325 = vpack.c.b16 %v2311, %v2310
    %v2326 = vpack.c.b16 %v2313, %v2312
    %v2327 = vpack.c.b16 %v2315, %v2314
    %v2328 = vpack.c.b16 %v2317, %v2316
    %v2329 = vpack.c.b16 %v2319, %v2318
    %v2330 = vpack.c.b16 %v2321, %v2320
    %v2331 = vpack.c.b16 %v2323, %v2322
    %2340 = vmatprep.subr.bf16.mxu0 0
    %2341 = vmatpush1.bf16.msra.mxu0 %v2331
    %2342 = vmatprep.subr.bf16.mxu0 0
    %2343 = vmatpush1.bf16.msra.mxu0 %v2330
    %2344 = vmatprep.subr.bf16.mxu0 0
    %2345 = vmatpush1.bf16.msra.mxu0 %v2329
    %2346 = vmatprep.subr.bf16.mxu0 0
    %2347 = vmatpush1.bf16.msra.mxu0 %v2328
    %2348 = vmatprep.subr.bf16.mxu0 0
    %2349 = vmatpush1.bf16.msra.mxu0 %v2327
    %2350 = vmatprep.subr.bf16.mxu0 0
    %2351 = vmatpush1.bf16.msra.mxu0 %v2326
    %2352 = vmatprep.subr.bf16.mxu0 0
    %2353 = vmatpush1.bf16.msra.mxu0 %v2325
    %2354 = vmatprep.subr.bf16.mxu0 0
    %2355 = vmatpush1.bf16.msra.mxu0 %v2324
    %2356 = vmatprep.subr.bf16.mxu0 0
    %2357 = vmatpush2.bf16.msra.mxu0 0
    %2358 = vmatprep.subr.bf16.mxu0 0
    %2359 = vmatpush2.bf16.msra.mxu0 0
    %2360 = vmatprep.subr.bf16.mxu0 0
    %2361 = vmatpush2.bf16.msra.mxu0 0
    %2362 = vmatprep.subr.bf16.mxu0 0
    %2363 = vmatpush2.bf16.msra.mxu0 0
    %2364 = vmatprep.subr.bf16.mxu0 0
    %2365 = vmatpush2.bf16.msra.mxu0 0
    %2366 = vmatprep.subr.bf16.mxu0 0
    %2367 = vmatpush2.bf16.msra.mxu0 0
    %2368 = vmatprep.subr.bf16.mxu0 0
    %2369 = vmatpush2.bf16.msra.mxu0 0
    %2370 = vmatprep.subr.bf16.mxu0 0
    %2371 = vmatpush2.bf16.msra.mxu0 0
    %2372 = vmatprep.mubr.bf16.mxu0 0
    %2373 = vmatmul.mubr.bf16.gmra.mxu0 %v2228
    %v2374 = vpop.f32.mrf.mxu0
    %v2375 = vadd.f32 0.0, %v2374
    %v2376 = vpop.f32.mrf.mxu0
    %v2377 = vpop.f32.mrf.mxu0
    %v2378 = vadd.f32 0.0, %v2377
    %v2379 = vpop.f32.mrf.mxu0
    %2380 = vmatprep.mubr.bf16.mxu0 0
    %2381 = vmatmul.mubr.bf16.gmra.mxu0 %v2229
    %v2382 = vpop.f32.mrf.mxu0
    %v2383 = vadd.f32 0.0, %v2382
    %v2384 = vpop.f32.mrf.mxu0
    %v2385 = vpop.f32.mrf.mxu0
    %v2386 = vadd.f32 0.0, %v2385
    %v2387 = vpop.f32.mrf.mxu0
    %2388 = vmatprep.mubr.bf16.mxu0 0
    %2389 = vmatmul.mubr.bf16.gmra.mxu0 %v2230
    %v2390 = vpop.f32.mrf.mxu0
    %v2391 = vadd.f32 0.0, %v2390
    %v2392 = vpop.f32.mrf.mxu0
    %v2393 = vpop.f32.mrf.mxu0
    %v2394 = vadd.f32 0.0, %v2393
    %v2395 = vpop.f32.mrf.mxu0
    %2396 = vmatprep.mubr.bf16.mxu0 0
    %2397 = vmatmul.mubr.bf16.gmra.mxu0 %v2231
    %v2398 = vpop.f32.mrf.mxu0
    %v2399 = vadd.f32 0.0, %v2398
    %v2400 = vpop.f32.mrf.mxu0
    %v2401 = vpop.f32.mrf.mxu0
    %v2402 = vadd.f32 0.0, %v2401
    %v2403 = vpop.f32.mrf.mxu0
    %2404 = vmatprep.mubr.bf16.mxu0 0
    %2405 = vmatmul.mubr.bf16.gmra.mxu0 %v2232
    %v2406 = vpop.f32.mrf.mxu0
    %v2407 = vadd.f32 0.0, %v2406
    %v2408 = vpop.f32.mrf.mxu0
    %v2409 = vpop.f32.mrf.mxu0
    %v2410 = vadd.f32 0.0, %v2409
    %v2411 = vpop.f32.mrf.mxu0
    %2412 = vmatprep.mubr.bf16.mxu0 0
    %2413 = vmatmul.mubr.bf16.gmra.mxu0 %v2233
    %v2414 = vpop.f32.mrf.mxu0
    %v2415 = vadd.f32 0.0, %v2414
    %v2416 = vpop.f32.mrf.mxu0
    %v2417 = vpop.f32.mrf.mxu0
    %v2418 = vadd.f32 0.0, %v2417
    %v2419 = vpop.f32.mrf.mxu0
    %2420 = vmatprep.mubr.bf16.mxu0 0
    %2421 = vmatmul.mubr.bf16.gmra.mxu0 %v2234
    %v2422 = vpop.f32.mrf.mxu0
    %v2423 = vadd.f32 0.0, %v2422
    %v2424 = vpop.f32.mrf.mxu0
    %v2425 = vpop.f32.mrf.mxu0
    %v2426 = vadd.f32 0.0, %v2425
    %v2427 = vpop.f32.mrf.mxu0
    %2428 = vmatprep.mubr.bf16.mxu0 0
    %2429 = vmatmul.mubr.bf16.gmra.mxu0 %v2235
    %v2430 = vpop.f32.mrf.mxu0
    %v2431 = vadd.f32 0.0, %v2430
    %v2432 = vpop.f32.mrf.mxu0
    %v2433 = vpop.f32.mrf.mxu0
    %v2434 = vadd.f32 0.0, %v2433
    %v2435 = vpop.f32.mrf.mxu0
    %2436 = vmatprep.mubr.bf16.mxu0 0
    %2437 = vmatmul.mubr.bf16.gmra.mxu0 %v2236
    %v2438 = vpop.f32.mrf.mxu0
    %v2439 = vadd.f32 0.0, %v2438
    %v2440 = vpop.f32.mrf.mxu0
    %v2441 = vpop.f32.mrf.mxu0
    %v2442 = vadd.f32 0.0, %v2441
    %v2443 = vpop.f32.mrf.mxu0
    %2444 = vmatprep.mubr.bf16.mxu0 0
    %2445 = vmatmul.mubr.bf16.gmra.mxu0 %v2237
    %v2446 = vpop.f32.mrf.mxu0
    %v2447 = vadd.f32 0.0, %v2446
    %v2448 = vpop.f32.mrf.mxu0
    %v2449 = vpop.f32.mrf.mxu0
    %v2450 = vadd.f32 0.0, %v2449
    %v2451 = vpop.f32.mrf.mxu0
    %2452 = vmatprep.mubr.bf16.mxu0 0
    %2453 = vmatmul.mubr.bf16.gmra.mxu0 %v2238
    %v2454 = vpop.f32.mrf.mxu0
    %v2455 = vadd.f32 0.0, %v2454
    %v2456 = vpop.f32.mrf.mxu0
    %v2457 = vpop.f32.mrf.mxu0
    %v2458 = vadd.f32 0.0, %v2457
    %v2459 = vpop.f32.mrf.mxu0
    %2460 = vmatprep.mubr.bf16.mxu0 0
    %2461 = vmatmul.mubr.bf16.gmra.mxu0 %v2239
    %v2462 = vpop.f32.mrf.mxu0
    %v2463 = vadd.f32 0.0, %v2462
    %v2464 = vpop.f32.mrf.mxu0
    %v2465 = vpop.f32.mrf.mxu0
    %v2466 = vadd.f32 0.0, %v2465
    %v2467 = vpop.f32.mrf.mxu0
    %2468 = vmatprep.mubr.bf16.mxu0 0
    %2469 = vmatmul.mubr.bf16.gmra.mxu0 %v2240
    %v2470 = vpop.f32.mrf.mxu0
    %v2471 = vadd.f32 0.0, %v2470
    %v2472 = vpop.f32.mrf.mxu0
    %v2473 = vpop.f32.mrf.mxu0
    %v2474 = vadd.f32 0.0, %v2473
    %v2475 = vpop.f32.mrf.mxu0
    %2476 = vmatprep.mubr.bf16.mxu0 0
    %2477 = vmatmul.mubr.bf16.gmra.mxu0 %v2241
    %v2478 = vpop.f32.mrf.mxu0
    %v2479 = vadd.f32 0.0, %v2478
    %v2480 = vpop.f32.mrf.mxu0
    %v2481 = vpop.f32.mrf.mxu0
    %v2482 = vadd.f32 0.0, %v2481
    %v2483 = vpop.f32.mrf.mxu0
    %2484 = vmatprep.mubr.bf16.mxu0 0
    %2485 = vmatmul.mubr.bf16.gmra.mxu0 %v2242
    %v2486 = vpop.f32.mrf.mxu0
    %v2487 = vadd.f32 0.0, %v2486
    %v2488 = vpop.f32.mrf.mxu0
    %v2489 = vpop.f32.mrf.mxu0
    %v2490 = vadd.f32 0.0, %v2489
    %v2491 = vpop.f32.mrf.mxu0
    %2492 = vmatprep.mubr.bf16.mxu0 0
    %2493 = vmatmul.mubr.bf16.gmra.mxu0 %v2243
    %v2494 = vpop.f32.mrf.mxu0
    %v2495 = vadd.f32 0.0, %v2494
    %v2496 = vpop.f32.mrf.mxu0
    %v2497 = vpop.f32.mrf.mxu0
    %v2498 = vadd.f32 0.0, %v2497
    %v2499 = vpop.f32.mrf.mxu0
    %2500 = vmatprep.mubr.bf16.mxu0 0
    %2501 = vmatmul.mubr.bf16.gmra.mxu0 %v2244
    %v2502 = vpop.f32.mrf.mxu0
    %v2503 = vadd.f32 0.0, %v2502
    %v2504 = vpop.f32.mrf.mxu0
    %v2505 = vpop.f32.mrf.mxu0
    %v2506 = vadd.f32 0.0, %v2505
    %v2507 = vpop.f32.mrf.mxu0
    %2508 = vmatprep.mubr.bf16.mxu0 0
    %2509 = vmatmul.mubr.bf16.gmra.mxu0 %v2245
    %v2510 = vpop.f32.mrf.mxu0
    %v2511 = vadd.f32 0.0, %v2510
    %v2512 = vpop.f32.mrf.mxu0
    %v2513 = vpop.f32.mrf.mxu0
    %v2514 = vadd.f32 0.0, %v2513
    %v2515 = vpop.f32.mrf.mxu0
    %2516 = vmatprep.mubr.bf16.mxu0 0
    %2517 = vmatmul.mubr.bf16.gmra.mxu0 %v2246
    %v2518 = vpop.f32.mrf.mxu0
    %v2519 = vadd.f32 0.0, %v2518
    %v2520 = vpop.f32.mrf.mxu0
    %v2521 = vpop.f32.mrf.mxu0
    %v2522 = vadd.f32 0.0, %v2521
    %v2523 = vpop.f32.mrf.mxu0
    %2524 = vmatprep.mubr.bf16.mxu0 0
    %2525 = vmatmul.mubr.bf16.gmra.mxu0 %v2247
    %v2526 = vpop.f32.mrf.mxu0
    %v2527 = vadd.f32 0.0, %v2526
    %v2528 = vpop.f32.mrf.mxu0
    %v2529 = vpop.f32.mrf.mxu0
    %v2530 = vadd.f32 0.0, %v2529
    %v2531 = vpop.f32.mrf.mxu0
    %2532 = vmatprep.mubr.bf16.mxu0 0
    %2533 = vmatmul.mubr.bf16.gmra.mxu0 %v2248
    %v2534 = vpop.f32.mrf.mxu0
    %v2535 = vadd.f32 0.0, %v2534
    %v2536 = vpop.f32.mrf.mxu0
    %v2537 = vpop.f32.mrf.mxu0
    %v2538 = vadd.f32 0.0, %v2537
    %v2539 = vpop.f32.mrf.mxu0
    %2540 = vmatprep.mubr.bf16.mxu0 0
    %2541 = vmatmul.mubr.bf16.gmra.mxu0 %v2249
    %v2542 = vpop.f32.mrf.mxu0
    %v2543 = vadd.f32 0.0, %v2542
    %v2544 = vpop.f32.mrf.mxu0
    %v2545 = vpop.f32.mrf.mxu0
    %v2546 = vadd.f32 0.0, %v2545
    %v2547 = vpop.f32.mrf.mxu0
    %2548 = vmatprep.mubr.bf16.mxu0 0
    %2549 = vmatmul.mubr.bf16.gmra.mxu0 %v2250
    %v2550 = vpop.f32.mrf.mxu0
    %v2551 = vadd.f32 0.0, %v2550
    %v2552 = vpop.f32.mrf.mxu0
    %v2553 = vpop.f32.mrf.mxu0
    %v2554 = vadd.f32 0.0, %v2553
    %v2555 = vpop.f32.mrf.mxu0
    %2556 = vmatprep.mubr.bf16.mxu0 0
    %2557 = vmatmul.mubr.bf16.gmra.mxu0 %v2251
    %v2558 = vpop.f32.mrf.mxu0
    %v2559 = vadd.f32 0.0, %v2558
    %v2560 = vpop.f32.mrf.mxu0
    %v2561 = vpop.f32.mrf.mxu0
    %v2562 = vadd.f32 0.0, %v2561
    %v2563 = vpop.f32.mrf.mxu0
    %2564 = vmatprep.mubr.bf16.mxu0 0
    %2565 = vmatmul.mubr.bf16.gmra.mxu0 %v2252
    %v2566 = vpop.f32.mrf.mxu0
    %v2567 = vadd.f32 0.0, %v2566
    %v2568 = vpop.f32.mrf.mxu0
    %v2569 = vpop.f32.mrf.mxu0
    %v2570 = vadd.f32 0.0, %v2569
    %v2571 = vpop.f32.mrf.mxu0
    %2572 = vmatprep.mubr.bf16.mxu0 0
    %2573 = vmatmul.mubr.bf16.gmra.mxu0 %v2253
    %v2574 = vpop.f32.mrf.mxu0
    %v2575 = vadd.f32 0.0, %v2574
    %v2576 = vpop.f32.mrf.mxu0
    %v2577 = vpop.f32.mrf.mxu0
    %v2578 = vadd.f32 0.0, %v2577
    %v2579 = vpop.f32.mrf.mxu0
    %2580 = vmatprep.mubr.bf16.mxu0 0
    %2581 = vmatmul.mubr.bf16.gmra.mxu0 %v2254
    %v2582 = vpop.f32.mrf.mxu0
    %v2583 = vadd.f32 0.0, %v2582
    %v2584 = vpop.f32.mrf.mxu0
    %v2585 = vpop.f32.mrf.mxu0
    %v2586 = vadd.f32 0.0, %v2585
    %v2587 = vpop.f32.mrf.mxu0
    %2588 = vmatprep.mubr.bf16.mxu0 0
    %2589 = vmatmul.mubr.bf16.gmra.mxu0 %v2255
    %v2590 = vpop.f32.mrf.mxu0
    %v2591 = vadd.f32 0.0, %v2590
    %v2592 = vpop.f32.mrf.mxu0
    %v2593 = vpop.f32.mrf.mxu0
    %v2594 = vadd.f32 0.0, %v2593
    %v2595 = vpop.f32.mrf.mxu0
    %2596 = vmatprep.mubr.bf16.mxu0 0
    %2597 = vmatmul.mubr.bf16.gmra.mxu0 %v2256
    %v2598 = vpop.f32.mrf.mxu0
    %v2599 = vadd.f32 0.0, %v2598
    %v2600 = vpop.f32.mrf.mxu0
    %v2601 = vpop.f32.mrf.mxu0
    %v2602 = vadd.f32 0.0, %v2601
    %v2603 = vpop.f32.mrf.mxu0
    %2604 = vmatprep.mubr.bf16.mxu0 0
    %2605 = vmatmul.mubr.bf16.gmra.mxu0 %v2257
    %v2606 = vpop.f32.mrf.mxu0
    %v2607 = vadd.f32 0.0, %v2606
    %v2608 = vpop.f32.mrf.mxu0
    %v2609 = vpop.f32.mrf.mxu0
    %v2610 = vadd.f32 0.0, %v2609
    %v2611 = vpop.f32.mrf.mxu0
    %2612 = vmatprep.mubr.bf16.mxu0 0
    %2613 = vmatmul.mubr.bf16.gmra.mxu0 %v2258
    %v2614 = vpop.f32.mrf.mxu0
    %v2615 = vadd.f32 0.0, %v2614
    %v2616 = vpop.f32.mrf.mxu0
    %v2617 = vpop.f32.mrf.mxu0
    %v2618 = vadd.f32 0.0, %v2617
    %v2619 = vpop.f32.mrf.mxu0
    %2620 = vmatprep.mubr.bf16.mxu0 0
    %2621 = vmatmul.mubr.bf16.gmra.mxu0 %v2259
    %v2622 = vpop.f32.mrf.mxu0
    %v2623 = vadd.f32 0.0, %v2622
    %v2624 = vpop.f32.mrf.mxu0
    %v2625 = vpop.f32.mrf.mxu0
    %v2626 = vadd.f32 0.0, %v2625
    %v2627 = vpop.f32.mrf.mxu0
    %2628 = vdwg.mxu0
    %v2645 = vunpack.c.l.b16 %v2067
    %v2646 = vunpack.c.l.b16 %v2068
    %v2647 = vunpack.c.l.b16 %v2069
    %v2648 = vunpack.c.l.b16 %v2070
    %v2649 = vunpack.c.l.b16 %v2071
    %v2650 = vunpack.c.l.b16 %v2072
    %v2651 = vunpack.c.l.b16 %v2073
    %v2652 = vunpack.c.l.b16 %v2074
    %v2653 = vunpack.c.l.b16 %v2075
    %v2654 = vunpack.c.l.b16 %v2076
    %v2655 = vunpack.c.l.b16 %v2077
    %v2656 = vunpack.c.l.b16 %v2078
    %v2657 = vunpack.c.l.b16 %v2079
    %v2658 = vunpack.c.l.b16 %v2080
    %v2659 = vunpack.c.l.b16 %v2081
    %v2660 = vunpack.c.l.b16 %v2082
    %v2661 = vpack.c.b16 %v2646, %v2645
    %v2662 = vpack.c.b16 %v2648, %v2647
    %v2663 = vpack.c.b16 %v2650, %v2649
    %v2664 = vpack.c.b16 %v2652, %v2651
    %v2665 = vpack.c.b16 %v2654, %v2653
    %v2666 = vpack.c.b16 %v2656, %v2655
    %v2667 = vpack.c.b16 %v2658, %v2657
    %v2668 = vpack.c.b16 %v2660, %v2659
    %2677 = vmatprep.subr.bf16.mxu0 0
    %2678 = vmatpush1.bf16.msra.mxu0 %v2668
    %2679 = vmatprep.subr.bf16.mxu0 0
    %2680 = vmatpush1.bf16.msra.mxu0 %v2667
    %2681 = vmatprep.subr.bf16.mxu0 0
    %2682 = vmatpush1.bf16.msra.mxu0 %v2666
    %2683 = vmatprep.subr.bf16.mxu0 0
    %2684 = vmatpush1.bf16.msra.mxu0 %v2665
    %2685 = vmatprep.subr.bf16.mxu0 0
    %2686 = vmatpush1.bf16.msra.mxu0 %v2664
    %2687 = vmatprep.subr.bf16.mxu0 0
    %2688 = vmatpush1.bf16.msra.mxu0 %v2663
    %2689 = vmatprep.subr.bf16.mxu0 0
    %2690 = vmatpush1.bf16.msra.mxu0 %v2662
    %2691 = vmatprep.subr.bf16.mxu0 0
    %2692 = vmatpush1.bf16.msra.mxu0 %v2661
    %2693 = vmatprep.subr.bf16.mxu0 0
    %2694 = vmatpush2.bf16.msra.mxu0 0
    %2695 = vmatprep.subr.bf16.mxu0 0
    %2696 = vmatpush2.bf16.msra.mxu0 0
    %2697 = vmatprep.subr.bf16.mxu0 0
    %2698 = vmatpush2.bf16.msra.mxu0 0
    %2699 = vmatprep.subr.bf16.mxu0 0
    %2700 = vmatpush2.bf16.msra.mxu0 0
    %2701 = vmatprep.subr.bf16.mxu0 0
    %2702 = vmatpush2.bf16.msra.mxu0 0
    %2703 = vmatprep.subr.bf16.mxu0 0
    %2704 = vmatpush2.bf16.msra.mxu0 0
    %2705 = vmatprep.subr.bf16.mxu0 0
    %2706 = vmatpush2.bf16.msra.mxu0 0
    %2707 = vmatprep.subr.bf16.mxu0 0
    %2708 = vmatpush2.bf16.msra.mxu0 0
    %2709 = vmatprep.mubr.bf16.mxu0 0
    %2710 = vmatmul.mubr.bf16.gmra.mxu0 %v2035
    %v2711 = vpop.f32.mrf.mxu0
    %v2712 = vadd.f32 %v2375, %v2711
    %v2713 = vpop.f32.mrf.mxu0
    %v2714 = vpop.f32.mrf.mxu0
    %v2715 = vadd.f32 %v2378, %v2714
    %v2716 = vpop.f32.mrf.mxu0
    %2717 = vmatprep.mubr.bf16.mxu0 0
    %2718 = vmatmul.mubr.bf16.gmra.mxu0 %v2036
    %v2719 = vpop.f32.mrf.mxu0
    %v2720 = vadd.f32 %v2383, %v2719
    %v2721 = vpop.f32.mrf.mxu0
    %v2722 = vpop.f32.mrf.mxu0
    %v2723 = vadd.f32 %v2386, %v2722
    %v2724 = vpop.f32.mrf.mxu0
    %2725 = vmatprep.mubr.bf16.mxu0 0
    %2726 = vmatmul.mubr.bf16.gmra.mxu0 %v2037
    %v2727 = vpop.f32.mrf.mxu0
    %v2728 = vadd.f32 %v2391, %v2727
    %v2729 = vpop.f32.mrf.mxu0
    %v2730 = vpop.f32.mrf.mxu0
    %v2731 = vadd.f32 %v2394, %v2730
    %v2732 = vpop.f32.mrf.mxu0
    %2733 = vmatprep.mubr.bf16.mxu0 0
    %2734 = vmatmul.mubr.bf16.gmra.mxu0 %v2038
    %v2735 = vpop.f32.mrf.mxu0
    %v2736 = vadd.f32 %v2399, %v2735
    %v2737 = vpop.f32.mrf.mxu0
    %v2738 = vpop.f32.mrf.mxu0
    %v2739 = vadd.f32 %v2402, %v2738
    %v2740 = vpop.f32.mrf.mxu0
    %2741 = vmatprep.mubr.bf16.mxu0 0
    %2742 = vmatmul.mubr.bf16.gmra.mxu0 %v2039
    %v2743 = vpop.f32.mrf.mxu0
    %v2744 = vadd.f32 %v2407, %v2743
    %v2745 = vpop.f32.mrf.mxu0
    %v2746 = vpop.f32.mrf.mxu0
    %v2747 = vadd.f32 %v2410, %v2746
    %v2748 = vpop.f32.mrf.mxu0
    %2749 = vmatprep.mubr.bf16.mxu0 0
    %2750 = vmatmul.mubr.bf16.gmra.mxu0 %v2040
    %v2751 = vpop.f32.mrf.mxu0
    %v2752 = vadd.f32 %v2415, %v2751
    %v2753 = vpop.f32.mrf.mxu0
    %v2754 = vpop.f32.mrf.mxu0
    %v2755 = vadd.f32 %v2418, %v2754
    %v2756 = vpop.f32.mrf.mxu0
    %2757 = vmatprep.mubr.bf16.mxu0 0
    %2758 = vmatmul.mubr.bf16.gmra.mxu0 %v2041
    %v2759 = vpop.f32.mrf.mxu0
    %v2760 = vadd.f32 %v2423, %v2759
    %v2761 = vpop.f32.mrf.mxu0
    %v2762 = vpop.f32.mrf.mxu0
    %v2763 = vadd.f32 %v2426, %v2762
    %v2764 = vpop.f32.mrf.mxu0
    %2765 = vmatprep.mubr.bf16.mxu0 0
    %2766 = vmatmul.mubr.bf16.gmra.mxu0 %v2042
    %v2767 = vpop.f32.mrf.mxu0
    %v2768 = vadd.f32 %v2431, %v2767
    %v2769 = vpop.f32.mrf.mxu0
    %v2770 = vpop.f32.mrf.mxu0
    %v2771 = vadd.f32 %v2434, %v2770
    %v2772 = vpop.f32.mrf.mxu0
    %2773 = vmatprep.mubr.bf16.mxu0 0
    %2774 = vmatmul.mubr.bf16.gmra.mxu0 %v2043
    %v2775 = vpop.f32.mrf.mxu0
    %v2776 = vadd.f32 %v2439, %v2775
    %v2777 = vpop.f32.mrf.mxu0
    %v2778 = vpop.f32.mrf.mxu0
    %v2779 = vadd.f32 %v2442, %v2778
    %v2780 = vpop.f32.mrf.mxu0
    %2781 = vmatprep.mubr.bf16.mxu0 0
    %2782 = vmatmul.mubr.bf16.gmra.mxu0 %v2044
    %v2783 = vpop.f32.mrf.mxu0
    %v2784 = vadd.f32 %v2447, %v2783
    %v2785 = vpop.f32.mrf.mxu0
    %v2786 = vpop.f32.mrf.mxu0
    %v2787 = vadd.f32 %v2450, %v2786
    %v2788 = vpop.f32.mrf.mxu0
    %2789 = vmatprep.mubr.bf16.mxu0 0
    %2790 = vmatmul.mubr.bf16.gmra.mxu0 %v2045
    %v2791 = vpop.f32.mrf.mxu0
    %v2792 = vadd.f32 %v2455, %v2791
    %v2793 = vpop.f32.mrf.mxu0
    %v2794 = vpop.f32.mrf.mxu0
    %v2795 = vadd.f32 %v2458, %v2794
    %v2796 = vpop.f32.mrf.mxu0
    %2797 = vmatprep.mubr.bf16.mxu0 0
    %2798 = vmatmul.mubr.bf16.gmra.mxu0 %v2046
    %v2799 = vpop.f32.mrf.mxu0
    %v2800 = vadd.f32 %v2463, %v2799
    %v2801 = vpop.f32.mrf.mxu0
    %v2802 = vpop.f32.mrf.mxu0
    %v2803 = vadd.f32 %v2466, %v2802
    %v2804 = vpop.f32.mrf.mxu0
    %2805 = vmatprep.mubr.bf16.mxu0 0
    %2806 = vmatmul.mubr.bf16.gmra.mxu0 %v2047
    %v2807 = vpop.f32.mrf.mxu0
    %v2808 = vadd.f32 %v2471, %v2807
    %v2809 = vpop.f32.mrf.mxu0
    %v2810 = vpop.f32.mrf.mxu0
    %v2811 = vadd.f32 %v2474, %v2810
    %v2812 = vpop.f32.mrf.mxu0
    %2813 = vmatprep.mubr.bf16.mxu0 0
    %2814 = vmatmul.mubr.bf16.gmra.mxu0 %v2048
    %v2815 = vpop.f32.mrf.mxu0
    %v2816 = vadd.f32 %v2479, %v2815
    %v2817 = vpop.f32.mrf.mxu0
    %v2818 = vpop.f32.mrf.mxu0
    %v2819 = vadd.f32 %v2482, %v2818
    %v2820 = vpop.f32.mrf.mxu0
    %2821 = vmatprep.mubr.bf16.mxu0 0
    %2822 = vmatmul.mubr.bf16.gmra.mxu0 %v2049
    %v2823 = vpop.f32.mrf.mxu0
    %v2824 = vadd.f32 %v2487, %v2823
    %v2825 = vpop.f32.mrf.mxu0
    %v2826 = vpop.f32.mrf.mxu0
    %v2827 = vadd.f32 %v2490, %v2826
    %v2828 = vpop.f32.mrf.mxu0
    %2829 = vmatprep.mubr.bf16.mxu0 0
    %2830 = vmatmul.mubr.bf16.gmra.mxu0 %v2050
    %v2831 = vpop.f32.mrf.mxu0
    %v2832 = vadd.f32 %v2495, %v2831
    %v2833 = vpop.f32.mrf.mxu0
    %v2834 = vpop.f32.mrf.mxu0
    %v2835 = vadd.f32 %v2498, %v2834
    %v2836 = vpop.f32.mrf.mxu0
    %2837 = vmatprep.mubr.bf16.mxu0 0
    %2838 = vmatmul.mubr.bf16.gmra.mxu0 %v2051
    %v2839 = vpop.f32.mrf.mxu0
    %v2840 = vadd.f32 %v2503, %v2839
    %v2841 = vpop.f32.mrf.mxu0
    %v2842 = vpop.f32.mrf.mxu0
    %v2843 = vadd.f32 %v2506, %v2842
    %v2844 = vpop.f32.mrf.mxu0
    %2845 = vmatprep.mubr.bf16.mxu0 0
    %2846 = vmatmul.mubr.bf16.gmra.mxu0 %v2052
    %v2847 = vpop.f32.mrf.mxu0
    %v2848 = vadd.f32 %v2511, %v2847
    %v2849 = vpop.f32.mrf.mxu0
    %v2850 = vpop.f32.mrf.mxu0
    %v2851 = vadd.f32 %v2514, %v2850
    %v2852 = vpop.f32.mrf.mxu0
    %2853 = vmatprep.mubr.bf16.mxu0 0
    %2854 = vmatmul.mubr.bf16.gmra.mxu0 %v2053
    %v2855 = vpop.f32.mrf.mxu0
    %v2856 = vadd.f32 %v2519, %v2855
    %v2857 = vpop.f32.mrf.mxu0
    %v2858 = vpop.f32.mrf.mxu0
    %v2859 = vadd.f32 %v2522, %v2858
    %v2860 = vpop.f32.mrf.mxu0
    %2861 = vmatprep.mubr.bf16.mxu0 0
    %2862 = vmatmul.mubr.bf16.gmra.mxu0 %v2054
    %v2863 = vpop.f32.mrf.mxu0
    %v2864 = vadd.f32 %v2527, %v2863
    %v2865 = vpop.f32.mrf.mxu0
    %v2866 = vpop.f32.mrf.mxu0
    %v2867 = vadd.f32 %v2530, %v2866
    %v2868 = vpop.f32.mrf.mxu0
    %2869 = vmatprep.mubr.bf16.mxu0 0
    %2870 = vmatmul.mubr.bf16.gmra.mxu0 %v2055
    %v2871 = vpop.f32.mrf.mxu0
    %v2872 = vadd.f32 %v2535, %v2871
    %v2873 = vpop.f32.mrf.mxu0
    %v2874 = vpop.f32.mrf.mxu0
    %v2875 = vadd.f32 %v2538, %v2874
    %v2876 = vpop.f32.mrf.mxu0
    %2877 = vmatprep.mubr.bf16.mxu0 0
    %2878 = vmatmul.mubr.bf16.gmra.mxu0 %v2056
    %v2879 = vpop.f32.mrf.mxu0
    %v2880 = vadd.f32 %v2543, %v2879
    %v2881 = vpop.f32.mrf.mxu0
    %v2882 = vpop.f32.mrf.mxu0
    %v2883 = vadd.f32 %v2546, %v2882
    %v2884 = vpop.f32.mrf.mxu0
    %2885 = vmatprep.mubr.bf16.mxu0 0
    %2886 = vmatmul.mubr.bf16.gmra.mxu0 %v2057
    %v2887 = vpop.f32.mrf.mxu0
    %v2888 = vadd.f32 %v2551, %v2887
    %v2889 = vpop.f32.mrf.mxu0
    %v2890 = vpop.f32.mrf.mxu0
    %v2891 = vadd.f32 %v2554, %v2890
    %v2892 = vpop.f32.mrf.mxu0
    %2893 = vmatprep.mubr.bf16.mxu0 0
    %2894 = vmatmul.mubr.bf16.gmra.mxu0 %v2058
    %v2895 = vpop.f32.mrf.mxu0
    %v2896 = vadd.f32 %v2559, %v2895
    %v2897 = vpop.f32.mrf.mxu0
    %v2898 = vpop.f32.mrf.mxu0
    %v2899 = vadd.f32 %v2562, %v2898
    %v2900 = vpop.f32.mrf.mxu0
    %2901 = vmatprep.mubr.bf16.mxu0 0
    %2902 = vmatmul.mubr.bf16.gmra.mxu0 %v2059
    %v2903 = vpop.f32.mrf.mxu0
    %v2904 = vadd.f32 %v2567, %v2903
    %v2905 = vpop.f32.mrf.mxu0
    %v2906 = vpop.f32.mrf.mxu0
    %v2907 = vadd.f32 %v2570, %v2906
    %v2908 = vpop.f32.mrf.mxu0
    %2909 = vmatprep.mubr.bf16.mxu0 0
    %2910 = vmatmul.mubr.bf16.gmra.mxu0 %v2060
    %v2911 = vpop.f32.mrf.mxu0
    %v2912 = vadd.f32 %v2575, %v2911
    %v2913 = vpop.f32.mrf.mxu0
    %v2914 = vpop.f32.mrf.mxu0
    %v2915 = vadd.f32 %v2578, %v2914
    %v2916 = vpop.f32.mrf.mxu0
    %2917 = vmatprep.mubr.bf16.mxu0 0
    %2918 = vmatmul.mubr.bf16.gmra.mxu0 %v2061
    %v2919 = vpop.f32.mrf.mxu0
    %v2920 = vadd.f32 %v2583, %v2919
    %v2921 = vpop.f32.mrf.mxu0
    %v2922 = vpop.f32.mrf.mxu0
    %v2923 = vadd.f32 %v2586, %v2922
    %v2924 = vpop.f32.mrf.mxu0
    %2925 = vmatprep.mubr.bf16.mxu0 0
    %2926 = vmatmul.mubr.bf16.gmra.mxu0 %v2062
    %v2927 = vpop.f32.mrf.mxu0
    %v2928 = vadd.f32 %v2591, %v2927
    %v2929 = vpop.f32.mrf.mxu0
    %v2930 = vpop.f32.mrf.mxu0
    %v2931 = vadd.f32 %v2594, %v2930
    %v2932 = vpop.f32.mrf.mxu0
    %2933 = vmatprep.mubr.bf16.mxu0 0
    %2934 = vmatmul.mubr.bf16.gmra.mxu0 %v2063
    %v2935 = vpop.f32.mrf.mxu0
    %v2936 = vadd.f32 %v2599, %v2935
    %v2937 = vpop.f32.mrf.mxu0
    %v2938 = vpop.f32.mrf.mxu0
    %v2939 = vadd.f32 %v2602, %v2938
    %v2940 = vpop.f32.mrf.mxu0
    %2941 = vmatprep.mubr.bf16.mxu0 0
    %2942 = vmatmul.mubr.bf16.gmra.mxu0 %v2064
    %v2943 = vpop.f32.mrf.mxu0
    %v2944 = vadd.f32 %v2607, %v2943
    %v2945 = vpop.f32.mrf.mxu0
    %v2946 = vpop.f32.mrf.mxu0
    %v2947 = vadd.f32 %v2610, %v2946
    %v2948 = vpop.f32.mrf.mxu0
    %2949 = vmatprep.mubr.bf16.mxu0 0
    %2950 = vmatmul.mubr.bf16.gmra.mxu0 %v2065
    %v2951 = vpop.f32.mrf.mxu0
    %v2952 = vadd.f32 %v2615, %v2951
    %v2953 = vpop.f32.mrf.mxu0
    %v2954 = vpop.f32.mrf.mxu0
    %v2955 = vadd.f32 %v2618, %v2954
    %v2956 = vpop.f32.mrf.mxu0
    %2957 = vmatprep.mubr.bf16.mxu0 0
    %2958 = vmatmul.mubr.bf16.gmra.mxu0 %v2066
    %v2959 = vpop.f32.mrf.mxu0
    %v2960 = vadd.f32 %v2623, %v2959
    %v2961 = vpop.f32.mrf.mxu0
    %v2962 = vpop.f32.mrf.mxu0
    %v2963 = vadd.f32 %v2626, %v2962
    %v2964 = vpop.f32.mrf.mxu0
    %2965 = vdwg.mxu0
    %vm2966 = vcmp.lt.s32.totalorder %v813, 240
    %vm2967 = vcmp.lt.s32.totalorder %v814, 240
    %vm2968 = vcmp.lt.s32.totalorder %v815, 240
    %vm2969 = vcmp.lt.s32.totalorder %v816, 240
    %vm2970 = vcmp.lt.s32.totalorder %v817, 240
    %vm2971 = vcmp.lt.s32.totalorder %v818, 240
    %vm2972 = vcmp.lt.s32.totalorder %v819, 240
    %vm2973 = vcmp.lt.s32.totalorder %v820, 240
    %vm2974 = vcmp.lt.s32.totalorder %v821, 240
    %vm2975 = vcmp.lt.s32.totalorder %v822, 240
    %vm2976 = vcmp.lt.s32.totalorder %v823, 240
    %vm2977 = vcmp.lt.s32.totalorder %v824, 240
    %vm2978 = vcmp.lt.s32.totalorder %v825, 240
    %vm2979 = vcmp.lt.s32.totalorder %v826, 240
    %vm2980 = vcmp.lt.s32.totalorder %v827, 240
    %vm2981 = vcmp.lt.s32.totalorder %v828, 240
    %vm2982 = vcmp.lt.s32.totalorder %v829, 240
    %vm2983 = vcmp.lt.s32.totalorder %v830, 240
    %vm2984 = vcmp.lt.s32.totalorder %v831, 240
    %vm2985 = vcmp.lt.s32.totalorder %v832, 240
    %vm2986 = vcmp.lt.s32.totalorder %v833, 240
    %vm2987 = vcmp.lt.s32.totalorder %v834, 240
    %vm2988 = vcmp.lt.s32.totalorder %v835, 240
    %vm2989 = vcmp.lt.s32.totalorder %v836, 240
    %vm2990 = vcmp.lt.s32.totalorder %v837, 240
    %vm2991 = vcmp.lt.s32.totalorder %v838, 240
    %vm2992 = vcmp.lt.s32.totalorder %v839, 240
    %vm2993 = vcmp.lt.s32.totalorder %v840, 240
    %vm2994 = vcmp.lt.s32.totalorder %v841, 240
    %vm2995 = vcmp.lt.s32.totalorder %v842, 240
    %vm2996 = vcmp.lt.s32.totalorder %v843, 240
    %vm2997 = vcmp.lt.s32.totalorder %v844, 240
    %vm2998 = vcmp.lt.s32.totalorder %v845, 240
    %vm2999 = vcmp.lt.s32.totalorder %v846, 240
    %vm3000 = vcmp.lt.s32.totalorder %v847, 240
    %vm3001 = vcmp.lt.s32.totalorder %v848, 240
    %vm3002 = vcmp.lt.s32.totalorder %v849, 240
    %vm3003 = vcmp.lt.s32.totalorder %v850, 240
    %vm3004 = vcmp.lt.s32.totalorder %v851, 240
    %vm3005 = vcmp.lt.s32.totalorder %v852, 240
    %vm3006 = vcmp.lt.s32.totalorder %v853, 240
    %vm3007 = vcmp.lt.s32.totalorder %v854, 240
    %vm3008 = vcmp.lt.s32.totalorder %v855, 240
    %vm3009 = vcmp.lt.s32.totalorder %v856, 240
    %vm3010 = vcmp.lt.s32.totalorder %v857, 240
    %vm3011 = vcmp.lt.s32.totalorder %v858, 240
    %vm3012 = vcmp.lt.s32.totalorder %v859, 240
    %vm3013 = vcmp.lt.s32.totalorder %v860, 240
    %vm3014 = vcmp.lt.s32.totalorder %v861, 240
    %vm3015 = vcmp.lt.s32.totalorder %v862, 240
    %vm3016 = vcmp.lt.s32.totalorder %v863, 240
    %vm3017 = vcmp.lt.s32.totalorder %v864, 240
    %vm3018 = vcmp.lt.s32.totalorder %v865, 240
    %vm3019 = vcmp.lt.s32.totalorder %v866, 240
    %vm3020 = vcmp.lt.s32.totalorder %v867, 240
    %vm3021 = vcmp.lt.s32.totalorder %v868, 240
    %vm3022 = vcmp.lt.s32.totalorder %v869, 240
    %vm3023 = vcmp.lt.s32.totalorder %v870, 240
    %vm3024 = vcmp.lt.s32.totalorder %v871, 240
    %vm3025 = vcmp.lt.s32.totalorder %v872, 240
    %vm3026 = vcmp.lt.s32.totalorder %v873, 240
    %vm3027 = vcmp.lt.s32.totalorder %v874, 240
    %vm3028 = vcmp.lt.s32.totalorder %v875, 240
    %vm3029 = vcmp.lt.s32.totalorder %v876, 240
    %v3030 = vsel %vm2966, 1, 0
    %v3031 = vsel %vm2967, 1, 0
    %v3032 = vsel %vm2968, 1, 0
    %v3033 = vsel %vm2969, 1, 0
    %v3034 = vsel %vm2970, 1, 0
    %v3035 = vsel %vm2971, 1, 0
    %v3036 = vsel %vm2972, 1, 0
    %v3037 = vsel %vm2973, 1, 0
    %v3038 = vsel %vm2974, 1, 0
    %v3039 = vsel %vm2975, 1, 0
    %v3040 = vsel %vm2976, 1, 0
    %v3041 = vsel %vm2977, 1, 0
    %v3042 = vsel %vm2978, 1, 0
    %v3043 = vsel %vm2979, 1, 0
    %v3044 = vsel %vm2980, 1, 0
    %v3045 = vsel %vm2981, 1, 0
    %v3046 = vsel %vm2982, 1, 0
    %v3047 = vsel %vm2983, 1, 0
    %v3048 = vsel %vm2984, 1, 0
    %v3049 = vsel %vm2985, 1, 0
    %v3050 = vsel %vm2986, 1, 0
    %v3051 = vsel %vm2987, 1, 0
    %v3052 = vsel %vm2988, 1, 0
    %v3053 = vsel %vm2989, 1, 0
    %v3054 = vsel %vm2990, 1, 0
    %v3055 = vsel %vm2991, 1, 0
    %v3056 = vsel %vm2992, 1, 0
    %v3057 = vsel %vm2993, 1, 0
    %v3058 = vsel %vm2994, 1, 0
    %v3059 = vsel %vm2995, 1, 0
    %v3060 = vsel %vm2996, 1, 0
    %v3061 = vsel %vm2997, 1, 0
    %v3062 = vsel %vm2998, 1, 0
    %v3063 = vsel %vm2999, 1, 0
    %v3064 = vsel %vm3000, 1, 0
    %v3065 = vsel %vm3001, 1, 0
    %v3066 = vsel %vm3002, 1, 0
    %v3067 = vsel %vm3003, 1, 0
    %v3068 = vsel %vm3004, 1, 0
    %v3069 = vsel %vm3005, 1, 0
    %v3070 = vsel %vm3006, 1, 0
    %v3071 = vsel %vm3007, 1, 0
    %v3072 = vsel %vm3008, 1, 0
    %v3073 = vsel %vm3009, 1, 0
    %v3074 = vsel %vm3010, 1, 0
    %v3075 = vsel %vm3011, 1, 0
    %v3076 = vsel %vm3012, 1, 0
    %v3077 = vsel %vm3013, 1, 0
    %v3078 = vsel %vm3014, 1, 0
    %v3079 = vsel %vm3015, 1, 0
    %v3080 = vsel %vm3016, 1, 0
    %v3081 = vsel %vm3017, 1, 0
    %v3082 = vsel %vm3018, 1, 0
    %v3083 = vsel %vm3019, 1, 0
    %v3084 = vsel %vm3020, 1, 0
    %v3085 = vsel %vm3021, 1, 0
    %v3086 = vsel %vm3022, 1, 0
    %v3087 = vsel %vm3023, 1, 0
    %v3088 = vsel %vm3024, 1, 0
    %v3089 = vsel %vm3025, 1, 0
    %v3090 = vsel %vm3026, 1, 0
    %v3091 = vsel %vm3027, 1, 0
    %v3092 = vsel %vm3028, 1, 0
    %v3093 = vsel %vm3029, 1, 0
    %v3094 = vcvt.s32.f32 %v3030
    %v3095 = vcvt.s32.f32 %v3031
    %v3096 = vcvt.s32.f32 %v3032
    %v3097 = vcvt.s32.f32 %v3033
    %v3098 = vcvt.s32.f32 %v3034
    %v3099 = vcvt.s32.f32 %v3035
    %v3100 = vcvt.s32.f32 %v3036
    %v3101 = vcvt.s32.f32 %v3037
    %v3102 = vcvt.s32.f32 %v3038
    %v3103 = vcvt.s32.f32 %v3039
    %v3104 = vcvt.s32.f32 %v3040
    %v3105 = vcvt.s32.f32 %v3041
    %v3106 = vcvt.s32.f32 %v3042
    %v3107 = vcvt.s32.f32 %v3043
    %v3108 = vcvt.s32.f32 %v3044
    %v3109 = vcvt.s32.f32 %v3045
    %v3110 = vcvt.s32.f32 %v3046
    %v3111 = vcvt.s32.f32 %v3047
    %v3112 = vcvt.s32.f32 %v3048
    %v3113 = vcvt.s32.f32 %v3049
    %v3114 = vcvt.s32.f32 %v3050
    %v3115 = vcvt.s32.f32 %v3051
    %v3116 = vcvt.s32.f32 %v3052
    %v3117 = vcvt.s32.f32 %v3053
    %v3118 = vcvt.s32.f32 %v3054
    %v3119 = vcvt.s32.f32 %v3055
    %v3120 = vcvt.s32.f32 %v3056
    %v3121 = vcvt.s32.f32 %v3057
    %v3122 = vcvt.s32.f32 %v3058
    %v3123 = vcvt.s32.f32 %v3059
    %v3124 = vcvt.s32.f32 %v3060
    %v3125 = vcvt.s32.f32 %v3061
    %v3126 = vcvt.s32.f32 %v3062
    %v3127 = vcvt.s32.f32 %v3063
    %v3128 = vcvt.s32.f32 %v3064
    %v3129 = vcvt.s32.f32 %v3065
    %v3130 = vcvt.s32.f32 %v3066
    %v3131 = vcvt.s32.f32 %v3067
    %v3132 = vcvt.s32.f32 %v3068
    %v3133 = vcvt.s32.f32 %v3069
    %v3134 = vcvt.s32.f32 %v3070
    %v3135 = vcvt.s32.f32 %v3071
    %v3136 = vcvt.s32.f32 %v3072
    %v3137 = vcvt.s32.f32 %v3073
    %v3138 = vcvt.s32.f32 %v3074
    %v3139 = vcvt.s32.f32 %v3075
    %v3140 = vcvt.s32.f32 %v3076
    %v3141 = vcvt.s32.f32 %v3077
    %v3142 = vcvt.s32.f32 %v3078
    %v3143 = vcvt.s32.f32 %v3079
    %v3144 = vcvt.s32.f32 %v3080
    %v3145 = vcvt.s32.f32 %v3081
    %v3146 = vcvt.s32.f32 %v3082
    %v3147 = vcvt.s32.f32 %v3083
    %v3148 = vcvt.s32.f32 %v3084
    %v3149 = vcvt.s32.f32 %v3085
    %v3150 = vcvt.s32.f32 %v3086
    %v3151 = vcvt.s32.f32 %v3087
    %v3152 = vcvt.s32.f32 %v3088
    %v3153 = vcvt.s32.f32 %v3089
    %v3154 = vcvt.s32.f32 %v3090
    %v3155 = vcvt.s32.f32 %v3091
    %v3156 = vcvt.s32.f32 %v3092
    %v3157 = vcvt.s32.f32 %v3093
    %v3158 = vmul.f32 %v1717, %v3094
    %v3159 = vmul.f32 %v1718, %v3095
    %v3160 = vmul.f32 %v1719, %v3096
    %v3161 = vmul.f32 %v1720, %v3097
    %v3162 = vmul.f32 %v1721, %v3098
    %v3163 = vmul.f32 %v1722, %v3099
    %v3164 = vmul.f32 %v1723, %v3100
    %v3165 = vmul.f32 %v1724, %v3101
    %v3166 = vmul.f32 %v1725, %v3102
    %v3167 = vmul.f32 %v1726, %v3103
    %v3168 = vmul.f32 %v1727, %v3104
    %v3169 = vmul.f32 %v1728, %v3105
    %v3170 = vmul.f32 %v1729, %v3106
    %v3171 = vmul.f32 %v1730, %v3107
    %v3172 = vmul.f32 %v1731, %v3108
    %v3173 = vmul.f32 %v1732, %v3109
    %v3174 = vmul.f32 %v1733, %v3110
    %v3175 = vmul.f32 %v1734, %v3111
    %v3176 = vmul.f32 %v1735, %v3112
    %v3177 = vmul.f32 %v1736, %v3113
    %v3178 = vmul.f32 %v1737, %v3114
    %v3179 = vmul.f32 %v1738, %v3115
    %v3180 = vmul.f32 %v1739, %v3116
    %v3181 = vmul.f32 %v1740, %v3117
    %v3182 = vmul.f32 %v1741, %v3118
    %v3183 = vmul.f32 %v1742, %v3119
    %v3184 = vmul.f32 %v1743, %v3120
    %v3185 = vmul.f32 %v1744, %v3121
    %v3186 = vmul.f32 %v1745, %v3122
    %v3187 = vmul.f32 %v1746, %v3123
    %v3188 = vmul.f32 %v1747, %v3124
    %v3189 = vmul.f32 %v1748, %v3125
    %v3190 = vmul.f32 %v1749, %v3126
    %v3191 = vmul.f32 %v1750, %v3127
    %v3192 = vmul.f32 %v1751, %v3128
    %v3193 = vmul.f32 %v1752, %v3129
    %v3194 = vmul.f32 %v1753, %v3130
    %v3195 = vmul.f32 %v1754, %v3131
    %v3196 = vmul.f32 %v1755, %v3132
    %v3197 = vmul.f32 %v1756, %v3133
    %v3198 = vmul.f32 %v1757, %v3134
    %v3199 = vmul.f32 %v1758, %v3135
    %v3200 = vmul.f32 %v1759, %v3136
    %v3201 = vmul.f32 %v1760, %v3137
    %v3202 = vmul.f32 %v1761, %v3138
    %v3203 = vmul.f32 %v1762, %v3139
    %v3204 = vmul.f32 %v1763, %v3140
    %v3205 = vmul.f32 %v1764, %v3141
    %v3206 = vmul.f32 %v1765, %v3142
    %v3207 = vmul.f32 %v1766, %v3143
    %v3208 = vmul.f32 %v1767, %v3144
    %v3209 = vmul.f32 %v1768, %v3145
    %v3210 = vmul.f32 %v1769, %v3146
    %v3211 = vmul.f32 %v1770, %v3147
    %v3212 = vmul.f32 %v1771, %v3148
    %v3213 = vmul.f32 %v1772, %v3149
    %v3214 = vmul.f32 %v1773, %v3150
    %v3215 = vmul.f32 %v1774, %v3151
    %v3216 = vmul.f32 %v1775, %v3152
    %v3217 = vmul.f32 %v1776, %v3153
    %v3218 = vmul.f32 %v1777, %v3154
    %v3219 = vmul.f32 %v1778, %v3155
    %v3220 = vmul.f32 %v1715, %v3156
    %v3221 = vmul.f32 %v1716, %v3157
    %v3222 = vpack.c.bf16 %v3159, %v3158
    %v3223 = vpack.c.bf16 %v3161, %v3160
    %v3224 = vpack.c.bf16 %v3163, %v3162
    %v3225 = vpack.c.bf16 %v3165, %v3164
    %v3226 = vpack.c.bf16 %v3167, %v3166
    %v3227 = vpack.c.bf16 %v3169, %v3168
    %v3228 = vpack.c.bf16 %v3171, %v3170
    %v3229 = vpack.c.bf16 %v3173, %v3172
    %v3230 = vpack.c.bf16 %v3175, %v3174
    %v3231 = vpack.c.bf16 %v3177, %v3176
    %v3232 = vpack.c.bf16 %v3179, %v3178
    %v3233 = vpack.c.bf16 %v3181, %v3180
    %v3234 = vpack.c.bf16 %v3183, %v3182
    %v3235 = vpack.c.bf16 %v3185, %v3184
    %v3236 = vpack.c.bf16 %v3187, %v3186
    %v3237 = vpack.c.bf16 %v3189, %v3188
    %v3238 = vpack.c.bf16 %v3191, %v3190
    %v3239 = vpack.c.bf16 %v3193, %v3192
    %v3240 = vpack.c.bf16 %v3195, %v3194
    %v3241 = vpack.c.bf16 %v3197, %v3196
    %v3242 = vpack.c.bf16 %v3199, %v3198
    %v3243 = vpack.c.bf16 %v3201, %v3200
    %v3244 = vpack.c.bf16 %v3203, %v3202
    %v3245 = vpack.c.bf16 %v3205, %v3204
    %v3246 = vpack.c.bf16 %v3207, %v3206
    %v3247 = vpack.c.bf16 %v3209, %v3208
    %v3248 = vpack.c.bf16 %v3211, %v3210
    %v3249 = vpack.c.bf16 %v3213, %v3212
    %v3250 = vpack.c.bf16 %v3215, %v3214
    %v3251 = vpack.c.bf16 %v3217, %v3216
    %v3252 = vpack.c.bf16 %v3219, %v3218
    %v3253 = vpack.c.bf16 %v3221, %v3220
    %s3254 = scalar_lea.vmem [#allocation5], 128
    %v3255 = vld [vmem:[%s3254] sm:$0xf]
    %v3256 = vld [vmem:[%s3254 + $0x4] sm:$0xf]
    %v3257 = vld [vmem:[%s3254 + $0x8] sm:$0xf]
    %v3258 = vld [vmem:[%s3254 + $0xc] sm:$0xf]
    %v3259 = vld [vmem:[%s3254 + $0x10] sm:$0xf]
    %v3260 = vld [vmem:[%s3254 + $0x14] sm:$0xf]
    %v3261 = vld [vmem:[%s3254 + $0x18] sm:$0xf]
    %v3262 = vld [vmem:[%s3254 + $0x1c] sm:$0xf]
    %v3263 = vld [vmem:[%s3254 + $0x20] sm:$0xf]
    %v3264 = vld [vmem:[%s3254 + $0x24] sm:$0xf]
    %v3265 = vld [vmem:[%s3254 + $0x28] sm:$0xf]
    %v3266 = vld [vmem:[%s3254 + $0x2c] sm:$0xf]
    %v3267 = vld [vmem:[%s3254 + $0x30] sm:$0xf]
    %v3268 = vld [vmem:[%s3254 + $0x34] sm:$0xf]
    %v3269 = vld [vmem:[%s3254 + $0x38] sm:$0xf]
    %v3270 = vld [vmem:[%s3254 + $0x3c] sm:$0xf]
    %v3287 = vunpack.c.l.b16 %v3255
    %v3288 = vunpack.c.l.b16 %v3256
    %v3289 = vunpack.c.l.b16 %v3257
    %v3290 = vunpack.c.l.b16 %v3258
    %v3291 = vunpack.c.l.b16 %v3259
    %v3292 = vunpack.c.l.b16 %v3260
    %v3293 = vunpack.c.l.b16 %v3261
    %v3294 = vunpack.c.l.b16 %v3262
    %v3295 = vunpack.c.l.b16 %v3263
    %v3296 = vunpack.c.l.b16 %v3264
    %v3297 = vunpack.c.l.b16 %v3265
    %v3298 = vunpack.c.l.b16 %v3266
    %v3299 = vunpack.c.l.b16 %v3267
    %v3300 = vunpack.c.l.b16 %v3268
    %v3301 = vunpack.c.l.b16 %v3269
    %v3302 = vunpack.c.l.b16 %v3270
    %v3303 = vpack.c.b16 %v3288, %v3287
    %v3304 = vpack.c.b16 %v3290, %v3289
    %v3305 = vpack.c.b16 %v3292, %v3291
    %v3306 = vpack.c.b16 %v3294, %v3293
    %v3307 = vpack.c.b16 %v3296, %v3295
    %v3308 = vpack.c.b16 %v3298, %v3297
    %v3309 = vpack.c.b16 %v3300, %v3299
    %v3310 = vpack.c.b16 %v3302, %v3301
    %3319 = vmatprep.subr.bf16.mxu0 0
    %3320 = vmatpush1.bf16.msra.mxu0 %v3310
    %3321 = vmatprep.subr.bf16.mxu0 0
    %3322 = vmatpush1.bf16.msra.mxu0 %v3309
    %3323 = vmatprep.subr.bf16.mxu0 0
    %3324 = vmatpush1.bf16.msra.mxu0 %v3308
    %3325 = vmatprep.subr.bf16.mxu0 0
    %3326 = vmatpush1.bf16.msra.mxu0 %v3307
    %3327 = vmatprep.subr.bf16.mxu0 0
    %3328 = vmatpush1.bf16.msra.mxu0 %v3306
    %3329 = vmatprep.subr.bf16.mxu0 0
    %3330 = vmatpush1.bf16.msra.mxu0 %v3305
    %3331 = vmatprep.subr.bf16.mxu0 0
    %3332 = vmatpush1.bf16.msra.mxu0 %v3304
    %3333 = vmatprep.subr.bf16.mxu0 0
    %3334 = vmatpush1.bf16.msra.mxu0 %v3303
    %3335 = vmatprep.subr.bf16.mxu0 0
    %3336 = vmatpush2.bf16.msra.mxu0 0
    %3337 = vmatprep.subr.bf16.mxu0 0
    %3338 = vmatpush2.bf16.msra.mxu0 0
    %3339 = vmatprep.subr.bf16.mxu0 0
    %3340 = vmatpush2.bf16.msra.mxu0 0
    %3341 = vmatprep.subr.bf16.mxu0 0
    %3342 = vmatpush2.bf16.msra.mxu0 0
    %3343 = vmatprep.subr.bf16.mxu0 0
    %3344 = vmatpush2.bf16.msra.mxu0 0
    %3345 = vmatprep.subr.bf16.mxu0 0
    %3346 = vmatpush2.bf16.msra.mxu0 0
    %3347 = vmatprep.subr.bf16.mxu0 0
    %3348 = vmatpush2.bf16.msra.mxu0 0
    %3349 = vmatprep.subr.bf16.mxu0 0
    %3350 = vmatpush2.bf16.msra.mxu0 0
    %3351 = vmatprep.mubr.bf16.mxu0 0
    %3352 = vmatmul.mubr.bf16.gmra.mxu0 %v3222
    %v3353 = vpop.f32.mrf.mxu0
    %v3354 = vadd.f32 0.0, %v3353
    %v3355 = vpop.f32.mrf.mxu0
    %v3356 = vpop.f32.mrf.mxu0
    %v3357 = vadd.f32 0.0, %v3356
    %v3358 = vpop.f32.mrf.mxu0
    %3359 = vmatprep.mubr.bf16.mxu0 0
    %3360 = vmatmul.mubr.bf16.gmra.mxu0 %v3223
    %v3361 = vpop.f32.mrf.mxu0
    %v3362 = vadd.f32 0.0, %v3361
    %v3363 = vpop.f32.mrf.mxu0
    %v3364 = vpop.f32.mrf.mxu0
    %v3365 = vadd.f32 0.0, %v3364
    %v3366 = vpop.f32.mrf.mxu0
    %3367 = vmatprep.mubr.bf16.mxu0 0
    %3368 = vmatmul.mubr.bf16.gmra.mxu0 %v3224
    %v3369 = vpop.f32.mrf.mxu0
    %v3370 = vadd.f32 0.0, %v3369
    %v3371 = vpop.f32.mrf.mxu0
    %v3372 = vpop.f32.mrf.mxu0
    %v3373 = vadd.f32 0.0, %v3372
    %v3374 = vpop.f32.mrf.mxu0
    %3375 = vmatprep.mubr.bf16.mxu0 0
    %3376 = vmatmul.mubr.bf16.gmra.mxu0 %v3225
    %v3377 = vpop.f32.mrf.mxu0
    %v3378 = vadd.f32 0.0, %v3377
    %v3379 = vpop.f32.mrf.mxu0
    %v3380 = vpop.f32.mrf.mxu0
    %v3381 = vadd.f32 0.0, %v3380
    %v3382 = vpop.f32.mrf.mxu0
    %3383 = vmatprep.mubr.bf16.mxu0 0
    %3384 = vmatmul.mubr.bf16.gmra.mxu0 %v3226
    %v3385 = vpop.f32.mrf.mxu0
    %v3386 = vadd.f32 0.0, %v3385
    %v3387 = vpop.f32.mrf.mxu0
    %v3388 = vpop.f32.mrf.mxu0
    %v3389 = vadd.f32 0.0, %v3388
    %v3390 = vpop.f32.mrf.mxu0
    %3391 = vmatprep.mubr.bf16.mxu0 0
    %3392 = vmatmul.mubr.bf16.gmra.mxu0 %v3227
    %v3393 = vpop.f32.mrf.mxu0
    %v3394 = vadd.f32 0.0, %v3393
    %v3395 = vpop.f32.mrf.mxu0
    %v3396 = vpop.f32.mrf.mxu0
    %v3397 = vadd.f32 0.0, %v3396
    %v3398 = vpop.f32.mrf.mxu0
    %3399 = vmatprep.mubr.bf16.mxu0 0
    %3400 = vmatmul.mubr.bf16.gmra.mxu0 %v3228
    %v3401 = vpop.f32.mrf.mxu0
    %v3402 = vadd.f32 0.0, %v3401
    %v3403 = vpop.f32.mrf.mxu0
    %v3404 = vpop.f32.mrf.mxu0
    %v3405 = vadd.f32 0.0, %v3404
    %v3406 = vpop.f32.mrf.mxu0
    %3407 = vmatprep.mubr.bf16.mxu0 0
    %3408 = vmatmul.mubr.bf16.gmra.mxu0 %v3229
    %v3409 = vpop.f32.mrf.mxu0
    %v3410 = vadd.f32 0.0, %v3409
    %v3411 = vpop.f32.mrf.mxu0
    %v3412 = vpop.f32.mrf.mxu0
    %v3413 = vadd.f32 0.0, %v3412
    %v3414 = vpop.f32.mrf.mxu0
    %3415 = vmatprep.mubr.bf16.mxu0 0
    %3416 = vmatmul.mubr.bf16.gmra.mxu0 %v3230
    %v3417 = vpop.f32.mrf.mxu0
    %v3418 = vadd.f32 0.0, %v3417
    %v3419 = vpop.f32.mrf.mxu0
    %v3420 = vpop.f32.mrf.mxu0
    %v3421 = vadd.f32 0.0, %v3420
    %v3422 = vpop.f32.mrf.mxu0
    %3423 = vmatprep.mubr.bf16.mxu0 0
    %3424 = vmatmul.mubr.bf16.gmra.mxu0 %v3231
    %v3425 = vpop.f32.mrf.mxu0
    %v3426 = vadd.f32 0.0, %v3425
    %v3427 = vpop.f32.mrf.mxu0
    %v3428 = vpop.f32.mrf.mxu0
    %v3429 = vadd.f32 0.0, %v3428
    %v3430 = vpop.f32.mrf.mxu0
    %3431 = vmatprep.mubr.bf16.mxu0 0
    %3432 = vmatmul.mubr.bf16.gmra.mxu0 %v3232
    %v3433 = vpop.f32.mrf.mxu0
    %v3434 = vadd.f32 0.0, %v3433
    %v3435 = vpop.f32.mrf.mxu0
    %v3436 = vpop.f32.mrf.mxu0
    %v3437 = vadd.f32 0.0, %v3436
    %v3438 = vpop.f32.mrf.mxu0
    %3439 = vmatprep.mubr.bf16.mxu0 0
    %3440 = vmatmul.mubr.bf16.gmra.mxu0 %v3233
    %v3441 = vpop.f32.mrf.mxu0
    %v3442 = vadd.f32 0.0, %v3441
    %v3443 = vpop.f32.mrf.mxu0
    %v3444 = vpop.f32.mrf.mxu0
    %v3445 = vadd.f32 0.0, %v3444
    %v3446 = vpop.f32.mrf.mxu0
    %3447 = vmatprep.mubr.bf16.mxu0 0
    %3448 = vmatmul.mubr.bf16.gmra.mxu0 %v3234
    %v3449 = vpop.f32.mrf.mxu0
    %v3450 = vadd.f32 0.0, %v3449
    %v3451 = vpop.f32.mrf.mxu0
    %v3452 = vpop.f32.mrf.mxu0
    %v3453 = vadd.f32 0.0, %v3452
    %v3454 = vpop.f32.mrf.mxu0
    %3455 = vmatprep.mubr.bf16.mxu0 0
    %3456 = vmatmul.mubr.bf16.gmra.mxu0 %v3235
    %v3457 = vpop.f32.mrf.mxu0
    %v3458 = vadd.f32 0.0, %v3457
    %v3459 = vpop.f32.mrf.mxu0
    %v3460 = vpop.f32.mrf.mxu0
    %v3461 = vadd.f32 0.0, %v3460
    %v3462 = vpop.f32.mrf.mxu0
    %3463 = vmatprep.mubr.bf16.mxu0 0
    %3464 = vmatmul.mubr.bf16.gmra.mxu0 %v3236
    %v3465 = vpop.f32.mrf.mxu0
    %v3466 = vadd.f32 0.0, %v3465
    %v3467 = vpop.f32.mrf.mxu0
    %v3468 = vpop.f32.mrf.mxu0
    %v3469 = vadd.f32 0.0, %v3468
    %v3470 = vpop.f32.mrf.mxu0
    %3471 = vmatprep.mubr.bf16.mxu0 0
    %3472 = vmatmul.mubr.bf16.gmra.mxu0 %v3237
    %v3473 = vpop.f32.mrf.mxu0
    %v3474 = vadd.f32 0.0, %v3473
    %v3475 = vpop.f32.mrf.mxu0
    %v3476 = vpop.f32.mrf.mxu0
    %v3477 = vadd.f32 0.0, %v3476
    %v3478 = vpop.f32.mrf.mxu0
    %3479 = vmatprep.mubr.bf16.mxu0 0
    %3480 = vmatmul.mubr.bf16.gmra.mxu0 %v3238
    %v3481 = vpop.f32.mrf.mxu0
    %v3482 = vadd.f32 0.0, %v3481
    %v3483 = vpop.f32.mrf.mxu0
    %v3484 = vpop.f32.mrf.mxu0
    %v3485 = vadd.f32 0.0, %v3484
    %v3486 = vpop.f32.mrf.mxu0
    %3487 = vmatprep.mubr.bf16.mxu0 0
    %3488 = vmatmul.mubr.bf16.gmra.mxu0 %v3239
    %v3489 = vpop.f32.mrf.mxu0
    %v3490 = vadd.f32 0.0, %v3489
    %v3491 = vpop.f32.mrf.mxu0
    %v3492 = vpop.f32.mrf.mxu0
    %v3493 = vadd.f32 0.0, %v3492
    %v3494 = vpop.f32.mrf.mxu0
    %3495 = vmatprep.mubr.bf16.mxu0 0
    %3496 = vmatmul.mubr.bf16.gmra.mxu0 %v3240
    %v3497 = vpop.f32.mrf.mxu0
    %v3498 = vadd.f32 0.0, %v3497
    %v3499 = vpop.f32.mrf.mxu0
    %v3500 = vpop.f32.mrf.mxu0
    %v3501 = vadd.f32 0.0, %v3500
    %v3502 = vpop.f32.mrf.mxu0
    %3503 = vmatprep.mubr.bf16.mxu0 0
    %3504 = vmatmul.mubr.bf16.gmra.mxu0 %v3241
    %v3505 = vpop.f32.mrf.mxu0
    %v3506 = vadd.f32 0.0, %v3505
    %v3507 = vpop.f32.mrf.mxu0
    %v3508 = vpop.f32.mrf.mxu0
    %v3509 = vadd.f32 0.0, %v3508
    %v3510 = vpop.f32.mrf.mxu0
    %3511 = vmatprep.mubr.bf16.mxu0 0
    %3512 = vmatmul.mubr.bf16.gmra.mxu0 %v3242
    %v3513 = vpop.f32.mrf.mxu0
    %v3514 = vadd.f32 0.0, %v3513
    %v3515 = vpop.f32.mrf.mxu0
    %v3516 = vpop.f32.mrf.mxu0
    %v3517 = vadd.f32 0.0, %v3516
    %v3518 = vpop.f32.mrf.mxu0
    %3519 = vmatprep.mubr.bf16.mxu0 0
    %3520 = vmatmul.mubr.bf16.gmra.mxu0 %v3243
    %v3521 = vpop.f32.mrf.mxu0
    %v3522 = vadd.f32 0.0, %v3521
    %v3523 = vpop.f32.mrf.mxu0
    %v3524 = vpop.f32.mrf.mxu0
    %v3525 = vadd.f32 0.0, %v3524
    %v3526 = vpop.f32.mrf.mxu0
    %3527 = vmatprep.mubr.bf16.mxu0 0
    %3528 = vmatmul.mubr.bf16.gmra.mxu0 %v3244
    %v3529 = vpop.f32.mrf.mxu0
    %v3530 = vadd.f32 0.0, %v3529
    %v3531 = vpop.f32.mrf.mxu0
    %v3532 = vpop.f32.mrf.mxu0
    %v3533 = vadd.f32 0.0, %v3532
    %v3534 = vpop.f32.mrf.mxu0
    %3535 = vmatprep.mubr.bf16.mxu0 0
    %3536 = vmatmul.mubr.bf16.gmra.mxu0 %v3245
    %v3537 = vpop.f32.mrf.mxu0
    %v3538 = vadd.f32 0.0, %v3537
    %v3539 = vpop.f32.mrf.mxu0
    %v3540 = vpop.f32.mrf.mxu0
    %v3541 = vadd.f32 0.0, %v3540
    %v3542 = vpop.f32.mrf.mxu0
    %3543 = vmatprep.mubr.bf16.mxu0 0
    %3544 = vmatmul.mubr.bf16.gmra.mxu0 %v3246
    %v3545 = vpop.f32.mrf.mxu0
    %v3546 = vadd.f32 0.0, %v3545
    %v3547 = vpop.f32.mrf.mxu0
    %v3548 = vpop.f32.mrf.mxu0
    %v3549 = vadd.f32 0.0, %v3548
    %v3550 = vpop.f32.mrf.mxu0
    %3551 = vmatprep.mubr.bf16.mxu0 0
    %3552 = vmatmul.mubr.bf16.gmra.mxu0 %v3247
    %v3553 = vpop.f32.mrf.mxu0
    %v3554 = vadd.f32 0.0, %v3553
    %v3555 = vpop.f32.mrf.mxu0
    %v3556 = vpop.f32.mrf.mxu0
    %v3557 = vadd.f32 0.0, %v3556
    %v3558 = vpop.f32.mrf.mxu0
    %3559 = vmatprep.mubr.bf16.mxu0 0
    %3560 = vmatmul.mubr.bf16.gmra.mxu0 %v3248
    %v3561 = vpop.f32.mrf.mxu0
    %v3562 = vadd.f32 0.0, %v3561
    %v3563 = vpop.f32.mrf.mxu0
    %v3564 = vpop.f32.mrf.mxu0
    %v3565 = vadd.f32 0.0, %v3564
    %v3566 = vpop.f32.mrf.mxu0
    %3567 = vmatprep.mubr.bf16.mxu0 0
    %3568 = vmatmul.mubr.bf16.gmra.mxu0 %v3249
    %v3569 = vpop.f32.mrf.mxu0
    %v3570 = vadd.f32 0.0, %v3569
    %v3571 = vpop.f32.mrf.mxu0
    %v3572 = vpop.f32.mrf.mxu0
    %v3573 = vadd.f32 0.0, %v3572
    %v3574 = vpop.f32.mrf.mxu0
    %3575 = vmatprep.mubr.bf16.mxu0 0
    %3576 = vmatmul.mubr.bf16.gmra.mxu0 %v3250
    %v3577 = vpop.f32.mrf.mxu0
    %v3578 = vadd.f32 0.0, %v3577
    %v3579 = vpop.f32.mrf.mxu0
    %v3580 = vpop.f32.mrf.mxu0
    %v3581 = vadd.f32 0.0, %v3580
    %v3582 = vpop.f32.mrf.mxu0
    %3583 = vmatprep.mubr.bf16.mxu0 0
    %3584 = vmatmul.mubr.bf16.gmra.mxu0 %v3251
    %v3585 = vpop.f32.mrf.mxu0
    %v3586 = vadd.f32 0.0, %v3585
    %v3587 = vpop.f32.mrf.mxu0
    %v3588 = vpop.f32.mrf.mxu0
    %v3589 = vadd.f32 0.0, %v3588
    %v3590 = vpop.f32.mrf.mxu0
    %3591 = vmatprep.mubr.bf16.mxu0 0
    %3592 = vmatmul.mubr.bf16.gmra.mxu0 %v3252
    %v3593 = vpop.f32.mrf.mxu0
    %v3594 = vadd.f32 0.0, %v3593
    %v3595 = vpop.f32.mrf.mxu0
    %v3596 = vpop.f32.mrf.mxu0
    %v3597 = vadd.f32 0.0, %v3596
    %v3598 = vpop.f32.mrf.mxu0
    %3599 = vmatprep.mubr.bf16.mxu0 0
    %3600 = vmatmul.mubr.bf16.gmra.mxu0 %v3253
    %v3601 = vpop.f32.mrf.mxu0
    %v3602 = vadd.f32 0.0, %v3601
    %v3603 = vpop.f32.mrf.mxu0
    %v3604 = vpop.f32.mrf.mxu0
    %v3605 = vadd.f32 0.0, %v3604
    %v3606 = vpop.f32.mrf.mxu0
    %3607 = vdwg.mxu0
    %v3608 = vadd.f32 %v2712, %v3354
    %v3609 = vadd.f32 %v2715, %v3357
    %v3610 = vadd.f32 %v2720, %v3362
    %v3611 = vadd.f32 %v2723, %v3365
    %v3612 = vadd.f32 %v2728, %v3370
    %v3613 = vadd.f32 %v2731, %v3373
    %v3614 = vadd.f32 %v2736, %v3378
    %v3615 = vadd.f32 %v2739, %v3381
    %v3616 = vadd.f32 %v2744, %v3386
    %v3617 = vadd.f32 %v2747, %v3389
    %v3618 = vadd.f32 %v2752, %v3394
    %v3619 = vadd.f32 %v2755, %v3397
    %v3620 = vadd.f32 %v2760, %v3402
    %v3621 = vadd.f32 %v2763, %v3405
    %v3622 = vadd.f32 %v2768, %v3410
    %v3623 = vadd.f32 %v2771, %v3413
    %v3624 = vadd.f32 %v2776, %v3418
    %v3625 = vadd.f32 %v2779, %v3421
    %v3626 = vadd.f32 %v2784, %v3426
    %v3627 = vadd.f32 %v2787, %v3429
    %v3628 = vadd.f32 %v2792, %v3434
    %v3629 = vadd.f32 %v2795, %v3437
    %v3630 = vadd.f32 %v2800, %v3442
    %v3631 = vadd.f32 %v2803, %v3445
    %v3632 = vadd.f32 %v2808, %v3450
    %v3633 = vadd.f32 %v2811, %v3453
    %v3634 = vadd.f32 %v2816, %v3458
    %v3635 = vadd.f32 %v2819, %v3461
    %v3636 = vadd.f32 %v2824, %v3466
    %v3637 = vadd.f32 %v2827, %v3469
    %v3638 = vadd.f32 %v2832, %v3474
    %v3639 = vadd.f32 %v2835, %v3477
    %v3640 = vadd.f32 %v2840, %v3482
    %v3641 = vadd.f32 %v2843, %v3485
    %v3642 = vadd.f32 %v2848, %v3490
    %v3643 = vadd.f32 %v2851, %v3493
    %v3644 = vadd.f32 %v2856, %v3498
    %v3645 = vadd.f32 %v2859, %v3501
    %v3646 = vadd.f32 %v2864, %v3506
    %v3647 = vadd.f32 %v2867, %v3509
    %v3648 = vadd.f32 %v2872, %v3514
    %v3649 = vadd.f32 %v2875, %v3517
    %v3650 = vadd.f32 %v2880, %v3522
    %v3651 = vadd.f32 %v2883, %v3525
    %v3652 = vadd.f32 %v2888, %v3530
    %v3653 = vadd.f32 %v2891, %v3533
    %v3654 = vadd.f32 %v2896, %v3538
    %v3655 = vadd.f32 %v2899, %v3541
    %v3656 = vadd.f32 %v2904, %v3546
    %v3657 = vadd.f32 %v2907, %v3549
    %v3658 = vadd.f32 %v2912, %v3554
    %v3659 = vadd.f32 %v2915, %v3557
    %v3660 = vadd.f32 %v2920, %v3562
    %v3661 = vadd.f32 %v2923, %v3565
    %v3662 = vadd.f32 %v2928, %v3570
    %v3663 = vadd.f32 %v2931, %v3573
    %v3664 = vadd.f32 %v2936, %v3578
    %v3665 = vadd.f32 %v2939, %v3581
    %v3666 = vadd.f32 %v2944, %v3586
    %v3667 = vadd.f32 %v2947, %v3589
    %v3668 = vadd.f32 %v2952, %v3594
    %v3669 = vadd.f32 %v2955, %v3597
    %v3670 = vadd.f32 %v2960, %v3602
    %v3671 = vadd.f32 %v2963, %v3605
    %v3672 = vlaneseq
    %v3673 = vshrl.u32 %v3672, 7
    %v3674 = vsub.s32 0, %v3673
    %v3675 = vrot.slane %v1645, %v3674
    %v3676 = vadd.f32 %v3608, %v3675
    %v3677 = vadd.f32 %v3609, %v3675
    %v3678 = vadd.f32 %v3610, %v3675
    %v3679 = vadd.f32 %v3611, %v3675
    %v3680 = vadd.f32 %v3612, %v3675
    %v3681 = vadd.f32 %v3613, %v3675
    %v3682 = vadd.f32 %v3614, %v3675
    %v3683 = vadd.f32 %v3615, %v3675
    %v3684 = vadd.f32 %v3616, %v3675
    %v3685 = vadd.f32 %v3617, %v3675
    %v3686 = vadd.f32 %v3618, %v3675
    %v3687 = vadd.f32 %v3619, %v3675
    %v3688 = vadd.f32 %v3620, %v3675
    %v3689 = vadd.f32 %v3621, %v3675
    %v3690 = vadd.f32 %v3622, %v3675
    %v3691 = vadd.f32 %v3623, %v3675
    %v3692 = vadd.f32 %v3624, %v3675
    %v3693 = vadd.f32 %v3625, %v3675
    %v3694 = vadd.f32 %v3626, %v3675
    %v3695 = vadd.f32 %v3627, %v3675
    %v3696 = vadd.f32 %v3628, %v3675
    %v3697 = vadd.f32 %v3629, %v3675
    %v3698 = vadd.f32 %v3630, %v3675
    %v3699 = vadd.f32 %v3631, %v3675
    %v3700 = vadd.f32 %v3632, %v3675
    %v3701 = vadd.f32 %v3633, %v3675
    %v3702 = vadd.f32 %v3634, %v3675
    %v3703 = vadd.f32 %v3635, %v3675
    %v3704 = vadd.f32 %v3636, %v3675
    %v3705 = vadd.f32 %v3637, %v3675
    %v3706 = vadd.f32 %v3638, %v3675
    %v3707 = vadd.f32 %v3639, %v3675
    %v3708 = vadd.f32 %v3640, %v3675
    %v3709 = vadd.f32 %v3641, %v3675
    %v3710 = vadd.f32 %v3642, %v3675
    %v3711 = vadd.f32 %v3643, %v3675
    %v3712 = vadd.f32 %v3644, %v3675
    %v3713 = vadd.f32 %v3645, %v3675
    %v3714 = vadd.f32 %v3646, %v3675
    %v3715 = vadd.f32 %v3647, %v3675
    %v3716 = vadd.f32 %v3648, %v3675
    %v3717 = vadd.f32 %v3649, %v3675
    %v3718 = vadd.f32 %v3650, %v3675
    %v3719 = vadd.f32 %v3651, %v3675
    %v3720 = vadd.f32 %v3652, %v3675
    %v3721 = vadd.f32 %v3653, %v3675
    %v3722 = vadd.f32 %v3654, %v3675
    %v3723 = vadd.f32 %v3655, %v3675
    %v3724 = vadd.f32 %v3656, %v3675
    %v3725 = vadd.f32 %v3657, %v3675
    %v3726 = vadd.f32 %v3658, %v3675
    %v3727 = vadd.f32 %v3659, %v3675
    %v3728 = vadd.f32 %v3660, %v3675
    %v3729 = vadd.f32 %v3661, %v3675
    %v3730 = vadd.f32 %v3662, %v3675
    %v3731 = vadd.f32 %v3663, %v3675
    %v3732 = vadd.f32 %v3664, %v3675
    %v3733 = vadd.f32 %v3665, %v3675
    %v3734 = vadd.f32 %v3666, %v3675
    %v3735 = vadd.f32 %v3667, %v3675
    %v3736 = vadd.f32 %v3668, %v3675
    %v3737 = vadd.f32 %v3669, %v3675
    %v3738 = vadd.f32 %v3670, %v3675
    %v3739 = vadd.f32 %v3671, %v3675
    %v3740 = vmax.f32 %v3676, 0.0
    %v3741 = vmax.f32 %v3677, 0.0
    %v3742 = vmax.f32 %v3678, 0.0
    %v3743 = vmax.f32 %v3679, 0.0
    %v3744 = vmax.f32 %v3680, 0.0
    %v3745 = vmax.f32 %v3681, 0.0
    %v3746 = vmax.f32 %v3682, 0.0
    %v3747 = vmax.f32 %v3683, 0.0
    %v3748 = vmax.f32 %v3684, 0.0
    %v3749 = vmax.f32 %v3685, 0.0
    %v3750 = vmax.f32 %v3686, 0.0
    %v3751 = vmax.f32 %v3687, 0.0
    %v3752 = vmax.f32 %v3688, 0.0
    %v3753 = vmax.f32 %v3689, 0.0
    %v3754 = vmax.f32 %v3690, 0.0
    %v3755 = vmax.f32 %v3691, 0.0
    %v3756 = vmax.f32 %v3692, 0.0
    %v3757 = vmax.f32 %v3693, 0.0
    %v3758 = vmax.f32 %v3694, 0.0
    %v3759 = vmax.f32 %v3695, 0.0
    %v3760 = vmax.f32 %v3696, 0.0
    %v3761 = vmax.f32 %v3697, 0.0
    %v3762 = vmax.f32 %v3698, 0.0
    %v3763 = vmax.f32 %v3699, 0.0
    %v3764 = vmax.f32 %v3700, 0.0
    %v3765 = vmax.f32 %v3701, 0.0
    %v3766 = vmax.f32 %v3702, 0.0
    %v3767 = vmax.f32 %v3703, 0.0
    %v3768 = vmax.f32 %v3704, 0.0
    %v3769 = vmax.f32 %v3705, 0.0
    %v3770 = vmax.f32 %v3706, 0.0
    %v3771 = vmax.f32 %v3707, 0.0
    %v3772 = vmax.f32 %v3708, 0.0
    %v3773 = vmax.f32 %v3709, 0.0
    %v3774 = vmax.f32 %v3710, 0.0
    %v3775 = vmax.f32 %v3711, 0.0
    %v3776 = vmax.f32 %v3712, 0.0
    %v3777 = vmax.f32 %v3713, 0.0
    %v3778 = vmax.f32 %v3714, 0.0
    %v3779 = vmax.f32 %v3715, 0.0
    %v3780 = vmax.f32 %v3716, 0.0
    %v3781 = vmax.f32 %v3717, 0.0
    %v3782 = vmax.f32 %v3718, 0.0
    %v3783 = vmax.f32 %v3719, 0.0
    %v3784 = vmax.f32 %v3720, 0.0
    %v3785 = vmax.f32 %v3721, 0.0
    %v3786 = vmax.f32 %v3722, 0.0
    %v3787 = vmax.f32 %v3723, 0.0
    %v3788 = vmax.f32 %v3724, 0.0
    %v3789 = vmax.f32 %v3725, 0.0
    %v3790 = vmax.f32 %v3726, 0.0
    %v3791 = vmax.f32 %v3727, 0.0
    %v3792 = vmax.f32 %v3728, 0.0
    %v3793 = vmax.f32 %v3729, 0.0
    %v3794 = vmax.f32 %v3730, 0.0
    %v3795 = vmax.f32 %v3731, 0.0
    %v3796 = vmax.f32 %v3732, 0.0
    %v3797 = vmax.f32 %v3733, 0.0
    %v3798 = vmax.f32 %v3734, 0.0
    %v3799 = vmax.f32 %v3735, 0.0
    %v3800 = vmax.f32 %v3736, 0.0
    %v3801 = vmax.f32 %v3737, 0.0
    %v3802 = vmax.f32 %v3738, 0.0
    %v3803 = vmax.f32 %v3739, 0.0
    %v3804 = vrot.slane %v3740, 7
    %v3805 = vrot.slane %v3741, 7
    %v3806 = vrot.slane %v3742, 7
    %v3807 = vrot.slane %v3743, 7
    %v3808 = vrot.slane %v3744, 7
    %v3809 = vrot.slane %v3745, 7
    %v3810 = vrot.slane %v3746, 7
    %v3811 = vrot.slane %v3747, 7
    %v3812 = vrot.slane %v3748, 7
    %v3813 = vrot.slane %v3749, 7
    %v3814 = vrot.slane %v3750, 7
    %v3815 = vrot.slane %v3751, 7
    %v3816 = vrot.slane %v3752, 7
    %v3817 = vrot.slane %v3753, 7
    %v3818 = vrot.slane %v3754, 7
    %v3819 = vrot.slane %v3755, 7
    %v3820 = vrot.slane %v3756, 7
    %v3821 = vrot.slane %v3757, 7
    %v3822 = vrot.slane %v3758, 7
    %v3823 = vrot.slane %v3759, 7
    %v3824 = vrot.slane %v3760, 7
    %v3825 = vrot.slane %v3761, 7
    %v3826 = vrot.slane %v3762, 7
    %v3827 = vrot.slane %v3763, 7
    %v3828 = vrot.slane %v3764, 7
    %v3829 = vrot.slane %v3765, 7
    %v3830 = vrot.slane %v3766, 7
    %v3831 = vrot.slane %v3767, 7
    %v3832 = vrot.slane %v3768, 7
    %v3833 = vrot.slane %v3769, 7
    %v3834 = vrot.slane %v3770, 7
    %v3835 = vrot.slane %v3771, 7
    %v3836 = vrot.slane %v3772, 7
    %v3837 = vrot.slane %v3773, 7
    %v3838 = vrot.slane %v3774, 7
    %v3839 = vrot.slane %v3775, 7
    %v3840 = vrot.slane %v3776, 7
    %v3841 = vrot.slane %v3777, 7
    %v3842 = vrot.slane %v3778, 7
    %v3843 = vrot.slane %v3779, 7
    %v3844 = vrot.slane %v3780, 7
    %v3845 = vrot.slane %v3781, 7
    %v3846 = vrot.slane %v3782, 7
    %v3847 = vrot.slane %v3783, 7
    %v3848 = vrot.slane %v3784, 7
    %v3849 = vrot.slane %v3785, 7
    %v3850 = vrot.slane %v3786, 7
    %v3851 = vrot.slane %v3787, 7
    %v3852 = vrot.slane %v3788, 7
    %v3853 = vrot.slane %v3789, 7
    %v3854 = vrot.slane %v3790, 7
    %v3855 = vrot.slane %v3791, 7
    %v3856 = vrot.slane %v3792, 7
    %v3857 = vrot.slane %v3793, 7
    %v3858 = vrot.slane %v3794, 7
    %v3859 = vrot.slane %v3795, 7
    %v3860 = vrot.slane %v3796, 7
    %v3861 = vrot.slane %v3797, 7
    %v3862 = vrot.slane %v3798, 7
    %v3863 = vrot.slane %v3799, 7
    %v3864 = vrot.slane %v3800, 7
    %v3865 = vrot.slane %v3801, 7
    %v3866 = vrot.slane %v3802, 7
    %v3867 = vrot.slane %v3803, 7
    %vm3868 = vcmp.lt.s32.totalorder %v45, 1
    %v3869 = vsel %vm3868, %v3866, %v3867
    %v3870 = vsel %vm3868, %v3865, %v3866
    %v3871 = vsel %vm3868, %v3864, %v3865
    %v3872 = vsel %vm3868, %v3863, %v3864
    %v3873 = vsel %vm3868, %v3862, %v3863
    %v3874 = vsel %vm3868, %v3861, %v3862
    %v3875 = vsel %vm3868, %v3860, %v3861
    %v3876 = vsel %vm3868, %v3859, %v3860
    %v3877 = vsel %vm3868, %v3858, %v3859
    %v3878 = vsel %vm3868, %v3857, %v3858
    %v3879 = vsel %vm3868, %v3856, %v3857
    %v3880 = vsel %vm3868, %v3855, %v3856
    %v3881 = vsel %vm3868, %v3854, %v3855
    %v3882 = vsel %vm3868, %v3853, %v3854
    %v3883 = vsel %vm3868, %v3852, %v3853
    %v3884 = vsel %vm3868, %v3851, %v3852
    %v3885 = vsel %vm3868, %v3850, %v3851
    %v3886 = vsel %vm3868, %v3849, %v3850
    %v3887 = vsel %vm3868, %v3848, %v3849
    %v3888 = vsel %vm3868, %v3847, %v3848
    %v3889 = vsel %vm3868, %v3846, %v3847
    %v3890 = vsel %vm3868, %v3845, %v3846
    %v3891 = vsel %vm3868, %v3844, %v3845
    %v3892 = vsel %vm3868, %v3843, %v3844
    %v3893 = vsel %vm3868, %v3842, %v3843
    %v3894 = vsel %vm3868, %v3841, %v3842
    %v3895 = vsel %vm3868, %v3840, %v3841
    %v3896 = vsel %vm3868, %v3839, %v3840
    %v3897 = vsel %vm3868, %v3838, %v3839
    %v3898 = vsel %vm3868, %v3837, %v3838
    %v3899 = vsel %vm3868, %v3836, %v3837
    %v3900 = vsel %vm3868, %v3835, %v3836
    %v3901 = vsel %vm3868, %v3834, %v3835
    %v3902 = vsel %vm3868, %v3833, %v3834
    %v3903 = vsel %vm3868, %v3832, %v3833
    %v3904 = vsel %vm3868, %v3831, %v3832
    %v3905 = vsel %vm3868, %v3830, %v3831
    %v3906 = vsel %vm3868, %v3829, %v3830
    %v3907 = vsel %vm3868, %v3828, %v3829
    %v3908 = vsel %vm3868, %v3827, %v3828
    %v3909 = vsel %vm3868, %v3826, %v3827
    %v3910 = vsel %vm3868, %v3825, %v3826
    %v3911 = vsel %vm3868, %v3824, %v3825
    %v3912 = vsel %vm3868, %v3823, %v3824
    %v3913 = vsel %vm3868, %v3822, %v3823
    %v3914 = vsel %vm3868, %v3821, %v3822
    %v3915 = vsel %vm3868, %v3820, %v3821
    %v3916 = vsel %vm3868, %v3819, %v3820
    %v3917 = vsel %vm3868, %v3818, %v3819
    %v3918 = vsel %vm3868, %v3817, %v3818
    %v3919 = vsel %vm3868, %v3816, %v3817
    %v3920 = vsel %vm3868, %v3815, %v3816
    %v3921 = vsel %vm3868, %v3814, %v3815
    %v3922 = vsel %vm3868, %v3813, %v3814
    %v3923 = vsel %vm3868, %v3812, %v3813
    %v3924 = vsel %vm3868, %v3811, %v3812
    %v3925 = vsel %vm3868, %v3810, %v3811
    %v3926 = vsel %vm3868, %v3809, %v3810
    %v3927 = vsel %vm3868, %v3808, %v3809
    %v3928 = vsel %vm3868, %v3807, %v3808
    %v3929 = vsel %vm3868, %v3806, %v3807
    %v3930 = vsel %vm3868, %v3805, %v3806
    %v3931 = vsel %vm3868, %v3804, %v3805
    %v3932 = vsel %vm3868, %v3867, %v3804
    %vm3933 = vcmp.ge.s32.totalorder %v1581, 1
    %vm3934 = vcmp.ge.s32.totalorder %v1582, 1
    %vm3935 = vcmp.ge.s32.totalorder %v1583, 1
    %vm3936 = vcmp.ge.s32.totalorder %v1584, 1
    %vm3937 = vcmp.ge.s32.totalorder %v1585, 1
    %vm3938 = vcmp.ge.s32.totalorder %v1586, 1
    %vm3939 = vcmp.ge.s32.totalorder %v1587, 1
    %vm3940 = vcmp.ge.s32.totalorder %v1588, 1
    %vm3941 = vcmp.ge.s32.totalorder %v1589, 1
    %vm3942 = vcmp.ge.s32.totalorder %v1590, 1
    %vm3943 = vcmp.ge.s32.totalorder %v1591, 1
    %vm3944 = vcmp.ge.s32.totalorder %v1592, 1
    %vm3945 = vcmp.ge.s32.totalorder %v1593, 1
    %vm3946 = vcmp.ge.s32.totalorder %v1594, 1
    %vm3947 = vcmp.ge.s32.totalorder %v1595, 1
    %vm3948 = vcmp.ge.s32.totalorder %v1596, 1
    %vm3949 = vcmp.ge.s32.totalorder %v1597, 1
    %vm3950 = vcmp.ge.s32.totalorder %v1598, 1
    %vm3951 = vcmp.ge.s32.totalorder %v1599, 1
    %vm3952 = vcmp.ge.s32.totalorder %v1600, 1
    %vm3953 = vcmp.ge.s32.totalorder %v1601, 1
    %vm3954 = vcmp.ge.s32.totalorder %v1602, 1
    %vm3955 = vcmp.ge.s32.totalorder %v1603, 1
    %vm3956 = vcmp.ge.s32.totalorder %v1604, 1
    %vm3957 = vcmp.ge.s32.totalorder %v1605, 1
    %vm3958 = vcmp.ge.s32.totalorder %v1606, 1
    %vm3959 = vcmp.ge.s32.totalorder %v1607, 1
    %vm3960 = vcmp.ge.s32.totalorder %v1608, 1
    %vm3961 = vcmp.ge.s32.totalorder %v1609, 1
    %vm3962 = vcmp.ge.s32.totalorder %v1610, 1
    %vm3963 = vcmp.ge.s32.totalorder %v1611, 1
    %vm3964 = vcmp.ge.s32.totalorder %v1612, 1
    %vm3965 = vcmp.ge.s32.totalorder %v1613, 1
    %vm3966 = vcmp.ge.s32.totalorder %v1614, 1
    %vm3967 = vcmp.ge.s32.totalorder %v1615, 1
    %vm3968 = vcmp.ge.s32.totalorder %v1616, 1
    %vm3969 = vcmp.ge.s32.totalorder %v1617, 1
    %vm3970 = vcmp.ge.s32.totalorder %v1618, 1
    %vm3971 = vcmp.ge.s32.totalorder %v1619, 1
    %vm3972 = vcmp.ge.s32.totalorder %v1620, 1
    %vm3973 = vcmp.ge.s32.totalorder %v1621, 1
    %vm3974 = vcmp.ge.s32.totalorder %v1622, 1
    %vm3975 = vcmp.ge.s32.totalorder %v1623, 1
    %vm3976 = vcmp.ge.s32.totalorder %v1624, 1
    %vm3977 = vcmp.ge.s32.totalorder %v1625, 1
    %vm3978 = vcmp.ge.s32.totalorder %v1626, 1
    %vm3979 = vcmp.ge.s32.totalorder %v1627, 1
    %vm3980 = vcmp.ge.s32.totalorder %v1628, 1
    %vm3981 = vcmp.ge.s32.totalorder %v1629, 1
    %vm3982 = vcmp.ge.s32.totalorder %v1630, 1
    %vm3983 = vcmp.ge.s32.totalorder %v1631, 1
    %vm3984 = vcmp.ge.s32.totalorder %v1632, 1
    %vm3985 = vcmp.ge.s32.totalorder %v1633, 1
    %vm3986 = vcmp.ge.s32.totalorder %v1634, 1
    %vm3987 = vcmp.ge.s32.totalorder %v1635, 1
    %vm3988 = vcmp.ge.s32.totalorder %v1636, 1
    %vm3989 = vcmp.ge.s32.totalorder %v1637, 1
    %vm3990 = vcmp.ge.s32.totalorder %v1638, 1
    %vm3991 = vcmp.ge.s32.totalorder %v1639, 1
    %vm3992 = vcmp.ge.s32.totalorder %v1640, 1
    %vm3993 = vcmp.ge.s32.totalorder %v1641, 1
    %vm3994 = vcmp.ge.s32.totalorder %v1642, 1
    %vm3995 = vcmp.ge.s32.totalorder %v1643, 1
    %vm3996 = vcmp.ge.s32.totalorder %v1644, 1
    %v3997 = vsel %vm3933, 1, 0
    %v3998 = vsel %vm3934, 1, 0
    %v3999 = vsel %vm3935, 1, 0
    %v4000 = vsel %vm3936, 1, 0
    %v4001 = vsel %vm3937, 1, 0
    %v4002 = vsel %vm3938, 1, 0
    %v4003 = vsel %vm3939, 1, 0
    %v4004 = vsel %vm3940, 1, 0
    %v4005 = vsel %vm3941, 1, 0
    %v4006 = vsel %vm3942, 1, 0
    %v4007 = vsel %vm3943, 1, 0
    %v4008 = vsel %vm3944, 1, 0
    %v4009 = vsel %vm3945, 1, 0
    %v4010 = vsel %vm3946, 1, 0
    %v4011 = vsel %vm3947, 1, 0
    %v4012 = vsel %vm3948, 1, 0
    %v4013 = vsel %vm3949, 1, 0
    %v4014 = vsel %vm3950, 1, 0
    %v4015 = vsel %vm3951, 1, 0
    %v4016 = vsel %vm3952, 1, 0
    %v4017 = vsel %vm3953, 1, 0
    %v4018 = vsel %vm3954, 1, 0
    %v4019 = vsel %vm3955, 1, 0
    %v4020 = vsel %vm3956, 1, 0
    %v4021 = vsel %vm3957, 1, 0
    %v4022 = vsel %vm3958, 1, 0
    %v4023 = vsel %vm3959, 1, 0
    %v4024 = vsel %vm3960, 1, 0
    %v4025 = vsel %vm3961, 1, 0
    %v4026 = vsel %vm3962, 1, 0
    %v4027 = vsel %vm3963, 1, 0
    %v4028 = vsel %vm3964, 1, 0
    %v4029 = vsel %vm3965, 1, 0
    %v4030 = vsel %vm3966, 1, 0
    %v4031 = vsel %vm3967, 1, 0
    %v4032 = vsel %vm3968, 1, 0
    %v4033 = vsel %vm3969, 1, 0
    %v4034 = vsel %vm3970, 1, 0
    %v4035 = vsel %vm3971, 1, 0
    %v4036 = vsel %vm3972, 1, 0
    %v4037 = vsel %vm3973, 1, 0
    %v4038 = vsel %vm3974, 1, 0
    %v4039 = vsel %vm3975, 1, 0
    %v4040 = vsel %vm3976, 1, 0
    %v4041 = vsel %vm3977, 1, 0
    %v4042 = vsel %vm3978, 1, 0
    %v4043 = vsel %vm3979, 1, 0
    %v4044 = vsel %vm3980, 1, 0
    %v4045 = vsel %vm3981, 1, 0
    %v4046 = vsel %vm3982, 1, 0
    %v4047 = vsel %vm3983, 1, 0
    %v4048 = vsel %vm3984, 1, 0
    %v4049 = vsel %vm3985, 1, 0
    %v4050 = vsel %vm3986, 1, 0
    %v4051 = vsel %vm3987, 1, 0
    %v4052 = vsel %vm3988, 1, 0
    %v4053 = vsel %vm3989, 1, 0
    %v4054 = vsel %vm3990, 1, 0
    %v4055 = vsel %vm3991, 1, 0
    %v4056 = vsel %vm3992, 1, 0
    %v4057 = vsel %vm3993, 1, 0
    %v4058 = vsel %vm3994, 1, 0
    %v4059 = vsel %vm3995, 1, 0
    %v4060 = vsel %vm3996, 1, 0
    %v4061 = vcvt.s32.f32 %v3997
    %v4062 = vcvt.s32.f32 %v3998
    %v4063 = vcvt.s32.f32 %v3999
    %v4064 = vcvt.s32.f32 %v4000
    %v4065 = vcvt.s32.f32 %v4001
    %v4066 = vcvt.s32.f32 %v4002
    %v4067 = vcvt.s32.f32 %v4003
    %v4068 = vcvt.s32.f32 %v4004
    %v4069 = vcvt.s32.f32 %v4005
    %v4070 = vcvt.s32.f32 %v4006
    %v4071 = vcvt.s32.f32 %v4007
    %v4072 = vcvt.s32.f32 %v4008
    %v4073 = vcvt.s32.f32 %v4009
    %v4074 = vcvt.s32.f32 %v4010
    %v4075 = vcvt.s32.f32 %v4011
    %v4076 = vcvt.s32.f32 %v4012
    %v4077 = vcvt.s32.f32 %v4013
    %v4078 = vcvt.s32.f32 %v4014
    %v4079 = vcvt.s32.f32 %v4015
    %v4080 = vcvt.s32.f32 %v4016
    %v4081 = vcvt.s32.f32 %v4017
    %v4082 = vcvt.s32.f32 %v4018
    %v4083 = vcvt.s32.f32 %v4019
    %v4084 = vcvt.s32.f32 %v4020
    %v4085 = vcvt.s32.f32 %v4021
    %v4086 = vcvt.s32.f32 %v4022
    %v4087 = vcvt.s32.f32 %v4023
    %v4088 = vcvt.s32.f32 %v4024
    %v4089 = vcvt.s32.f32 %v4025
    %v4090 = vcvt.s32.f32 %v4026
    %v4091 = vcvt.s32.f32 %v4027
    %v4092 = vcvt.s32.f32 %v4028
    %v4093 = vcvt.s32.f32 %v4029
    %v4094 = vcvt.s32.f32 %v4030
    %v4095 = vcvt.s32.f32 %v4031
    %v4096 = vcvt.s32.f32 %v4032
    %v4097 = vcvt.s32.f32 %v4033
    %v4098 = vcvt.s32.f32 %v4034
    %v4099 = vcvt.s32.f32 %v4035
    %v4100 = vcvt.s32.f32 %v4036
    %v4101 = vcvt.s32.f32 %v4037
    %v4102 = vcvt.s32.f32 %v4038
    %v4103 = vcvt.s32.f32 %v4039
    %v4104 = vcvt.s32.f32 %v4040
    %v4105 = vcvt.s32.f32 %v4041
    %v4106 = vcvt.s32.f32 %v4042
    %v4107 = vcvt.s32.f32 %v4043
    %v4108 = vcvt.s32.f32 %v4044
    %v4109 = vcvt.s32.f32 %v4045
    %v4110 = vcvt.s32.f32 %v4046
    %v4111 = vcvt.s32.f32 %v4047
    %v4112 = vcvt.s32.f32 %v4048
    %v4113 = vcvt.s32.f32 %v4049
    %v4114 = vcvt.s32.f32 %v4050
    %v4115 = vcvt.s32.f32 %v4051
    %v4116 = vcvt.s32.f32 %v4052
    %v4117 = vcvt.s32.f32 %v4053
    %v4118 = vcvt.s32.f32 %v4054
    %v4119 = vcvt.s32.f32 %v4055
    %v4120 = vcvt.s32.f32 %v4056
    %v4121 = vcvt.s32.f32 %v4057
    %v4122 = vcvt.s32.f32 %v4058
    %v4123 = vcvt.s32.f32 %v4059
    %v4124 = vcvt.s32.f32 %v4060
    %v4125 = vmul.f32 %v3932, %v4061
    %v4126 = vmul.f32 %v3931, %v4062
    %v4127 = vmul.f32 %v3930, %v4063
    %v4128 = vmul.f32 %v3929, %v4064
    %v4129 = vmul.f32 %v3928, %v4065
    %v4130 = vmul.f32 %v3927, %v4066
    %v4131 = vmul.f32 %v3926, %v4067
    %v4132 = vmul.f32 %v3925, %v4068
    %v4133 = vmul.f32 %v3924, %v4069
    %v4134 = vmul.f32 %v3923, %v4070
    %v4135 = vmul.f32 %v3922, %v4071
    %v4136 = vmul.f32 %v3921, %v4072
    %v4137 = vmul.f32 %v3920, %v4073
    %v4138 = vmul.f32 %v3919, %v4074
    %v4139 = vmul.f32 %v3918, %v4075
    %v4140 = vmul.f32 %v3917, %v4076
    %v4141 = vmul.f32 %v3916, %v4077
    %v4142 = vmul.f32 %v3915, %v4078
    %v4143 = vmul.f32 %v3914, %v4079
    %v4144 = vmul.f32 %v3913, %v4080
    %v4145 = vmul.f32 %v3912, %v4081
    %v4146 = vmul.f32 %v3911, %v4082
    %v4147 = vmul.f32 %v3910, %v4083
    %v4148 = vmul.f32 %v3909, %v4084
    %v4149 = vmul.f32 %v3908, %v4085
    %v4150 = vmul.f32 %v3907, %v4086
    %v4151 = vmul.f32 %v3906, %v4087
    %v4152 = vmul.f32 %v3905, %v4088
    %v4153 = vmul.f32 %v3904, %v4089
    %v4154 = vmul.f32 %v3903, %v4090
    %v4155 = vmul.f32 %v3902, %v4091
    %v4156 = vmul.f32 %v3901, %v4092
    %v4157 = vmul.f32 %v3900, %v4093
    %v4158 = vmul.f32 %v3899, %v4094
    %v4159 = vmul.f32 %v3898, %v4095
    %v4160 = vmul.f32 %v3897, %v4096
    %v4161 = vmul.f32 %v3896, %v4097
    %v4162 = vmul.f32 %v3895, %v4098
    %v4163 = vmul.f32 %v3894, %v4099
    %v4164 = vmul.f32 %v3893, %v4100
    %v4165 = vmul.f32 %v3892, %v4101
    %v4166 = vmul.f32 %v3891, %v4102
    %v4167 = vmul.f32 %v3890, %v4103
    %v4168 = vmul.f32 %v3889, %v4104
    %v4169 = vmul.f32 %v3888, %v4105
    %v4170 = vmul.f32 %v3887, %v4106
    %v4171 = vmul.f32 %v3886, %v4107
    %v4172 = vmul.f32 %v3885, %v4108
    %v4173 = vmul.f32 %v3884, %v4109
    %v4174 = vmul.f32 %v3883, %v4110
    %v4175 = vmul.f32 %v3882, %v4111
    %v4176 = vmul.f32 %v3881, %v4112
    %v4177 = vmul.f32 %v3880, %v4113
    %v4178 = vmul.f32 %v3879, %v4114
    %v4179 = vmul.f32 %v3878, %v4115
    %v4180 = vmul.f32 %v3877, %v4116
    %v4181 = vmul.f32 %v3876, %v4117
    %v4182 = vmul.f32 %v3875, %v4118
    %v4183 = vmul.f32 %v3874, %v4119
    %v4184 = vmul.f32 %v3873, %v4120
    %v4185 = vmul.f32 %v3872, %v4121
    %v4186 = vmul.f32 %v3871, %v4122
    %v4187 = vmul.f32 %v3870, %v4123
    %v4188 = vmul.f32 %v3869, %v4124
    %v4189 = vpack.c.bf16 %v4126, %v4125
    %v4190 = vpack.c.bf16 %v4128, %v4127
    %v4191 = vpack.c.bf16 %v4130, %v4129
    %v4192 = vpack.c.bf16 %v4132, %v4131
    %v4193 = vpack.c.bf16 %v4134, %v4133
    %v4194 = vpack.c.bf16 %v4136, %v4135
    %v4195 = vpack.c.bf16 %v4138, %v4137
    %v4196 = vpack.c.bf16 %v4140, %v4139
    %v4197 = vpack.c.bf16 %v4142, %v4141
    %v4198 = vpack.c.bf16 %v4144, %v4143
    %v4199 = vpack.c.bf16 %v4146, %v4145
    %v4200 = vpack.c.bf16 %v4148, %v4147
    %v4201 = vpack.c.bf16 %v4150, %v4149
    %v4202 = vpack.c.bf16 %v4152, %v4151
    %v4203 = vpack.c.bf16 %v4154, %v4153
    %v4204 = vpack.c.bf16 %v4156, %v4155
    %v4205 = vpack.c.bf16 %v4158, %v4157
    %v4206 = vpack.c.bf16 %v4160, %v4159
    %v4207 = vpack.c.bf16 %v4162, %v4161
    %v4208 = vpack.c.bf16 %v4164, %v4163
    %v4209 = vpack.c.bf16 %v4166, %v4165
    %v4210 = vpack.c.bf16 %v4168, %v4167
    %v4211 = vpack.c.bf16 %v4170, %v4169
    %v4212 = vpack.c.bf16 %v4172, %v4171
    %v4213 = vpack.c.bf16 %v4174, %v4173
    %v4214 = vpack.c.bf16 %v4176, %v4175
    %v4215 = vpack.c.bf16 %v4178, %v4177
    %v4216 = vpack.c.bf16 %v4180, %v4179
    %v4217 = vpack.c.bf16 %v4182, %v4181
    %v4218 = vpack.c.bf16 %v4184, %v4183
    %v4219 = vpack.c.bf16 %v4186, %v4185
    %v4220 = vpack.c.bf16 %v4188, %v4187
    %s4221 = scalar_lea.vmem [#allocation5], 192
    %v4222 = vld [vmem:[%s4221] sm:$0xf]
    %v4223 = vld [vmem:[%s4221 + $0x4] sm:$0xf]
    %v4224 = vld [vmem:[%s4221 + $0x8] sm:$0xf]
    %v4225 = vld [vmem:[%s4221 + $0xc] sm:$0xf]
    %v4226 = vld [vmem:[%s4221 + $0x10] sm:$0xf]
    %v4227 = vld [vmem:[%s4221 + $0x14] sm:$0xf]
    %v4228 = vld [vmem:[%s4221 + $0x18] sm:$0xf]
    %v4229 = vld [vmem:[%s4221 + $0x1c] sm:$0xf]
    %v4230 = vld [vmem:[%s4221 + $0x20] sm:$0xf]
    %v4231 = vld [vmem:[%s4221 + $0x24] sm:$0xf]
    %v4232 = vld [vmem:[%s4221 + $0x28] sm:$0xf]
    %v4233 = vld [vmem:[%s4221 + $0x2c] sm:$0xf]
    %v4234 = vld [vmem:[%s4221 + $0x30] sm:$0xf]
    %v4235 = vld [vmem:[%s4221 + $0x34] sm:$0xf]
    %v4236 = vld [vmem:[%s4221 + $0x38] sm:$0xf]
    %v4237 = vld [vmem:[%s4221 + $0x3c] sm:$0xf]
    %v4238 = vpack.c.bf16 %v3741, %v3740
    %v4239 = vpack.c.bf16 %v3743, %v3742
    %v4240 = vpack.c.bf16 %v3745, %v3744
    %v4241 = vpack.c.bf16 %v3747, %v3746
    %v4242 = vpack.c.bf16 %v3749, %v3748
    %v4243 = vpack.c.bf16 %v3751, %v3750
    %v4244 = vpack.c.bf16 %v3753, %v3752
    %v4245 = vpack.c.bf16 %v3755, %v3754
    %v4246 = vpack.c.bf16 %v3757, %v3756
    %v4247 = vpack.c.bf16 %v3759, %v3758
    %v4248 = vpack.c.bf16 %v3761, %v3760
    %v4249 = vpack.c.bf16 %v3763, %v3762
    %v4250 = vpack.c.bf16 %v3765, %v3764
    %v4251 = vpack.c.bf16 %v3767, %v3766
    %v4252 = vpack.c.bf16 %v3769, %v3768
    %v4253 = vpack.c.bf16 %v3771, %v3770
    %v4254 = vpack.c.bf16 %v3773, %v3772
    %v4255 = vpack.c.bf16 %v3775, %v3774
    %v4256 = vpack.c.bf16 %v3777, %v3776
    %v4257 = vpack.c.bf16 %v3779, %v3778
    %v4258 = vpack.c.bf16 %v3781, %v3780
    %v4259 = vpack.c.bf16 %v3783, %v3782
    %v4260 = vpack.c.bf16 %v3785, %v3784
    %v4261 = vpack.c.bf16 %v3787, %v3786
    %v4262 = vpack.c.bf16 %v3789, %v3788
    %v4263 = vpack.c.bf16 %v3791, %v3790
    %v4264 = vpack.c.bf16 %v3793, %v3792
    %v4265 = vpack.c.bf16 %v3795, %v3794
    %v4266 = vpack.c.bf16 %v3797, %v3796
    %v4267 = vpack.c.bf16 %v3799, %v3798
    %v4268 = vpack.c.bf16 %v3801, %v3800
    %v4269 = vpack.c.bf16 %v3803, %v3802
    %s4270 = scalar_lea.vmem [#allocation5], 256
    %v4271 = vld [vmem:[%s4270] sm:$0xf]
    %v4272 = vld [vmem:[%s4270 + $0x4] sm:$0xf]
    %v4273 = vld [vmem:[%s4270 + $0x8] sm:$0xf]
    %v4274 = vld [vmem:[%s4270 + $0xc] sm:$0xf]
    %v4275 = vld [vmem:[%s4270 + $0x10] sm:$0xf]
    %v4276 = vld [vmem:[%s4270 + $0x14] sm:$0xf]
    %v4277 = vld [vmem:[%s4270 + $0x18] sm:$0xf]
    %v4278 = vld [vmem:[%s4270 + $0x1c] sm:$0xf]
    %v4279 = vld [vmem:[%s4270 + $0x20] sm:$0xf]
    %v4280 = vld [vmem:[%s4270 + $0x24] sm:$0xf]
    %v4281 = vld [vmem:[%s4270 + $0x28] sm:$0xf]
    %v4282 = vld [vmem:[%s4270 + $0x2c] sm:$0xf]
    %v4283 = vld [vmem:[%s4270 + $0x30] sm:$0xf]
    %v4284 = vld [vmem:[%s4270 + $0x34] sm:$0xf]
    %v4285 = vld [vmem:[%s4270 + $0x38] sm:$0xf]
    %v4286 = vld [vmem:[%s4270 + $0x3c] sm:$0xf]
    %v4303 = vunpack.c.l.b16 %v4271
    %v4304 = vunpack.c.l.b16 %v4272
    %v4305 = vunpack.c.l.b16 %v4273
    %v4306 = vunpack.c.l.b16 %v4274
    %v4307 = vunpack.c.l.b16 %v4275
    %v4308 = vunpack.c.l.b16 %v4276
    %v4309 = vunpack.c.l.b16 %v4277
    %v4310 = vunpack.c.l.b16 %v4278
    %v4311 = vunpack.c.l.b16 %v4279
    %v4312 = vunpack.c.l.b16 %v4280
    %v4313 = vunpack.c.l.b16 %v4281
    %v4314 = vunpack.c.l.b16 %v4282
    %v4315 = vunpack.c.l.b16 %v4283
    %v4316 = vunpack.c.l.b16 %v4284
    %v4317 = vunpack.c.l.b16 %v4285
    %v4318 = vunpack.c.l.b16 %v4286
    %v4319 = vpack.c.b16 %v4304, %v4303
    %v4320 = vpack.c.b16 %v4306, %v4305
    %v4321 = vpack.c.b16 %v4308, %v4307
    %v4322 = vpack.c.b16 %v4310, %v4309
    %v4323 = vpack.c.b16 %v4312, %v4311
    %v4324 = vpack.c.b16 %v4314, %v4313
    %v4325 = vpack.c.b16 %v4316, %v4315
    %v4326 = vpack.c.b16 %v4318, %v4317
    %4335 = vmatprep.subr.bf16.mxu0 0
    %4336 = vmatpush1.bf16.msra.mxu0 %v4326
    %4337 = vmatprep.subr.bf16.mxu0 0
    %4338 = vmatpush1.bf16.msra.mxu0 %v4325
    %4339 = vmatprep.subr.bf16.mxu0 0
    %4340 = vmatpush1.bf16.msra.mxu0 %v4324
    %4341 = vmatprep.subr.bf16.mxu0 0
    %4342 = vmatpush1.bf16.msra.mxu0 %v4323
    %4343 = vmatprep.subr.bf16.mxu0 0
    %4344 = vmatpush1.bf16.msra.mxu0 %v4322
    %4345 = vmatprep.subr.bf16.mxu0 0
    %4346 = vmatpush1.bf16.msra.mxu0 %v4321
    %4347 = vmatprep.subr.bf16.mxu0 0
    %4348 = vmatpush1.bf16.msra.mxu0 %v4320
    %4349 = vmatprep.subr.bf16.mxu0 0
    %4350 = vmatpush1.bf16.msra.mxu0 %v4319
    %4351 = vmatprep.subr.bf16.mxu0 0
    %4352 = vmatpush2.bf16.msra.mxu0 0
    %4353 = vmatprep.subr.bf16.mxu0 0
    %4354 = vmatpush2.bf16.msra.mxu0 0
    %4355 = vmatprep.subr.bf16.mxu0 0
    %4356 = vmatpush2.bf16.msra.mxu0 0
    %4357 = vmatprep.subr.bf16.mxu0 0
    %4358 = vmatpush2.bf16.msra.mxu0 0
    %4359 = vmatprep.subr.bf16.mxu0 0
    %4360 = vmatpush2.bf16.msra.mxu0 0
    %4361 = vmatprep.subr.bf16.mxu0 0
    %4362 = vmatpush2.bf16.msra.mxu0 0
    %4363 = vmatprep.subr.bf16.mxu0 0
    %4364 = vmatpush2.bf16.msra.mxu0 0
    %4365 = vmatprep.subr.bf16.mxu0 0
    %4366 = vmatpush2.bf16.msra.mxu0 0
    %4367 = vmatprep.mubr.bf16.mxu0 0
    %4368 = vmatmul.mubr.bf16.gmra.mxu0 %v4238
    %v4369 = vpop.f32.mrf.mxu0
    %v4370 = vadd.f32 0.0, %v4369
    %v4371 = vpop.f32.mrf.mxu0
    %v4372 = vpop.f32.mrf.mxu0
    %v4373 = vadd.f32 0.0, %v4372
    %v4374 = vpop.f32.mrf.mxu0
    %4375 = vmatprep.mubr.bf16.mxu0 0
    %4376 = vmatmul.mubr.bf16.gmra.mxu0 %v4239
    %v4377 = vpop.f32.mrf.mxu0
    %v4378 = vadd.f32 0.0, %v4377
    %v4379 = vpop.f32.mrf.mxu0
    %v4380 = vpop.f32.mrf.mxu0
    %v4381 = vadd.f32 0.0, %v4380
    %v4382 = vpop.f32.mrf.mxu0
    %4383 = vmatprep.mubr.bf16.mxu0 0
    %4384 = vmatmul.mubr.bf16.gmra.mxu0 %v4240
    %v4385 = vpop.f32.mrf.mxu0
    %v4386 = vadd.f32 0.0, %v4385
    %v4387 = vpop.f32.mrf.mxu0
    %v4388 = vpop.f32.mrf.mxu0
    %v4389 = vadd.f32 0.0, %v4388
    %v4390 = vpop.f32.mrf.mxu0
    %4391 = vmatprep.mubr.bf16.mxu0 0
    %4392 = vmatmul.mubr.bf16.gmra.mxu0 %v4241
    %v4393 = vpop.f32.mrf.mxu0
    %v4394 = vadd.f32 0.0, %v4393
    %v4395 = vpop.f32.mrf.mxu0
    %v4396 = vpop.f32.mrf.mxu0
    %v4397 = vadd.f32 0.0, %v4396
    %v4398 = vpop.f32.mrf.mxu0
    %4399 = vmatprep.mubr.bf16.mxu0 0
    %4400 = vmatmul.mubr.bf16.gmra.mxu0 %v4242
    %v4401 = vpop.f32.mrf.mxu0
    %v4402 = vadd.f32 0.0, %v4401
    %v4403 = vpop.f32.mrf.mxu0
    %v4404 = vpop.f32.mrf.mxu0
    %v4405 = vadd.f32 0.0, %v4404
    %v4406 = vpop.f32.mrf.mxu0
    %4407 = vmatprep.mubr.bf16.mxu0 0
    %4408 = vmatmul.mubr.bf16.gmra.mxu0 %v4243
    %v4409 = vpop.f32.mrf.mxu0
    %v4410 = vadd.f32 0.0, %v4409
    %v4411 = vpop.f32.mrf.mxu0
    %v4412 = vpop.f32.mrf.mxu0
    %v4413 = vadd.f32 0.0, %v4412
    %v4414 = vpop.f32.mrf.mxu0
    %4415 = vmatprep.mubr.bf16.mxu0 0
    %4416 = vmatmul.mubr.bf16.gmra.mxu0 %v4244
    %v4417 = vpop.f32.mrf.mxu0
    %v4418 = vadd.f32 0.0, %v4417
    %v4419 = vpop.f32.mrf.mxu0
    %v4420 = vpop.f32.mrf.mxu0
    %v4421 = vadd.f32 0.0, %v4420
    %v4422 = vpop.f32.mrf.mxu0
    %4423 = vmatprep.mubr.bf16.mxu0 0
    %4424 = vmatmul.mubr.bf16.gmra.mxu0 %v4245
    %v4425 = vpop.f32.mrf.mxu0
    %v4426 = vadd.f32 0.0, %v4425
    %v4427 = vpop.f32.mrf.mxu0
    %v4428 = vpop.f32.mrf.mxu0
    %v4429 = vadd.f32 0.0, %v4428
    %v4430 = vpop.f32.mrf.mxu0
    %4431 = vmatprep.mubr.bf16.mxu0 0
    %4432 = vmatmul.mubr.bf16.gmra.mxu0 %v4246
    %v4433 = vpop.f32.mrf.mxu0
    %v4434 = vadd.f32 0.0, %v4433
    %v4435 = vpop.f32.mrf.mxu0
    %v4436 = vpop.f32.mrf.mxu0
    %v4437 = vadd.f32 0.0, %v4436
    %v4438 = vpop.f32.mrf.mxu0
    %4439 = vmatprep.mubr.bf16.mxu0 0
    %4440 = vmatmul.mubr.bf16.gmra.mxu0 %v4247
    %v4441 = vpop.f32.mrf.mxu0
    %v4442 = vadd.f32 0.0, %v4441
    %v4443 = vpop.f32.mrf.mxu0
    %v4444 = vpop.f32.mrf.mxu0
    %v4445 = vadd.f32 0.0, %v4444
    %v4446 = vpop.f32.mrf.mxu0
    %4447 = vmatprep.mubr.bf16.mxu0 0
    %4448 = vmatmul.mubr.bf16.gmra.mxu0 %v4248
    %v4449 = vpop.f32.mrf.mxu0
    %v4450 = vadd.f32 0.0, %v4449
    %v4451 = vpop.f32.mrf.mxu0
    %v4452 = vpop.f32.mrf.mxu0
    %v4453 = vadd.f32 0.0, %v4452
    %v4454 = vpop.f32.mrf.mxu0
    %4455 = vmatprep.mubr.bf16.mxu0 0
    %4456 = vmatmul.mubr.bf16.gmra.mxu0 %v4249
    %v4457 = vpop.f32.mrf.mxu0
    %v4458 = vadd.f32 0.0, %v4457
    %v4459 = vpop.f32.mrf.mxu0
    %v4460 = vpop.f32.mrf.mxu0
    %v4461 = vadd.f32 0.0, %v4460
    %v4462 = vpop.f32.mrf.mxu0
    %4463 = vmatprep.mubr.bf16.mxu0 0
    %4464 = vmatmul.mubr.bf16.gmra.mxu0 %v4250
    %v4465 = vpop.f32.mrf.mxu0
    %v4466 = vadd.f32 0.0, %v4465
    %v4467 = vpop.f32.mrf.mxu0
    %v4468 = vpop.f32.mrf.mxu0
    %v4469 = vadd.f32 0.0, %v4468
    %v4470 = vpop.f32.mrf.mxu0
    %4471 = vmatprep.mubr.bf16.mxu0 0
    %4472 = vmatmul.mubr.bf16.gmra.mxu0 %v4251
    %v4473 = vpop.f32.mrf.mxu0
    %v4474 = vadd.f32 0.0, %v4473
    %v4475 = vpop.f32.mrf.mxu0
    %v4476 = vpop.f32.mrf.mxu0
    %v4477 = vadd.f32 0.0, %v4476
    %v4478 = vpop.f32.mrf.mxu0
    %4479 = vmatprep.mubr.bf16.mxu0 0
    %4480 = vmatmul.mubr.bf16.gmra.mxu0 %v4252
    %v4481 = vpop.f32.mrf.mxu0
    %v4482 = vadd.f32 0.0, %v4481
    %v4483 = vpop.f32.mrf.mxu0
    %v4484 = vpop.f32.mrf.mxu0
    %v4485 = vadd.f32 0.0, %v4484
    %v4486 = vpop.f32.mrf.mxu0
    %4487 = vmatprep.mubr.bf16.mxu0 0
    %4488 = vmatmul.mubr.bf16.gmra.mxu0 %v4253
    %v4489 = vpop.f32.mrf.mxu0
    %v4490 = vadd.f32 0.0, %v4489
    %v4491 = vpop.f32.mrf.mxu0
    %v4492 = vpop.f32.mrf.mxu0
    %v4493 = vadd.f32 0.0, %v4492
    %v4494 = vpop.f32.mrf.mxu0
    %4495 = vmatprep.mubr.bf16.mxu0 0
    %4496 = vmatmul.mubr.bf16.gmra.mxu0 %v4254
    %v4497 = vpop.f32.mrf.mxu0
    %v4498 = vadd.f32 0.0, %v4497
    %v4499 = vpop.f32.mrf.mxu0
    %v4500 = vpop.f32.mrf.mxu0
    %v4501 = vadd.f32 0.0, %v4500
    %v4502 = vpop.f32.mrf.mxu0
    %4503 = vmatprep.mubr.bf16.mxu0 0
    %4504 = vmatmul.mubr.bf16.gmra.mxu0 %v4255
    %v4505 = vpop.f32.mrf.mxu0
    %v4506 = vadd.f32 0.0, %v4505
    %v4507 = vpop.f32.mrf.mxu0
    %v4508 = vpop.f32.mrf.mxu0
    %v4509 = vadd.f32 0.0, %v4508
    %v4510 = vpop.f32.mrf.mxu0
    %4511 = vmatprep.mubr.bf16.mxu0 0
    %4512 = vmatmul.mubr.bf16.gmra.mxu0 %v4256
    %v4513 = vpop.f32.mrf.mxu0
    %v4514 = vadd.f32 0.0, %v4513
    %v4515 = vpop.f32.mrf.mxu0
    %v4516 = vpop.f32.mrf.mxu0
    %v4517 = vadd.f32 0.0, %v4516
    %v4518 = vpop.f32.mrf.mxu0
    %4519 = vmatprep.mubr.bf16.mxu0 0
    %4520 = vmatmul.mubr.bf16.gmra.mxu0 %v4257
    %v4521 = vpop.f32.mrf.mxu0
    %v4522 = vadd.f32 0.0, %v4521
    %v4523 = vpop.f32.mrf.mxu0
    %v4524 = vpop.f32.mrf.mxu0
    %v4525 = vadd.f32 0.0, %v4524
    %v4526 = vpop.f32.mrf.mxu0
    %4527 = vmatprep.mubr.bf16.mxu0 0
    %4528 = vmatmul.mubr.bf16.gmra.mxu0 %v4258
    %v4529 = vpop.f32.mrf.mxu0
    %v4530 = vadd.f32 0.0, %v4529
    %v4531 = vpop.f32.mrf.mxu0
    %v4532 = vpop.f32.mrf.mxu0
    %v4533 = vadd.f32 0.0, %v4532
    %v4534 = vpop.f32.mrf.mxu0
    %4535 = vmatprep.mubr.bf16.mxu0 0
    %4536 = vmatmul.mubr.bf16.gmra.mxu0 %v4259
    %v4537 = vpop.f32.mrf.mxu0
    %v4538 = vadd.f32 0.0, %v4537
    %v4539 = vpop.f32.mrf.mxu0
    %v4540 = vpop.f32.mrf.mxu0
    %v4541 = vadd.f32 0.0, %v4540
    %v4542 = vpop.f32.mrf.mxu0
    %4543 = vmatprep.mubr.bf16.mxu0 0
    %4544 = vmatmul.mubr.bf16.gmra.mxu0 %v4260
    %v4545 = vpop.f32.mrf.mxu0
    %v4546 = vadd.f32 0.0, %v4545
    %v4547 = vpop.f32.mrf.mxu0
    %v4548 = vpop.f32.mrf.mxu0
    %v4549 = vadd.f32 0.0, %v4548
    %v4550 = vpop.f32.mrf.mxu0
    %4551 = vmatprep.mubr.bf16.mxu0 0
    %4552 = vmatmul.mubr.bf16.gmra.mxu0 %v4261
    %v4553 = vpop.f32.mrf.mxu0
    %v4554 = vadd.f32 0.0, %v4553
    %v4555 = vpop.f32.mrf.mxu0
    %v4556 = vpop.f32.mrf.mxu0
    %v4557 = vadd.f32 0.0, %v4556
    %v4558 = vpop.f32.mrf.mxu0
    %4559 = vmatprep.mubr.bf16.mxu0 0
    %4560 = vmatmul.mubr.bf16.gmra.mxu0 %v4262
    %v4561 = vpop.f32.mrf.mxu0
    %v4562 = vadd.f32 0.0, %v4561
    %v4563 = vpop.f32.mrf.mxu0
    %v4564 = vpop.f32.mrf.mxu0
    %v4565 = vadd.f32 0.0, %v4564
    %v4566 = vpop.f32.mrf.mxu0
    %4567 = vmatprep.mubr.bf16.mxu0 0
    %4568 = vmatmul.mubr.bf16.gmra.mxu0 %v4263
    %v4569 = vpop.f32.mrf.mxu0
    %v4570 = vadd.f32 0.0, %v4569
    %v4571 = vpop.f32.mrf.mxu0
    %v4572 = vpop.f32.mrf.mxu0
    %v4573 = vadd.f32 0.0, %v4572
    %v4574 = vpop.f32.mrf.mxu0
    %4575 = vmatprep.mubr.bf16.mxu0 0
    %4576 = vmatmul.mubr.bf16.gmra.mxu0 %v4264
    %v4577 = vpop.f32.mrf.mxu0
    %v4578 = vadd.f32 0.0, %v4577
    %v4579 = vpop.f32.mrf.mxu0
    %v4580 = vpop.f32.mrf.mxu0
    %v4581 = vadd.f32 0.0, %v4580
    %v4582 = vpop.f32.mrf.mxu0
    %4583 = vmatprep.mubr.bf16.mxu0 0
    %4584 = vmatmul.mubr.bf16.gmra.mxu0 %v4265
    %v4585 = vpop.f32.mrf.mxu0
    %v4586 = vadd.f32 0.0, %v4585
    %v4587 = vpop.f32.mrf.mxu0
    %v4588 = vpop.f32.mrf.mxu0
    %v4589 = vadd.f32 0.0, %v4588
    %v4590 = vpop.f32.mrf.mxu0
    %4591 = vmatprep.mubr.bf16.mxu0 0
    %4592 = vmatmul.mubr.bf16.gmra.mxu0 %v4266
    %v4593 = vpop.f32.mrf.mxu0
    %v4594 = vadd.f32 0.0, %v4593
    %v4595 = vpop.f32.mrf.mxu0
    %v4596 = vpop.f32.mrf.mxu0
    %v4597 = vadd.f32 0.0, %v4596
    %v4598 = vpop.f32.mrf.mxu0
    %4599 = vmatprep.mubr.bf16.mxu0 0
    %4600 = vmatmul.mubr.bf16.gmra.mxu0 %v4267
    %v4601 = vpop.f32.mrf.mxu0
    %v4602 = vadd.f32 0.0, %v4601
    %v4603 = vpop.f32.mrf.mxu0
    %v4604 = vpop.f32.mrf.mxu0
    %v4605 = vadd.f32 0.0, %v4604
    %v4606 = vpop.f32.mrf.mxu0
    %4607 = vmatprep.mubr.bf16.mxu0 0
    %4608 = vmatmul.mubr.bf16.gmra.mxu0 %v4268
    %v4609 = vpop.f32.mrf.mxu0
    %v4610 = vadd.f32 0.0, %v4609
    %v4611 = vpop.f32.mrf.mxu0
    %v4612 = vpop.f32.mrf.mxu0
    %v4613 = vadd.f32 0.0, %v4612
    %v4614 = vpop.f32.mrf.mxu0
    %4615 = vmatprep.mubr.bf16.mxu0 0
    %4616 = vmatmul.mubr.bf16.gmra.mxu0 %v4269
    %v4617 = vpop.f32.mrf.mxu0
    %v4618 = vadd.f32 0.0, %v4617
    %v4619 = vpop.f32.mrf.mxu0
    %v4620 = vpop.f32.mrf.mxu0
    %v4621 = vadd.f32 0.0, %v4620
    %v4622 = vpop.f32.mrf.mxu0
    %4623 = vdwg.mxu0
    %v4640 = vunpack.c.l.b16 %v4222
    %v4641 = vunpack.c.l.b16 %v4223
    %v4642 = vunpack.c.l.b16 %v4224
    %v4643 = vunpack.c.l.b16 %v4225
    %v4644 = vunpack.c.l.b16 %v4226
    %v4645 = vunpack.c.l.b16 %v4227
    %v4646 = vunpack.c.l.b16 %v4228
    %v4647 = vunpack.c.l.b16 %v4229
    %v4648 = vunpack.c.l.b16 %v4230
    %v4649 = vunpack.c.l.b16 %v4231
    %v4650 = vunpack.c.l.b16 %v4232
    %v4651 = vunpack.c.l.b16 %v4233
    %v4652 = vunpack.c.l.b16 %v4234
    %v4653 = vunpack.c.l.b16 %v4235
    %v4654 = vunpack.c.l.b16 %v4236
    %v4655 = vunpack.c.l.b16 %v4237
    %v4656 = vpack.c.b16 %v4641, %v4640
    %v4657 = vpack.c.b16 %v4643, %v4642
    %v4658 = vpack.c.b16 %v4645, %v4644
    %v4659 = vpack.c.b16 %v4647, %v4646
    %v4660 = vpack.c.b16 %v4649, %v4648
    %v4661 = vpack.c.b16 %v4651, %v4650
    %v4662 = vpack.c.b16 %v4653, %v4652
    %v4663 = vpack.c.b16 %v4655, %v4654
    %4672 = vmatprep.subr.bf16.mxu0 0
    %4673 = vmatpush1.bf16.msra.mxu0 %v4663
    %4674 = vmatprep.subr.bf16.mxu0 0
    %4675 = vmatpush1.bf16.msra.mxu0 %v4662
    %4676 = vmatprep.subr.bf16.mxu0 0
    %4677 = vmatpush1.bf16.msra.mxu0 %v4661
    %4678 = vmatprep.subr.bf16.mxu0 0
    %4679 = vmatpush1.bf16.msra.mxu0 %v4660
    %4680 = vmatprep.subr.bf16.mxu0 0
    %4681 = vmatpush1.bf16.msra.mxu0 %v4659
    %4682 = vmatprep.subr.bf16.mxu0 0
    %4683 = vmatpush1.bf16.msra.mxu0 %v4658
    %4684 = vmatprep.subr.bf16.mxu0 0
    %4685 = vmatpush1.bf16.msra.mxu0 %v4657
    %4686 = vmatprep.subr.bf16.mxu0 0
    %4687 = vmatpush1.bf16.msra.mxu0 %v4656
    %4688 = vmatprep.subr.bf16.mxu0 0
    %4689 = vmatpush2.bf16.msra.mxu0 0
    %4690 = vmatprep.subr.bf16.mxu0 0
    %4691 = vmatpush2.bf16.msra.mxu0 0
    %4692 = vmatprep.subr.bf16.mxu0 0
    %4693 = vmatpush2.bf16.msra.mxu0 0
    %4694 = vmatprep.subr.bf16.mxu0 0
    %4695 = vmatpush2.bf16.msra.mxu0 0
    %4696 = vmatprep.subr.bf16.mxu0 0
    %4697 = vmatpush2.bf16.msra.mxu0 0
    %4698 = vmatprep.subr.bf16.mxu0 0
    %4699 = vmatpush2.bf16.msra.mxu0 0
    %4700 = vmatprep.subr.bf16.mxu0 0
    %4701 = vmatpush2.bf16.msra.mxu0 0
    %4702 = vmatprep.subr.bf16.mxu0 0
    %4703 = vmatpush2.bf16.msra.mxu0 0
    %4704 = vmatprep.mubr.bf16.mxu0 0
    %4705 = vmatmul.mubr.bf16.gmra.mxu0 %v4189
    %v4706 = vpop.f32.mrf.mxu0
    %v4707 = vadd.f32 %v4370, %v4706
    %v4708 = vpop.f32.mrf.mxu0
    %v4709 = vpop.f32.mrf.mxu0
    %v4710 = vadd.f32 %v4373, %v4709
    %v4711 = vpop.f32.mrf.mxu0
    %4712 = vmatprep.mubr.bf16.mxu0 0
    %4713 = vmatmul.mubr.bf16.gmra.mxu0 %v4190
    %v4714 = vpop.f32.mrf.mxu0
    %v4715 = vadd.f32 %v4378, %v4714
    %v4716 = vpop.f32.mrf.mxu0
    %v4717 = vpop.f32.mrf.mxu0
    %v4718 = vadd.f32 %v4381, %v4717
    %v4719 = vpop.f32.mrf.mxu0
    %4720 = vmatprep.mubr.bf16.mxu0 0
    %4721 = vmatmul.mubr.bf16.gmra.mxu0 %v4191
    %v4722 = vpop.f32.mrf.mxu0
    %v4723 = vadd.f32 %v4386, %v4722
    %v4724 = vpop.f32.mrf.mxu0
    %v4725 = vpop.f32.mrf.mxu0
    %v4726 = vadd.f32 %v4389, %v4725
    %v4727 = vpop.f32.mrf.mxu0
    %4728 = vmatprep.mubr.bf16.mxu0 0
    %4729 = vmatmul.mubr.bf16.gmra.mxu0 %v4192
    %v4730 = vpop.f32.mrf.mxu0
    %v4731 = vadd.f32 %v4394, %v4730
    %v4732 = vpop.f32.mrf.mxu0
    %v4733 = vpop.f32.mrf.mxu0
    %v4734 = vadd.f32 %v4397, %v4733
    %v4735 = vpop.f32.mrf.mxu0
    %4736 = vmatprep.mubr.bf16.mxu0 0
    %4737 = vmatmul.mubr.bf16.gmra.mxu0 %v4193
    %v4738 = vpop.f32.mrf.mxu0
    %v4739 = vadd.f32 %v4402, %v4738
    %v4740 = vpop.f32.mrf.mxu0
    %v4741 = vpop.f32.mrf.mxu0
    %v4742 = vadd.f32 %v4405, %v4741
    %v4743 = vpop.f32.mrf.mxu0
    %4744 = vmatprep.mubr.bf16.mxu0 0
    %4745 = vmatmul.mubr.bf16.gmra.mxu0 %v4194
    %v4746 = vpop.f32.mrf.mxu0
    %v4747 = vadd.f32 %v4410, %v4746
    %v4748 = vpop.f32.mrf.mxu0
    %v4749 = vpop.f32.mrf.mxu0
    %v4750 = vadd.f32 %v4413, %v4749
    %v4751 = vpop.f32.mrf.mxu0
    %4752 = vmatprep.mubr.bf16.mxu0 0
    %4753 = vmatmul.mubr.bf16.gmra.mxu0 %v4195
    %v4754 = vpop.f32.mrf.mxu0
    %v4755 = vadd.f32 %v4418, %v4754
    %v4756 = vpop.f32.mrf.mxu0
    %v4757 = vpop.f32.mrf.mxu0
    %v4758 = vadd.f32 %v4421, %v4757
    %v4759 = vpop.f32.mrf.mxu0
    %4760 = vmatprep.mubr.bf16.mxu0 0
    %4761 = vmatmul.mubr.bf16.gmra.mxu0 %v4196
    %v4762 = vpop.f32.mrf.mxu0
    %v4763 = vadd.f32 %v4426, %v4762
    %v4764 = vpop.f32.mrf.mxu0
    %v4765 = vpop.f32.mrf.mxu0
    %v4766 = vadd.f32 %v4429, %v4765
    %v4767 = vpop.f32.mrf.mxu0
    %4768 = vmatprep.mubr.bf16.mxu0 0
    %4769 = vmatmul.mubr.bf16.gmra.mxu0 %v4197
    %v4770 = vpop.f32.mrf.mxu0
    %v4771 = vadd.f32 %v4434, %v4770
    %v4772 = vpop.f32.mrf.mxu0
    %v4773 = vpop.f32.mrf.mxu0
    %v4774 = vadd.f32 %v4437, %v4773
    %v4775 = vpop.f32.mrf.mxu0
    %4776 = vmatprep.mubr.bf16.mxu0 0
    %4777 = vmatmul.mubr.bf16.gmra.mxu0 %v4198
    %v4778 = vpop.f32.mrf.mxu0
    %v4779 = vadd.f32 %v4442, %v4778
    %v4780 = vpop.f32.mrf.mxu0
    %v4781 = vpop.f32.mrf.mxu0
    %v4782 = vadd.f32 %v4445, %v4781
    %v4783 = vpop.f32.mrf.mxu0
    %4784 = vmatprep.mubr.bf16.mxu0 0
    %4785 = vmatmul.mubr.bf16.gmra.mxu0 %v4199
    %v4786 = vpop.f32.mrf.mxu0
    %v4787 = vadd.f32 %v4450, %v4786
    %v4788 = vpop.f32.mrf.mxu0
    %v4789 = vpop.f32.mrf.mxu0
    %v4790 = vadd.f32 %v4453, %v4789
    %v4791 = vpop.f32.mrf.mxu0
    %4792 = vmatprep.mubr.bf16.mxu0 0
    %4793 = vmatmul.mubr.bf16.gmra.mxu0 %v4200
    %v4794 = vpop.f32.mrf.mxu0
    %v4795 = vadd.f32 %v4458, %v4794
    %v4796 = vpop.f32.mrf.mxu0
    %v4797 = vpop.f32.mrf.mxu0
    %v4798 = vadd.f32 %v4461, %v4797
    %v4799 = vpop.f32.mrf.mxu0
    %4800 = vmatprep.mubr.bf16.mxu0 0
    %4801 = vmatmul.mubr.bf16.gmra.mxu0 %v4201
    %v4802 = vpop.f32.mrf.mxu0
    %v4803 = vadd.f32 %v4466, %v4802
    %v4804 = vpop.f32.mrf.mxu0
    %v4805 = vpop.f32.mrf.mxu0
    %v4806 = vadd.f32 %v4469, %v4805
    %v4807 = vpop.f32.mrf.mxu0
    %4808 = vmatprep.mubr.bf16.mxu0 0
    %4809 = vmatmul.mubr.bf16.gmra.mxu0 %v4202
    %v4810 = vpop.f32.mrf.mxu0
    %v4811 = vadd.f32 %v4474, %v4810
    %v4812 = vpop.f32.mrf.mxu0
    %v4813 = vpop.f32.mrf.mxu0
    %v4814 = vadd.f32 %v4477, %v4813
    %v4815 = vpop.f32.mrf.mxu0
    %4816 = vmatprep.mubr.bf16.mxu0 0
    %4817 = vmatmul.mubr.bf16.gmra.mxu0 %v4203
    %v4818 = vpop.f32.mrf.mxu0
    %v4819 = vadd.f32 %v4482, %v4818
    %v4820 = vpop.f32.mrf.mxu0
    %v4821 = vpop.f32.mrf.mxu0
    %v4822 = vadd.f32 %v4485, %v4821
    %v4823 = vpop.f32.mrf.mxu0
    %4824 = vmatprep.mubr.bf16.mxu0 0
    %4825 = vmatmul.mubr.bf16.gmra.mxu0 %v4204
    %v4826 = vpop.f32.mrf.mxu0
    %v4827 = vadd.f32 %v4490, %v4826
    %v4828 = vpop.f32.mrf.mxu0
    %v4829 = vpop.f32.mrf.mxu0
    %v4830 = vadd.f32 %v4493, %v4829
    %v4831 = vpop.f32.mrf.mxu0
    %4832 = vmatprep.mubr.bf16.mxu0 0
    %4833 = vmatmul.mubr.bf16.gmra.mxu0 %v4205
    %v4834 = vpop.f32.mrf.mxu0
    %v4835 = vadd.f32 %v4498, %v4834
    %v4836 = vpop.f32.mrf.mxu0
    %v4837 = vpop.f32.mrf.mxu0
    %v4838 = vadd.f32 %v4501, %v4837
    %v4839 = vpop.f32.mrf.mxu0
    %4840 = vmatprep.mubr.bf16.mxu0 0
    %4841 = vmatmul.mubr.bf16.gmra.mxu0 %v4206
    %v4842 = vpop.f32.mrf.mxu0
    %v4843 = vadd.f32 %v4506, %v4842
    %v4844 = vpop.f32.mrf.mxu0
    %v4845 = vpop.f32.mrf.mxu0
    %v4846 = vadd.f32 %v4509, %v4845
    %v4847 = vpop.f32.mrf.mxu0
    %4848 = vmatprep.mubr.bf16.mxu0 0
    %4849 = vmatmul.mubr.bf16.gmra.mxu0 %v4207
    %v4850 = vpop.f32.mrf.mxu0
    %v4851 = vadd.f32 %v4514, %v4850
    %v4852 = vpop.f32.mrf.mxu0
    %v4853 = vpop.f32.mrf.mxu0
    %v4854 = vadd.f32 %v4517, %v4853
    %v4855 = vpop.f32.mrf.mxu0
    %4856 = vmatprep.mubr.bf16.mxu0 0
    %4857 = vmatmul.mubr.bf16.gmra.mxu0 %v4208
    %v4858 = vpop.f32.mrf.mxu0
    %v4859 = vadd.f32 %v4522, %v4858
    %v4860 = vpop.f32.mrf.mxu0
    %v4861 = vpop.f32.mrf.mxu0
    %v4862 = vadd.f32 %v4525, %v4861
    %v4863 = vpop.f32.mrf.mxu0
    %4864 = vmatprep.mubr.bf16.mxu0 0
    %4865 = vmatmul.mubr.bf16.gmra.mxu0 %v4209
    %v4866 = vpop.f32.mrf.mxu0
    %v4867 = vadd.f32 %v4530, %v4866
    %v4868 = vpop.f32.mrf.mxu0
    %v4869 = vpop.f32.mrf.mxu0
    %v4870 = vadd.f32 %v4533, %v4869
    %v4871 = vpop.f32.mrf.mxu0
    %4872 = vmatprep.mubr.bf16.mxu0 0
    %4873 = vmatmul.mubr.bf16.gmra.mxu0 %v4210
    %v4874 = vpop.f32.mrf.mxu0
    %v4875 = vadd.f32 %v4538, %v4874
    %v4876 = vpop.f32.mrf.mxu0
    %v4877 = vpop.f32.mrf.mxu0
    %v4878 = vadd.f32 %v4541, %v4877
    %v4879 = vpop.f32.mrf.mxu0
    %4880 = vmatprep.mubr.bf16.mxu0 0
    %4881 = vmatmul.mubr.bf16.gmra.mxu0 %v4211
    %v4882 = vpop.f32.mrf.mxu0
    %v4883 = vadd.f32 %v4546, %v4882
    %v4884 = vpop.f32.mrf.mxu0
    %v4885 = vpop.f32.mrf.mxu0
    %v4886 = vadd.f32 %v4549, %v4885
    %v4887 = vpop.f32.mrf.mxu0
    %4888 = vmatprep.mubr.bf16.mxu0 0
    %4889 = vmatmul.mubr.bf16.gmra.mxu0 %v4212
    %v4890 = vpop.f32.mrf.mxu0
    %v4891 = vadd.f32 %v4554, %v4890
    %v4892 = vpop.f32.mrf.mxu0
    %v4893 = vpop.f32.mrf.mxu0
    %v4894 = vadd.f32 %v4557, %v4893
    %v4895 = vpop.f32.mrf.mxu0
    %4896 = vmatprep.mubr.bf16.mxu0 0
    %4897 = vmatmul.mubr.bf16.gmra.mxu0 %v4213
    %v4898 = vpop.f32.mrf.mxu0
    %v4899 = vadd.f32 %v4562, %v4898
    %v4900 = vpop.f32.mrf.mxu0
    %v4901 = vpop.f32.mrf.mxu0
    %v4902 = vadd.f32 %v4565, %v4901
    %v4903 = vpop.f32.mrf.mxu0
    %4904 = vmatprep.mubr.bf16.mxu0 0
    %4905 = vmatmul.mubr.bf16.gmra.mxu0 %v4214
    %v4906 = vpop.f32.mrf.mxu0
    %v4907 = vadd.f32 %v4570, %v4906
    %v4908 = vpop.f32.mrf.mxu0
    %v4909 = vpop.f32.mrf.mxu0
    %v4910 = vadd.f32 %v4573, %v4909
    %v4911 = vpop.f32.mrf.mxu0
    %4912 = vmatprep.mubr.bf16.mxu0 0
    %4913 = vmatmul.mubr.bf16.gmra.mxu0 %v4215
    %v4914 = vpop.f32.mrf.mxu0
    %v4915 = vadd.f32 %v4578, %v4914
    %v4916 = vpop.f32.mrf.mxu0
    %v4917 = vpop.f32.mrf.mxu0
    %v4918 = vadd.f32 %v4581, %v4917
    %v4919 = vpop.f32.mrf.mxu0
    %4920 = vmatprep.mubr.bf16.mxu0 0
    %4921 = vmatmul.mubr.bf16.gmra.mxu0 %v4216
    %v4922 = vpop.f32.mrf.mxu0
    %v4923 = vadd.f32 %v4586, %v4922
    %v4924 = vpop.f32.mrf.mxu0
    %v4925 = vpop.f32.mrf.mxu0
    %v4926 = vadd.f32 %v4589, %v4925
    %v4927 = vpop.f32.mrf.mxu0
    %4928 = vmatprep.mubr.bf16.mxu0 0
    %4929 = vmatmul.mubr.bf16.gmra.mxu0 %v4217
    %v4930 = vpop.f32.mrf.mxu0
    %v4931 = vadd.f32 %v4594, %v4930
    %v4932 = vpop.f32.mrf.mxu0
    %v4933 = vpop.f32.mrf.mxu0
    %v4934 = vadd.f32 %v4597, %v4933
    %v4935 = vpop.f32.mrf.mxu0
    %4936 = vmatprep.mubr.bf16.mxu0 0
    %4937 = vmatmul.mubr.bf16.gmra.mxu0 %v4218
    %v4938 = vpop.f32.mrf.mxu0
    %v4939 = vadd.f32 %v4602, %v4938
    %v4940 = vpop.f32.mrf.mxu0
    %v4941 = vpop.f32.mrf.mxu0
    %v4942 = vadd.f32 %v4605, %v4941
    %v4943 = vpop.f32.mrf.mxu0
    %4944 = vmatprep.mubr.bf16.mxu0 0
    %4945 = vmatmul.mubr.bf16.gmra.mxu0 %v4219
    %v4946 = vpop.f32.mrf.mxu0
    %v4947 = vadd.f32 %v4610, %v4946
    %v4948 = vpop.f32.mrf.mxu0
    %v4949 = vpop.f32.mrf.mxu0
    %v4950 = vadd.f32 %v4613, %v4949
    %v4951 = vpop.f32.mrf.mxu0
    %4952 = vmatprep.mubr.bf16.mxu0 0
    %4953 = vmatmul.mubr.bf16.gmra.mxu0 %v4220
    %v4954 = vpop.f32.mrf.mxu0
    %v4955 = vadd.f32 %v4618, %v4954
    %v4956 = vpop.f32.mrf.mxu0
    %v4957 = vpop.f32.mrf.mxu0
    %v4958 = vadd.f32 %v4621, %v4957
    %v4959 = vpop.f32.mrf.mxu0
    %4960 = vdwg.mxu0
    %v4961 = vrot.slane %v3740, 1
    %v4962 = vrot.slane %v3741, 1
    %v4963 = vrot.slane %v3742, 1
    %v4964 = vrot.slane %v3743, 1
    %v4965 = vrot.slane %v3744, 1
    %v4966 = vrot.slane %v3745, 1
    %v4967 = vrot.slane %v3746, 1
    %v4968 = vrot.slane %v3747, 1
    %v4969 = vrot.slane %v3748, 1
    %v4970 = vrot.slane %v3749, 1
    %v4971 = vrot.slane %v3750, 1
    %v4972 = vrot.slane %v3751, 1
    %v4973 = vrot.slane %v3752, 1
    %v4974 = vrot.slane %v3753, 1
    %v4975 = vrot.slane %v3754, 1
    %v4976 = vrot.slane %v3755, 1
    %v4977 = vrot.slane %v3756, 1
    %v4978 = vrot.slane %v3757, 1
    %v4979 = vrot.slane %v3758, 1
    %v4980 = vrot.slane %v3759, 1
    %v4981 = vrot.slane %v3760, 1
    %v4982 = vrot.slane %v3761, 1
    %v4983 = vrot.slane %v3762, 1
    %v4984 = vrot.slane %v3763, 1
    %v4985 = vrot.slane %v3764, 1
    %v4986 = vrot.slane %v3765, 1
    %v4987 = vrot.slane %v3766, 1
    %v4988 = vrot.slane %v3767, 1
    %v4989 = vrot.slane %v3768, 1
    %v4990 = vrot.slane %v3769, 1
    %v4991 = vrot.slane %v3770, 1
    %v4992 = vrot.slane %v3771, 1
    %v4993 = vrot.slane %v3772, 1
    %v4994 = vrot.slane %v3773, 1
    %v4995 = vrot.slane %v3774, 1
    %v4996 = vrot.slane %v3775, 1
    %v4997 = vrot.slane %v3776, 1
    %v4998 = vrot.slane %v3777, 1
    %v4999 = vrot.slane %v3778, 1
    %v5000 = vrot.slane %v3779, 1
    %v5001 = vrot.slane %v3780, 1
    %v5002 = vrot.slane %v3781, 1
    %v5003 = vrot.slane %v3782, 1
    %v5004 = vrot.slane %v3783, 1
    %v5005 = vrot.slane %v3784, 1
    %v5006 = vrot.slane %v3785, 1
    %v5007 = vrot.slane %v3786, 1
    %v5008 = vrot.slane %v3787, 1
    %v5009 = vrot.slane %v3788, 1
    %v5010 = vrot.slane %v3789, 1
    %v5011 = vrot.slane %v3790, 1
    %v5012 = vrot.slane %v3791, 1
    %v5013 = vrot.slane %v3792, 1
    %v5014 = vrot.slane %v3793, 1
    %v5015 = vrot.slane %v3794, 1
    %v5016 = vrot.slane %v3795, 1
    %v5017 = vrot.slane %v3796, 1
    %v5018 = vrot.slane %v3797, 1
    %v5019 = vrot.slane %v3798, 1
    %v5020 = vrot.slane %v3799, 1
    %v5021 = vrot.slane %v3800, 1
    %v5022 = vrot.slane %v3801, 1
    %v5023 = vrot.slane %v3802, 1
    %v5024 = vrot.slane %v3803, 1
    %vm5025 = vcmp.lt.s32.totalorder %v45, 7
    %v5026 = vsel %vm5025, %v5023, %v5024
    %v5027 = vsel %vm5025, %v5022, %v5023
    %v5028 = vsel %vm5025, %v5021, %v5022
    %v5029 = vsel %vm5025, %v5020, %v5021
    %v5030 = vsel %vm5025, %v5019, %v5020
    %v5031 = vsel %vm5025, %v5018, %v5019
    %v5032 = vsel %vm5025, %v5017, %v5018
    %v5033 = vsel %vm5025, %v5016, %v5017
    %v5034 = vsel %vm5025, %v5015, %v5016
    %v5035 = vsel %vm5025, %v5014, %v5015
    %v5036 = vsel %vm5025, %v5013, %v5014
    %v5037 = vsel %vm5025, %v5012, %v5013
    %v5038 = vsel %vm5025, %v5011, %v5012
    %v5039 = vsel %vm5025, %v5010, %v5011
    %v5040 = vsel %vm5025, %v5009, %v5010
    %v5041 = vsel %vm5025, %v5008, %v5009
    %v5042 = vsel %vm5025, %v5007, %v5008
    %v5043 = vsel %vm5025, %v5006, %v5007
    %v5044 = vsel %vm5025, %v5005, %v5006
    %v5045 = vsel %vm5025, %v5004, %v5005
    %v5046 = vsel %vm5025, %v5003, %v5004
    %v5047 = vsel %vm5025, %v5002, %v5003
    %v5048 = vsel %vm5025, %v5001, %v5002
    %v5049 = vsel %vm5025, %v5000, %v5001
    %v5050 = vsel %vm5025, %v4999, %v5000
    %v5051 = vsel %vm5025, %v4998, %v4999
    %v5052 = vsel %vm5025, %v4997, %v4998
    %v5053 = vsel %vm5025, %v4996, %v4997
    %v5054 = vsel %vm5025, %v4995, %v4996
    %v5055 = vsel %vm5025, %v4994, %v4995
    %v5056 = vsel %vm5025, %v4993, %v4994
    %v5057 = vsel %vm5025, %v4992, %v4993
    %v5058 = vsel %vm5025, %v4991, %v4992
    %v5059 = vsel %vm5025, %v4990, %v4991
    %v5060 = vsel %vm5025, %v4989, %v4990
    %v5061 = vsel %vm5025, %v4988, %v4989
    %v5062 = vsel %vm5025, %v4987, %v4988
    %v5063 = vsel %vm5025, %v4986, %v4987
    %v5064 = vsel %vm5025, %v4985, %v4986
    %v5065 = vsel %vm5025, %v4984, %v4985
    %v5066 = vsel %vm5025, %v4983, %v4984
    %v5067 = vsel %vm5025, %v4982, %v4983
    %v5068 = vsel %vm5025, %v4981, %v4982
    %v5069 = vsel %vm5025, %v4980, %v4981
    %v5070 = vsel %vm5025, %v4979, %v4980
    %v5071 = vsel %vm5025, %v4978, %v4979
    %v5072 = vsel %vm5025, %v4977, %v4978
    %v5073 = vsel %vm5025, %v4976, %v4977
    %v5074 = vsel %vm5025, %v4975, %v4976
    %v5075 = vsel %vm5025, %v4974, %v4975
    %v5076 = vsel %vm5025, %v4973, %v4974
    %v5077 = vsel %vm5025, %v4972, %v4973
    %v5078 = vsel %vm5025, %v4971, %v4972
    %v5079 = vsel %vm5025, %v4970, %v4971
    %v5080 = vsel %vm5025, %v4969, %v4970
    %v5081 = vsel %vm5025, %v4968, %v4969
    %v5082 = vsel %vm5025, %v4967, %v4968
    %v5083 = vsel %vm5025, %v4966, %v4967
    %v5084 = vsel %vm5025, %v4965, %v4966
    %v5085 = vsel %vm5025, %v4964, %v4965
    %v5086 = vsel %vm5025, %v4963, %v4964
    %v5087 = vsel %vm5025, %v4962, %v4963
    %v5088 = vsel %vm5025, %v4961, %v4962
    %v5089 = vsel %vm5025, %v5024, %v4961
    %vm5090 = vcmp.lt.s32.totalorder %v1581, 15
    %vm5091 = vcmp.lt.s32.totalorder %v1582, 15
    %vm5092 = vcmp.lt.s32.totalorder %v1583, 15
    %vm5093 = vcmp.lt.s32.totalorder %v1584, 15
    %vm5094 = vcmp.lt.s32.totalorder %v1585, 15
    %vm5095 = vcmp.lt.s32.totalorder %v1586, 15
    %vm5096 = vcmp.lt.s32.totalorder %v1587, 15
    %vm5097 = vcmp.lt.s32.totalorder %v1588, 15
    %vm5098 = vcmp.lt.s32.totalorder %v1589, 15
    %vm5099 = vcmp.lt.s32.totalorder %v1590, 15
    %vm5100 = vcmp.lt.s32.totalorder %v1591, 15
    %vm5101 = vcmp.lt.s32.totalorder %v1592, 15
    %vm5102 = vcmp.lt.s32.totalorder %v1593, 15
    %vm5103 = vcmp.lt.s32.totalorder %v1594, 15
    %vm5104 = vcmp.lt.s32.totalorder %v1595, 15
    %vm5105 = vcmp.lt.s32.totalorder %v1596, 15
    %vm5106 = vcmp.lt.s32.totalorder %v1597, 15
    %vm5107 = vcmp.lt.s32.totalorder %v1598, 15
    %vm5108 = vcmp.lt.s32.totalorder %v1599, 15
    %vm5109 = vcmp.lt.s32.totalorder %v1600, 15
    %vm5110 = vcmp.lt.s32.totalorder %v1601, 15
    %vm5111 = vcmp.lt.s32.totalorder %v1602, 15
    %vm5112 = vcmp.lt.s32.totalorder %v1603, 15
    %vm5113 = vcmp.lt.s32.totalorder %v1604, 15
    %vm5114 = vcmp.lt.s32.totalorder %v1605, 15
    %vm5115 = vcmp.lt.s32.totalorder %v1606, 15
    %vm5116 = vcmp.lt.s32.totalorder %v1607, 15
    %vm5117 = vcmp.lt.s32.totalorder %v1608, 15
    %vm5118 = vcmp.lt.s32.totalorder %v1609, 15
    %vm5119 = vcmp.lt.s32.totalorder %v1610, 15
    %vm5120 = vcmp.lt.s32.totalorder %v1611, 15
    %vm5121 = vcmp.lt.s32.totalorder %v1612, 15
    %vm5122 = vcmp.lt.s32.totalorder %v1613, 15
    %vm5123 = vcmp.lt.s32.totalorder %v1614, 15
    %vm5124 = vcmp.lt.s32.totalorder %v1615, 15
    %vm5125 = vcmp.lt.s32.totalorder %v1616, 15
    %vm5126 = vcmp.lt.s32.totalorder %v1617, 15
    %vm5127 = vcmp.lt.s32.totalorder %v1618, 15
    %vm5128 = vcmp.lt.s32.totalorder %v1619, 15
    %vm5129 = vcmp.lt.s32.totalorder %v1620, 15
    %vm5130 = vcmp.lt.s32.totalorder %v1621, 15
    %vm5131 = vcmp.lt.s32.totalorder %v1622, 15
    %vm5132 = vcmp.lt.s32.totalorder %v1623, 15
    %vm5133 = vcmp.lt.s32.totalorder %v1624, 15
    %vm5134 = vcmp.lt.s32.totalorder %v1625, 15
    %vm5135 = vcmp.lt.s32.totalorder %v1626, 15
    %vm5136 = vcmp.lt.s32.totalorder %v1627, 15
    %vm5137 = vcmp.lt.s32.totalorder %v1628, 15
    %vm5138 = vcmp.lt.s32.totalorder %v1629, 15
    %vm5139 = vcmp.lt.s32.totalorder %v1630, 15
    %vm5140 = vcmp.lt.s32.totalorder %v1631, 15
    %vm5141 = vcmp.lt.s32.totalorder %v1632, 15
    %vm5142 = vcmp.lt.s32.totalorder %v1633, 15
    %vm5143 = vcmp.lt.s32.totalorder %v1634, 15
    %vm5144 = vcmp.lt.s32.totalorder %v1635, 15
    %vm5145 = vcmp.lt.s32.totalorder %v1636, 15
    %vm5146 = vcmp.lt.s32.totalorder %v1637, 15
    %vm5147 = vcmp.lt.s32.totalorder %v1638, 15
    %vm5148 = vcmp.lt.s32.totalorder %v1639, 15
    %vm5149 = vcmp.lt.s32.totalorder %v1640, 15
    %vm5150 = vcmp.lt.s32.totalorder %v1641, 15
    %vm5151 = vcmp.lt.s32.totalorder %v1642, 15
    %vm5152 = vcmp.lt.s32.totalorder %v1643, 15
    %vm5153 = vcmp.lt.s32.totalorder %v1644, 15
    %v5154 = vsel %vm5090, 1, 0
    %v5155 = vsel %vm5091, 1, 0
    %v5156 = vsel %vm5092, 1, 0
    %v5157 = vsel %vm5093, 1, 0
    %v5158 = vsel %vm5094, 1, 0
    %v5159 = vsel %vm5095, 1, 0
    %v5160 = vsel %vm5096, 1, 0
    %v5161 = vsel %vm5097, 1, 0
    %v5162 = vsel %vm5098, 1, 0
    %v5163 = vsel %vm5099, 1, 0
    %v5164 = vsel %vm5100, 1, 0
    %v5165 = vsel %vm5101, 1, 0
    %v5166 = vsel %vm5102, 1, 0
    %v5167 = vsel %vm5103, 1, 0
    %v5168 = vsel %vm5104, 1, 0
    %v5169 = vsel %vm5105, 1, 0
    %v5170 = vsel %vm5106, 1, 0
    %v5171 = vsel %vm5107, 1, 0
    %v5172 = vsel %vm5108, 1, 0
    %v5173 = vsel %vm5109, 1, 0
    %v5174 = vsel %vm5110, 1, 0
    %v5175 = vsel %vm5111, 1, 0
    %v5176 = vsel %vm5112, 1, 0
    %v5177 = vsel %vm5113, 1, 0
    %v5178 = vsel %vm5114, 1, 0
    %v5179 = vsel %vm5115, 1, 0
    %v5180 = vsel %vm5116, 1, 0
    %v5181 = vsel %vm5117, 1, 0
    %v5182 = vsel %vm5118, 1, 0
    %v5183 = vsel %vm5119, 1, 0
    %v5184 = vsel %vm5120, 1, 0
    %v5185 = vsel %vm5121, 1, 0
    %v5186 = vsel %vm5122, 1, 0
    %v5187 = vsel %vm5123, 1, 0
    %v5188 = vsel %vm5124, 1, 0
    %v5189 = vsel %vm5125, 1, 0
    %v5190 = vsel %vm5126, 1, 0
    %v5191 = vsel %vm5127, 1, 0
    %v5192 = vsel %vm5128, 1, 0
    %v5193 = vsel %vm5129, 1, 0
    %v5194 = vsel %vm5130, 1, 0
    %v5195 = vsel %vm5131, 1, 0
    %v5196 = vsel %vm5132, 1, 0
    %v5197 = vsel %vm5133, 1, 0
    %v5198 = vsel %vm5134, 1, 0
    %v5199 = vsel %vm5135, 1, 0
    %v5200 = vsel %vm5136, 1, 0
    %v5201 = vsel %vm5137, 1, 0
    %v5202 = vsel %vm5138, 1, 0
    %v5203 = vsel %vm5139, 1, 0
    %v5204 = vsel %vm5140, 1, 0
    %v5205 = vsel %vm5141, 1, 0
    %v5206 = vsel %vm5142, 1, 0
    %v5207 = vsel %vm5143, 1, 0
    %v5208 = vsel %vm5144, 1, 0
    %v5209 = vsel %vm5145, 1, 0
    %v5210 = vsel %vm5146, 1, 0
    %v5211 = vsel %vm5147, 1, 0
    %v5212 = vsel %vm5148, 1, 0
    %v5213 = vsel %vm5149, 1, 0
    %v5214 = vsel %vm5150, 1, 0
    %v5215 = vsel %vm5151, 1, 0
    %v5216 = vsel %vm5152, 1, 0
    %v5217 = vsel %vm5153, 1, 0
    %v5218 = vcvt.s32.f32 %v5154
    %v5219 = vcvt.s32.f32 %v5155
    %v5220 = vcvt.s32.f32 %v5156
    %v5221 = vcvt.s32.f32 %v5157
    %v5222 = vcvt.s32.f32 %v5158
    %v5223 = vcvt.s32.f32 %v5159
    %v5224 = vcvt.s32.f32 %v5160
    %v5225 = vcvt.s32.f32 %v5161
    %v5226 = vcvt.s32.f32 %v5162
    %v5227 = vcvt.s32.f32 %v5163
    %v5228 = vcvt.s32.f32 %v5164
    %v5229 = vcvt.s32.f32 %v5165
    %v5230 = vcvt.s32.f32 %v5166
    %v5231 = vcvt.s32.f32 %v5167
    %v5232 = vcvt.s32.f32 %v5168
    %v5233 = vcvt.s32.f32 %v5169
    %v5234 = vcvt.s32.f32 %v5170
    %v5235 = vcvt.s32.f32 %v5171
    %v5236 = vcvt.s32.f32 %v5172
    %v5237 = vcvt.s32.f32 %v5173
    %v5238 = vcvt.s32.f32 %v5174
    %v5239 = vcvt.s32.f32 %v5175
    %v5240 = vcvt.s32.f32 %v5176
    %v5241 = vcvt.s32.f32 %v5177
    %v5242 = vcvt.s32.f32 %v5178
    %v5243 = vcvt.s32.f32 %v5179
    %v5244 = vcvt.s32.f32 %v5180
    %v5245 = vcvt.s32.f32 %v5181
    %v5246 = vcvt.s32.f32 %v5182
    %v5247 = vcvt.s32.f32 %v5183
    %v5248 = vcvt.s32.f32 %v5184
    %v5249 = vcvt.s32.f32 %v5185
    %v5250 = vcvt.s32.f32 %v5186
    %v5251 = vcvt.s32.f32 %v5187
    %v5252 = vcvt.s32.f32 %v5188
    %v5253 = vcvt.s32.f32 %v5189
    %v5254 = vcvt.s32.f32 %v5190
    %v5255 = vcvt.s32.f32 %v5191
    %v5256 = vcvt.s32.f32 %v5192
    %v5257 = vcvt.s32.f32 %v5193
    %v5258 = vcvt.s32.f32 %v5194
    %v5259 = vcvt.s32.f32 %v5195
    %v5260 = vcvt.s32.f32 %v5196
    %v5261 = vcvt.s32.f32 %v5197
    %v5262 = vcvt.s32.f32 %v5198
    %v5263 = vcvt.s32.f32 %v5199
    %v5264 = vcvt.s32.f32 %v5200
    %v5265 = vcvt.s32.f32 %v5201
    %v5266 = vcvt.s32.f32 %v5202
    %v5267 = vcvt.s32.f32 %v5203
    %v5268 = vcvt.s32.f32 %v5204
    %v5269 = vcvt.s32.f32 %v5205
    %v5270 = vcvt.s32.f32 %v5206
    %v5271 = vcvt.s32.f32 %v5207
    %v5272 = vcvt.s32.f32 %v5208
    %v5273 = vcvt.s32.f32 %v5209
    %v5274 = vcvt.s32.f32 %v5210
    %v5275 = vcvt.s32.f32 %v5211
    %v5276 = vcvt.s32.f32 %v5212
    %v5277 = vcvt.s32.f32 %v5213
    %v5278 = vcvt.s32.f32 %v5214
    %v5279 = vcvt.s32.f32 %v5215
    %v5280 = vcvt.s32.f32 %v5216
    %v5281 = vcvt.s32.f32 %v5217
    %v5282 = vmul.f32 %v5088, %v5218
    %v5283 = vmul.f32 %v5087, %v5219
    %v5284 = vmul.f32 %v5086, %v5220
    %v5285 = vmul.f32 %v5085, %v5221
    %v5286 = vmul.f32 %v5084, %v5222
    %v5287 = vmul.f32 %v5083, %v5223
    %v5288 = vmul.f32 %v5082, %v5224
    %v5289 = vmul.f32 %v5081, %v5225
    %v5290 = vmul.f32 %v5080, %v5226
    %v5291 = vmul.f32 %v5079, %v5227
    %v5292 = vmul.f32 %v5078, %v5228
    %v5293 = vmul.f32 %v5077, %v5229
    %v5294 = vmul.f32 %v5076, %v5230
    %v5295 = vmul.f32 %v5075, %v5231
    %v5296 = vmul.f32 %v5074, %v5232
    %v5297 = vmul.f32 %v5073, %v5233
    %v5298 = vmul.f32 %v5072, %v5234
    %v5299 = vmul.f32 %v5071, %v5235
    %v5300 = vmul.f32 %v5070, %v5236
    %v5301 = vmul.f32 %v5069, %v5237
    %v5302 = vmul.f32 %v5068, %v5238
    %v5303 = vmul.f32 %v5067, %v5239
    %v5304 = vmul.f32 %v5066, %v5240
    %v5305 = vmul.f32 %v5065, %v5241
    %v5306 = vmul.f32 %v5064, %v5242
    %v5307 = vmul.f32 %v5063, %v5243
    %v5308 = vmul.f32 %v5062, %v5244
    %v5309 = vmul.f32 %v5061, %v5245
    %v5310 = vmul.f32 %v5060, %v5246
    %v5311 = vmul.f32 %v5059, %v5247
    %v5312 = vmul.f32 %v5058, %v5248
    %v5313 = vmul.f32 %v5057, %v5249
    %v5314 = vmul.f32 %v5056, %v5250
    %v5315 = vmul.f32 %v5055, %v5251
    %v5316 = vmul.f32 %v5054, %v5252
    %v5317 = vmul.f32 %v5053, %v5253
    %v5318 = vmul.f32 %v5052, %v5254
    %v5319 = vmul.f32 %v5051, %v5255
    %v5320 = vmul.f32 %v5050, %v5256
    %v5321 = vmul.f32 %v5049, %v5257
    %v5322 = vmul.f32 %v5048, %v5258
    %v5323 = vmul.f32 %v5047, %v5259
    %v5324 = vmul.f32 %v5046, %v5260
    %v5325 = vmul.f32 %v5045, %v5261
    %v5326 = vmul.f32 %v5044, %v5262
    %v5327 = vmul.f32 %v5043, %v5263
    %v5328 = vmul.f32 %v5042, %v5264
    %v5329 = vmul.f32 %v5041, %v5265
    %v5330 = vmul.f32 %v5040, %v5266
    %v5331 = vmul.f32 %v5039, %v5267
    %v5332 = vmul.f32 %v5038, %v5268
    %v5333 = vmul.f32 %v5037, %v5269
    %v5334 = vmul.f32 %v5036, %v5270
    %v5335 = vmul.f32 %v5035, %v5271
    %v5336 = vmul.f32 %v5034, %v5272
    %v5337 = vmul.f32 %v5033, %v5273
    %v5338 = vmul.f32 %v5032, %v5274
    %v5339 = vmul.f32 %v5031, %v5275
    %v5340 = vmul.f32 %v5030, %v5276
    %v5341 = vmul.f32 %v5029, %v5277
    %v5342 = vmul.f32 %v5028, %v5278
    %v5343 = vmul.f32 %v5027, %v5279
    %v5344 = vmul.f32 %v5026, %v5280
    %v5345 = vmul.f32 %v5089, %v5281
    %v5346 = vpack.c.bf16 %v5283, %v5282
    %v5347 = vpack.c.bf16 %v5285, %v5284
    %v5348 = vpack.c.bf16 %v5287, %v5286
    %v5349 = vpack.c.bf16 %v5289, %v5288
    %v5350 = vpack.c.bf16 %v5291, %v5290
    %v5351 = vpack.c.bf16 %v5293, %v5292
    %v5352 = vpack.c.bf16 %v5295, %v5294
    %v5353 = vpack.c.bf16 %v5297, %v5296
    %v5354 = vpack.c.bf16 %v5299, %v5298
    %v5355 = vpack.c.bf16 %v5301, %v5300
    %v5356 = vpack.c.bf16 %v5303, %v5302
    %v5357 = vpack.c.bf16 %v5305, %v5304
    %v5358 = vpack.c.bf16 %v5307, %v5306
    %v5359 = vpack.c.bf16 %v5309, %v5308
    %v5360 = vpack.c.bf16 %v5311, %v5310
    %v5361 = vpack.c.bf16 %v5313, %v5312
    %v5362 = vpack.c.bf16 %v5315, %v5314
    %v5363 = vpack.c.bf16 %v5317, %v5316
    %v5364 = vpack.c.bf16 %v5319, %v5318
    %v5365 = vpack.c.bf16 %v5321, %v5320
    %v5366 = vpack.c.bf16 %v5323, %v5322
    %v5367 = vpack.c.bf16 %v5325, %v5324
    %v5368 = vpack.c.bf16 %v5327, %v5326
    %v5369 = vpack.c.bf16 %v5329, %v5328
    %v5370 = vpack.c.bf16 %v5331, %v5330
    %v5371 = vpack.c.bf16 %v5333, %v5332
    %v5372 = vpack.c.bf16 %v5335, %v5334
    %v5373 = vpack.c.bf16 %v5337, %v5336
    %v5374 = vpack.c.bf16 %v5339, %v5338
    %v5375 = vpack.c.bf16 %v5341, %v5340
    %v5376 = vpack.c.bf16 %v5343, %v5342
    %v5377 = vpack.c.bf16 %v5345, %v5344
    %s5378 = scalar_lea.vmem [#allocation5], 320
    %v5379 = vld [vmem:[%s5378] sm:$0xf]
    %v5380 = vld [vmem:[%s5378 + $0x4] sm:$0xf]
    %v5381 = vld [vmem:[%s5378 + $0x8] sm:$0xf]
    %v5382 = vld [vmem:[%s5378 + $0xc] sm:$0xf]
    %v5383 = vld [vmem:[%s5378 + $0x10] sm:$0xf]
    %v5384 = vld [vmem:[%s5378 + $0x14] sm:$0xf]
    %v5385 = vld [vmem:[%s5378 + $0x18] sm:$0xf]
    %v5386 = vld [vmem:[%s5378 + $0x1c] sm:$0xf]
    %v5387 = vld [vmem:[%s5378 + $0x20] sm:$0xf]
    %v5388 = vld [vmem:[%s5378 + $0x24] sm:$0xf]
    %v5389 = vld [vmem:[%s5378 + $0x28] sm:$0xf]
    %v5390 = vld [vmem:[%s5378 + $0x2c] sm:$0xf]
    %v5391 = vld [vmem:[%s5378 + $0x30] sm:$0xf]
    %v5392 = vld [vmem:[%s5378 + $0x34] sm:$0xf]
    %v5393 = vld [vmem:[%s5378 + $0x38] sm:$0xf]
    %v5394 = vld [vmem:[%s5378 + $0x3c] sm:$0xf]
    %v5411 = vunpack.c.l.b16 %v5379
    %v5412 = vunpack.c.l.b16 %v5380
    %v5413 = vunpack.c.l.b16 %v5381
    %v5414 = vunpack.c.l.b16 %v5382
    %v5415 = vunpack.c.l.b16 %v5383
    %v5416 = vunpack.c.l.b16 %v5384
    %v5417 = vunpack.c.l.b16 %v5385
    %v5418 = vunpack.c.l.b16 %v5386
    %v5419 = vunpack.c.l.b16 %v5387
    %v5420 = vunpack.c.l.b16 %v5388
    %v5421 = vunpack.c.l.b16 %v5389
    %v5422 = vunpack.c.l.b16 %v5390
    %v5423 = vunpack.c.l.b16 %v5391
    %v5424 = vunpack.c.l.b16 %v5392
    %v5425 = vunpack.c.l.b16 %v5393
    %v5426 = vunpack.c.l.b16 %v5394
    %v5427 = vpack.c.b16 %v5412, %v5411
    %v5428 = vpack.c.b16 %v5414, %v5413
    %v5429 = vpack.c.b16 %v5416, %v5415
    %v5430 = vpack.c.b16 %v5418, %v5417
    %v5431 = vpack.c.b16 %v5420, %v5419
    %v5432 = vpack.c.b16 %v5422, %v5421
    %v5433 = vpack.c.b16 %v5424, %v5423
    %v5434 = vpack.c.b16 %v5426, %v5425
    %5443 = vmatprep.subr.bf16.mxu0 0
    %5444 = vmatpush1.bf16.msra.mxu0 %v5434
    %5445 = vmatprep.subr.bf16.mxu0 0
    %5446 = vmatpush1.bf16.msra.mxu0 %v5433
    %5447 = vmatprep.subr.bf16.mxu0 0
    %5448 = vmatpush1.bf16.msra.mxu0 %v5432
    %5449 = vmatprep.subr.bf16.mxu0 0
    %5450 = vmatpush1.bf16.msra.mxu0 %v5431
    %5451 = vmatprep.subr.bf16.mxu0 0
    %5452 = vmatpush1.bf16.msra.mxu0 %v5430
    %5453 = vmatprep.subr.bf16.mxu0 0
    %5454 = vmatpush1.bf16.msra.mxu0 %v5429
    %5455 = vmatprep.subr.bf16.mxu0 0
    %5456 = vmatpush1.bf16.msra.mxu0 %v5428
    %5457 = vmatprep.subr.bf16.mxu0 0
    %5458 = vmatpush1.bf16.msra.mxu0 %v5427
    %5459 = vmatprep.subr.bf16.mxu0 0
    %5460 = vmatpush2.bf16.msra.mxu0 0
    %5461 = vmatprep.subr.bf16.mxu0 0
    %5462 = vmatpush2.bf16.msra.mxu0 0
    %5463 = vmatprep.subr.bf16.mxu0 0
    %5464 = vmatpush2.bf16.msra.mxu0 0
    %5465 = vmatprep.subr.bf16.mxu0 0
    %5466 = vmatpush2.bf16.msra.mxu0 0
    %5467 = vmatprep.subr.bf16.mxu0 0
    %5468 = vmatpush2.bf16.msra.mxu0 0
    %5469 = vmatprep.subr.bf16.mxu0 0
    %5470 = vmatpush2.bf16.msra.mxu0 0
    %5471 = vmatprep.subr.bf16.mxu0 0
    %5472 = vmatpush2.bf16.msra.mxu0 0
    %5473 = vmatprep.subr.bf16.mxu0 0
    %5474 = vmatpush2.bf16.msra.mxu0 0
    %5475 = vmatprep.mubr.bf16.mxu0 0
    %5476 = vmatmul.mubr.bf16.gmra.mxu0 %v5346
    %v5477 = vpop.f32.mrf.mxu0
    %v5478 = vadd.f32 0.0, %v5477
    %v5479 = vpop.f32.mrf.mxu0
    %v5480 = vpop.f32.mrf.mxu0
    %v5481 = vadd.f32 0.0, %v5480
    %v5482 = vpop.f32.mrf.mxu0
    %5483 = vmatprep.mubr.bf16.mxu0 0
    %5484 = vmatmul.mubr.bf16.gmra.mxu0 %v5347
    %v5485 = vpop.f32.mrf.mxu0
    %v5486 = vadd.f32 0.0, %v5485
    %v5487 = vpop.f32.mrf.mxu0
    %v5488 = vpop.f32.mrf.mxu0
    %v5489 = vadd.f32 0.0, %v5488
    %v5490 = vpop.f32.mrf.mxu0
    %5491 = vmatprep.mubr.bf16.mxu0 0
    %5492 = vmatmul.mubr.bf16.gmra.mxu0 %v5348
    %v5493 = vpop.f32.mrf.mxu0
    %v5494 = vadd.f32 0.0, %v5493
    %v5495 = vpop.f32.mrf.mxu0
    %v5496 = vpop.f32.mrf.mxu0
    %v5497 = vadd.f32 0.0, %v5496
    %v5498 = vpop.f32.mrf.mxu0
    %5499 = vmatprep.mubr.bf16.mxu0 0
    %5500 = vmatmul.mubr.bf16.gmra.mxu0 %v5349
    %v5501 = vpop.f32.mrf.mxu0
    %v5502 = vadd.f32 0.0, %v5501
    %v5503 = vpop.f32.mrf.mxu0
    %v5504 = vpop.f32.mrf.mxu0
    %v5505 = vadd.f32 0.0, %v5504
    %v5506 = vpop.f32.mrf.mxu0
    %5507 = vmatprep.mubr.bf16.mxu0 0
    %5508 = vmatmul.mubr.bf16.gmra.mxu0 %v5350
    %v5509 = vpop.f32.mrf.mxu0
    %v5510 = vadd.f32 0.0, %v5509
    %v5511 = vpop.f32.mrf.mxu0
    %v5512 = vpop.f32.mrf.mxu0
    %v5513 = vadd.f32 0.0, %v5512
    %v5514 = vpop.f32.mrf.mxu0
    %5515 = vmatprep.mubr.bf16.mxu0 0
    %5516 = vmatmul.mubr.bf16.gmra.mxu0 %v5351
    %v5517 = vpop.f32.mrf.mxu0
    %v5518 = vadd.f32 0.0, %v5517
    %v5519 = vpop.f32.mrf.mxu0
    %v5520 = vpop.f32.mrf.mxu0
    %v5521 = vadd.f32 0.0, %v5520
    %v5522 = vpop.f32.mrf.mxu0
    %5523 = vmatprep.mubr.bf16.mxu0 0
    %5524 = vmatmul.mubr.bf16.gmra.mxu0 %v5352
    %v5525 = vpop.f32.mrf.mxu0
    %v5526 = vadd.f32 0.0, %v5525
    %v5527 = vpop.f32.mrf.mxu0
    %v5528 = vpop.f32.mrf.mxu0
    %v5529 = vadd.f32 0.0, %v5528
    %v5530 = vpop.f32.mrf.mxu0
    %5531 = vmatprep.mubr.bf16.mxu0 0
    %5532 = vmatmul.mubr.bf16.gmra.mxu0 %v5353
    %v5533 = vpop.f32.mrf.mxu0
    %v5534 = vadd.f32 0.0, %v5533
    %v5535 = vpop.f32.mrf.mxu0
    %v5536 = vpop.f32.mrf.mxu0
    %v5537 = vadd.f32 0.0, %v5536
    %v5538 = vpop.f32.mrf.mxu0
    %5539 = vmatprep.mubr.bf16.mxu0 0
    %5540 = vmatmul.mubr.bf16.gmra.mxu0 %v5354
    %v5541 = vpop.f32.mrf.mxu0
    %v5542 = vadd.f32 0.0, %v5541
    %v5543 = vpop.f32.mrf.mxu0
    %v5544 = vpop.f32.mrf.mxu0
    %v5545 = vadd.f32 0.0, %v5544
    %v5546 = vpop.f32.mrf.mxu0
    %5547 = vmatprep.mubr.bf16.mxu0 0
    %5548 = vmatmul.mubr.bf16.gmra.mxu0 %v5355
    %v5549 = vpop.f32.mrf.mxu0
    %v5550 = vadd.f32 0.0, %v5549
    %v5551 = vpop.f32.mrf.mxu0
    %v5552 = vpop.f32.mrf.mxu0
    %v5553 = vadd.f32 0.0, %v5552
    %v5554 = vpop.f32.mrf.mxu0
    %5555 = vmatprep.mubr.bf16.mxu0 0
    %5556 = vmatmul.mubr.bf16.gmra.mxu0 %v5356
    %v5557 = vpop.f32.mrf.mxu0
    %v5558 = vadd.f32 0.0, %v5557
    %v5559 = vpop.f32.mrf.mxu0
    %v5560 = vpop.f32.mrf.mxu0
    %v5561 = vadd.f32 0.0, %v5560
    %v5562 = vpop.f32.mrf.mxu0
    %5563 = vmatprep.mubr.bf16.mxu0 0
    %5564 = vmatmul.mubr.bf16.gmra.mxu0 %v5357
    %v5565 = vpop.f32.mrf.mxu0
    %v5566 = vadd.f32 0.0, %v5565
    %v5567 = vpop.f32.mrf.mxu0
    %v5568 = vpop.f32.mrf.mxu0
    %v5569 = vadd.f32 0.0, %v5568
    %v5570 = vpop.f32.mrf.mxu0
    %5571 = vmatprep.mubr.bf16.mxu0 0
    %5572 = vmatmul.mubr.bf16.gmra.mxu0 %v5358
    %v5573 = vpop.f32.mrf.mxu0
    %v5574 = vadd.f32 0.0, %v5573
    %v5575 = vpop.f32.mrf.mxu0
    %v5576 = vpop.f32.mrf.mxu0
    %v5577 = vadd.f32 0.0, %v5576
    %v5578 = vpop.f32.mrf.mxu0
    %5579 = vmatprep.mubr.bf16.mxu0 0
    %5580 = vmatmul.mubr.bf16.gmra.mxu0 %v5359
    %v5581 = vpop.f32.mrf.mxu0
    %v5582 = vadd.f32 0.0, %v5581
    %v5583 = vpop.f32.mrf.mxu0
    %v5584 = vpop.f32.mrf.mxu0
    %v5585 = vadd.f32 0.0, %v5584
    %v5586 = vpop.f32.mrf.mxu0
    %5587 = vmatprep.mubr.bf16.mxu0 0
    %5588 = vmatmul.mubr.bf16.gmra.mxu0 %v5360
    %v5589 = vpop.f32.mrf.mxu0
    %v5590 = vadd.f32 0.0, %v5589
    %v5591 = vpop.f32.mrf.mxu0
    %v5592 = vpop.f32.mrf.mxu0
    %v5593 = vadd.f32 0.0, %v5592
    %v5594 = vpop.f32.mrf.mxu0
    %5595 = vmatprep.mubr.bf16.mxu0 0
    %5596 = vmatmul.mubr.bf16.gmra.mxu0 %v5361
    %v5597 = vpop.f32.mrf.mxu0
    %v5598 = vadd.f32 0.0, %v5597
    %v5599 = vpop.f32.mrf.mxu0
    %v5600 = vpop.f32.mrf.mxu0
    %v5601 = vadd.f32 0.0, %v5600
    %v5602 = vpop.f32.mrf.mxu0
    %5603 = vmatprep.mubr.bf16.mxu0 0
    %5604 = vmatmul.mubr.bf16.gmra.mxu0 %v5362
    %v5605 = vpop.f32.mrf.mxu0
    %v5606 = vadd.f32 0.0, %v5605
    %v5607 = vpop.f32.mrf.mxu0
    %v5608 = vpop.f32.mrf.mxu0
    %v5609 = vadd.f32 0.0, %v5608
    %v5610 = vpop.f32.mrf.mxu0
    %5611 = vmatprep.mubr.bf16.mxu0 0
    %5612 = vmatmul.mubr.bf16.gmra.mxu0 %v5363
    %v5613 = vpop.f32.mrf.mxu0
    %v5614 = vadd.f32 0.0, %v5613
    %v5615 = vpop.f32.mrf.mxu0
    %v5616 = vpop.f32.mrf.mxu0
    %v5617 = vadd.f32 0.0, %v5616
    %v5618 = vpop.f32.mrf.mxu0
    %5619 = vmatprep.mubr.bf16.mxu0 0
    %5620 = vmatmul.mubr.bf16.gmra.mxu0 %v5364
    %v5621 = vpop.f32.mrf.mxu0
    %v5622 = vadd.f32 0.0, %v5621
    %v5623 = vpop.f32.mrf.mxu0
    %v5624 = vpop.f32.mrf.mxu0
    %v5625 = vadd.f32 0.0, %v5624
    %v5626 = vpop.f32.mrf.mxu0
    %5627 = vmatprep.mubr.bf16.mxu0 0
    %5628 = vmatmul.mubr.bf16.gmra.mxu0 %v5365
    %v5629 = vpop.f32.mrf.mxu0
    %v5630 = vadd.f32 0.0, %v5629
    %v5631 = vpop.f32.mrf.mxu0
    %v5632 = vpop.f32.mrf.mxu0
    %v5633 = vadd.f32 0.0, %v5632
    %v5634 = vpop.f32.mrf.mxu0
    %5635 = vmatprep.mubr.bf16.mxu0 0
    %5636 = vmatmul.mubr.bf16.gmra.mxu0 %v5366
    %v5637 = vpop.f32.mrf.mxu0
    %v5638 = vadd.f32 0.0, %v5637
    %v5639 = vpop.f32.mrf.mxu0
    %v5640 = vpop.f32.mrf.mxu0
    %v5641 = vadd.f32 0.0, %v5640
    %v5642 = vpop.f32.mrf.mxu0
    %5643 = vmatprep.mubr.bf16.mxu0 0
    %5644 = vmatmul.mubr.bf16.gmra.mxu0 %v5367
    %v5645 = vpop.f32.mrf.mxu0
    %v5646 = vadd.f32 0.0, %v5645
    %v5647 = vpop.f32.mrf.mxu0
    %v5648 = vpop.f32.mrf.mxu0
    %v5649 = vadd.f32 0.0, %v5648
    %v5650 = vpop.f32.mrf.mxu0
    %5651 = vmatprep.mubr.bf16.mxu0 0
    %5652 = vmatmul.mubr.bf16.gmra.mxu0 %v5368
    %v5653 = vpop.f32.mrf.mxu0
    %v5654 = vadd.f32 0.0, %v5653
    %v5655 = vpop.f32.mrf.mxu0
    %v5656 = vpop.f32.mrf.mxu0
    %v5657 = vadd.f32 0.0, %v5656
    %v5658 = vpop.f32.mrf.mxu0
    %5659 = vmatprep.mubr.bf16.mxu0 0
    %5660 = vmatmul.mubr.bf16.gmra.mxu0 %v5369
    %v5661 = vpop.f32.mrf.mxu0
    %v5662 = vadd.f32 0.0, %v5661
    %v5663 = vpop.f32.mrf.mxu0
    %v5664 = vpop.f32.mrf.mxu0
    %v5665 = vadd.f32 0.0, %v5664
    %v5666 = vpop.f32.mrf.mxu0
    %5667 = vmatprep.mubr.bf16.mxu0 0
    %5668 = vmatmul.mubr.bf16.gmra.mxu0 %v5370
    %v5669 = vpop.f32.mrf.mxu0
    %v5670 = vadd.f32 0.0, %v5669
    %v5671 = vpop.f32.mrf.mxu0
    %v5672 = vpop.f32.mrf.mxu0
    %v5673 = vadd.f32 0.0, %v5672
    %v5674 = vpop.f32.mrf.mxu0
    %5675 = vmatprep.mubr.bf16.mxu0 0
    %5676 = vmatmul.mubr.bf16.gmra.mxu0 %v5371
    %v5677 = vpop.f32.mrf.mxu0
    %v5678 = vadd.f32 0.0, %v5677
    %v5679 = vpop.f32.mrf.mxu0
    %v5680 = vpop.f32.mrf.mxu0
    %v5681 = vadd.f32 0.0, %v5680
    %v5682 = vpop.f32.mrf.mxu0
    %5683 = vmatprep.mubr.bf16.mxu0 0
    %5684 = vmatmul.mubr.bf16.gmra.mxu0 %v5372
    %v5685 = vpop.f32.mrf.mxu0
    %v5686 = vadd.f32 0.0, %v5685
    %v5687 = vpop.f32.mrf.mxu0
    %v5688 = vpop.f32.mrf.mxu0
    %v5689 = vadd.f32 0.0, %v5688
    %v5690 = vpop.f32.mrf.mxu0
    %5691 = vmatprep.mubr.bf16.mxu0 0
    %5692 = vmatmul.mubr.bf16.gmra.mxu0 %v5373
    %v5693 = vpop.f32.mrf.mxu0
    %v5694 = vadd.f32 0.0, %v5693
    %v5695 = vpop.f32.mrf.mxu0
    %v5696 = vpop.f32.mrf.mxu0
    %v5697 = vadd.f32 0.0, %v5696
    %v5698 = vpop.f32.mrf.mxu0
    %5699 = vmatprep.mubr.bf16.mxu0 0
    %5700 = vmatmul.mubr.bf16.gmra.mxu0 %v5374
    %v5701 = vpop.f32.mrf.mxu0
    %v5702 = vadd.f32 0.0, %v5701
    %v5703 = vpop.f32.mrf.mxu0
    %v5704 = vpop.f32.mrf.mxu0
    %v5705 = vadd.f32 0.0, %v5704
    %v5706 = vpop.f32.mrf.mxu0
    %5707 = vmatprep.mubr.bf16.mxu0 0
    %5708 = vmatmul.mubr.bf16.gmra.mxu0 %v5375
    %v5709 = vpop.f32.mrf.mxu0
    %v5710 = vadd.f32 0.0, %v5709
    %v5711 = vpop.f32.mrf.mxu0
    %v5712 = vpop.f32.mrf.mxu0
    %v5713 = vadd.f32 0.0, %v5712
    %v5714 = vpop.f32.mrf.mxu0
    %5715 = vmatprep.mubr.bf16.mxu0 0
    %5716 = vmatmul.mubr.bf16.gmra.mxu0 %v5376
    %v5717 = vpop.f32.mrf.mxu0
    %v5718 = vadd.f32 0.0, %v5717
    %v5719 = vpop.f32.mrf.mxu0
    %v5720 = vpop.f32.mrf.mxu0
    %v5721 = vadd.f32 0.0, %v5720
    %v5722 = vpop.f32.mrf.mxu0
    %5723 = vmatprep.mubr.bf16.mxu0 0
    %5724 = vmatmul.mubr.bf16.gmra.mxu0 %v5377
    %v5725 = vpop.f32.mrf.mxu0
    %v5726 = vadd.f32 0.0, %v5725
    %v5727 = vpop.f32.mrf.mxu0
    %v5728 = vpop.f32.mrf.mxu0
    %v5729 = vadd.f32 0.0, %v5728
    %v5730 = vpop.f32.mrf.mxu0
    %5731 = vdwg.mxu0
    %v5732 = vadd.f32 %v4707, %v5478
    %v5733 = vadd.f32 %v4710, %v5481
    %v5734 = vadd.f32 %v4715, %v5486
    %v5735 = vadd.f32 %v4718, %v5489
    %v5736 = vadd.f32 %v4723, %v5494
    %v5737 = vadd.f32 %v4726, %v5497
    %v5738 = vadd.f32 %v4731, %v5502
    %v5739 = vadd.f32 %v4734, %v5505
    %v5740 = vadd.f32 %v4739, %v5510
    %v5741 = vadd.f32 %v4742, %v5513
    %v5742 = vadd.f32 %v4747, %v5518
    %v5743 = vadd.f32 %v4750, %v5521
    %v5744 = vadd.f32 %v4755, %v5526
    %v5745 = vadd.f32 %v4758, %v5529
    %v5746 = vadd.f32 %v4763, %v5534
    %v5747 = vadd.f32 %v4766, %v5537
    %v5748 = vadd.f32 %v4771, %v5542
    %v5749 = vadd.f32 %v4774, %v5545
    %v5750 = vadd.f32 %v4779, %v5550
    %v5751 = vadd.f32 %v4782, %v5553
    %v5752 = vadd.f32 %v4787, %v5558
    %v5753 = vadd.f32 %v4790, %v5561
    %v5754 = vadd.f32 %v4795, %v5566
    %v5755 = vadd.f32 %v4798, %v5569
    %v5756 = vadd.f32 %v4803, %v5574
    %v5757 = vadd.f32 %v4806, %v5577
    %v5758 = vadd.f32 %v4811, %v5582
    %v5759 = vadd.f32 %v4814, %v5585
    %v5760 = vadd.f32 %v4819, %v5590
    %v5761 = vadd.f32 %v4822, %v5593
    %v5762 = vadd.f32 %v4827, %v5598
    %v5763 = vadd.f32 %v4830, %v5601
    %v5764 = vadd.f32 %v4835, %v5606
    %v5765 = vadd.f32 %v4838, %v5609
    %v5766 = vadd.f32 %v4843, %v5614
    %v5767 = vadd.f32 %v4846, %v5617
    %v5768 = vadd.f32 %v4851, %v5622
    %v5769 = vadd.f32 %v4854, %v5625
    %v5770 = vadd.f32 %v4859, %v5630
    %v5771 = vadd.f32 %v4862, %v5633
    %v5772 = vadd.f32 %v4867, %v5638
    %v5773 = vadd.f32 %v4870, %v5641
    %v5774 = vadd.f32 %v4875, %v5646
    %v5775 = vadd.f32 %v4878, %v5649
    %v5776 = vadd.f32 %v4883, %v5654
    %v5777 = vadd.f32 %v4886, %v5657
    %v5778 = vadd.f32 %v4891, %v5662
    %v5779 = vadd.f32 %v4894, %v5665
    %v5780 = vadd.f32 %v4899, %v5670
    %v5781 = vadd.f32 %v4902, %v5673
    %v5782 = vadd.f32 %v4907, %v5678
    %v5783 = vadd.f32 %v4910, %v5681
    %v5784 = vadd.f32 %v4915, %v5686
    %v5785 = vadd.f32 %v4918, %v5689
    %v5786 = vadd.f32 %v4923, %v5694
    %v5787 = vadd.f32 %v4926, %v5697
    %v5788 = vadd.f32 %v4931, %v5702
    %v5789 = vadd.f32 %v4934, %v5705
    %v5790 = vadd.f32 %v4939, %v5710
    %v5791 = vadd.f32 %v4942, %v5713
    %v5792 = vadd.f32 %v4947, %v5718
    %v5793 = vadd.f32 %v4950, %v5721
    %v5794 = vadd.f32 %v4955, %v5726
    %v5795 = vadd.f32 %v4958, %v5729
    %v5796 = vlaneseq
    %v5797 = vshrl.u32 %v5796, 7
    %v5798 = vsub.s32 0, %v5797
    %v5799 = vrot.slane %v1647, %v5798
    %v5800 = vmul.f32 %v5732, %v5799
    %v5801 = vmul.f32 %v5733, %v5799
    %v5802 = vmul.f32 %v5734, %v5799
    %v5803 = vmul.f32 %v5735, %v5799
    %v5804 = vmul.f32 %v5736, %v5799
    %v5805 = vmul.f32 %v5737, %v5799
    %v5806 = vmul.f32 %v5738, %v5799
    %v5807 = vmul.f32 %v5739, %v5799
    %v5808 = vmul.f32 %v5740, %v5799
    %v5809 = vmul.f32 %v5741, %v5799
    %v5810 = vmul.f32 %v5742, %v5799
    %v5811 = vmul.f32 %v5743, %v5799
    %v5812 = vmul.f32 %v5744, %v5799
    %v5813 = vmul.f32 %v5745, %v5799
    %v5814 = vmul.f32 %v5746, %v5799
    %v5815 = vmul.f32 %v5747, %v5799
    %v5816 = vmul.f32 %v5748, %v5799
    %v5817 = vmul.f32 %v5749, %v5799
    %v5818 = vmul.f32 %v5750, %v5799
    %v5819 = vmul.f32 %v5751, %v5799
    %v5820 = vmul.f32 %v5752, %v5799
    %v5821 = vmul.f32 %v5753, %v5799
    %v5822 = vmul.f32 %v5754, %v5799
    %v5823 = vmul.f32 %v5755, %v5799
    %v5824 = vmul.f32 %v5756, %v5799
    %v5825 = vmul.f32 %v5757, %v5799
    %v5826 = vmul.f32 %v5758, %v5799
    %v5827 = vmul.f32 %v5759, %v5799
    %v5828 = vmul.f32 %v5760, %v5799
    %v5829 = vmul.f32 %v5761, %v5799
    %v5830 = vmul.f32 %v5762, %v5799
    %v5831 = vmul.f32 %v5763, %v5799
    %v5832 = vmul.f32 %v5764, %v5799
    %v5833 = vmul.f32 %v5765, %v5799
    %v5834 = vmul.f32 %v5766, %v5799
    %v5835 = vmul.f32 %v5767, %v5799
    %v5836 = vmul.f32 %v5768, %v5799
    %v5837 = vmul.f32 %v5769, %v5799
    %v5838 = vmul.f32 %v5770, %v5799
    %v5839 = vmul.f32 %v5771, %v5799
    %v5840 = vmul.f32 %v5772, %v5799
    %v5841 = vmul.f32 %v5773, %v5799
    %v5842 = vmul.f32 %v5774, %v5799
    %v5843 = vmul.f32 %v5775, %v5799
    %v5844 = vmul.f32 %v5776, %v5799
    %v5845 = vmul.f32 %v5777, %v5799
    %v5846 = vmul.f32 %v5778, %v5799
    %v5847 = vmul.f32 %v5779, %v5799
    %v5848 = vmul.f32 %v5780, %v5799
    %v5849 = vmul.f32 %v5781, %v5799
    %v5850 = vmul.f32 %v5782, %v5799
    %v5851 = vmul.f32 %v5783, %v5799
    %v5852 = vmul.f32 %v5784, %v5799
    %v5853 = vmul.f32 %v5785, %v5799
    %v5854 = vmul.f32 %v5786, %v5799
    %v5855 = vmul.f32 %v5787, %v5799
    %v5856 = vmul.f32 %v5788, %v5799
    %v5857 = vmul.f32 %v5789, %v5799
    %v5858 = vmul.f32 %v5790, %v5799
    %v5859 = vmul.f32 %v5791, %v5799
    %v5860 = vmul.f32 %v5792, %v5799
    %v5861 = vmul.f32 %v5793, %v5799
    %v5862 = vmul.f32 %v5794, %v5799
    %v5863 = vmul.f32 %v5795, %v5799
    %v5864 = vlaneseq
    %v5865 = vshrl.u32 %v5864, 7
    %v5866 = vsub.s32 0, %v5865
    %v5867 = vrot.slane %v1648, %v5866
    %v5868 = vadd.f32 %v5800, %v5867
    %v5869 = vadd.f32 %v5801, %v5867
    %v5870 = vadd.f32 %v5802, %v5867
    %v5871 = vadd.f32 %v5803, %v5867
    %v5872 = vadd.f32 %v5804, %v5867
    %v5873 = vadd.f32 %v5805, %v5867
    %v5874 = vadd.f32 %v5806, %v5867
    %v5875 = vadd.f32 %v5807, %v5867
    %v5876 = vadd.f32 %v5808, %v5867
    %v5877 = vadd.f32 %v5809, %v5867
    %v5878 = vadd.f32 %v5810, %v5867
    %v5879 = vadd.f32 %v5811, %v5867
    %v5880 = vadd.f32 %v5812, %v5867
    %v5881 = vadd.f32 %v5813, %v5867
    %v5882 = vadd.f32 %v5814, %v5867
    %v5883 = vadd.f32 %v5815, %v5867
    %v5884 = vadd.f32 %v5816, %v5867
    %v5885 = vadd.f32 %v5817, %v5867
    %v5886 = vadd.f32 %v5818, %v5867
    %v5887 = vadd.f32 %v5819, %v5867
    %v5888 = vadd.f32 %v5820, %v5867
    %v5889 = vadd.f32 %v5821, %v5867
    %v5890 = vadd.f32 %v5822, %v5867
    %v5891 = vadd.f32 %v5823, %v5867
    %v5892 = vadd.f32 %v5824, %v5867
    %v5893 = vadd.f32 %v5825, %v5867
    %v5894 = vadd.f32 %v5826, %v5867
    %v5895 = vadd.f32 %v5827, %v5867
    %v5896 = vadd.f32 %v5828, %v5867
    %v5897 = vadd.f32 %v5829, %v5867
    %v5898 = vadd.f32 %v5830, %v5867
    %v5899 = vadd.f32 %v5831, %v5867
    %v5900 = vadd.f32 %v5832, %v5867
    %v5901 = vadd.f32 %v5833, %v5867
    %v5902 = vadd.f32 %v5834, %v5867
    %v5903 = vadd.f32 %v5835, %v5867
    %v5904 = vadd.f32 %v5836, %v5867
    %v5905 = vadd.f32 %v5837, %v5867
    %v5906 = vadd.f32 %v5838, %v5867
    %v5907 = vadd.f32 %v5839, %v5867
    %v5908 = vadd.f32 %v5840, %v5867
    %v5909 = vadd.f32 %v5841, %v5867
    %v5910 = vadd.f32 %v5842, %v5867
    %v5911 = vadd.f32 %v5843, %v5867
    %v5912 = vadd.f32 %v5844, %v5867
    %v5913 = vadd.f32 %v5845, %v5867
    %v5914 = vadd.f32 %v5846, %v5867
    %v5915 = vadd.f32 %v5847, %v5867
    %v5916 = vadd.f32 %v5848, %v5867
    %v5917 = vadd.f32 %v5849, %v5867
    %v5918 = vadd.f32 %v5850, %v5867
    %v5919 = vadd.f32 %v5851, %v5867
    %v5920 = vadd.f32 %v5852, %v5867
    %v5921 = vadd.f32 %v5853, %v5867
    %v5922 = vadd.f32 %v5854, %v5867
    %v5923 = vadd.f32 %v5855, %v5867
    %v5924 = vadd.f32 %v5856, %v5867
    %v5925 = vadd.f32 %v5857, %v5867
    %v5926 = vadd.f32 %v5858, %v5867
    %v5927 = vadd.f32 %v5859, %v5867
    %v5928 = vadd.f32 %v5860, %v5867
    %v5929 = vadd.f32 %v5861, %v5867
    %v5930 = vadd.f32 %v5862, %v5867
    %v5931 = vadd.f32 %v5863, %v5867
    %v5932 = vmax.f32 %v5868, 0.0
    %v5933 = vmax.f32 %v5869, 0.0
    %v5934 = vmax.f32 %v5870, 0.0
    %v5935 = vmax.f32 %v5871, 0.0
    %v5936 = vmax.f32 %v5872, 0.0
    %v5937 = vmax.f32 %v5873, 0.0
    %v5938 = vmax.f32 %v5874, 0.0
    %v5939 = vmax.f32 %v5875, 0.0
    %v5940 = vmax.f32 %v5876, 0.0
    %v5941 = vmax.f32 %v5877, 0.0
    %v5942 = vmax.f32 %v5878, 0.0
    %v5943 = vmax.f32 %v5879, 0.0
    %v5944 = vmax.f32 %v5880, 0.0
    %v5945 = vmax.f32 %v5881, 0.0
    %v5946 = vmax.f32 %v5882, 0.0
    %v5947 = vmax.f32 %v5883, 0.0
    %v5948 = vmax.f32 %v5884, 0.0
    %v5949 = vmax.f32 %v5885, 0.0
    %v5950 = vmax.f32 %v5886, 0.0
    %v5951 = vmax.f32 %v5887, 0.0
    %v5952 = vmax.f32 %v5888, 0.0
    %v5953 = vmax.f32 %v5889, 0.0
    %v5954 = vmax.f32 %v5890, 0.0
    %v5955 = vmax.f32 %v5891, 0.0
    %v5956 = vmax.f32 %v5892, 0.0
    %v5957 = vmax.f32 %v5893, 0.0
    %v5958 = vmax.f32 %v5894, 0.0
    %v5959 = vmax.f32 %v5895, 0.0
    %v5960 = vmax.f32 %v5896, 0.0
    %v5961 = vmax.f32 %v5897, 0.0
    %v5962 = vmax.f32 %v5898, 0.0
    %v5963 = vmax.f32 %v5899, 0.0
    %v5964 = vmax.f32 %v5900, 0.0
    %v5965 = vmax.f32 %v5901, 0.0
    %v5966 = vmax.f32 %v5902, 0.0
    %v5967 = vmax.f32 %v5903, 0.0
    %v5968 = vmax.f32 %v5904, 0.0
    %v5969 = vmax.f32 %v5905, 0.0
    %v5970 = vmax.f32 %v5906, 0.0
    %v5971 = vmax.f32 %v5907, 0.0
    %v5972 = vmax.f32 %v5908, 0.0
    %v5973 = vmax.f32 %v5909, 0.0
    %v5974 = vmax.f32 %v5910, 0.0
    %v5975 = vmax.f32 %v5911, 0.0
    %v5976 = vmax.f32 %v5912, 0.0
    %v5977 = vmax.f32 %v5913, 0.0
    %v5978 = vmax.f32 %v5914, 0.0
    %v5979 = vmax.f32 %v5915, 0.0
    %v5980 = vmax.f32 %v5916, 0.0
    %v5981 = vmax.f32 %v5917, 0.0
    %v5982 = vmax.f32 %v5918, 0.0
    %v5983 = vmax.f32 %v5919, 0.0
    %v5984 = vmax.f32 %v5920, 0.0
    %v5985 = vmax.f32 %v5921, 0.0
    %v5986 = vmax.f32 %v5922, 0.0
    %v5987 = vmax.f32 %v5923, 0.0
    %v5988 = vmax.f32 %v5924, 0.0
    %v5989 = vmax.f32 %v5925, 0.0
    %v5990 = vmax.f32 %v5926, 0.0
    %v5991 = vmax.f32 %v5927, 0.0
    %v5992 = vmax.f32 %v5928, 0.0
    %v5993 = vmax.f32 %v5929, 0.0
    %v5994 = vmax.f32 %v5930, 0.0
    %v5995 = vmax.f32 %v5931, 0.0
    %vm5996 = vcmp.ge.s32.totalorder %v813, 32
    %vm5997 = vcmp.ge.s32.totalorder %v814, 32
    %vm5998 = vcmp.ge.s32.totalorder %v815, 32
    %vm5999 = vcmp.ge.s32.totalorder %v816, 32
    %vm6000 = vcmp.ge.s32.totalorder %v817, 32
    %vm6001 = vcmp.ge.s32.totalorder %v818, 32
    %vm6002 = vcmp.ge.s32.totalorder %v819, 32
    %vm6003 = vcmp.ge.s32.totalorder %v820, 32
    %vm6004 = vcmp.ge.s32.totalorder %v821, 32
    %vm6005 = vcmp.ge.s32.totalorder %v822, 32
    %vm6006 = vcmp.ge.s32.totalorder %v823, 32
    %vm6007 = vcmp.ge.s32.totalorder %v824, 32
    %vm6008 = vcmp.ge.s32.totalorder %v825, 32
    %vm6009 = vcmp.ge.s32.totalorder %v826, 32
    %vm6010 = vcmp.ge.s32.totalorder %v827, 32
    %vm6011 = vcmp.ge.s32.totalorder %v828, 32
    %vm6012 = vcmp.ge.s32.totalorder %v829, 32
    %vm6013 = vcmp.ge.s32.totalorder %v830, 32
    %vm6014 = vcmp.ge.s32.totalorder %v831, 32
    %vm6015 = vcmp.ge.s32.totalorder %v832, 32
    %vm6016 = vcmp.ge.s32.totalorder %v833, 32
    %vm6017 = vcmp.ge.s32.totalorder %v834, 32
    %vm6018 = vcmp.ge.s32.totalorder %v835, 32
    %vm6019 = vcmp.ge.s32.totalorder %v836, 32
    %vm6020 = vcmp.ge.s32.totalorder %v837, 32
    %vm6021 = vcmp.ge.s32.totalorder %v838, 32
    %vm6022 = vcmp.ge.s32.totalorder %v839, 32
    %vm6023 = vcmp.ge.s32.totalorder %v840, 32
    %vm6024 = vcmp.ge.s32.totalorder %v841, 32
    %vm6025 = vcmp.ge.s32.totalorder %v842, 32
    %vm6026 = vcmp.ge.s32.totalorder %v843, 32
    %vm6027 = vcmp.ge.s32.totalorder %v844, 32
    %vm6028 = vcmp.ge.s32.totalorder %v845, 32
    %vm6029 = vcmp.ge.s32.totalorder %v846, 32
    %vm6030 = vcmp.ge.s32.totalorder %v847, 32
    %vm6031 = vcmp.ge.s32.totalorder %v848, 32
    %vm6032 = vcmp.ge.s32.totalorder %v849, 32
    %vm6033 = vcmp.ge.s32.totalorder %v850, 32
    %vm6034 = vcmp.ge.s32.totalorder %v851, 32
    %vm6035 = vcmp.ge.s32.totalorder %v852, 32
    %vm6036 = vcmp.ge.s32.totalorder %v853, 32
    %vm6037 = vcmp.ge.s32.totalorder %v854, 32
    %vm6038 = vcmp.ge.s32.totalorder %v855, 32
    %vm6039 = vcmp.ge.s32.totalorder %v856, 32
    %vm6040 = vcmp.ge.s32.totalorder %v857, 32
    %vm6041 = vcmp.ge.s32.totalorder %v858, 32
    %vm6042 = vcmp.ge.s32.totalorder %v859, 32
    %vm6043 = vcmp.ge.s32.totalorder %v860, 32
    %vm6044 = vcmp.ge.s32.totalorder %v861, 32
    %vm6045 = vcmp.ge.s32.totalorder %v862, 32
    %vm6046 = vcmp.ge.s32.totalorder %v863, 32
    %vm6047 = vcmp.ge.s32.totalorder %v864, 32
    %vm6048 = vcmp.ge.s32.totalorder %v865, 32
    %vm6049 = vcmp.ge.s32.totalorder %v866, 32
    %vm6050 = vcmp.ge.s32.totalorder %v867, 32
    %vm6051 = vcmp.ge.s32.totalorder %v868, 32
    %vm6052 = vcmp.ge.s32.totalorder %v869, 32
    %vm6053 = vcmp.ge.s32.totalorder %v870, 32
    %vm6054 = vcmp.ge.s32.totalorder %v871, 32
    %vm6055 = vcmp.ge.s32.totalorder %v872, 32
    %vm6056 = vcmp.ge.s32.totalorder %v873, 32
    %vm6057 = vcmp.ge.s32.totalorder %v874, 32
    %vm6058 = vcmp.ge.s32.totalorder %v875, 32
    %vm6059 = vcmp.ge.s32.totalorder %v876, 32
    %v6060 = vsel %vm5996, 1, 0
    %v6061 = vsel %vm5997, 1, 0
    %v6062 = vsel %vm5998, 1, 0
    %v6063 = vsel %vm5999, 1, 0
    %v6064 = vsel %vm6000, 1, 0
    %v6065 = vsel %vm6001, 1, 0
    %v6066 = vsel %vm6002, 1, 0
    %v6067 = vsel %vm6003, 1, 0
    %v6068 = vsel %vm6004, 1, 0
    %v6069 = vsel %vm6005, 1, 0
    %v6070 = vsel %vm6006, 1, 0
    %v6071 = vsel %vm6007, 1, 0
    %v6072 = vsel %vm6008, 1, 0
    %v6073 = vsel %vm6009, 1, 0
    %v6074 = vsel %vm6010, 1, 0
    %v6075 = vsel %vm6011, 1, 0
    %v6076 = vsel %vm6012, 1, 0
    %v6077 = vsel %vm6013, 1, 0
    %v6078 = vsel %vm6014, 1, 0
    %v6079 = vsel %vm6015, 1, 0
    %v6080 = vsel %vm6016, 1, 0
    %v6081 = vsel %vm6017, 1, 0
    %v6082 = vsel %vm6018, 1, 0
    %v6083 = vsel %vm6019, 1, 0
    %v6084 = vsel %vm6020, 1, 0
    %v6085 = vsel %vm6021, 1, 0
    %v6086 = vsel %vm6022, 1, 0
    %v6087 = vsel %vm6023, 1, 0
    %v6088 = vsel %vm6024, 1, 0
    %v6089 = vsel %vm6025, 1, 0
    %v6090 = vsel %vm6026, 1, 0
    %v6091 = vsel %vm6027, 1, 0
    %v6092 = vsel %vm6028, 1, 0
    %v6093 = vsel %vm6029, 1, 0
    %v6094 = vsel %vm6030, 1, 0
    %v6095 = vsel %vm6031, 1, 0
    %v6096 = vsel %vm6032, 1, 0
    %v6097 = vsel %vm6033, 1, 0
    %v6098 = vsel %vm6034, 1, 0
    %v6099 = vsel %vm6035, 1, 0
    %v6100 = vsel %vm6036, 1, 0
    %v6101 = vsel %vm6037, 1, 0
    %v6102 = vsel %vm6038, 1, 0
    %v6103 = vsel %vm6039, 1, 0
    %v6104 = vsel %vm6040, 1, 0
    %v6105 = vsel %vm6041, 1, 0
    %v6106 = vsel %vm6042, 1, 0
    %v6107 = vsel %vm6043, 1, 0
    %v6108 = vsel %vm6044, 1, 0
    %v6109 = vsel %vm6045, 1, 0
    %v6110 = vsel %vm6046, 1, 0
    %v6111 = vsel %vm6047, 1, 0
    %v6112 = vsel %vm6048, 1, 0
    %v6113 = vsel %vm6049, 1, 0
    %v6114 = vsel %vm6050, 1, 0
    %v6115 = vsel %vm6051, 1, 0
    %v6116 = vsel %vm6052, 1, 0
    %v6117 = vsel %vm6053, 1, 0
    %v6118 = vsel %vm6054, 1, 0
    %v6119 = vsel %vm6055, 1, 0
    %v6120 = vsel %vm6056, 1, 0
    %v6121 = vsel %vm6057, 1, 0
    %v6122 = vsel %vm6058, 1, 0
    %v6123 = vsel %vm6059, 1, 0
    %v6124 = vcvt.s32.f32 %v6060
    %v6125 = vcvt.s32.f32 %v6061
    %v6126 = vcvt.s32.f32 %v6062
    %v6127 = vcvt.s32.f32 %v6063
    %v6128 = vcvt.s32.f32 %v6064
    %v6129 = vcvt.s32.f32 %v6065
    %v6130 = vcvt.s32.f32 %v6066
    %v6131 = vcvt.s32.f32 %v6067
    %v6132 = vcvt.s32.f32 %v6068
    %v6133 = vcvt.s32.f32 %v6069
    %v6134 = vcvt.s32.f32 %v6070
    %v6135 = vcvt.s32.f32 %v6071
    %v6136 = vcvt.s32.f32 %v6072
    %v6137 = vcvt.s32.f32 %v6073
    %v6138 = vcvt.s32.f32 %v6074
    %v6139 = vcvt.s32.f32 %v6075
    %v6140 = vcvt.s32.f32 %v6076
    %v6141 = vcvt.s32.f32 %v6077
    %v6142 = vcvt.s32.f32 %v6078
    %v6143 = vcvt.s32.f32 %v6079
    %v6144 = vcvt.s32.f32 %v6080
    %v6145 = vcvt.s32.f32 %v6081
    %v6146 = vcvt.s32.f32 %v6082
    %v6147 = vcvt.s32.f32 %v6083
    %v6148 = vcvt.s32.f32 %v6084
    %v6149 = vcvt.s32.f32 %v6085
    %v6150 = vcvt.s32.f32 %v6086
    %v6151 = vcvt.s32.f32 %v6087
    %v6152 = vcvt.s32.f32 %v6088
    %v6153 = vcvt.s32.f32 %v6089
    %v6154 = vcvt.s32.f32 %v6090
    %v6155 = vcvt.s32.f32 %v6091
    %v6156 = vcvt.s32.f32 %v6092
    %v6157 = vcvt.s32.f32 %v6093
    %v6158 = vcvt.s32.f32 %v6094
    %v6159 = vcvt.s32.f32 %v6095
    %v6160 = vcvt.s32.f32 %v6096
    %v6161 = vcvt.s32.f32 %v6097
    %v6162 = vcvt.s32.f32 %v6098
    %v6163 = vcvt.s32.f32 %v6099
    %v6164 = vcvt.s32.f32 %v6100
    %v6165 = vcvt.s32.f32 %v6101
    %v6166 = vcvt.s32.f32 %v6102
    %v6167 = vcvt.s32.f32 %v6103
    %v6168 = vcvt.s32.f32 %v6104
    %v6169 = vcvt.s32.f32 %v6105
    %v6170 = vcvt.s32.f32 %v6106
    %v6171 = vcvt.s32.f32 %v6107
    %v6172 = vcvt.s32.f32 %v6108
    %v6173 = vcvt.s32.f32 %v6109
    %v6174 = vcvt.s32.f32 %v6110
    %v6175 = vcvt.s32.f32 %v6111
    %v6176 = vcvt.s32.f32 %v6112
    %v6177 = vcvt.s32.f32 %v6113
    %v6178 = vcvt.s32.f32 %v6114
    %v6179 = vcvt.s32.f32 %v6115
    %v6180 = vcvt.s32.f32 %v6116
    %v6181 = vcvt.s32.f32 %v6117
    %v6182 = vcvt.s32.f32 %v6118
    %v6183 = vcvt.s32.f32 %v6119
    %v6184 = vcvt.s32.f32 %v6120
    %v6185 = vcvt.s32.f32 %v6121
    %v6186 = vcvt.s32.f32 %v6122
    %v6187 = vcvt.s32.f32 %v6123
    %v6188 = vmul.f32 %v5992, %v6124
    %v6189 = vmul.f32 %v5993, %v6125
    %v6190 = vmul.f32 %v5994, %v6126
    %v6191 = vmul.f32 %v5995, %v6127
    %v6192 = vmul.f32 %v5932, %v6128
    %v6193 = vmul.f32 %v5933, %v6129
    %v6194 = vmul.f32 %v5934, %v6130
    %v6195 = vmul.f32 %v5935, %v6131
    %v6196 = vmul.f32 %v5936, %v6132
    %v6197 = vmul.f32 %v5937, %v6133
    %v6198 = vmul.f32 %v5938, %v6134
    %v6199 = vmul.f32 %v5939, %v6135
    %v6200 = vmul.f32 %v5940, %v6136
    %v6201 = vmul.f32 %v5941, %v6137
    %v6202 = vmul.f32 %v5942, %v6138
    %v6203 = vmul.f32 %v5943, %v6139
    %v6204 = vmul.f32 %v5944, %v6140
    %v6205 = vmul.f32 %v5945, %v6141
    %v6206 = vmul.f32 %v5946, %v6142
    %v6207 = vmul.f32 %v5947, %v6143
    %v6208 = vmul.f32 %v5948, %v6144
    %v6209 = vmul.f32 %v5949, %v6145
    %v6210 = vmul.f32 %v5950, %v6146
    %v6211 = vmul.f32 %v5951, %v6147
    %v6212 = vmul.f32 %v5952, %v6148
    %v6213 = vmul.f32 %v5953, %v6149
    %v6214 = vmul.f32 %v5954, %v6150
    %v6215 = vmul.f32 %v5955, %v6151
    %v6216 = vmul.f32 %v5956, %v6152
    %v6217 = vmul.f32 %v5957, %v6153
    %v6218 = vmul.f32 %v5958, %v6154
    %v6219 = vmul.f32 %v5959, %v6155
    %v6220 = vmul.f32 %v5960, %v6156
    %v6221 = vmul.f32 %v5961, %v6157
    %v6222 = vmul.f32 %v5962, %v6158
    %v6223 = vmul.f32 %v5963, %v6159
    %v6224 = vmul.f32 %v5964, %v6160
    %v6225 = vmul.f32 %v5965, %v6161
    %v6226 = vmul.f32 %v5966, %v6162
    %v6227 = vmul.f32 %v5967, %v6163
    %v6228 = vmul.f32 %v5968, %v6164
    %v6229 = vmul.f32 %v5969, %v6165
    %v6230 = vmul.f32 %v5970, %v6166
    %v6231 = vmul.f32 %v5971, %v6167
    %v6232 = vmul.f32 %v5972, %v6168
    %v6233 = vmul.f32 %v5973, %v6169
    %v6234 = vmul.f32 %v5974, %v6170
    %v6235 = vmul.f32 %v5975, %v6171
    %v6236 = vmul.f32 %v5976, %v6172
    %v6237 = vmul.f32 %v5977, %v6173
    %v6238 = vmul.f32 %v5978, %v6174
    %v6239 = vmul.f32 %v5979, %v6175
    %v6240 = vmul.f32 %v5980, %v6176
    %v6241 = vmul.f32 %v5981, %v6177
    %v6242 = vmul.f32 %v5982, %v6178
    %v6243 = vmul.f32 %v5983, %v6179
    %v6244 = vmul.f32 %v5984, %v6180
    %v6245 = vmul.f32 %v5985, %v6181
    %v6246 = vmul.f32 %v5986, %v6182
    %v6247 = vmul.f32 %v5987, %v6183
    %v6248 = vmul.f32 %v5988, %v6184
    %v6249 = vmul.f32 %v5989, %v6185
    %v6250 = vmul.f32 %v5990, %v6186
    %v6251 = vmul.f32 %v5991, %v6187
    %v6252 = vpack.c.bf16 %v6189, %v6188
    %v6253 = vpack.c.bf16 %v6191, %v6190
    %v6254 = vpack.c.bf16 %v6193, %v6192
    %v6255 = vpack.c.bf16 %v6195, %v6194
    %v6256 = vpack.c.bf16 %v6197, %v6196
    %v6257 = vpack.c.bf16 %v6199, %v6198
    %v6258 = vpack.c.bf16 %v6201, %v6200
    %v6259 = vpack.c.bf16 %v6203, %v6202
    %v6260 = vpack.c.bf16 %v6205, %v6204
    %v6261 = vpack.c.bf16 %v6207, %v6206
    %v6262 = vpack.c.bf16 %v6209, %v6208
    %v6263 = vpack.c.bf16 %v6211, %v6210
    %v6264 = vpack.c.bf16 %v6213, %v6212
    %v6265 = vpack.c.bf16 %v6215, %v6214
    %v6266 = vpack.c.bf16 %v6217, %v6216
    %v6267 = vpack.c.bf16 %v6219, %v6218
    %v6268 = vpack.c.bf16 %v6221, %v6220
    %v6269 = vpack.c.bf16 %v6223, %v6222
    %v6270 = vpack.c.bf16 %v6225, %v6224
    %v6271 = vpack.c.bf16 %v6227, %v6226
    %v6272 = vpack.c.bf16 %v6229, %v6228
    %v6273 = vpack.c.bf16 %v6231, %v6230
    %v6274 = vpack.c.bf16 %v6233, %v6232
    %v6275 = vpack.c.bf16 %v6235, %v6234
    %v6276 = vpack.c.bf16 %v6237, %v6236
    %v6277 = vpack.c.bf16 %v6239, %v6238
    %v6278 = vpack.c.bf16 %v6241, %v6240
    %v6279 = vpack.c.bf16 %v6243, %v6242
    %v6280 = vpack.c.bf16 %v6245, %v6244
    %v6281 = vpack.c.bf16 %v6247, %v6246
    %v6282 = vpack.c.bf16 %v6249, %v6248
    %v6283 = vpack.c.bf16 %v6251, %v6250
    %s6284 = scalar_lea.vmem [#allocation5], 384
    %v6285 = vld [vmem:[%s6284] sm:$0xf]
    %v6286 = vld [vmem:[%s6284 + $0x4] sm:$0xf]
    %v6287 = vld [vmem:[%s6284 + $0x8] sm:$0xf]
    %v6288 = vld [vmem:[%s6284 + $0xc] sm:$0xf]
    %v6289 = vld [vmem:[%s6284 + $0x10] sm:$0xf]
    %v6290 = vld [vmem:[%s6284 + $0x14] sm:$0xf]
    %v6291 = vld [vmem:[%s6284 + $0x18] sm:$0xf]
    %v6292 = vld [vmem:[%s6284 + $0x1c] sm:$0xf]
    %v6293 = vld [vmem:[%s6284 + $0x20] sm:$0xf]
    %v6294 = vld [vmem:[%s6284 + $0x24] sm:$0xf]
    %v6295 = vld [vmem:[%s6284 + $0x28] sm:$0xf]
    %v6296 = vld [vmem:[%s6284 + $0x2c] sm:$0xf]
    %v6297 = vld [vmem:[%s6284 + $0x30] sm:$0xf]
    %v6298 = vld [vmem:[%s6284 + $0x34] sm:$0xf]
    %v6299 = vld [vmem:[%s6284 + $0x38] sm:$0xf]
    %v6300 = vld [vmem:[%s6284 + $0x3c] sm:$0xf]
    %v6301 = vpack.c.bf16 %v5933, %v5932
    %v6302 = vpack.c.bf16 %v5935, %v5934
    %v6303 = vpack.c.bf16 %v5937, %v5936
    %v6304 = vpack.c.bf16 %v5939, %v5938
    %v6305 = vpack.c.bf16 %v5941, %v5940
    %v6306 = vpack.c.bf16 %v5943, %v5942
    %v6307 = vpack.c.bf16 %v5945, %v5944
    %v6308 = vpack.c.bf16 %v5947, %v5946
    %v6309 = vpack.c.bf16 %v5949, %v5948
    %v6310 = vpack.c.bf16 %v5951, %v5950
    %v6311 = vpack.c.bf16 %v5953, %v5952
    %v6312 = vpack.c.bf16 %v5955, %v5954
    %v6313 = vpack.c.bf16 %v5957, %v5956
    %v6314 = vpack.c.bf16 %v5959, %v5958
    %v6315 = vpack.c.bf16 %v5961, %v5960
    %v6316 = vpack.c.bf16 %v5963, %v5962
    %v6317 = vpack.c.bf16 %v5965, %v5964
    %v6318 = vpack.c.bf16 %v5967, %v5966
    %v6319 = vpack.c.bf16 %v5969, %v5968
    %v6320 = vpack.c.bf16 %v5971, %v5970
    %v6321 = vpack.c.bf16 %v5973, %v5972
    %v6322 = vpack.c.bf16 %v5975, %v5974
    %v6323 = vpack.c.bf16 %v5977, %v5976
    %v6324 = vpack.c.bf16 %v5979, %v5978
    %v6325 = vpack.c.bf16 %v5981, %v5980
    %v6326 = vpack.c.bf16 %v5983, %v5982
    %v6327 = vpack.c.bf16 %v5985, %v5984
    %v6328 = vpack.c.bf16 %v5987, %v5986
    %v6329 = vpack.c.bf16 %v5989, %v5988
    %v6330 = vpack.c.bf16 %v5991, %v5990
    %v6331 = vpack.c.bf16 %v5993, %v5992
    %v6332 = vpack.c.bf16 %v5995, %v5994
    %s6333 = scalar_lea.vmem [#allocation5], 448
    %v6334 = vld [vmem:[%s6333] sm:$0xf]
    %v6335 = vld [vmem:[%s6333 + $0x4] sm:$0xf]
    %v6336 = vld [vmem:[%s6333 + $0x8] sm:$0xf]
    %v6337 = vld [vmem:[%s6333 + $0xc] sm:$0xf]
    %v6338 = vld [vmem:[%s6333 + $0x10] sm:$0xf]
    %v6339 = vld [vmem:[%s6333 + $0x14] sm:$0xf]
    %v6340 = vld [vmem:[%s6333 + $0x18] sm:$0xf]
    %v6341 = vld [vmem:[%s6333 + $0x1c] sm:$0xf]
    %v6342 = vld [vmem:[%s6333 + $0x20] sm:$0xf]
    %v6343 = vld [vmem:[%s6333 + $0x24] sm:$0xf]
    %v6344 = vld [vmem:[%s6333 + $0x28] sm:$0xf]
    %v6345 = vld [vmem:[%s6333 + $0x2c] sm:$0xf]
    %v6346 = vld [vmem:[%s6333 + $0x30] sm:$0xf]
    %v6347 = vld [vmem:[%s6333 + $0x34] sm:$0xf]
    %v6348 = vld [vmem:[%s6333 + $0x38] sm:$0xf]
    %v6349 = vld [vmem:[%s6333 + $0x3c] sm:$0xf]
    %v6366 = vunpack.c.l.b16 %v6334
    %v6367 = vunpack.c.l.b16 %v6335
    %v6368 = vunpack.c.l.b16 %v6336
    %v6369 = vunpack.c.l.b16 %v6337
    %v6370 = vunpack.c.l.b16 %v6338
    %v6371 = vunpack.c.l.b16 %v6339
    %v6372 = vunpack.c.l.b16 %v6340
    %v6373 = vunpack.c.l.b16 %v6341
    %v6374 = vunpack.c.l.b16 %v6342
    %v6375 = vunpack.c.l.b16 %v6343
    %v6376 = vunpack.c.l.b16 %v6344
    %v6377 = vunpack.c.l.b16 %v6345
    %v6378 = vunpack.c.l.b16 %v6346
    %v6379 = vunpack.c.l.b16 %v6347
    %v6380 = vunpack.c.l.b16 %v6348
    %v6381 = vunpack.c.l.b16 %v6349
    %v6382 = vpack.c.b16 %v6367, %v6366
    %v6383 = vpack.c.b16 %v6369, %v6368
    %v6384 = vpack.c.b16 %v6371, %v6370
    %v6385 = vpack.c.b16 %v6373, %v6372
    %v6386 = vpack.c.b16 %v6375, %v6374
    %v6387 = vpack.c.b16 %v6377, %v6376
    %v6388 = vpack.c.b16 %v6379, %v6378
    %v6389 = vpack.c.b16 %v6381, %v6380
    %6398 = vmatprep.subr.bf16.mxu0 0
    %6399 = vmatpush1.bf16.msra.mxu0 %v6389
    %6400 = vmatprep.subr.bf16.mxu0 0
    %6401 = vmatpush1.bf16.msra.mxu0 %v6388
    %6402 = vmatprep.subr.bf16.mxu0 0
    %6403 = vmatpush1.bf16.msra.mxu0 %v6387
    %6404 = vmatprep.subr.bf16.mxu0 0
    %6405 = vmatpush1.bf16.msra.mxu0 %v6386
    %6406 = vmatprep.subr.bf16.mxu0 0
    %6407 = vmatpush1.bf16.msra.mxu0 %v6385
    %6408 = vmatprep.subr.bf16.mxu0 0
    %6409 = vmatpush1.bf16.msra.mxu0 %v6384
    %6410 = vmatprep.subr.bf16.mxu0 0
    %6411 = vmatpush1.bf16.msra.mxu0 %v6383
    %6412 = vmatprep.subr.bf16.mxu0 0
    %6413 = vmatpush1.bf16.msra.mxu0 %v6382
    %6414 = vmatprep.subr.bf16.mxu0 0
    %6415 = vmatpush2.bf16.msra.mxu0 0
    %6416 = vmatprep.subr.bf16.mxu0 0
    %6417 = vmatpush2.bf16.msra.mxu0 0
    %6418 = vmatprep.subr.bf16.mxu0 0
    %6419 = vmatpush2.bf16.msra.mxu0 0
    %6420 = vmatprep.subr.bf16.mxu0 0
    %6421 = vmatpush2.bf16.msra.mxu0 0
    %6422 = vmatprep.subr.bf16.mxu0 0
    %6423 = vmatpush2.bf16.msra.mxu0 0
    %6424 = vmatprep.subr.bf16.mxu0 0
    %6425 = vmatpush2.bf16.msra.mxu0 0
    %6426 = vmatprep.subr.bf16.mxu0 0
    %6427 = vmatpush2.bf16.msra.mxu0 0
    %6428 = vmatprep.subr.bf16.mxu0 0
    %6429 = vmatpush2.bf16.msra.mxu0 0
    %6430 = vmatprep.mubr.bf16.mxu0 0
    %6431 = vmatmul.mubr.bf16.gmra.mxu0 %v6301
    %v6432 = vpop.f32.mrf.mxu0
    %v6433 = vadd.f32 0.0, %v6432
    %v6434 = vpop.f32.mrf.mxu0
    %v6435 = vpop.f32.mrf.mxu0
    %v6436 = vadd.f32 0.0, %v6435
    %v6437 = vpop.f32.mrf.mxu0
    %6438 = vmatprep.mubr.bf16.mxu0 0
    %6439 = vmatmul.mubr.bf16.gmra.mxu0 %v6302
    %v6440 = vpop.f32.mrf.mxu0
    %v6441 = vadd.f32 0.0, %v6440
    %v6442 = vpop.f32.mrf.mxu0
    %v6443 = vpop.f32.mrf.mxu0
    %v6444 = vadd.f32 0.0, %v6443
    %v6445 = vpop.f32.mrf.mxu0
    %6446 = vmatprep.mubr.bf16.mxu0 0
    %6447 = vmatmul.mubr.bf16.gmra.mxu0 %v6303
    %v6448 = vpop.f32.mrf.mxu0
    %v6449 = vadd.f32 0.0, %v6448
    %v6450 = vpop.f32.mrf.mxu0
    %v6451 = vpop.f32.mrf.mxu0
    %v6452 = vadd.f32 0.0, %v6451
    %v6453 = vpop.f32.mrf.mxu0
    %6454 = vmatprep.mubr.bf16.mxu0 0
    %6455 = vmatmul.mubr.bf16.gmra.mxu0 %v6304
    %v6456 = vpop.f32.mrf.mxu0
    %v6457 = vadd.f32 0.0, %v6456
    %v6458 = vpop.f32.mrf.mxu0
    %v6459 = vpop.f32.mrf.mxu0
    %v6460 = vadd.f32 0.0, %v6459
    %v6461 = vpop.f32.mrf.mxu0
    %6462 = vmatprep.mubr.bf16.mxu0 0
    %6463 = vmatmul.mubr.bf16.gmra.mxu0 %v6305
    %v6464 = vpop.f32.mrf.mxu0
    %v6465 = vadd.f32 0.0, %v6464
    %v6466 = vpop.f32.mrf.mxu0
    %v6467 = vpop.f32.mrf.mxu0
    %v6468 = vadd.f32 0.0, %v6467
    %v6469 = vpop.f32.mrf.mxu0
    %6470 = vmatprep.mubr.bf16.mxu0 0
    %6471 = vmatmul.mubr.bf16.gmra.mxu0 %v6306
    %v6472 = vpop.f32.mrf.mxu0
    %v6473 = vadd.f32 0.0, %v6472
    %v6474 = vpop.f32.mrf.mxu0
    %v6475 = vpop.f32.mrf.mxu0
    %v6476 = vadd.f32 0.0, %v6475
    %v6477 = vpop.f32.mrf.mxu0
    %6478 = vmatprep.mubr.bf16.mxu0 0
    %6479 = vmatmul.mubr.bf16.gmra.mxu0 %v6307
    %v6480 = vpop.f32.mrf.mxu0
    %v6481 = vadd.f32 0.0, %v6480
    %v6482 = vpop.f32.mrf.mxu0
    %v6483 = vpop.f32.mrf.mxu0
    %v6484 = vadd.f32 0.0, %v6483
    %v6485 = vpop.f32.mrf.mxu0
    %6486 = vmatprep.mubr.bf16.mxu0 0
    %6487 = vmatmul.mubr.bf16.gmra.mxu0 %v6308
    %v6488 = vpop.f32.mrf.mxu0
    %v6489 = vadd.f32 0.0, %v6488
    %v6490 = vpop.f32.mrf.mxu0
    %v6491 = vpop.f32.mrf.mxu0
    %v6492 = vadd.f32 0.0, %v6491
    %v6493 = vpop.f32.mrf.mxu0
    %6494 = vmatprep.mubr.bf16.mxu0 0
    %6495 = vmatmul.mubr.bf16.gmra.mxu0 %v6309
    %v6496 = vpop.f32.mrf.mxu0
    %v6497 = vadd.f32 0.0, %v6496
    %v6498 = vpop.f32.mrf.mxu0
    %v6499 = vpop.f32.mrf.mxu0
    %v6500 = vadd.f32 0.0, %v6499
    %v6501 = vpop.f32.mrf.mxu0
    %6502 = vmatprep.mubr.bf16.mxu0 0
    %6503 = vmatmul.mubr.bf16.gmra.mxu0 %v6310
    %v6504 = vpop.f32.mrf.mxu0
    %v6505 = vadd.f32 0.0, %v6504
    %v6506 = vpop.f32.mrf.mxu0
    %v6507 = vpop.f32.mrf.mxu0
    %v6508 = vadd.f32 0.0, %v6507
    %v6509 = vpop.f32.mrf.mxu0
    %6510 = vmatprep.mubr.bf16.mxu0 0
    %6511 = vmatmul.mubr.bf16.gmra.mxu0 %v6311
    %v6512 = vpop.f32.mrf.mxu0
    %v6513 = vadd.f32 0.0, %v6512
    %v6514 = vpop.f32.mrf.mxu0
    %v6515 = vpop.f32.mrf.mxu0
    %v6516 = vadd.f32 0.0, %v6515
    %v6517 = vpop.f32.mrf.mxu0
    %6518 = vmatprep.mubr.bf16.mxu0 0
    %6519 = vmatmul.mubr.bf16.gmra.mxu0 %v6312
    %v6520 = vpop.f32.mrf.mxu0
    %v6521 = vadd.f32 0.0, %v6520
    %v6522 = vpop.f32.mrf.mxu0
    %v6523 = vpop.f32.mrf.mxu0
    %v6524 = vadd.f32 0.0, %v6523
    %v6525 = vpop.f32.mrf.mxu0
    %6526 = vmatprep.mubr.bf16.mxu0 0
    %6527 = vmatmul.mubr.bf16.gmra.mxu0 %v6313
    %v6528 = vpop.f32.mrf.mxu0
    %v6529 = vadd.f32 0.0, %v6528
    %v6530 = vpop.f32.mrf.mxu0
    %v6531 = vpop.f32.mrf.mxu0
    %v6532 = vadd.f32 0.0, %v6531
    %v6533 = vpop.f32.mrf.mxu0
    %6534 = vmatprep.mubr.bf16.mxu0 0
    %6535 = vmatmul.mubr.bf16.gmra.mxu0 %v6314
    %v6536 = vpop.f32.mrf.mxu0
    %v6537 = vadd.f32 0.0, %v6536
    %v6538 = vpop.f32.mrf.mxu0
    %v6539 = vpop.f32.mrf.mxu0
    %v6540 = vadd.f32 0.0, %v6539
    %v6541 = vpop.f32.mrf.mxu0
    %6542 = vmatprep.mubr.bf16.mxu0 0
    %6543 = vmatmul.mubr.bf16.gmra.mxu0 %v6315
    %v6544 = vpop.f32.mrf.mxu0
    %v6545 = vadd.f32 0.0, %v6544
    %v6546 = vpop.f32.mrf.mxu0
    %v6547 = vpop.f32.mrf.mxu0
    %v6548 = vadd.f32 0.0, %v6547
    %v6549 = vpop.f32.mrf.mxu0
    %6550 = vmatprep.mubr.bf16.mxu0 0
    %6551 = vmatmul.mubr.bf16.gmra.mxu0 %v6316
    %v6552 = vpop.f32.mrf.mxu0
    %v6553 = vadd.f32 0.0, %v6552
    %v6554 = vpop.f32.mrf.mxu0
    %v6555 = vpop.f32.mrf.mxu0
    %v6556 = vadd.f32 0.0, %v6555
    %v6557 = vpop.f32.mrf.mxu0
    %6558 = vmatprep.mubr.bf16.mxu0 0
    %6559 = vmatmul.mubr.bf16.gmra.mxu0 %v6317
    %v6560 = vpop.f32.mrf.mxu0
    %v6561 = vadd.f32 0.0, %v6560
    %v6562 = vpop.f32.mrf.mxu0
    %v6563 = vpop.f32.mrf.mxu0
    %v6564 = vadd.f32 0.0, %v6563
    %v6565 = vpop.f32.mrf.mxu0
    %6566 = vmatprep.mubr.bf16.mxu0 0
    %6567 = vmatmul.mubr.bf16.gmra.mxu0 %v6318
    %v6568 = vpop.f32.mrf.mxu0
    %v6569 = vadd.f32 0.0, %v6568
    %v6570 = vpop.f32.mrf.mxu0
    %v6571 = vpop.f32.mrf.mxu0
    %v6572 = vadd.f32 0.0, %v6571
    %v6573 = vpop.f32.mrf.mxu0
    %6574 = vmatprep.mubr.bf16.mxu0 0
    %6575 = vmatmul.mubr.bf16.gmra.mxu0 %v6319
    %v6576 = vpop.f32.mrf.mxu0
    %v6577 = vadd.f32 0.0, %v6576
    %v6578 = vpop.f32.mrf.mxu0
    %v6579 = vpop.f32.mrf.mxu0
    %v6580 = vadd.f32 0.0, %v6579
    %v6581 = vpop.f32.mrf.mxu0
    %6582 = vmatprep.mubr.bf16.mxu0 0
    %6583 = vmatmul.mubr.bf16.gmra.mxu0 %v6320
    %v6584 = vpop.f32.mrf.mxu0
    %v6585 = vadd.f32 0.0, %v6584
    %v6586 = vpop.f32.mrf.mxu0
    %v6587 = vpop.f32.mrf.mxu0
    %v6588 = vadd.f32 0.0, %v6587
    %v6589 = vpop.f32.mrf.mxu0
    %6590 = vmatprep.mubr.bf16.mxu0 0
    %6591 = vmatmul.mubr.bf16.gmra.mxu0 %v6321
    %v6592 = vpop.f32.mrf.mxu0
    %v6593 = vadd.f32 0.0, %v6592
    %v6594 = vpop.f32.mrf.mxu0
    %v6595 = vpop.f32.mrf.mxu0
    %v6596 = vadd.f32 0.0, %v6595
    %v6597 = vpop.f32.mrf.mxu0
    %6598 = vmatprep.mubr.bf16.mxu0 0
    %6599 = vmatmul.mubr.bf16.gmra.mxu0 %v6322
    %v6600 = vpop.f32.mrf.mxu0
    %v6601 = vadd.f32 0.0, %v6600
    %v6602 = vpop.f32.mrf.mxu0
    %v6603 = vpop.f32.mrf.mxu0
    %v6604 = vadd.f32 0.0, %v6603
    %v6605 = vpop.f32.mrf.mxu0
    %6606 = vmatprep.mubr.bf16.mxu0 0
    %6607 = vmatmul.mubr.bf16.gmra.mxu0 %v6323
    %v6608 = vpop.f32.mrf.mxu0
    %v6609 = vadd.f32 0.0, %v6608
    %v6610 = vpop.f32.mrf.mxu0
    %v6611 = vpop.f32.mrf.mxu0
    %v6612 = vadd.f32 0.0, %v6611
    %v6613 = vpop.f32.mrf.mxu0
    %6614 = vmatprep.mubr.bf16.mxu0 0
    %6615 = vmatmul.mubr.bf16.gmra.mxu0 %v6324
    %v6616 = vpop.f32.mrf.mxu0
    %v6617 = vadd.f32 0.0, %v6616
    %v6618 = vpop.f32.mrf.mxu0
    %v6619 = vpop.f32.mrf.mxu0
    %v6620 = vadd.f32 0.0, %v6619
    %v6621 = vpop.f32.mrf.mxu0
    %6622 = vmatprep.mubr.bf16.mxu0 0
    %6623 = vmatmul.mubr.bf16.gmra.mxu0 %v6325
    %v6624 = vpop.f32.mrf.mxu0
    %v6625 = vadd.f32 0.0, %v6624
    %v6626 = vpop.f32.mrf.mxu0
    %v6627 = vpop.f32.mrf.mxu0
    %v6628 = vadd.f32 0.0, %v6627
    %v6629 = vpop.f32.mrf.mxu0
    %6630 = vmatprep.mubr.bf16.mxu0 0
    %6631 = vmatmul.mubr.bf16.gmra.mxu0 %v6326
    %v6632 = vpop.f32.mrf.mxu0
    %v6633 = vadd.f32 0.0, %v6632
    %v6634 = vpop.f32.mrf.mxu0
    %v6635 = vpop.f32.mrf.mxu0
    %v6636 = vadd.f32 0.0, %v6635
    %v6637 = vpop.f32.mrf.mxu0
    %6638 = vmatprep.mubr.bf16.mxu0 0
    %6639 = vmatmul.mubr.bf16.gmra.mxu0 %v6327
    %v6640 = vpop.f32.mrf.mxu0
    %v6641 = vadd.f32 0.0, %v6640
    %v6642 = vpop.f32.mrf.mxu0
    %v6643 = vpop.f32.mrf.mxu0
    %v6644 = vadd.f32 0.0, %v6643
    %v6645 = vpop.f32.mrf.mxu0
    %6646 = vmatprep.mubr.bf16.mxu0 0
    %6647 = vmatmul.mubr.bf16.gmra.mxu0 %v6328
    %v6648 = vpop.f32.mrf.mxu0
    %v6649 = vadd.f32 0.0, %v6648
    %v6650 = vpop.f32.mrf.mxu0
    %v6651 = vpop.f32.mrf.mxu0
    %v6652 = vadd.f32 0.0, %v6651
    %v6653 = vpop.f32.mrf.mxu0
    %6654 = vmatprep.mubr.bf16.mxu0 0
    %6655 = vmatmul.mubr.bf16.gmra.mxu0 %v6329
    %v6656 = vpop.f32.mrf.mxu0
    %v6657 = vadd.f32 0.0, %v6656
    %v6658 = vpop.f32.mrf.mxu0
    %v6659 = vpop.f32.mrf.mxu0
    %v6660 = vadd.f32 0.0, %v6659
    %v6661 = vpop.f32.mrf.mxu0
    %6662 = vmatprep.mubr.bf16.mxu0 0
    %6663 = vmatmul.mubr.bf16.gmra.mxu0 %v6330
    %v6664 = vpop.f32.mrf.mxu0
    %v6665 = vadd.f32 0.0, %v6664
    %v6666 = vpop.f32.mrf.mxu0
    %v6667 = vpop.f32.mrf.mxu0
    %v6668 = vadd.f32 0.0, %v6667
    %v6669 = vpop.f32.mrf.mxu0
    %6670 = vmatprep.mubr.bf16.mxu0 0
    %6671 = vmatmul.mubr.bf16.gmra.mxu0 %v6331
    %v6672 = vpop.f32.mrf.mxu0
    %v6673 = vadd.f32 0.0, %v6672
    %v6674 = vpop.f32.mrf.mxu0
    %v6675 = vpop.f32.mrf.mxu0
    %v6676 = vadd.f32 0.0, %v6675
    %v6677 = vpop.f32.mrf.mxu0
    %6678 = vmatprep.mubr.bf16.mxu0 0
    %6679 = vmatmul.mubr.bf16.gmra.mxu0 %v6332
    %v6680 = vpop.f32.mrf.mxu0
    %v6681 = vadd.f32 0.0, %v6680
    %v6682 = vpop.f32.mrf.mxu0
    %v6683 = vpop.f32.mrf.mxu0
    %v6684 = vadd.f32 0.0, %v6683
    %v6685 = vpop.f32.mrf.mxu0
    %6686 = vdwg.mxu0
    %v6703 = vunpack.c.l.b16 %v6285
    %v6704 = vunpack.c.l.b16 %v6286
    %v6705 = vunpack.c.l.b16 %v6287
    %v6706 = vunpack.c.l.b16 %v6288
    %v6707 = vunpack.c.l.b16 %v6289
    %v6708 = vunpack.c.l.b16 %v6290
    %v6709 = vunpack.c.l.b16 %v6291
    %v6710 = vunpack.c.l.b16 %v6292
    %v6711 = vunpack.c.l.b16 %v6293
    %v6712 = vunpack.c.l.b16 %v6294
    %v6713 = vunpack.c.l.b16 %v6295
    %v6714 = vunpack.c.l.b16 %v6296
    %v6715 = vunpack.c.l.b16 %v6297
    %v6716 = vunpack.c.l.b16 %v6298
    %v6717 = vunpack.c.l.b16 %v6299
    %v6718 = vunpack.c.l.b16 %v6300
    %v6719 = vpack.c.b16 %v6704, %v6703
    %v6720 = vpack.c.b16 %v6706, %v6705
    %v6721 = vpack.c.b16 %v6708, %v6707
    %v6722 = vpack.c.b16 %v6710, %v6709
    %v6723 = vpack.c.b16 %v6712, %v6711
    %v6724 = vpack.c.b16 %v6714, %v6713
    %v6725 = vpack.c.b16 %v6716, %v6715
    %v6726 = vpack.c.b16 %v6718, %v6717
    %6735 = vmatprep.subr.bf16.mxu0 0
    %6736 = vmatpush1.bf16.msra.mxu0 %v6726
    %6737 = vmatprep.subr.bf16.mxu0 0
    %6738 = vmatpush1.bf16.msra.mxu0 %v6725
    %6739 = vmatprep.subr.bf16.mxu0 0
    %6740 = vmatpush1.bf16.msra.mxu0 %v6724
    %6741 = vmatprep.subr.bf16.mxu0 0
    %6742 = vmatpush1.bf16.msra.mxu0 %v6723
    %6743 = vmatprep.subr.bf16.mxu0 0
    %6744 = vmatpush1.bf16.msra.mxu0 %v6722
    %6745 = vmatprep.subr.bf16.mxu0 0
    %6746 = vmatpush1.bf16.msra.mxu0 %v6721
    %6747 = vmatprep.subr.bf16.mxu0 0
    %6748 = vmatpush1.bf16.msra.mxu0 %v6720
    %6749 = vmatprep.subr.bf16.mxu0 0
    %6750 = vmatpush1.bf16.msra.mxu0 %v6719
    %6751 = vmatprep.subr.bf16.mxu0 0
    %6752 = vmatpush2.bf16.msra.mxu0 0
    %6753 = vmatprep.subr.bf16.mxu0 0
    %6754 = vmatpush2.bf16.msra.mxu0 0
    %6755 = vmatprep.subr.bf16.mxu0 0
    %6756 = vmatpush2.bf16.msra.mxu0 0
    %6757 = vmatprep.subr.bf16.mxu0 0
    %6758 = vmatpush2.bf16.msra.mxu0 0
    %6759 = vmatprep.subr.bf16.mxu0 0
    %6760 = vmatpush2.bf16.msra.mxu0 0
    %6761 = vmatprep.subr.bf16.mxu0 0
    %6762 = vmatpush2.bf16.msra.mxu0 0
    %6763 = vmatprep.subr.bf16.mxu0 0
    %6764 = vmatpush2.bf16.msra.mxu0 0
    %6765 = vmatprep.subr.bf16.mxu0 0
    %6766 = vmatpush2.bf16.msra.mxu0 0
    %6767 = vmatprep.mubr.bf16.mxu0 0
    %6768 = vmatmul.mubr.bf16.gmra.mxu0 %v6252
    %v6769 = vpop.f32.mrf.mxu0
    %v6770 = vadd.f32 %v6433, %v6769
    %v6771 = vpop.f32.mrf.mxu0
    %v6772 = vpop.f32.mrf.mxu0
    %v6773 = vadd.f32 %v6436, %v6772
    %v6774 = vpop.f32.mrf.mxu0
    %6775 = vmatprep.mubr.bf16.mxu0 0
    %6776 = vmatmul.mubr.bf16.gmra.mxu0 %v6253
    %v6777 = vpop.f32.mrf.mxu0
    %v6778 = vadd.f32 %v6441, %v6777
    %v6779 = vpop.f32.mrf.mxu0
    %v6780 = vpop.f32.mrf.mxu0
    %v6781 = vadd.f32 %v6444, %v6780
    %v6782 = vpop.f32.mrf.mxu0
    %6783 = vmatprep.mubr.bf16.mxu0 0
    %6784 = vmatmul.mubr.bf16.gmra.mxu0 %v6254
    %v6785 = vpop.f32.mrf.mxu0
    %v6786 = vadd.f32 %v6449, %v6785
    %v6787 = vpop.f32.mrf.mxu0
    %v6788 = vpop.f32.mrf.mxu0
    %v6789 = vadd.f32 %v6452, %v6788
    %v6790 = vpop.f32.mrf.mxu0
    %6791 = vmatprep.mubr.bf16.mxu0 0
    %6792 = vmatmul.mubr.bf16.gmra.mxu0 %v6255
    %v6793 = vpop.f32.mrf.mxu0
    %v6794 = vadd.f32 %v6457, %v6793
    %v6795 = vpop.f32.mrf.mxu0
    %v6796 = vpop.f32.mrf.mxu0
    %v6797 = vadd.f32 %v6460, %v6796
    %v6798 = vpop.f32.mrf.mxu0
    %6799 = vmatprep.mubr.bf16.mxu0 0
    %6800 = vmatmul.mubr.bf16.gmra.mxu0 %v6256
    %v6801 = vpop.f32.mrf.mxu0
    %v6802 = vadd.f32 %v6465, %v6801
    %v6803 = vpop.f32.mrf.mxu0
    %v6804 = vpop.f32.mrf.mxu0
    %v6805 = vadd.f32 %v6468, %v6804
    %v6806 = vpop.f32.mrf.mxu0
    %6807 = vmatprep.mubr.bf16.mxu0 0
    %6808 = vmatmul.mubr.bf16.gmra.mxu0 %v6257
    %v6809 = vpop.f32.mrf.mxu0
    %v6810 = vadd.f32 %v6473, %v6809
    %v6811 = vpop.f32.mrf.mxu0
    %v6812 = vpop.f32.mrf.mxu0
    %v6813 = vadd.f32 %v6476, %v6812
    %v6814 = vpop.f32.mrf.mxu0
    %6815 = vmatprep.mubr.bf16.mxu0 0
    %6816 = vmatmul.mubr.bf16.gmra.mxu0 %v6258
    %v6817 = vpop.f32.mrf.mxu0
    %v6818 = vadd.f32 %v6481, %v6817
    %v6819 = vpop.f32.mrf.mxu0
    %v6820 = vpop.f32.mrf.mxu0
    %v6821 = vadd.f32 %v6484, %v6820
    %v6822 = vpop.f32.mrf.mxu0
    %6823 = vmatprep.mubr.bf16.mxu0 0
    %6824 = vmatmul.mubr.bf16.gmra.mxu0 %v6259
    %v6825 = vpop.f32.mrf.mxu0
    %v6826 = vadd.f32 %v6489, %v6825
    %v6827 = vpop.f32.mrf.mxu0
    %v6828 = vpop.f32.mrf.mxu0
    %v6829 = vadd.f32 %v6492, %v6828
    %v6830 = vpop.f32.mrf.mxu0
    %6831 = vmatprep.mubr.bf16.mxu0 0
    %6832 = vmatmul.mubr.bf16.gmra.mxu0 %v6260
    %v6833 = vpop.f32.mrf.mxu0
    %v6834 = vadd.f32 %v6497, %v6833
    %v6835 = vpop.f32.mrf.mxu0
    %v6836 = vpop.f32.mrf.mxu0
    %v6837 = vadd.f32 %v6500, %v6836
    %v6838 = vpop.f32.mrf.mxu0
    %6839 = vmatprep.mubr.bf16.mxu0 0
    %6840 = vmatmul.mubr.bf16.gmra.mxu0 %v6261
    %v6841 = vpop.f32.mrf.mxu0
    %v6842 = vadd.f32 %v6505, %v6841
    %v6843 = vpop.f32.mrf.mxu0
    %v6844 = vpop.f32.mrf.mxu0
    %v6845 = vadd.f32 %v6508, %v6844
    %v6846 = vpop.f32.mrf.mxu0
    %6847 = vmatprep.mubr.bf16.mxu0 0
    %6848 = vmatmul.mubr.bf16.gmra.mxu0 %v6262
    %v6849 = vpop.f32.mrf.mxu0
    %v6850 = vadd.f32 %v6513, %v6849
    %v6851 = vpop.f32.mrf.mxu0
    %v6852 = vpop.f32.mrf.mxu0
    %v6853 = vadd.f32 %v6516, %v6852
    %v6854 = vpop.f32.mrf.mxu0
    %6855 = vmatprep.mubr.bf16.mxu0 0
    %6856 = vmatmul.mubr.bf16.gmra.mxu0 %v6263
    %v6857 = vpop.f32.mrf.mxu0
    %v6858 = vadd.f32 %v6521, %v6857
    %v6859 = vpop.f32.mrf.mxu0
    %v6860 = vpop.f32.mrf.mxu0
    %v6861 = vadd.f32 %v6524, %v6860
    %v6862 = vpop.f32.mrf.mxu0
    %6863 = vmatprep.mubr.bf16.mxu0 0
    %6864 = vmatmul.mubr.bf16.gmra.mxu0 %v6264
    %v6865 = vpop.f32.mrf.mxu0
    %v6866 = vadd.f32 %v6529, %v6865
    %v6867 = vpop.f32.mrf.mxu0
    %v6868 = vpop.f32.mrf.mxu0
    %v6869 = vadd.f32 %v6532, %v6868
    %v6870 = vpop.f32.mrf.mxu0
    %6871 = vmatprep.mubr.bf16.mxu0 0
    %6872 = vmatmul.mubr.bf16.gmra.mxu0 %v6265
    %v6873 = vpop.f32.mrf.mxu0
    %v6874 = vadd.f32 %v6537, %v6873
    %v6875 = vpop.f32.mrf.mxu0
    %v6876 = vpop.f32.mrf.mxu0
    %v6877 = vadd.f32 %v6540, %v6876
    %v6878 = vpop.f32.mrf.mxu0
    %6879 = vmatprep.mubr.bf16.mxu0 0
    %6880 = vmatmul.mubr.bf16.gmra.mxu0 %v6266
    %v6881 = vpop.f32.mrf.mxu0
    %v6882 = vadd.f32 %v6545, %v6881
    %v6883 = vpop.f32.mrf.mxu0
    %v6884 = vpop.f32.mrf.mxu0
    %v6885 = vadd.f32 %v6548, %v6884
    %v6886 = vpop.f32.mrf.mxu0
    %6887 = vmatprep.mubr.bf16.mxu0 0
    %6888 = vmatmul.mubr.bf16.gmra.mxu0 %v6267
    %v6889 = vpop.f32.mrf.mxu0
    %v6890 = vadd.f32 %v6553, %v6889
    %v6891 = vpop.f32.mrf.mxu0
    %v6892 = vpop.f32.mrf.mxu0
    %v6893 = vadd.f32 %v6556, %v6892
    %v6894 = vpop.f32.mrf.mxu0
    %6895 = vmatprep.mubr.bf16.mxu0 0
    %6896 = vmatmul.mubr.bf16.gmra.mxu0 %v6268
    %v6897 = vpop.f32.mrf.mxu0
    %v6898 = vadd.f32 %v6561, %v6897
    %v6899 = vpop.f32.mrf.mxu0
    %v6900 = vpop.f32.mrf.mxu0
    %v6901 = vadd.f32 %v6564, %v6900
    %v6902 = vpop.f32.mrf.mxu0
    %6903 = vmatprep.mubr.bf16.mxu0 0
    %6904 = vmatmul.mubr.bf16.gmra.mxu0 %v6269
    %v6905 = vpop.f32.mrf.mxu0
    %v6906 = vadd.f32 %v6569, %v6905
    %v6907 = vpop.f32.mrf.mxu0
    %v6908 = vpop.f32.mrf.mxu0
    %v6909 = vadd.f32 %v6572, %v6908
    %v6910 = vpop.f32.mrf.mxu0
    %6911 = vmatprep.mubr.bf16.mxu0 0
    %6912 = vmatmul.mubr.bf16.gmra.mxu0 %v6270
    %v6913 = vpop.f32.mrf.mxu0
    %v6914 = vadd.f32 %v6577, %v6913
    %v6915 = vpop.f32.mrf.mxu0
    %v6916 = vpop.f32.mrf.mxu0
    %v6917 = vadd.f32 %v6580, %v6916
    %v6918 = vpop.f32.mrf.mxu0
    %6919 = vmatprep.mubr.bf16.mxu0 0
    %6920 = vmatmul.mubr.bf16.gmra.mxu0 %v6271
    %v6921 = vpop.f32.mrf.mxu0
    %v6922 = vadd.f32 %v6585, %v6921
    %v6923 = vpop.f32.mrf.mxu0
    %v6924 = vpop.f32.mrf.mxu0
    %v6925 = vadd.f32 %v6588, %v6924
    %v6926 = vpop.f32.mrf.mxu0
    %6927 = vmatprep.mubr.bf16.mxu0 0
    %6928 = vmatmul.mubr.bf16.gmra.mxu0 %v6272
    %v6929 = vpop.f32.mrf.mxu0
    %v6930 = vadd.f32 %v6593, %v6929
    %v6931 = vpop.f32.mrf.mxu0
    %v6932 = vpop.f32.mrf.mxu0
    %v6933 = vadd.f32 %v6596, %v6932
    %v6934 = vpop.f32.mrf.mxu0
    %6935 = vmatprep.mubr.bf16.mxu0 0
    %6936 = vmatmul.mubr.bf16.gmra.mxu0 %v6273
    %v6937 = vpop.f32.mrf.mxu0
    %v6938 = vadd.f32 %v6601, %v6937
    %v6939 = vpop.f32.mrf.mxu0
    %v6940 = vpop.f32.mrf.mxu0
    %v6941 = vadd.f32 %v6604, %v6940
    %v6942 = vpop.f32.mrf.mxu0
    %6943 = vmatprep.mubr.bf16.mxu0 0
    %6944 = vmatmul.mubr.bf16.gmra.mxu0 %v6274
    %v6945 = vpop.f32.mrf.mxu0
    %v6946 = vadd.f32 %v6609, %v6945
    %v6947 = vpop.f32.mrf.mxu0
    %v6948 = vpop.f32.mrf.mxu0
    %v6949 = vadd.f32 %v6612, %v6948
    %v6950 = vpop.f32.mrf.mxu0
    %6951 = vmatprep.mubr.bf16.mxu0 0
    %6952 = vmatmul.mubr.bf16.gmra.mxu0 %v6275
    %v6953 = vpop.f32.mrf.mxu0
    %v6954 = vadd.f32 %v6617, %v6953
    %v6955 = vpop.f32.mrf.mxu0
    %v6956 = vpop.f32.mrf.mxu0
    %v6957 = vadd.f32 %v6620, %v6956
    %v6958 = vpop.f32.mrf.mxu0
    %6959 = vmatprep.mubr.bf16.mxu0 0
    %6960 = vmatmul.mubr.bf16.gmra.mxu0 %v6276
    %v6961 = vpop.f32.mrf.mxu0
    %v6962 = vadd.f32 %v6625, %v6961
    %v6963 = vpop.f32.mrf.mxu0
    %v6964 = vpop.f32.mrf.mxu0
    %v6965 = vadd.f32 %v6628, %v6964
    %v6966 = vpop.f32.mrf.mxu0
    %6967 = vmatprep.mubr.bf16.mxu0 0
    %6968 = vmatmul.mubr.bf16.gmra.mxu0 %v6277
    %v6969 = vpop.f32.mrf.mxu0
    %v6970 = vadd.f32 %v6633, %v6969
    %v6971 = vpop.f32.mrf.mxu0
    %v6972 = vpop.f32.mrf.mxu0
    %v6973 = vadd.f32 %v6636, %v6972
    %v6974 = vpop.f32.mrf.mxu0
    %6975 = vmatprep.mubr.bf16.mxu0 0
    %6976 = vmatmul.mubr.bf16.gmra.mxu0 %v6278
    %v6977 = vpop.f32.mrf.mxu0
    %v6978 = vadd.f32 %v6641, %v6977
    %v6979 = vpop.f32.mrf.mxu0
    %v6980 = vpop.f32.mrf.mxu0
    %v6981 = vadd.f32 %v6644, %v6980
    %v6982 = vpop.f32.mrf.mxu0
    %6983 = vmatprep.mubr.bf16.mxu0 0
    %6984 = vmatmul.mubr.bf16.gmra.mxu0 %v6279
    %v6985 = vpop.f32.mrf.mxu0
    %v6986 = vadd.f32 %v6649, %v6985
    %v6987 = vpop.f32.mrf.mxu0
    %v6988 = vpop.f32.mrf.mxu0
    %v6989 = vadd.f32 %v6652, %v6988
    %v6990 = vpop.f32.mrf.mxu0
    %6991 = vmatprep.mubr.bf16.mxu0 0
    %6992 = vmatmul.mubr.bf16.gmra.mxu0 %v6280
    %v6993 = vpop.f32.mrf.mxu0
    %v6994 = vadd.f32 %v6657, %v6993
    %v6995 = vpop.f32.mrf.mxu0
    %v6996 = vpop.f32.mrf.mxu0
    %v6997 = vadd.f32 %v6660, %v6996
    %v6998 = vpop.f32.mrf.mxu0
    %6999 = vmatprep.mubr.bf16.mxu0 0
    %7000 = vmatmul.mubr.bf16.gmra.mxu0 %v6281
    %v7001 = vpop.f32.mrf.mxu0
    %v7002 = vadd.f32 %v6665, %v7001
    %v7003 = vpop.f32.mrf.mxu0
    %v7004 = vpop.f32.mrf.mxu0
    %v7005 = vadd.f32 %v6668, %v7004
    %v7006 = vpop.f32.mrf.mxu0
    %7007 = vmatprep.mubr.bf16.mxu0 0
    %7008 = vmatmul.mubr.bf16.gmra.mxu0 %v6282
    %v7009 = vpop.f32.mrf.mxu0
    %v7010 = vadd.f32 %v6673, %v7009
    %v7011 = vpop.f32.mrf.mxu0
    %v7012 = vpop.f32.mrf.mxu0
    %v7013 = vadd.f32 %v6676, %v7012
    %v7014 = vpop.f32.mrf.mxu0
    %7015 = vmatprep.mubr.bf16.mxu0 0
    %7016 = vmatmul.mubr.bf16.gmra.mxu0 %v6283
    %v7017 = vpop.f32.mrf.mxu0
    %v7018 = vadd.f32 %v6681, %v7017
    %v7019 = vpop.f32.mrf.mxu0
    %v7020 = vpop.f32.mrf.mxu0
    %v7021 = vadd.f32 %v6684, %v7020
    %v7022 = vpop.f32.mrf.mxu0
    %7023 = vdwg.mxu0
    %vm7024 = vcmp.lt.s32.totalorder %v813, 224
    %vm7025 = vcmp.lt.s32.totalorder %v814, 224
    %vm7026 = vcmp.lt.s32.totalorder %v815, 224
    %vm7027 = vcmp.lt.s32.totalorder %v816, 224
    %vm7028 = vcmp.lt.s32.totalorder %v817, 224
    %vm7029 = vcmp.lt.s32.totalorder %v818, 224
    %vm7030 = vcmp.lt.s32.totalorder %v819, 224
    %vm7031 = vcmp.lt.s32.totalorder %v820, 224
    %vm7032 = vcmp.lt.s32.totalorder %v821, 224
    %vm7033 = vcmp.lt.s32.totalorder %v822, 224
    %vm7034 = vcmp.lt.s32.totalorder %v823, 224
    %vm7035 = vcmp.lt.s32.totalorder %v824, 224
    %vm7036 = vcmp.lt.s32.totalorder %v825, 224
    %vm7037 = vcmp.lt.s32.totalorder %v826, 224
    %vm7038 = vcmp.lt.s32.totalorder %v827, 224
    %vm7039 = vcmp.lt.s32.totalorder %v828, 224
    %vm7040 = vcmp.lt.s32.totalorder %v829, 224
    %vm7041 = vcmp.lt.s32.totalorder %v830, 224
    %vm7042 = vcmp.lt.s32.totalorder %v831, 224
    %vm7043 = vcmp.lt.s32.totalorder %v832, 224
    %vm7044 = vcmp.lt.s32.totalorder %v833, 224
    %vm7045 = vcmp.lt.s32.totalorder %v834, 224
    %vm7046 = vcmp.lt.s32.totalorder %v835, 224
    %vm7047 = vcmp.lt.s32.totalorder %v836, 224
    %vm7048 = vcmp.lt.s32.totalorder %v837, 224
    %vm7049 = vcmp.lt.s32.totalorder %v838, 224
    %vm7050 = vcmp.lt.s32.totalorder %v839, 224
    %vm7051 = vcmp.lt.s32.totalorder %v840, 224
    %vm7052 = vcmp.lt.s32.totalorder %v841, 224
    %vm7053 = vcmp.lt.s32.totalorder %v842, 224
    %vm7054 = vcmp.lt.s32.totalorder %v843, 224
    %vm7055 = vcmp.lt.s32.totalorder %v844, 224
    %vm7056 = vcmp.lt.s32.totalorder %v845, 224
    %vm7057 = vcmp.lt.s32.totalorder %v846, 224
    %vm7058 = vcmp.lt.s32.totalorder %v847, 224
    %vm7059 = vcmp.lt.s32.totalorder %v848, 224
    %vm7060 = vcmp.lt.s32.totalorder %v849, 224
    %vm7061 = vcmp.lt.s32.totalorder %v850, 224
    %vm7062 = vcmp.lt.s32.totalorder %v851, 224
    %vm7063 = vcmp.lt.s32.totalorder %v852, 224
    %vm7064 = vcmp.lt.s32.totalorder %v853, 224
    %vm7065 = vcmp.lt.s32.totalorder %v854, 224
    %vm7066 = vcmp.lt.s32.totalorder %v855, 224
    %vm7067 = vcmp.lt.s32.totalorder %v856, 224
    %vm7068 = vcmp.lt.s32.totalorder %v857, 224
    %vm7069 = vcmp.lt.s32.totalorder %v858, 224
    %vm7070 = vcmp.lt.s32.totalorder %v859, 224
    %vm7071 = vcmp.lt.s32.totalorder %v860, 224
    %vm7072 = vcmp.lt.s32.totalorder %v861, 224
    %vm7073 = vcmp.lt.s32.totalorder %v862, 224
    %vm7074 = vcmp.lt.s32.totalorder %v863, 224
    %vm7075 = vcmp.lt.s32.totalorder %v864, 224
    %vm7076 = vcmp.lt.s32.totalorder %v865, 224
    %vm7077 = vcmp.lt.s32.totalorder %v866, 224
    %vm7078 = vcmp.lt.s32.totalorder %v867, 224
    %vm7079 = vcmp.lt.s32.totalorder %v868, 224
    %vm7080 = vcmp.lt.s32.totalorder %v869, 224
    %vm7081 = vcmp.lt.s32.totalorder %v870, 224
    %vm7082 = vcmp.lt.s32.totalorder %v871, 224
    %vm7083 = vcmp.lt.s32.totalorder %v872, 224
    %vm7084 = vcmp.lt.s32.totalorder %v873, 224
    %vm7085 = vcmp.lt.s32.totalorder %v874, 224
    %vm7086 = vcmp.lt.s32.totalorder %v875, 224
    %vm7087 = vcmp.lt.s32.totalorder %v876, 224
    %v7088 = vsel %vm7024, 1, 0
    %v7089 = vsel %vm7025, 1, 0
    %v7090 = vsel %vm7026, 1, 0
    %v7091 = vsel %vm7027, 1, 0
    %v7092 = vsel %vm7028, 1, 0
    %v7093 = vsel %vm7029, 1, 0
    %v7094 = vsel %vm7030, 1, 0
    %v7095 = vsel %vm7031, 1, 0
    %v7096 = vsel %vm7032, 1, 0
    %v7097 = vsel %vm7033, 1, 0
    %v7098 = vsel %vm7034, 1, 0
    %v7099 = vsel %vm7035, 1, 0
    %v7100 = vsel %vm7036, 1, 0
    %v7101 = vsel %vm7037, 1, 0
    %v7102 = vsel %vm7038, 1, 0
    %v7103 = vsel %vm7039, 1, 0
    %v7104 = vsel %vm7040, 1, 0
    %v7105 = vsel %vm7041, 1, 0
    %v7106 = vsel %vm7042, 1, 0
    %v7107 = vsel %vm7043, 1, 0
    %v7108 = vsel %vm7044, 1, 0
    %v7109 = vsel %vm7045, 1, 0
    %v7110 = vsel %vm7046, 1, 0
    %v7111 = vsel %vm7047, 1, 0
    %v7112 = vsel %vm7048, 1, 0
    %v7113 = vsel %vm7049, 1, 0
    %v7114 = vsel %vm7050, 1, 0
    %v7115 = vsel %vm7051, 1, 0
    %v7116 = vsel %vm7052, 1, 0
    %v7117 = vsel %vm7053, 1, 0
    %v7118 = vsel %vm7054, 1, 0
    %v7119 = vsel %vm7055, 1, 0
    %v7120 = vsel %vm7056, 1, 0
    %v7121 = vsel %vm7057, 1, 0
    %v7122 = vsel %vm7058, 1, 0
    %v7123 = vsel %vm7059, 1, 0
    %v7124 = vsel %vm7060, 1, 0
    %v7125 = vsel %vm7061, 1, 0
    %v7126 = vsel %vm7062, 1, 0
    %v7127 = vsel %vm7063, 1, 0
    %v7128 = vsel %vm7064, 1, 0
    %v7129 = vsel %vm7065, 1, 0
    %v7130 = vsel %vm7066, 1, 0
    %v7131 = vsel %vm7067, 1, 0
    %v7132 = vsel %vm7068, 1, 0
    %v7133 = vsel %vm7069, 1, 0
    %v7134 = vsel %vm7070, 1, 0
    %v7135 = vsel %vm7071, 1, 0
    %v7136 = vsel %vm7072, 1, 0
    %v7137 = vsel %vm7073, 1, 0
    %v7138 = vsel %vm7074, 1, 0
    %v7139 = vsel %vm7075, 1, 0
    %v7140 = vsel %vm7076, 1, 0
    %v7141 = vsel %vm7077, 1, 0
    %v7142 = vsel %vm7078, 1, 0
    %v7143 = vsel %vm7079, 1, 0
    %v7144 = vsel %vm7080, 1, 0
    %v7145 = vsel %vm7081, 1, 0
    %v7146 = vsel %vm7082, 1, 0
    %v7147 = vsel %vm7083, 1, 0
    %v7148 = vsel %vm7084, 1, 0
    %v7149 = vsel %vm7085, 1, 0
    %v7150 = vsel %vm7086, 1, 0
    %v7151 = vsel %vm7087, 1, 0
    %v7152 = vcvt.s32.f32 %v7088
    %v7153 = vcvt.s32.f32 %v7089
    %v7154 = vcvt.s32.f32 %v7090
    %v7155 = vcvt.s32.f32 %v7091
    %v7156 = vcvt.s32.f32 %v7092
    %v7157 = vcvt.s32.f32 %v7093
    %v7158 = vcvt.s32.f32 %v7094
    %v7159 = vcvt.s32.f32 %v7095
    %v7160 = vcvt.s32.f32 %v7096
    %v7161 = vcvt.s32.f32 %v7097
    %v7162 = vcvt.s32.f32 %v7098
    %v7163 = vcvt.s32.f32 %v7099
    %v7164 = vcvt.s32.f32 %v7100
    %v7165 = vcvt.s32.f32 %v7101
    %v7166 = vcvt.s32.f32 %v7102
    %v7167 = vcvt.s32.f32 %v7103
    %v7168 = vcvt.s32.f32 %v7104
    %v7169 = vcvt.s32.f32 %v7105
    %v7170 = vcvt.s32.f32 %v7106
    %v7171 = vcvt.s32.f32 %v7107
    %v7172 = vcvt.s32.f32 %v7108
    %v7173 = vcvt.s32.f32 %v7109
    %v7174 = vcvt.s32.f32 %v7110
    %v7175 = vcvt.s32.f32 %v7111
    %v7176 = vcvt.s32.f32 %v7112
    %v7177 = vcvt.s32.f32 %v7113
    %v7178 = vcvt.s32.f32 %v7114
    %v7179 = vcvt.s32.f32 %v7115
    %v7180 = vcvt.s32.f32 %v7116
    %v7181 = vcvt.s32.f32 %v7117
    %v7182 = vcvt.s32.f32 %v7118
    %v7183 = vcvt.s32.f32 %v7119
    %v7184 = vcvt.s32.f32 %v7120
    %v7185 = vcvt.s32.f32 %v7121
    %v7186 = vcvt.s32.f32 %v7122
    %v7187 = vcvt.s32.f32 %v7123
    %v7188 = vcvt.s32.f32 %v7124
    %v7189 = vcvt.s32.f32 %v7125
    %v7190 = vcvt.s32.f32 %v7126
    %v7191 = vcvt.s32.f32 %v7127
    %v7192 = vcvt.s32.f32 %v7128
    %v7193 = vcvt.s32.f32 %v7129
    %v7194 = vcvt.s32.f32 %v7130
    %v7195 = vcvt.s32.f32 %v7131
    %v7196 = vcvt.s32.f32 %v7132
    %v7197 = vcvt.s32.f32 %v7133
    %v7198 = vcvt.s32.f32 %v7134
    %v7199 = vcvt.s32.f32 %v7135
    %v7200 = vcvt.s32.f32 %v7136
    %v7201 = vcvt.s32.f32 %v7137
    %v7202 = vcvt.s32.f32 %v7138
    %v7203 = vcvt.s32.f32 %v7139
    %v7204 = vcvt.s32.f32 %v7140
    %v7205 = vcvt.s32.f32 %v7141
    %v7206 = vcvt.s32.f32 %v7142
    %v7207 = vcvt.s32.f32 %v7143
    %v7208 = vcvt.s32.f32 %v7144
    %v7209 = vcvt.s32.f32 %v7145
    %v7210 = vcvt.s32.f32 %v7146
    %v7211 = vcvt.s32.f32 %v7147
    %v7212 = vcvt.s32.f32 %v7148
    %v7213 = vcvt.s32.f32 %v7149
    %v7214 = vcvt.s32.f32 %v7150
    %v7215 = vcvt.s32.f32 %v7151
    %v7216 = vmul.f32 %v5936, %v7152
    %v7217 = vmul.f32 %v5937, %v7153
    %v7218 = vmul.f32 %v5938, %v7154
    %v7219 = vmul.f32 %v5939, %v7155
    %v7220 = vmul.f32 %v5940, %v7156
    %v7221 = vmul.f32 %v5941, %v7157
    %v7222 = vmul.f32 %v5942, %v7158
    %v7223 = vmul.f32 %v5943, %v7159
    %v7224 = vmul.f32 %v5944, %v7160
    %v7225 = vmul.f32 %v5945, %v7161
    %v7226 = vmul.f32 %v5946, %v7162
    %v7227 = vmul.f32 %v5947, %v7163
    %v7228 = vmul.f32 %v5948, %v7164
    %v7229 = vmul.f32 %v5949, %v7165
    %v7230 = vmul.f32 %v5950, %v7166
    %v7231 = vmul.f32 %v5951, %v7167
    %v7232 = vmul.f32 %v5952, %v7168
    %v7233 = vmul.f32 %v5953, %v7169
    %v7234 = vmul.f32 %v5954, %v7170
    %v7235 = vmul.f32 %v5955, %v7171
    %v7236 = vmul.f32 %v5956, %v7172
    %v7237 = vmul.f32 %v5957, %v7173
    %v7238 = vmul.f32 %v5958, %v7174
    %v7239 = vmul.f32 %v5959, %v7175
    %v7240 = vmul.f32 %v5960, %v7176
    %v7241 = vmul.f32 %v5961, %v7177
    %v7242 = vmul.f32 %v5962, %v7178
    %v7243 = vmul.f32 %v5963, %v7179
    %v7244 = vmul.f32 %v5964, %v7180
    %v7245 = vmul.f32 %v5965, %v7181
    %v7246 = vmul.f32 %v5966, %v7182
    %v7247 = vmul.f32 %v5967, %v7183
    %v7248 = vmul.f32 %v5968, %v7184
    %v7249 = vmul.f32 %v5969, %v7185
    %v7250 = vmul.f32 %v5970, %v7186
    %v7251 = vmul.f32 %v5971, %v7187
    %v7252 = vmul.f32 %v5972, %v7188
    %v7253 = vmul.f32 %v5973, %v7189
    %v7254 = vmul.f32 %v5974, %v7190
    %v7255 = vmul.f32 %v5975, %v7191
    %v7256 = vmul.f32 %v5976, %v7192
    %v7257 = vmul.f32 %v5977, %v7193
    %v7258 = vmul.f32 %v5978, %v7194
    %v7259 = vmul.f32 %v5979, %v7195
    %v7260 = vmul.f32 %v5980, %v7196
    %v7261 = vmul.f32 %v5981, %v7197
    %v7262 = vmul.f32 %v5982, %v7198
    %v7263 = vmul.f32 %v5983, %v7199
    %v7264 = vmul.f32 %v5984, %v7200
    %v7265 = vmul.f32 %v5985, %v7201
    %v7266 = vmul.f32 %v5986, %v7202
    %v7267 = vmul.f32 %v5987, %v7203
    %v7268 = vmul.f32 %v5988, %v7204
    %v7269 = vmul.f32 %v5989, %v7205
    %v7270 = vmul.f32 %v5990, %v7206
    %v7271 = vmul.f32 %v5991, %v7207
    %v7272 = vmul.f32 %v5992, %v7208
    %v7273 = vmul.f32 %v5993, %v7209
    %v7274 = vmul.f32 %v5994, %v7210
    %v7275 = vmul.f32 %v5995, %v7211
    %v7276 = vmul.f32 %v5932, %v7212
    %v7277 = vmul.f32 %v5933, %v7213
    %v7278 = vmul.f32 %v5934, %v7214
    %v7279 = vmul.f32 %v5935, %v7215
    %v7280 = vpack.c.bf16 %v7217, %v7216
    %v7281 = vpack.c.bf16 %v7219, %v7218
    %v7282 = vpack.c.bf16 %v7221, %v7220
    %v7283 = vpack.c.bf16 %v7223, %v7222
    %v7284 = vpack.c.bf16 %v7225, %v7224
    %v7285 = vpack.c.bf16 %v7227, %v7226
    %v7286 = vpack.c.bf16 %v7229, %v7228
    %v7287 = vpack.c.bf16 %v7231, %v7230
    %v7288 = vpack.c.bf16 %v7233, %v7232
    %v7289 = vpack.c.bf16 %v7235, %v7234
    %v7290 = vpack.c.bf16 %v7237, %v7236
    %v7291 = vpack.c.bf16 %v7239, %v7238
    %v7292 = vpack.c.bf16 %v7241, %v7240
    %v7293 = vpack.c.bf16 %v7243, %v7242
    %v7294 = vpack.c.bf16 %v7245, %v7244
    %v7295 = vpack.c.bf16 %v7247, %v7246
    %v7296 = vpack.c.bf16 %v7249, %v7248
    %v7297 = vpack.c.bf16 %v7251, %v7250
    %v7298 = vpack.c.bf16 %v7253, %v7252
    %v7299 = vpack.c.bf16 %v7255, %v7254
    %v7300 = vpack.c.bf16 %v7257, %v7256
    %v7301 = vpack.c.bf16 %v7259, %v7258
    %v7302 = vpack.c.bf16 %v7261, %v7260
    %v7303 = vpack.c.bf16 %v7263, %v7262
    %v7304 = vpack.c.bf16 %v7265, %v7264
    %v7305 = vpack.c.bf16 %v7267, %v7266
    %v7306 = vpack.c.bf16 %v7269, %v7268
    %v7307 = vpack.c.bf16 %v7271, %v7270
    %v7308 = vpack.c.bf16 %v7273, %v7272
    %v7309 = vpack.c.bf16 %v7275, %v7274
    %v7310 = vpack.c.bf16 %v7277, %v7276
    %v7311 = vpack.c.bf16 %v7279, %v7278
    %s7312 = scalar_lea.vmem [#allocation5], 512
    %v7313 = vld [vmem:[%s7312] sm:$0xf]
    %v7314 = vld [vmem:[%s7312 + $0x4] sm:$0xf]
    %v7315 = vld [vmem:[%s7312 + $0x8] sm:$0xf]
    %v7316 = vld [vmem:[%s7312 + $0xc] sm:$0xf]
    %v7317 = vld [vmem:[%s7312 + $0x10] sm:$0xf]
    %v7318 = vld [vmem:[%s7312 + $0x14] sm:$0xf]
    %v7319 = vld [vmem:[%s7312 + $0x18] sm:$0xf]
    %v7320 = vld [vmem:[%s7312 + $0x1c] sm:$0xf]
    %v7321 = vld [vmem:[%s7312 + $0x20] sm:$0xf]
    %v7322 = vld [vmem:[%s7312 + $0x24] sm:$0xf]
    %v7323 = vld [vmem:[%s7312 + $0x28] sm:$0xf]
    %v7324 = vld [vmem:[%s7312 + $0x2c] sm:$0xf]
    %v7325 = vld [vmem:[%s7312 + $0x30] sm:$0xf]
    %v7326 = vld [vmem:[%s7312 + $0x34] sm:$0xf]
    %v7327 = vld [vmem:[%s7312 + $0x38] sm:$0xf]
    %v7328 = vld [vmem:[%s7312 + $0x3c] sm:$0xf]
    %v7345 = vunpack.c.l.b16 %v7313
    %v7346 = vunpack.c.l.b16 %v7314
    %v7347 = vunpack.c.l.b16 %v7315
    %v7348 = vunpack.c.l.b16 %v7316
    %v7349 = vunpack.c.l.b16 %v7317
    %v7350 = vunpack.c.l.b16 %v7318
    %v7351 = vunpack.c.l.b16 %v7319
    %v7352 = vunpack.c.l.b16 %v7320
    %v7353 = vunpack.c.l.b16 %v7321
    %v7354 = vunpack.c.l.b16 %v7322
    %v7355 = vunpack.c.l.b16 %v7323
    %v7356 = vunpack.c.l.b16 %v7324
    %v7357 = vunpack.c.l.b16 %v7325
    %v7358 = vunpack.c.l.b16 %v7326
    %v7359 = vunpack.c.l.b16 %v7327
    %v7360 = vunpack.c.l.b16 %v7328
    %v7361 = vpack.c.b16 %v7346, %v7345
    %v7362 = vpack.c.b16 %v7348, %v7347
    %v7363 = vpack.c.b16 %v7350, %v7349
    %v7364 = vpack.c.b16 %v7352, %v7351
    %v7365 = vpack.c.b16 %v7354, %v7353
    %v7366 = vpack.c.b16 %v7356, %v7355
    %v7367 = vpack.c.b16 %v7358, %v7357
    %v7368 = vpack.c.b16 %v7360, %v7359
    %7377 = vmatprep.subr.bf16.mxu0 0
    %7378 = vmatpush1.bf16.msra.mxu0 %v7368
    %7379 = vmatprep.subr.bf16.mxu0 0
    %7380 = vmatpush1.bf16.msra.mxu0 %v7367
    %7381 = vmatprep.subr.bf16.mxu0 0
    %7382 = vmatpush1.bf16.msra.mxu0 %v7366
    %7383 = vmatprep.subr.bf16.mxu0 0
    %7384 = vmatpush1.bf16.msra.mxu0 %v7365
    %7385 = vmatprep.subr.bf16.mxu0 0
    %7386 = vmatpush1.bf16.msra.mxu0 %v7364
    %7387 = vmatprep.subr.bf16.mxu0 0
    %7388 = vmatpush1.bf16.msra.mxu0 %v7363
    %7389 = vmatprep.subr.bf16.mxu0 0
    %7390 = vmatpush1.bf16.msra.mxu0 %v7362
    %7391 = vmatprep.subr.bf16.mxu0 0
    %7392 = vmatpush1.bf16.msra.mxu0 %v7361
    %7393 = vmatprep.subr.bf16.mxu0 0
    %7394 = vmatpush2.bf16.msra.mxu0 0
    %7395 = vmatprep.subr.bf16.mxu0 0
    %7396 = vmatpush2.bf16.msra.mxu0 0
    %7397 = vmatprep.subr.bf16.mxu0 0
    %7398 = vmatpush2.bf16.msra.mxu0 0
    %7399 = vmatprep.subr.bf16.mxu0 0
    %7400 = vmatpush2.bf16.msra.mxu0 0
    %7401 = vmatprep.subr.bf16.mxu0 0
    %7402 = vmatpush2.bf16.msra.mxu0 0
    %7403 = vmatprep.subr.bf16.mxu0 0
    %7404 = vmatpush2.bf16.msra.mxu0 0
    %7405 = vmatprep.subr.bf16.mxu0 0
    %7406 = vmatpush2.bf16.msra.mxu0 0
    %7407 = vmatprep.subr.bf16.mxu0 0
    %7408 = vmatpush2.bf16.msra.mxu0 0
    %7409 = vmatprep.mubr.bf16.mxu0 0
    %7410 = vmatmul.mubr.bf16.gmra.mxu0 %v7280
    %v7411 = vpop.f32.mrf.mxu0
    %v7412 = vadd.f32 0.0, %v7411
    %v7413 = vpop.f32.mrf.mxu0
    %v7414 = vpop.f32.mrf.mxu0
    %v7415 = vadd.f32 0.0, %v7414
    %v7416 = vpop.f32.mrf.mxu0
    %7417 = vmatprep.mubr.bf16.mxu0 0
    %7418 = vmatmul.mubr.bf16.gmra.mxu0 %v7281
    %v7419 = vpop.f32.mrf.mxu0
    %v7420 = vadd.f32 0.0, %v7419
    %v7421 = vpop.f32.mrf.mxu0
    %v7422 = vpop.f32.mrf.mxu0
    %v7423 = vadd.f32 0.0, %v7422
    %v7424 = vpop.f32.mrf.mxu0
    %7425 = vmatprep.mubr.bf16.mxu0 0
    %7426 = vmatmul.mubr.bf16.gmra.mxu0 %v7282
    %v7427 = vpop.f32.mrf.mxu0
    %v7428 = vadd.f32 0.0, %v7427
    %v7429 = vpop.f32.mrf.mxu0
    %v7430 = vpop.f32.mrf.mxu0
    %v7431 = vadd.f32 0.0, %v7430
    %v7432 = vpop.f32.mrf.mxu0
    %7433 = vmatprep.mubr.bf16.mxu0 0
    %7434 = vmatmul.mubr.bf16.gmra.mxu0 %v7283
    %v7435 = vpop.f32.mrf.mxu0
    %v7436 = vadd.f32 0.0, %v7435
    %v7437 = vpop.f32.mrf.mxu0
    %v7438 = vpop.f32.mrf.mxu0
    %v7439 = vadd.f32 0.0, %v7438
    %v7440 = vpop.f32.mrf.mxu0
    %7441 = vmatprep.mubr.bf16.mxu0 0
    %7442 = vmatmul.mubr.bf16.gmra.mxu0 %v7284
    %v7443 = vpop.f32.mrf.mxu0
    %v7444 = vadd.f32 0.0, %v7443
    %v7445 = vpop.f32.mrf.mxu0
    %v7446 = vpop.f32.mrf.mxu0
    %v7447 = vadd.f32 0.0, %v7446
    %v7448 = vpop.f32.mrf.mxu0
    %7449 = vmatprep.mubr.bf16.mxu0 0
    %7450 = vmatmul.mubr.bf16.gmra.mxu0 %v7285
    %v7451 = vpop.f32.mrf.mxu0
    %v7452 = vadd.f32 0.0, %v7451
    %v7453 = vpop.f32.mrf.mxu0
    %v7454 = vpop.f32.mrf.mxu0
    %v7455 = vadd.f32 0.0, %v7454
    %v7456 = vpop.f32.mrf.mxu0
    %7457 = vmatprep.mubr.bf16.mxu0 0
    %7458 = vmatmul.mubr.bf16.gmra.mxu0 %v7286
    %v7459 = vpop.f32.mrf.mxu0
    %v7460 = vadd.f32 0.0, %v7459
    %v7461 = vpop.f32.mrf.mxu0
    %v7462 = vpop.f32.mrf.mxu0
    %v7463 = vadd.f32 0.0, %v7462
    %v7464 = vpop.f32.mrf.mxu0
    %7465 = vmatprep.mubr.bf16.mxu0 0
    %7466 = vmatmul.mubr.bf16.gmra.mxu0 %v7287
    %v7467 = vpop.f32.mrf.mxu0
    %v7468 = vadd.f32 0.0, %v7467
    %v7469 = vpop.f32.mrf.mxu0
    %v7470 = vpop.f32.mrf.mxu0
    %v7471 = vadd.f32 0.0, %v7470
    %v7472 = vpop.f32.mrf.mxu0
    %7473 = vmatprep.mubr.bf16.mxu0 0
    %7474 = vmatmul.mubr.bf16.gmra.mxu0 %v7288
    %v7475 = vpop.f32.mrf.mxu0
    %v7476 = vadd.f32 0.0, %v7475
    %v7477 = vpop.f32.mrf.mxu0
    %v7478 = vpop.f32.mrf.mxu0
    %v7479 = vadd.f32 0.0, %v7478
    %v7480 = vpop.f32.mrf.mxu0
    %7481 = vmatprep.mubr.bf16.mxu0 0
    %7482 = vmatmul.mubr.bf16.gmra.mxu0 %v7289
    %v7483 = vpop.f32.mrf.mxu0
    %v7484 = vadd.f32 0.0, %v7483
    %v7485 = vpop.f32.mrf.mxu0
    %v7486 = vpop.f32.mrf.mxu0
    %v7487 = vadd.f32 0.0, %v7486
    %v7488 = vpop.f32.mrf.mxu0
    %7489 = vmatprep.mubr.bf16.mxu0 0
    %7490 = vmatmul.mubr.bf16.gmra.mxu0 %v7290
    %v7491 = vpop.f32.mrf.mxu0
    %v7492 = vadd.f32 0.0, %v7491
    %v7493 = vpop.f32.mrf.mxu0
    %v7494 = vpop.f32.mrf.mxu0
    %v7495 = vadd.f32 0.0, %v7494
    %v7496 = vpop.f32.mrf.mxu0
    %7497 = vmatprep.mubr.bf16.mxu0 0
    %7498 = vmatmul.mubr.bf16.gmra.mxu0 %v7291
    %v7499 = vpop.f32.mrf.mxu0
    %v7500 = vadd.f32 0.0, %v7499
    %v7501 = vpop.f32.mrf.mxu0
    %v7502 = vpop.f32.mrf.mxu0
    %v7503 = vadd.f32 0.0, %v7502
    %v7504 = vpop.f32.mrf.mxu0
    %7505 = vmatprep.mubr.bf16.mxu0 0
    %7506 = vmatmul.mubr.bf16.gmra.mxu0 %v7292
    %v7507 = vpop.f32.mrf.mxu0
    %v7508 = vadd.f32 0.0, %v7507
    %v7509 = vpop.f32.mrf.mxu0
    %v7510 = vpop.f32.mrf.mxu0
    %v7511 = vadd.f32 0.0, %v7510
    %v7512 = vpop.f32.mrf.mxu0
    %7513 = vmatprep.mubr.bf16.mxu0 0
    %7514 = vmatmul.mubr.bf16.gmra.mxu0 %v7293
    %v7515 = vpop.f32.mrf.mxu0
    %v7516 = vadd.f32 0.0, %v7515
    %v7517 = vpop.f32.mrf.mxu0
    %v7518 = vpop.f32.mrf.mxu0
    %v7519 = vadd.f32 0.0, %v7518
    %v7520 = vpop.f32.mrf.mxu0
    %7521 = vmatprep.mubr.bf16.mxu0 0
    %7522 = vmatmul.mubr.bf16.gmra.mxu0 %v7294
    %v7523 = vpop.f32.mrf.mxu0
    %v7524 = vadd.f32 0.0, %v7523
    %v7525 = vpop.f32.mrf.mxu0
    %v7526 = vpop.f32.mrf.mxu0
    %v7527 = vadd.f32 0.0, %v7526
    %v7528 = vpop.f32.mrf.mxu0
    %7529 = vmatprep.mubr.bf16.mxu0 0
    %7530 = vmatmul.mubr.bf16.gmra.mxu0 %v7295
    %v7531 = vpop.f32.mrf.mxu0
    %v7532 = vadd.f32 0.0, %v7531
    %v7533 = vpop.f32.mrf.mxu0
    %v7534 = vpop.f32.mrf.mxu0
    %v7535 = vadd.f32 0.0, %v7534
    %v7536 = vpop.f32.mrf.mxu0
    %7537 = vmatprep.mubr.bf16.mxu0 0
    %7538 = vmatmul.mubr.bf16.gmra.mxu0 %v7296
    %v7539 = vpop.f32.mrf.mxu0
    %v7540 = vadd.f32 0.0, %v7539
    %v7541 = vpop.f32.mrf.mxu0
    %v7542 = vpop.f32.mrf.mxu0
    %v7543 = vadd.f32 0.0, %v7542
    %v7544 = vpop.f32.mrf.mxu0
    %7545 = vmatprep.mubr.bf16.mxu0 0
    %7546 = vmatmul.mubr.bf16.gmra.mxu0 %v7297
    %v7547 = vpop.f32.mrf.mxu0
    %v7548 = vadd.f32 0.0, %v7547
    %v7549 = vpop.f32.mrf.mxu0
    %v7550 = vpop.f32.mrf.mxu0
    %v7551 = vadd.f32 0.0, %v7550
    %v7552 = vpop.f32.mrf.mxu0
    %7553 = vmatprep.mubr.bf16.mxu0 0
    %7554 = vmatmul.mubr.bf16.gmra.mxu0 %v7298
    %v7555 = vpop.f32.mrf.mxu0
    %v7556 = vadd.f32 0.0, %v7555
    %v7557 = vpop.f32.mrf.mxu0
    %v7558 = vpop.f32.mrf.mxu0
    %v7559 = vadd.f32 0.0, %v7558
    %v7560 = vpop.f32.mrf.mxu0
    %7561 = vmatprep.mubr.bf16.mxu0 0
    %7562 = vmatmul.mubr.bf16.gmra.mxu0 %v7299
    %v7563 = vpop.f32.mrf.mxu0
    %v7564 = vadd.f32 0.0, %v7563
    %v7565 = vpop.f32.mrf.mxu0
    %v7566 = vpop.f32.mrf.mxu0
    %v7567 = vadd.f32 0.0, %v7566
    %v7568 = vpop.f32.mrf.mxu0
    %7569 = vmatprep.mubr.bf16.mxu0 0
    %7570 = vmatmul.mubr.bf16.gmra.mxu0 %v7300
    %v7571 = vpop.f32.mrf.mxu0
    %v7572 = vadd.f32 0.0, %v7571
    %v7573 = vpop.f32.mrf.mxu0
    %v7574 = vpop.f32.mrf.mxu0
    %v7575 = vadd.f32 0.0, %v7574
    %v7576 = vpop.f32.mrf.mxu0
    %7577 = vmatprep.mubr.bf16.mxu0 0
    %7578 = vmatmul.mubr.bf16.gmra.mxu0 %v7301
    %v7579 = vpop.f32.mrf.mxu0
    %v7580 = vadd.f32 0.0, %v7579
    %v7581 = vpop.f32.mrf.mxu0
    %v7582 = vpop.f32.mrf.mxu0
    %v7583 = vadd.f32 0.0, %v7582
    %v7584 = vpop.f32.mrf.mxu0
    %7585 = vmatprep.mubr.bf16.mxu0 0
    %7586 = vmatmul.mubr.bf16.gmra.mxu0 %v7302
    %v7587 = vpop.f32.mrf.mxu0
    %v7588 = vadd.f32 0.0, %v7587
    %v7589 = vpop.f32.mrf.mxu0
    %v7590 = vpop.f32.mrf.mxu0
    %v7591 = vadd.f32 0.0, %v7590
    %v7592 = vpop.f32.mrf.mxu0
    %7593 = vmatprep.mubr.bf16.mxu0 0
    %7594 = vmatmul.mubr.bf16.gmra.mxu0 %v7303
    %v7595 = vpop.f32.mrf.mxu0
    %v7596 = vadd.f32 0.0, %v7595
    %v7597 = vpop.f32.mrf.mxu0
    %v7598 = vpop.f32.mrf.mxu0
    %v7599 = vadd.f32 0.0, %v7598
    %v7600 = vpop.f32.mrf.mxu0
    %7601 = vmatprep.mubr.bf16.mxu0 0
    %7602 = vmatmul.mubr.bf16.gmra.mxu0 %v7304
    %v7603 = vpop.f32.mrf.mxu0
    %v7604 = vadd.f32 0.0, %v7603
    %v7605 = vpop.f32.mrf.mxu0
    %v7606 = vpop.f32.mrf.mxu0
    %v7607 = vadd.f32 0.0, %v7606
    %v7608 = vpop.f32.mrf.mxu0
    %7609 = vmatprep.mubr.bf16.mxu0 0
    %7610 = vmatmul.mubr.bf16.gmra.mxu0 %v7305
    %v7611 = vpop.f32.mrf.mxu0
    %v7612 = vadd.f32 0.0, %v7611
    %v7613 = vpop.f32.mrf.mxu0
    %v7614 = vpop.f32.mrf.mxu0
    %v7615 = vadd.f32 0.0, %v7614
    %v7616 = vpop.f32.mrf.mxu0
    %7617 = vmatprep.mubr.bf16.mxu0 0
    %7618 = vmatmul.mubr.bf16.gmra.mxu0 %v7306
    %v7619 = vpop.f32.mrf.mxu0
    %v7620 = vadd.f32 0.0, %v7619
    %v7621 = vpop.f32.mrf.mxu0
    %v7622 = vpop.f32.mrf.mxu0
    %v7623 = vadd.f32 0.0, %v7622
    %v7624 = vpop.f32.mrf.mxu0
    %7625 = vmatprep.mubr.bf16.mxu0 0
    %7626 = vmatmul.mubr.bf16.gmra.mxu0 %v7307
    %v7627 = vpop.f32.mrf.mxu0
    %v7628 = vadd.f32 0.0, %v7627
    %v7629 = vpop.f32.mrf.mxu0
    %v7630 = vpop.f32.mrf.mxu0
    %v7631 = vadd.f32 0.0, %v7630
    %v7632 = vpop.f32.mrf.mxu0
    %7633 = vmatprep.mubr.bf16.mxu0 0
    %7634 = vmatmul.mubr.bf16.gmra.mxu0 %v7308
    %v7635 = vpop.f32.mrf.mxu0
    %v7636 = vadd.f32 0.0, %v7635
    %v7637 = vpop.f32.mrf.mxu0
    %v7638 = vpop.f32.mrf.mxu0
    %v7639 = vadd.f32 0.0, %v7638
    %v7640 = vpop.f32.mrf.mxu0
    %7641 = vmatprep.mubr.bf16.mxu0 0
    %7642 = vmatmul.mubr.bf16.gmra.mxu0 %v7309
    %v7643 = vpop.f32.mrf.mxu0
    %v7644 = vadd.f32 0.0, %v7643
    %v7645 = vpop.f32.mrf.mxu0
    %v7646 = vpop.f32.mrf.mxu0
    %v7647 = vadd.f32 0.0, %v7646
    %v7648 = vpop.f32.mrf.mxu0
    %7649 = vmatprep.mubr.bf16.mxu0 0
    %7650 = vmatmul.mubr.bf16.gmra.mxu0 %v7310
    %v7651 = vpop.f32.mrf.mxu0
    %v7652 = vadd.f32 0.0, %v7651
    %v7653 = vpop.f32.mrf.mxu0
    %v7654 = vpop.f32.mrf.mxu0
    %v7655 = vadd.f32 0.0, %v7654
    %v7656 = vpop.f32.mrf.mxu0
    %7657 = vmatprep.mubr.bf16.mxu0 0
    %7658 = vmatmul.mubr.bf16.gmra.mxu0 %v7311
    %v7659 = vpop.f32.mrf.mxu0
    %v7660 = vadd.f32 0.0, %v7659
    %v7661 = vpop.f32.mrf.mxu0
    %v7662 = vpop.f32.mrf.mxu0
    %v7663 = vadd.f32 0.0, %v7662
    %v7664 = vpop.f32.mrf.mxu0
    %7665 = vdwg.mxu0
    %v7666 = vadd.f32 %v6770, %v7412
    %v7667 = vadd.f32 %v6773, %v7415
    %v7668 = vadd.f32 %v6778, %v7420
    %v7669 = vadd.f32 %v6781, %v7423
    %v7670 = vadd.f32 %v6786, %v7428
    %v7671 = vadd.f32 %v6789, %v7431
    %v7672 = vadd.f32 %v6794, %v7436
    %v7673 = vadd.f32 %v6797, %v7439
    %v7674 = vadd.f32 %v6802, %v7444
    %v7675 = vadd.f32 %v6805, %v7447
    %v7676 = vadd.f32 %v6810, %v7452
    %v7677 = vadd.f32 %v6813, %v7455
    %v7678 = vadd.f32 %v6818, %v7460
    %v7679 = vadd.f32 %v6821, %v7463
    %v7680 = vadd.f32 %v6826, %v7468
    %v7681 = vadd.f32 %v6829, %v7471
    %v7682 = vadd.f32 %v6834, %v7476
    %v7683 = vadd.f32 %v6837, %v7479
    %v7684 = vadd.f32 %v6842, %v7484
    %v7685 = vadd.f32 %v6845, %v7487
    %v7686 = vadd.f32 %v6850, %v7492
    %v7687 = vadd.f32 %v6853, %v7495
    %v7688 = vadd.f32 %v6858, %v7500
    %v7689 = vadd.f32 %v6861, %v7503
    %v7690 = vadd.f32 %v6866, %v7508
    %v7691 = vadd.f32 %v6869, %v7511
    %v7692 = vadd.f32 %v6874, %v7516
    %v7693 = vadd.f32 %v6877, %v7519
    %v7694 = vadd.f32 %v6882, %v7524
    %v7695 = vadd.f32 %v6885, %v7527
    %v7696 = vadd.f32 %v6890, %v7532
    %v7697 = vadd.f32 %v6893, %v7535
    %v7698 = vadd.f32 %v6898, %v7540
    %v7699 = vadd.f32 %v6901, %v7543
    %v7700 = vadd.f32 %v6906, %v7548
    %v7701 = vadd.f32 %v6909, %v7551
    %v7702 = vadd.f32 %v6914, %v7556
    %v7703 = vadd.f32 %v6917, %v7559
    %v7704 = vadd.f32 %v6922, %v7564
    %v7705 = vadd.f32 %v6925, %v7567
    %v7706 = vadd.f32 %v6930, %v7572
    %v7707 = vadd.f32 %v6933, %v7575
    %v7708 = vadd.f32 %v6938, %v7580
    %v7709 = vadd.f32 %v6941, %v7583
    %v7710 = vadd.f32 %v6946, %v7588
    %v7711 = vadd.f32 %v6949, %v7591
    %v7712 = vadd.f32 %v6954, %v7596
    %v7713 = vadd.f32 %v6957, %v7599
    %v7714 = vadd.f32 %v6962, %v7604
    %v7715 = vadd.f32 %v6965, %v7607
    %v7716 = vadd.f32 %v6970, %v7612
    %v7717 = vadd.f32 %v6973, %v7615
    %v7718 = vadd.f32 %v6978, %v7620
    %v7719 = vadd.f32 %v6981, %v7623
    %v7720 = vadd.f32 %v6986, %v7628
    %v7721 = vadd.f32 %v6989, %v7631
    %v7722 = vadd.f32 %v6994, %v7636
    %v7723 = vadd.f32 %v6997, %v7639
    %v7724 = vadd.f32 %v7002, %v7644
    %v7725 = vadd.f32 %v7005, %v7647
    %v7726 = vadd.f32 %v7010, %v7652
    %v7727 = vadd.f32 %v7013, %v7655
    %v7728 = vadd.f32 %v7018, %v7660
    %v7729 = vadd.f32 %v7021, %v7663
    %v7730 = vlaneseq
    %v7731 = vshrl.u32 %v7730, 7
    %v7732 = vsub.s32 0, %v7731
    %v7733 = vrot.slane %v1646, %v7732
    %v7734 = vadd.f32 %v7666, %v7733
    %v7735 = vadd.f32 %v7667, %v7733
    %v7736 = vadd.f32 %v7668, %v7733
    %v7737 = vadd.f32 %v7669, %v7733
    %v7738 = vadd.f32 %v7670, %v7733
    %v7739 = vadd.f32 %v7671, %v7733
    %v7740 = vadd.f32 %v7672, %v7733
    %v7741 = vadd.f32 %v7673, %v7733
    %v7742 = vadd.f32 %v7674, %v7733
    %v7743 = vadd.f32 %v7675, %v7733
    %v7744 = vadd.f32 %v7676, %v7733
    %v7745 = vadd.f32 %v7677, %v7733
    %v7746 = vadd.f32 %v7678, %v7733
    %v7747 = vadd.f32 %v7679, %v7733
    %v7748 = vadd.f32 %v7680, %v7733
    %v7749 = vadd.f32 %v7681, %v7733
    %v7750 = vadd.f32 %v7682, %v7733
    %v7751 = vadd.f32 %v7683, %v7733
    %v7752 = vadd.f32 %v7684, %v7733
    %v7753 = vadd.f32 %v7685, %v7733
    %v7754 = vadd.f32 %v7686, %v7733
    %v7755 = vadd.f32 %v7687, %v7733
    %v7756 = vadd.f32 %v7688, %v7733
    %v7757 = vadd.f32 %v7689, %v7733
    %v7758 = vadd.f32 %v7690, %v7733
    %v7759 = vadd.f32 %v7691, %v7733
    %v7760 = vadd.f32 %v7692, %v7733
    %v7761 = vadd.f32 %v7693, %v7733
    %v7762 = vadd.f32 %v7694, %v7733
    %v7763 = vadd.f32 %v7695, %v7733
    %v7764 = vadd.f32 %v7696, %v7733
    %v7765 = vadd.f32 %v7697, %v7733
    %v7766 = vadd.f32 %v7698, %v7733
    %v7767 = vadd.f32 %v7699, %v7733
    %v7768 = vadd.f32 %v7700, %v7733
    %v7769 = vadd.f32 %v7701, %v7733
    %v7770 = vadd.f32 %v7702, %v7733
    %v7771 = vadd.f32 %v7703, %v7733
    %v7772 = vadd.f32 %v7704, %v7733
    %v7773 = vadd.f32 %v7705, %v7733
    %v7774 = vadd.f32 %v7706, %v7733
    %v7775 = vadd.f32 %v7707, %v7733
    %v7776 = vadd.f32 %v7708, %v7733
    %v7777 = vadd.f32 %v7709, %v7733
    %v7778 = vadd.f32 %v7710, %v7733
    %v7779 = vadd.f32 %v7711, %v7733
    %v7780 = vadd.f32 %v7712, %v7733
    %v7781 = vadd.f32 %v7713, %v7733
    %v7782 = vadd.f32 %v7714, %v7733
    %v7783 = vadd.f32 %v7715, %v7733
    %v7784 = vadd.f32 %v7716, %v7733
    %v7785 = vadd.f32 %v7717, %v7733
    %v7786 = vadd.f32 %v7718, %v7733
    %v7787 = vadd.f32 %v7719, %v7733
    %v7788 = vadd.f32 %v7720, %v7733
    %v7789 = vadd.f32 %v7721, %v7733
    %v7790 = vadd.f32 %v7722, %v7733
    %v7791 = vadd.f32 %v7723, %v7733
    %v7792 = vadd.f32 %v7724, %v7733
    %v7793 = vadd.f32 %v7725, %v7733
    %v7794 = vadd.f32 %v7726, %v7733
    %v7795 = vadd.f32 %v7727, %v7733
    %v7796 = vadd.f32 %v7728, %v7733
    %v7797 = vadd.f32 %v7729, %v7733
    %v7798 = vmax.f32 %v7734, 0.0
    %v7799 = vmax.f32 %v7735, 0.0
    %v7800 = vmax.f32 %v7736, 0.0
    %v7801 = vmax.f32 %v7737, 0.0
    %v7802 = vmax.f32 %v7738, 0.0
    %v7803 = vmax.f32 %v7739, 0.0
    %v7804 = vmax.f32 %v7740, 0.0
    %v7805 = vmax.f32 %v7741, 0.0
    %v7806 = vmax.f32 %v7742, 0.0
    %v7807 = vmax.f32 %v7743, 0.0
    %v7808 = vmax.f32 %v7744, 0.0
    %v7809 = vmax.f32 %v7745, 0.0
    %v7810 = vmax.f32 %v7746, 0.0
    %v7811 = vmax.f32 %v7747, 0.0
    %v7812 = vmax.f32 %v7748, 0.0
    %v7813 = vmax.f32 %v7749, 0.0
    %v7814 = vmax.f32 %v7750, 0.0
    %v7815 = vmax.f32 %v7751, 0.0
    %v7816 = vmax.f32 %v7752, 0.0
    %v7817 = vmax.f32 %v7753, 0.0
    %v7818 = vmax.f32 %v7754, 0.0
    %v7819 = vmax.f32 %v7755, 0.0
    %v7820 = vmax.f32 %v7756, 0.0
    %v7821 = vmax.f32 %v7757, 0.0
    %v7822 = vmax.f32 %v7758, 0.0
    %v7823 = vmax.f32 %v7759, 0.0
    %v7824 = vmax.f32 %v7760, 0.0
    %v7825 = vmax.f32 %v7761, 0.0
    %v7826 = vmax.f32 %v7762, 0.0
    %v7827 = vmax.f32 %v7763, 0.0
    %v7828 = vmax.f32 %v7764, 0.0
    %v7829 = vmax.f32 %v7765, 0.0
    %v7830 = vmax.f32 %v7766, 0.0
    %v7831 = vmax.f32 %v7767, 0.0
    %v7832 = vmax.f32 %v7768, 0.0
    %v7833 = vmax.f32 %v7769, 0.0
    %v7834 = vmax.f32 %v7770, 0.0
    %v7835 = vmax.f32 %v7771, 0.0
    %v7836 = vmax.f32 %v7772, 0.0
    %v7837 = vmax.f32 %v7773, 0.0
    %v7838 = vmax.f32 %v7774, 0.0
    %v7839 = vmax.f32 %v7775, 0.0
    %v7840 = vmax.f32 %v7776, 0.0
    %v7841 = vmax.f32 %v7777, 0.0
    %v7842 = vmax.f32 %v7778, 0.0
    %v7843 = vmax.f32 %v7779, 0.0
    %v7844 = vmax.f32 %v7780, 0.0
    %v7845 = vmax.f32 %v7781, 0.0
    %v7846 = vmax.f32 %v7782, 0.0
    %v7847 = vmax.f32 %v7783, 0.0
    %v7848 = vmax.f32 %v7784, 0.0
    %v7849 = vmax.f32 %v7785, 0.0
    %v7850 = vmax.f32 %v7786, 0.0
    %v7851 = vmax.f32 %v7787, 0.0
    %v7852 = vmax.f32 %v7788, 0.0
    %v7853 = vmax.f32 %v7789, 0.0
    %v7854 = vmax.f32 %v7790, 0.0
    %v7855 = vmax.f32 %v7791, 0.0
    %v7856 = vmax.f32 %v7792, 0.0
    %v7857 = vmax.f32 %v7793, 0.0
    %v7858 = vmax.f32 %v7794, 0.0
    %v7859 = vmax.f32 %v7795, 0.0
    %v7860 = vmax.f32 %v7796, 0.0
    %v7861 = vmax.f32 %v7797, 0.0
    %v7862 = vrot.slane %v7798, 6
    %v7863 = vrot.slane %v7799, 6
    %v7864 = vrot.slane %v7800, 6
    %v7865 = vrot.slane %v7801, 6
    %v7866 = vrot.slane %v7802, 6
    %v7867 = vrot.slane %v7803, 6
    %v7868 = vrot.slane %v7804, 6
    %v7869 = vrot.slane %v7805, 6
    %v7870 = vrot.slane %v7806, 6
    %v7871 = vrot.slane %v7807, 6
    %v7872 = vrot.slane %v7808, 6
    %v7873 = vrot.slane %v7809, 6
    %v7874 = vrot.slane %v7810, 6
    %v7875 = vrot.slane %v7811, 6
    %v7876 = vrot.slane %v7812, 6
    %v7877 = vrot.slane %v7813, 6
    %v7878 = vrot.slane %v7814, 6
    %v7879 = vrot.slane %v7815, 6
    %v7880 = vrot.slane %v7816, 6
    %v7881 = vrot.slane %v7817, 6
    %v7882 = vrot.slane %v7818, 6
    %v7883 = vrot.slane %v7819, 6
    %v7884 = vrot.slane %v7820, 6
    %v7885 = vrot.slane %v7821, 6
    %v7886 = vrot.slane %v7822, 6
    %v7887 = vrot.slane %v7823, 6
    %v7888 = vrot.slane %v7824, 6
    %v7889 = vrot.slane %v7825, 6
    %v7890 = vrot.slane %v7826, 6
    %v7891 = vrot.slane %v7827, 6
    %v7892 = vrot.slane %v7828, 6
    %v7893 = vrot.slane %v7829, 6
    %v7894 = vrot.slane %v7830, 6
    %v7895 = vrot.slane %v7831, 6
    %v7896 = vrot.slane %v7832, 6
    %v7897 = vrot.slane %v7833, 6
    %v7898 = vrot.slane %v7834, 6
    %v7899 = vrot.slane %v7835, 6
    %v7900 = vrot.slane %v7836, 6
    %v7901 = vrot.slane %v7837, 6
    %v7902 = vrot.slane %v7838, 6
    %v7903 = vrot.slane %v7839, 6
    %v7904 = vrot.slane %v7840, 6
    %v7905 = vrot.slane %v7841, 6
    %v7906 = vrot.slane %v7842, 6
    %v7907 = vrot.slane %v7843, 6
    %v7908 = vrot.slane %v7844, 6
    %v7909 = vrot.slane %v7845, 6
    %v7910 = vrot.slane %v7846, 6
    %v7911 = vrot.slane %v7847, 6
    %v7912 = vrot.slane %v7848, 6
    %v7913 = vrot.slane %v7849, 6
    %v7914 = vrot.slane %v7850, 6
    %v7915 = vrot.slane %v7851, 6
    %v7916 = vrot.slane %v7852, 6
    %v7917 = vrot.slane %v7853, 6
    %v7918 = vrot.slane %v7854, 6
    %v7919 = vrot.slane %v7855, 6
    %v7920 = vrot.slane %v7856, 6
    %v7921 = vrot.slane %v7857, 6
    %v7922 = vrot.slane %v7858, 6
    %v7923 = vrot.slane %v7859, 6
    %v7924 = vrot.slane %v7860, 6
    %v7925 = vrot.slane %v7861, 6
    %vm7926 = vcmp.lt.s32.totalorder %v45, 2
    %v7927 = vsel %vm7926, %v7924, %v7925
    %v7928 = vsel %vm7926, %v7923, %v7924
    %v7929 = vsel %vm7926, %v7922, %v7923
    %v7930 = vsel %vm7926, %v7921, %v7922
    %v7931 = vsel %vm7926, %v7920, %v7921
    %v7932 = vsel %vm7926, %v7919, %v7920
    %v7933 = vsel %vm7926, %v7918, %v7919
    %v7934 = vsel %vm7926, %v7917, %v7918
    %v7935 = vsel %vm7926, %v7916, %v7917
    %v7936 = vsel %vm7926, %v7915, %v7916
    %v7937 = vsel %vm7926, %v7914, %v7915
    %v7938 = vsel %vm7926, %v7913, %v7914
    %v7939 = vsel %vm7926, %v7912, %v7913
    %v7940 = vsel %vm7926, %v7911, %v7912
    %v7941 = vsel %vm7926, %v7910, %v7911
    %v7942 = vsel %vm7926, %v7909, %v7910
    %v7943 = vsel %vm7926, %v7908, %v7909
    %v7944 = vsel %vm7926, %v7907, %v7908
    %v7945 = vsel %vm7926, %v7906, %v7907
    %v7946 = vsel %vm7926, %v7905, %v7906
    %v7947 = vsel %vm7926, %v7904, %v7905
    %v7948 = vsel %vm7926, %v7903, %v7904
    %v7949 = vsel %vm7926, %v7902, %v7903
    %v7950 = vsel %vm7926, %v7901, %v7902
    %v7951 = vsel %vm7926, %v7900, %v7901
    %v7952 = vsel %vm7926, %v7899, %v7900
    %v7953 = vsel %vm7926, %v7898, %v7899
    %v7954 = vsel %vm7926, %v7897, %v7898
    %v7955 = vsel %vm7926, %v7896, %v7897
    %v7956 = vsel %vm7926, %v7895, %v7896
    %v7957 = vsel %vm7926, %v7894, %v7895
    %v7958 = vsel %vm7926, %v7893, %v7894
    %v7959 = vsel %vm7926, %v7892, %v7893
    %v7960 = vsel %vm7926, %v7891, %v7892
    %v7961 = vsel %vm7926, %v7890, %v7891
    %v7962 = vsel %vm7926, %v7889, %v7890
    %v7963 = vsel %vm7926, %v7888, %v7889
    %v7964 = vsel %vm7926, %v7887, %v7888
    %v7965 = vsel %vm7926, %v7886, %v7887
    %v7966 = vsel %vm7926, %v7885, %v7886
    %v7967 = vsel %vm7926, %v7884, %v7885
    %v7968 = vsel %vm7926, %v7883, %v7884
    %v7969 = vsel %vm7926, %v7882, %v7883
    %v7970 = vsel %vm7926, %v7881, %v7882
    %v7971 = vsel %vm7926, %v7880, %v7881
    %v7972 = vsel %vm7926, %v7879, %v7880
    %v7973 = vsel %vm7926, %v7878, %v7879
    %v7974 = vsel %vm7926, %v7877, %v7878
    %v7975 = vsel %vm7926, %v7876, %v7877
    %v7976 = vsel %vm7926, %v7875, %v7876
    %v7977 = vsel %vm7926, %v7874, %v7875
    %v7978 = vsel %vm7926, %v7873, %v7874
    %v7979 = vsel %vm7926, %v7872, %v7873
    %v7980 = vsel %vm7926, %v7871, %v7872
    %v7981 = vsel %vm7926, %v7870, %v7871
    %v7982 = vsel %vm7926, %v7869, %v7870
    %v7983 = vsel %vm7926, %v7868, %v7869
    %v7984 = vsel %vm7926, %v7867, %v7868
    %v7985 = vsel %vm7926, %v7866, %v7867
    %v7986 = vsel %vm7926, %v7865, %v7866
    %v7987 = vsel %vm7926, %v7864, %v7865
    %v7988 = vsel %vm7926, %v7863, %v7864
    %v7989 = vsel %vm7926, %v7862, %v7863
    %v7990 = vsel %vm7926, %v7925, %v7862
    %vm7991 = vcmp.ge.s32.totalorder %v1581, 2
    %vm7992 = vcmp.ge.s32.totalorder %v1582, 2
    %vm7993 = vcmp.ge.s32.totalorder %v1583, 2
    %vm7994 = vcmp.ge.s32.totalorder %v1584, 2
    %vm7995 = vcmp.ge.s32.totalorder %v1585, 2
    %vm7996 = vcmp.ge.s32.totalorder %v1586, 2
    %vm7997 = vcmp.ge.s32.totalorder %v1587, 2
    %vm7998 = vcmp.ge.s32.totalorder %v1588, 2
    %vm7999 = vcmp.ge.s32.totalorder %v1589, 2
    %vm8000 = vcmp.ge.s32.totalorder %v1590, 2
    %vm8001 = vcmp.ge.s32.totalorder %v1591, 2
    %vm8002 = vcmp.ge.s32.totalorder %v1592, 2
    %vm8003 = vcmp.ge.s32.totalorder %v1593, 2
    %vm8004 = vcmp.ge.s32.totalorder %v1594, 2
    %vm8005 = vcmp.ge.s32.totalorder %v1595, 2
    %vm8006 = vcmp.ge.s32.totalorder %v1596, 2
    %vm8007 = vcmp.ge.s32.totalorder %v1597, 2
    %vm8008 = vcmp.ge.s32.totalorder %v1598, 2
    %vm8009 = vcmp.ge.s32.totalorder %v1599, 2
    %vm8010 = vcmp.ge.s32.totalorder %v1600, 2
    %vm8011 = vcmp.ge.s32.totalorder %v1601, 2
    %vm8012 = vcmp.ge.s32.totalorder %v1602, 2
    %vm8013 = vcmp.ge.s32.totalorder %v1603, 2
    %vm8014 = vcmp.ge.s32.totalorder %v1604, 2
    %vm8015 = vcmp.ge.s32.totalorder %v1605, 2
    %vm8016 = vcmp.ge.s32.totalorder %v1606, 2
    %vm8017 = vcmp.ge.s32.totalorder %v1607, 2
    %vm8018 = vcmp.ge.s32.totalorder %v1608, 2
    %vm8019 = vcmp.ge.s32.totalorder %v1609, 2
    %vm8020 = vcmp.ge.s32.totalorder %v1610, 2
    %vm8021 = vcmp.ge.s32.totalorder %v1611, 2
    %vm8022 = vcmp.ge.s32.totalorder %v1612, 2
    %vm8023 = vcmp.ge.s32.totalorder %v1613, 2
    %vm8024 = vcmp.ge.s32.totalorder %v1614, 2
    %vm8025 = vcmp.ge.s32.totalorder %v1615, 2
    %vm8026 = vcmp.ge.s32.totalorder %v1616, 2
    %vm8027 = vcmp.ge.s32.totalorder %v1617, 2
    %vm8028 = vcmp.ge.s32.totalorder %v1618, 2
    %vm8029 = vcmp.ge.s32.totalorder %v1619, 2
    %vm8030 = vcmp.ge.s32.totalorder %v1620, 2
    %vm8031 = vcmp.ge.s32.totalorder %v1621, 2
    %vm8032 = vcmp.ge.s32.totalorder %v1622, 2
    %vm8033 = vcmp.ge.s32.totalorder %v1623, 2
    %vm8034 = vcmp.ge.s32.totalorder %v1624, 2
    %vm8035 = vcmp.ge.s32.totalorder %v1625, 2
    %vm8036 = vcmp.ge.s32.totalorder %v1626, 2
    %vm8037 = vcmp.ge.s32.totalorder %v1627, 2
    %vm8038 = vcmp.ge.s32.totalorder %v1628, 2
    %vm8039 = vcmp.ge.s32.totalorder %v1629, 2
    %vm8040 = vcmp.ge.s32.totalorder %v1630, 2
    %vm8041 = vcmp.ge.s32.totalorder %v1631, 2
    %vm8042 = vcmp.ge.s32.totalorder %v1632, 2
    %vm8043 = vcmp.ge.s32.totalorder %v1633, 2
    %vm8044 = vcmp.ge.s32.totalorder %v1634, 2
    %vm8045 = vcmp.ge.s32.totalorder %v1635, 2
    %vm8046 = vcmp.ge.s32.totalorder %v1636, 2
    %vm8047 = vcmp.ge.s32.totalorder %v1637, 2
    %vm8048 = vcmp.ge.s32.totalorder %v1638, 2
    %vm8049 = vcmp.ge.s32.totalorder %v1639, 2
    %vm8050 = vcmp.ge.s32.totalorder %v1640, 2
    %vm8051 = vcmp.ge.s32.totalorder %v1641, 2
    %vm8052 = vcmp.ge.s32.totalorder %v1642, 2
    %vm8053 = vcmp.ge.s32.totalorder %v1643, 2
    %vm8054 = vcmp.ge.s32.totalorder %v1644, 2
    %v8055 = vsel %vm7991, 1, 0
    %v8056 = vsel %vm7992, 1, 0
    %v8057 = vsel %vm7993, 1, 0
    %v8058 = vsel %vm7994, 1, 0
    %v8059 = vsel %vm7995, 1, 0
    %v8060 = vsel %vm7996, 1, 0
    %v8061 = vsel %vm7997, 1, 0
    %v8062 = vsel %vm7998, 1, 0
    %v8063 = vsel %vm7999, 1, 0
    %v8064 = vsel %vm8000, 1, 0
    %v8065 = vsel %vm8001, 1, 0
    %v8066 = vsel %vm8002, 1, 0
    %v8067 = vsel %vm8003, 1, 0
    %v8068 = vsel %vm8004, 1, 0
    %v8069 = vsel %vm8005, 1, 0
    %v8070 = vsel %vm8006, 1, 0
    %v8071 = vsel %vm8007, 1, 0
    %v8072 = vsel %vm8008, 1, 0
    %v8073 = vsel %vm8009, 1, 0
    %v8074 = vsel %vm8010, 1, 0
    %v8075 = vsel %vm8011, 1, 0
    %v8076 = vsel %vm8012, 1, 0
    %v8077 = vsel %vm8013, 1, 0
    %v8078 = vsel %vm8014, 1, 0
    %v8079 = vsel %vm8015, 1, 0
    %v8080 = vsel %vm8016, 1, 0
    %v8081 = vsel %vm8017, 1, 0
    %v8082 = vsel %vm8018, 1, 0
    %v8083 = vsel %vm8019, 1, 0
    %v8084 = vsel %vm8020, 1, 0
    %v8085 = vsel %vm8021, 1, 0
    %v8086 = vsel %vm8022, 1, 0
    %v8087 = vsel %vm8023, 1, 0
    %v8088 = vsel %vm8024, 1, 0
    %v8089 = vsel %vm8025, 1, 0
    %v8090 = vsel %vm8026, 1, 0
    %v8091 = vsel %vm8027, 1, 0
    %v8092 = vsel %vm8028, 1, 0
    %v8093 = vsel %vm8029, 1, 0
    %v8094 = vsel %vm8030, 1, 0
    %v8095 = vsel %vm8031, 1, 0
    %v8096 = vsel %vm8032, 1, 0
    %v8097 = vsel %vm8033, 1, 0
    %v8098 = vsel %vm8034, 1, 0
    %v8099 = vsel %vm8035, 1, 0
    %v8100 = vsel %vm8036, 1, 0
    %v8101 = vsel %vm8037, 1, 0
    %v8102 = vsel %vm8038, 1, 0
    %v8103 = vsel %vm8039, 1, 0
    %v8104 = vsel %vm8040, 1, 0
    %v8105 = vsel %vm8041, 1, 0
    %v8106 = vsel %vm8042, 1, 0
    %v8107 = vsel %vm8043, 1, 0
    %v8108 = vsel %vm8044, 1, 0
    %v8109 = vsel %vm8045, 1, 0
    %v8110 = vsel %vm8046, 1, 0
    %v8111 = vsel %vm8047, 1, 0
    %v8112 = vsel %vm8048, 1, 0
    %v8113 = vsel %vm8049, 1, 0
    %v8114 = vsel %vm8050, 1, 0
    %v8115 = vsel %vm8051, 1, 0
    %v8116 = vsel %vm8052, 1, 0
    %v8117 = vsel %vm8053, 1, 0
    %v8118 = vsel %vm8054, 1, 0
    %v8119 = vcvt.s32.f32 %v8055
    %v8120 = vcvt.s32.f32 %v8056
    %v8121 = vcvt.s32.f32 %v8057
    %v8122 = vcvt.s32.f32 %v8058
    %v8123 = vcvt.s32.f32 %v8059
    %v8124 = vcvt.s32.f32 %v8060
    %v8125 = vcvt.s32.f32 %v8061
    %v8126 = vcvt.s32.f32 %v8062
    %v8127 = vcvt.s32.f32 %v8063
    %v8128 = vcvt.s32.f32 %v8064
    %v8129 = vcvt.s32.f32 %v8065
    %v8130 = vcvt.s32.f32 %v8066
    %v8131 = vcvt.s32.f32 %v8067
    %v8132 = vcvt.s32.f32 %v8068
    %v8133 = vcvt.s32.f32 %v8069
    %v8134 = vcvt.s32.f32 %v8070
    %v8135 = vcvt.s32.f32 %v8071
    %v8136 = vcvt.s32.f32 %v8072
    %v8137 = vcvt.s32.f32 %v8073
    %v8138 = vcvt.s32.f32 %v8074
    %v8139 = vcvt.s32.f32 %v8075
    %v8140 = vcvt.s32.f32 %v8076
    %v8141 = vcvt.s32.f32 %v8077
    %v8142 = vcvt.s32.f32 %v8078
    %v8143 = vcvt.s32.f32 %v8079
    %v8144 = vcvt.s32.f32 %v8080
    %v8145 = vcvt.s32.f32 %v8081
    %v8146 = vcvt.s32.f32 %v8082
    %v8147 = vcvt.s32.f32 %v8083
    %v8148 = vcvt.s32.f32 %v8084
    %v8149 = vcvt.s32.f32 %v8085
    %v8150 = vcvt.s32.f32 %v8086
    %v8151 = vcvt.s32.f32 %v8087
    %v8152 = vcvt.s32.f32 %v8088
    %v8153 = vcvt.s32.f32 %v8089
    %v8154 = vcvt.s32.f32 %v8090
    %v8155 = vcvt.s32.f32 %v8091
    %v8156 = vcvt.s32.f32 %v8092
    %v8157 = vcvt.s32.f32 %v8093
    %v8158 = vcvt.s32.f32 %v8094
    %v8159 = vcvt.s32.f32 %v8095
    %v8160 = vcvt.s32.f32 %v8096
    %v8161 = vcvt.s32.f32 %v8097
    %v8162 = vcvt.s32.f32 %v8098
    %v8163 = vcvt.s32.f32 %v8099
    %v8164 = vcvt.s32.f32 %v8100
    %v8165 = vcvt.s32.f32 %v8101
    %v8166 = vcvt.s32.f32 %v8102
    %v8167 = vcvt.s32.f32 %v8103
    %v8168 = vcvt.s32.f32 %v8104
    %v8169 = vcvt.s32.f32 %v8105
    %v8170 = vcvt.s32.f32 %v8106
    %v8171 = vcvt.s32.f32 %v8107
    %v8172 = vcvt.s32.f32 %v8108
    %v8173 = vcvt.s32.f32 %v8109
    %v8174 = vcvt.s32.f32 %v8110
    %v8175 = vcvt.s32.f32 %v8111
    %v8176 = vcvt.s32.f32 %v8112
    %v8177 = vcvt.s32.f32 %v8113
    %v8178 = vcvt.s32.f32 %v8114
    %v8179 = vcvt.s32.f32 %v8115
    %v8180 = vcvt.s32.f32 %v8116
    %v8181 = vcvt.s32.f32 %v8117
    %v8182 = vcvt.s32.f32 %v8118
    %v8183 = vmul.f32 %v7990, %v8119
    %v8184 = vmul.f32 %v7989, %v8120
    %v8185 = vmul.f32 %v7988, %v8121
    %v8186 = vmul.f32 %v7987, %v8122
    %v8187 = vmul.f32 %v7986, %v8123
    %v8188 = vmul.f32 %v7985, %v8124
    %v8189 = vmul.f32 %v7984, %v8125
    %v8190 = vmul.f32 %v7983, %v8126
    %v8191 = vmul.f32 %v7982, %v8127
    %v8192 = vmul.f32 %v7981, %v8128
    %v8193 = vmul.f32 %v7980, %v8129
    %v8194 = vmul.f32 %v7979, %v8130
    %v8195 = vmul.f32 %v7978, %v8131
    %v8196 = vmul.f32 %v7977, %v8132
    %v8197 = vmul.f32 %v7976, %v8133
    %v8198 = vmul.f32 %v7975, %v8134
    %v8199 = vmul.f32 %v7974, %v8135
    %v8200 = vmul.f32 %v7973, %v8136
    %v8201 = vmul.f32 %v7972, %v8137
    %v8202 = vmul.f32 %v7971, %v8138
    %v8203 = vmul.f32 %v7970, %v8139
    %v8204 = vmul.f32 %v7969, %v8140
    %v8205 = vmul.f32 %v7968, %v8141
    %v8206 = vmul.f32 %v7967, %v8142
    %v8207 = vmul.f32 %v7966, %v8143
    %v8208 = vmul.f32 %v7965, %v8144
    %v8209 = vmul.f32 %v7964, %v8145
    %v8210 = vmul.f32 %v7963, %v8146
    %v8211 = vmul.f32 %v7962, %v8147
    %v8212 = vmul.f32 %v7961, %v8148
    %v8213 = vmul.f32 %v7960, %v8149
    %v8214 = vmul.f32 %v7959, %v8150
    %v8215 = vmul.f32 %v7958, %v8151
    %v8216 = vmul.f32 %v7957, %v8152
    %v8217 = vmul.f32 %v7956, %v8153
    %v8218 = vmul.f32 %v7955, %v8154
    %v8219 = vmul.f32 %v7954, %v8155
    %v8220 = vmul.f32 %v7953, %v8156
    %v8221 = vmul.f32 %v7952, %v8157
    %v8222 = vmul.f32 %v7951, %v8158
    %v8223 = vmul.f32 %v7950, %v8159
    %v8224 = vmul.f32 %v7949, %v8160
    %v8225 = vmul.f32 %v7948, %v8161
    %v8226 = vmul.f32 %v7947, %v8162
    %v8227 = vmul.f32 %v7946, %v8163
    %v8228 = vmul.f32 %v7945, %v8164
    %v8229 = vmul.f32 %v7944, %v8165
    %v8230 = vmul.f32 %v7943, %v8166
    %v8231 = vmul.f32 %v7942, %v8167
    %v8232 = vmul.f32 %v7941, %v8168
    %v8233 = vmul.f32 %v7940, %v8169
    %v8234 = vmul.f32 %v7939, %v8170
    %v8235 = vmul.f32 %v7938, %v8171
    %v8236 = vmul.f32 %v7937, %v8172
    %v8237 = vmul.f32 %v7936, %v8173
    %v8238 = vmul.f32 %v7935, %v8174
    %v8239 = vmul.f32 %v7934, %v8175
    %v8240 = vmul.f32 %v7933, %v8176
    %v8241 = vmul.f32 %v7932, %v8177
    %v8242 = vmul.f32 %v7931, %v8178
    %v8243 = vmul.f32 %v7930, %v8179
    %v8244 = vmul.f32 %v7929, %v8180
    %v8245 = vmul.f32 %v7928, %v8181
    %v8246 = vmul.f32 %v7927, %v8182
    %v8247 = vpack.c.bf16 %v8184, %v8183
    %v8248 = vpack.c.bf16 %v8186, %v8185
    %v8249 = vpack.c.bf16 %v8188, %v8187
    %v8250 = vpack.c.bf16 %v8190, %v8189
    %v8251 = vpack.c.bf16 %v8192, %v8191
    %v8252 = vpack.c.bf16 %v8194, %v8193
    %v8253 = vpack.c.bf16 %v8196, %v8195
    %v8254 = vpack.c.bf16 %v8198, %v8197
    %v8255 = vpack.c.bf16 %v8200, %v8199
    %v8256 = vpack.c.bf16 %v8202, %v8201
    %v8257 = vpack.c.bf16 %v8204, %v8203
    %v8258 = vpack.c.bf16 %v8206, %v8205
    %v8259 = vpack.c.bf16 %v8208, %v8207
    %v8260 = vpack.c.bf16 %v8210, %v8209
    %v8261 = vpack.c.bf16 %v8212, %v8211
    %v8262 = vpack.c.bf16 %v8214, %v8213
    %v8263 = vpack.c.bf16 %v8216, %v8215
    %v8264 = vpack.c.bf16 %v8218, %v8217
    %v8265 = vpack.c.bf16 %v8220, %v8219
    %v8266 = vpack.c.bf16 %v8222, %v8221
    %v8267 = vpack.c.bf16 %v8224, %v8223
    %v8268 = vpack.c.bf16 %v8226, %v8225
    %v8269 = vpack.c.bf16 %v8228, %v8227
    %v8270 = vpack.c.bf16 %v8230, %v8229
    %v8271 = vpack.c.bf16 %v8232, %v8231
    %v8272 = vpack.c.bf16 %v8234, %v8233
    %v8273 = vpack.c.bf16 %v8236, %v8235
    %v8274 = vpack.c.bf16 %v8238, %v8237
    %v8275 = vpack.c.bf16 %v8240, %v8239
    %v8276 = vpack.c.bf16 %v8242, %v8241
    %v8277 = vpack.c.bf16 %v8244, %v8243
    %v8278 = vpack.c.bf16 %v8246, %v8245
    %s8279 = scalar_lea.vmem [#allocation5], 576
    %v8280 = vld [vmem:[%s8279] sm:$0xf]
    %v8281 = vld [vmem:[%s8279 + $0x4] sm:$0xf]
    %v8282 = vld [vmem:[%s8279 + $0x8] sm:$0xf]
    %v8283 = vld [vmem:[%s8279 + $0xc] sm:$0xf]
    %v8284 = vld [vmem:[%s8279 + $0x10] sm:$0xf]
    %v8285 = vld [vmem:[%s8279 + $0x14] sm:$0xf]
    %v8286 = vld [vmem:[%s8279 + $0x18] sm:$0xf]
    %v8287 = vld [vmem:[%s8279 + $0x1c] sm:$0xf]
    %v8288 = vld [vmem:[%s8279 + $0x20] sm:$0xf]
    %v8289 = vld [vmem:[%s8279 + $0x24] sm:$0xf]
    %v8290 = vld [vmem:[%s8279 + $0x28] sm:$0xf]
    %v8291 = vld [vmem:[%s8279 + $0x2c] sm:$0xf]
    %v8292 = vld [vmem:[%s8279 + $0x30] sm:$0xf]
    %v8293 = vld [vmem:[%s8279 + $0x34] sm:$0xf]
    %v8294 = vld [vmem:[%s8279 + $0x38] sm:$0xf]
    %v8295 = vld [vmem:[%s8279 + $0x3c] sm:$0xf]
    %v8296 = vpack.c.bf16 %v7799, %v7798
    %v8297 = vpack.c.bf16 %v7801, %v7800
    %v8298 = vpack.c.bf16 %v7803, %v7802
    %v8299 = vpack.c.bf16 %v7805, %v7804
    %v8300 = vpack.c.bf16 %v7807, %v7806
    %v8301 = vpack.c.bf16 %v7809, %v7808
    %v8302 = vpack.c.bf16 %v7811, %v7810
    %v8303 = vpack.c.bf16 %v7813, %v7812
    %v8304 = vpack.c.bf16 %v7815, %v7814
    %v8305 = vpack.c.bf16 %v7817, %v7816
    %v8306 = vpack.c.bf16 %v7819, %v7818
    %v8307 = vpack.c.bf16 %v7821, %v7820
    %v8308 = vpack.c.bf16 %v7823, %v7822
    %v8309 = vpack.c.bf16 %v7825, %v7824
    %v8310 = vpack.c.bf16 %v7827, %v7826
    %v8311 = vpack.c.bf16 %v7829, %v7828
    %v8312 = vpack.c.bf16 %v7831, %v7830
    %v8313 = vpack.c.bf16 %v7833, %v7832
    %v8314 = vpack.c.bf16 %v7835, %v7834
    %v8315 = vpack.c.bf16 %v7837, %v7836
    %v8316 = vpack.c.bf16 %v7839, %v7838
    %v8317 = vpack.c.bf16 %v7841, %v7840
    %v8318 = vpack.c.bf16 %v7843, %v7842
    %v8319 = vpack.c.bf16 %v7845, %v7844
    %v8320 = vpack.c.bf16 %v7847, %v7846
    %v8321 = vpack.c.bf16 %v7849, %v7848
    %v8322 = vpack.c.bf16 %v7851, %v7850
    %v8323 = vpack.c.bf16 %v7853, %v7852
    %v8324 = vpack.c.bf16 %v7855, %v7854
    %v8325 = vpack.c.bf16 %v7857, %v7856
    %v8326 = vpack.c.bf16 %v7859, %v7858
    %v8327 = vpack.c.bf16 %v7861, %v7860
    %s8328 = scalar_lea.vmem [#allocation5], 640
    %v8329 = vld [vmem:[%s8328] sm:$0xf]
    %v8330 = vld [vmem:[%s8328 + $0x4] sm:$0xf]
    %v8331 = vld [vmem:[%s8328 + $0x8] sm:$0xf]
    %v8332 = vld [vmem:[%s8328 + $0xc] sm:$0xf]
    %v8333 = vld [vmem:[%s8328 + $0x10] sm:$0xf]
    %v8334 = vld [vmem:[%s8328 + $0x14] sm:$0xf]
    %v8335 = vld [vmem:[%s8328 + $0x18] sm:$0xf]
    %v8336 = vld [vmem:[%s8328 + $0x1c] sm:$0xf]
    %v8337 = vld [vmem:[%s8328 + $0x20] sm:$0xf]
    %v8338 = vld [vmem:[%s8328 + $0x24] sm:$0xf]
    %v8339 = vld [vmem:[%s8328 + $0x28] sm:$0xf]
    %v8340 = vld [vmem:[%s8328 + $0x2c] sm:$0xf]
    %v8341 = vld [vmem:[%s8328 + $0x30] sm:$0xf]
    %v8342 = vld [vmem:[%s8328 + $0x34] sm:$0xf]
    %v8343 = vld [vmem:[%s8328 + $0x38] sm:$0xf]
    %v8344 = vld [vmem:[%s8328 + $0x3c] sm:$0xf]
    %v8361 = vunpack.c.l.b16 %v8329
    %v8362 = vunpack.c.l.b16 %v8330
    %v8363 = vunpack.c.l.b16 %v8331
    %v8364 = vunpack.c.l.b16 %v8332
    %v8365 = vunpack.c.l.b16 %v8333
    %v8366 = vunpack.c.l.b16 %v8334
    %v8367 = vunpack.c.l.b16 %v8335
    %v8368 = vunpack.c.l.b16 %v8336
    %v8369 = vunpack.c.l.b16 %v8337
    %v8370 = vunpack.c.l.b16 %v8338
    %v8371 = vunpack.c.l.b16 %v8339
    %v8372 = vunpack.c.l.b16 %v8340
    %v8373 = vunpack.c.l.b16 %v8341
    %v8374 = vunpack.c.l.b16 %v8342
    %v8375 = vunpack.c.l.b16 %v8343
    %v8376 = vunpack.c.l.b16 %v8344
    %v8377 = vpack.c.b16 %v8362, %v8361
    %v8378 = vpack.c.b16 %v8364, %v8363
    %v8379 = vpack.c.b16 %v8366, %v8365
    %v8380 = vpack.c.b16 %v8368, %v8367
    %v8381 = vpack.c.b16 %v8370, %v8369
    %v8382 = vpack.c.b16 %v8372, %v8371
    %v8383 = vpack.c.b16 %v8374, %v8373
    %v8384 = vpack.c.b16 %v8376, %v8375
    %8393 = vmatprep.subr.bf16.mxu0 0
    %8394 = vmatpush1.bf16.msra.mxu0 %v8384
    %8395 = vmatprep.subr.bf16.mxu0 0
    %8396 = vmatpush1.bf16.msra.mxu0 %v8383
    %8397 = vmatprep.subr.bf16.mxu0 0
    %8398 = vmatpush1.bf16.msra.mxu0 %v8382
    %8399 = vmatprep.subr.bf16.mxu0 0
    %8400 = vmatpush1.bf16.msra.mxu0 %v8381
    %8401 = vmatprep.subr.bf16.mxu0 0
    %8402 = vmatpush1.bf16.msra.mxu0 %v8380
    %8403 = vmatprep.subr.bf16.mxu0 0
    %8404 = vmatpush1.bf16.msra.mxu0 %v8379
    %8405 = vmatprep.subr.bf16.mxu0 0
    %8406 = vmatpush1.bf16.msra.mxu0 %v8378
    %8407 = vmatprep.subr.bf16.mxu0 0
    %8408 = vmatpush1.bf16.msra.mxu0 %v8377
    %8409 = vmatprep.subr.bf16.mxu0 0
    %8410 = vmatpush2.bf16.msra.mxu0 0
    %8411 = vmatprep.subr.bf16.mxu0 0
    %8412 = vmatpush2.bf16.msra.mxu0 0
    %8413 = vmatprep.subr.bf16.mxu0 0
    %8414 = vmatpush2.bf16.msra.mxu0 0
    %8415 = vmatprep.subr.bf16.mxu0 0
    %8416 = vmatpush2.bf16.msra.mxu0 0
    %8417 = vmatprep.subr.bf16.mxu0 0
    %8418 = vmatpush2.bf16.msra.mxu0 0
    %8419 = vmatprep.subr.bf16.mxu0 0
    %8420 = vmatpush2.bf16.msra.mxu0 0
    %8421 = vmatprep.subr.bf16.mxu0 0
    %8422 = vmatpush2.bf16.msra.mxu0 0
    %8423 = vmatprep.subr.bf16.mxu0 0
    %8424 = vmatpush2.bf16.msra.mxu0 0
    %8425 = vmatprep.mubr.bf16.mxu0 0
    %8426 = vmatmul.mubr.bf16.gmra.mxu0 %v8296
    %v8427 = vpop.f32.mrf.mxu0
    %v8428 = vadd.f32 0.0, %v8427
    %v8429 = vpop.f32.mrf.mxu0
    %v8430 = vpop.f32.mrf.mxu0
    %v8431 = vadd.f32 0.0, %v8430
    %v8432 = vpop.f32.mrf.mxu0
    %8433 = vmatprep.mubr.bf16.mxu0 0
    %8434 = vmatmul.mubr.bf16.gmra.mxu0 %v8297
    %v8435 = vpop.f32.mrf.mxu0
    %v8436 = vadd.f32 0.0, %v8435
    %v8437 = vpop.f32.mrf.mxu0
    %v8438 = vpop.f32.mrf.mxu0
    %v8439 = vadd.f32 0.0, %v8438
    %v8440 = vpop.f32.mrf.mxu0
    %8441 = vmatprep.mubr.bf16.mxu0 0
    %8442 = vmatmul.mubr.bf16.gmra.mxu0 %v8298
    %v8443 = vpop.f32.mrf.mxu0
    %v8444 = vadd.f32 0.0, %v8443
    %v8445 = vpop.f32.mrf.mxu0
    %v8446 = vpop.f32.mrf.mxu0
    %v8447 = vadd.f32 0.0, %v8446
    %v8448 = vpop.f32.mrf.mxu0
    %8449 = vmatprep.mubr.bf16.mxu0 0
    %8450 = vmatmul.mubr.bf16.gmra.mxu0 %v8299
    %v8451 = vpop.f32.mrf.mxu0
    %v8452 = vadd.f32 0.0, %v8451
    %v8453 = vpop.f32.mrf.mxu0
    %v8454 = vpop.f32.mrf.mxu0
    %v8455 = vadd.f32 0.0, %v8454
    %v8456 = vpop.f32.mrf.mxu0
    %8457 = vmatprep.mubr.bf16.mxu0 0
    %8458 = vmatmul.mubr.bf16.gmra.mxu0 %v8300
    %v8459 = vpop.f32.mrf.mxu0
    %v8460 = vadd.f32 0.0, %v8459
    %v8461 = vpop.f32.mrf.mxu0
    %v8462 = vpop.f32.mrf.mxu0
    %v8463 = vadd.f32 0.0, %v8462
    %v8464 = vpop.f32.mrf.mxu0
    %8465 = vmatprep.mubr.bf16.mxu0 0
    %8466 = vmatmul.mubr.bf16.gmra.mxu0 %v8301
    %v8467 = vpop.f32.mrf.mxu0
    %v8468 = vadd.f32 0.0, %v8467
    %v8469 = vpop.f32.mrf.mxu0
    %v8470 = vpop.f32.mrf.mxu0
    %v8471 = vadd.f32 0.0, %v8470
    %v8472 = vpop.f32.mrf.mxu0
    %8473 = vmatprep.mubr.bf16.mxu0 0
    %8474 = vmatmul.mubr.bf16.gmra.mxu0 %v8302
    %v8475 = vpop.f32.mrf.mxu0
    %v8476 = vadd.f32 0.0, %v8475
    %v8477 = vpop.f32.mrf.mxu0
    %v8478 = vpop.f32.mrf.mxu0
    %v8479 = vadd.f32 0.0, %v8478
    %v8480 = vpop.f32.mrf.mxu0
    %8481 = vmatprep.mubr.bf16.mxu0 0
    %8482 = vmatmul.mubr.bf16.gmra.mxu0 %v8303
    %v8483 = vpop.f32.mrf.mxu0
    %v8484 = vadd.f32 0.0, %v8483
    %v8485 = vpop.f32.mrf.mxu0
    %v8486 = vpop.f32.mrf.mxu0
    %v8487 = vadd.f32 0.0, %v8486
    %v8488 = vpop.f32.mrf.mxu0
    %8489 = vmatprep.mubr.bf16.mxu0 0
    %8490 = vmatmul.mubr.bf16.gmra.mxu0 %v8304
    %v8491 = vpop.f32.mrf.mxu0
    %v8492 = vadd.f32 0.0, %v8491
    %v8493 = vpop.f32.mrf.mxu0
    %v8494 = vpop.f32.mrf.mxu0
    %v8495 = vadd.f32 0.0, %v8494
    %v8496 = vpop.f32.mrf.mxu0
    %8497 = vmatprep.mubr.bf16.mxu0 0
    %8498 = vmatmul.mubr.bf16.gmra.mxu0 %v8305
    %v8499 = vpop.f32.mrf.mxu0
    %v8500 = vadd.f32 0.0, %v8499
    %v8501 = vpop.f32.mrf.mxu0
    %v8502 = vpop.f32.mrf.mxu0
    %v8503 = vadd.f32 0.0, %v8502
    %v8504 = vpop.f32.mrf.mxu0
    %8505 = vmatprep.mubr.bf16.mxu0 0
    %8506 = vmatmul.mubr.bf16.gmra.mxu0 %v8306
    %v8507 = vpop.f32.mrf.mxu0
    %v8508 = vadd.f32 0.0, %v8507
    %v8509 = vpop.f32.mrf.mxu0
    %v8510 = vpop.f32.mrf.mxu0
    %v8511 = vadd.f32 0.0, %v8510
    %v8512 = vpop.f32.mrf.mxu0
    %8513 = vmatprep.mubr.bf16.mxu0 0
    %8514 = vmatmul.mubr.bf16.gmra.mxu0 %v8307
    %v8515 = vpop.f32.mrf.mxu0
    %v8516 = vadd.f32 0.0, %v8515
    %v8517 = vpop.f32.mrf.mxu0
    %v8518 = vpop.f32.mrf.mxu0
    %v8519 = vadd.f32 0.0, %v8518
    %v8520 = vpop.f32.mrf.mxu0
    %8521 = vmatprep.mubr.bf16.mxu0 0
    %8522 = vmatmul.mubr.bf16.gmra.mxu0 %v8308
    %v8523 = vpop.f32.mrf.mxu0
    %v8524 = vadd.f32 0.0, %v8523
    %v8525 = vpop.f32.mrf.mxu0
    %v8526 = vpop.f32.mrf.mxu0
    %v8527 = vadd.f32 0.0, %v8526
    %v8528 = vpop.f32.mrf.mxu0
    %8529 = vmatprep.mubr.bf16.mxu0 0
    %8530 = vmatmul.mubr.bf16.gmra.mxu0 %v8309
    %v8531 = vpop.f32.mrf.mxu0
    %v8532 = vadd.f32 0.0, %v8531
    %v8533 = vpop.f32.mrf.mxu0
    %v8534 = vpop.f32.mrf.mxu0
    %v8535 = vadd.f32 0.0, %v8534
    %v8536 = vpop.f32.mrf.mxu0
    %8537 = vmatprep.mubr.bf16.mxu0 0
    %8538 = vmatmul.mubr.bf16.gmra.mxu0 %v8310
    %v8539 = vpop.f32.mrf.mxu0
    %v8540 = vadd.f32 0.0, %v8539
    %v8541 = vpop.f32.mrf.mxu0
    %v8542 = vpop.f32.mrf.mxu0
    %v8543 = vadd.f32 0.0, %v8542
    %v8544 = vpop.f32.mrf.mxu0
    %8545 = vmatprep.mubr.bf16.mxu0 0
    %8546 = vmatmul.mubr.bf16.gmra.mxu0 %v8311
    %v8547 = vpop.f32.mrf.mxu0
    %v8548 = vadd.f32 0.0, %v8547
    %v8549 = vpop.f32.mrf.mxu0
    %v8550 = vpop.f32.mrf.mxu0
    %v8551 = vadd.f32 0.0, %v8550
    %v8552 = vpop.f32.mrf.mxu0
    %8553 = vmatprep.mubr.bf16.mxu0 0
    %8554 = vmatmul.mubr.bf16.gmra.mxu0 %v8312
    %v8555 = vpop.f32.mrf.mxu0
    %v8556 = vadd.f32 0.0, %v8555
    %v8557 = vpop.f32.mrf.mxu0
    %v8558 = vpop.f32.mrf.mxu0
    %v8559 = vadd.f32 0.0, %v8558
    %v8560 = vpop.f32.mrf.mxu0
    %8561 = vmatprep.mubr.bf16.mxu0 0
    %8562 = vmatmul.mubr.bf16.gmra.mxu0 %v8313
    %v8563 = vpop.f32.mrf.mxu0
    %v8564 = vadd.f32 0.0, %v8563
    %v8565 = vpop.f32.mrf.mxu0
    %v8566 = vpop.f32.mrf.mxu0
    %v8567 = vadd.f32 0.0, %v8566
    %v8568 = vpop.f32.mrf.mxu0
    %8569 = vmatprep.mubr.bf16.mxu0 0
    %8570 = vmatmul.mubr.bf16.gmra.mxu0 %v8314
    %v8571 = vpop.f32.mrf.mxu0
    %v8572 = vadd.f32 0.0, %v8571
    %v8573 = vpop.f32.mrf.mxu0
    %v8574 = vpop.f32.mrf.mxu0
    %v8575 = vadd.f32 0.0, %v8574
    %v8576 = vpop.f32.mrf.mxu0
    %8577 = vmatprep.mubr.bf16.mxu0 0
    %8578 = vmatmul.mubr.bf16.gmra.mxu0 %v8315
    %v8579 = vpop.f32.mrf.mxu0
    %v8580 = vadd.f32 0.0, %v8579
    %v8581 = vpop.f32.mrf.mxu0
    %v8582 = vpop.f32.mrf.mxu0
    %v8583 = vadd.f32 0.0, %v8582
    %v8584 = vpop.f32.mrf.mxu0
    %8585 = vmatprep.mubr.bf16.mxu0 0
    %8586 = vmatmul.mubr.bf16.gmra.mxu0 %v8316
    %v8587 = vpop.f32.mrf.mxu0
    %v8588 = vadd.f32 0.0, %v8587
    %v8589 = vpop.f32.mrf.mxu0
    %v8590 = vpop.f32.mrf.mxu0
    %v8591 = vadd.f32 0.0, %v8590
    %v8592 = vpop.f32.mrf.mxu0
    %8593 = vmatprep.mubr.bf16.mxu0 0
    %8594 = vmatmul.mubr.bf16.gmra.mxu0 %v8317
    %v8595 = vpop.f32.mrf.mxu0
    %v8596 = vadd.f32 0.0, %v8595
    %v8597 = vpop.f32.mrf.mxu0
    %v8598 = vpop.f32.mrf.mxu0
    %v8599 = vadd.f32 0.0, %v8598
    %v8600 = vpop.f32.mrf.mxu0
    %8601 = vmatprep.mubr.bf16.mxu0 0
    %8602 = vmatmul.mubr.bf16.gmra.mxu0 %v8318
    %v8603 = vpop.f32.mrf.mxu0
    %v8604 = vadd.f32 0.0, %v8603
    %v8605 = vpop.f32.mrf.mxu0
    %v8606 = vpop.f32.mrf.mxu0
    %v8607 = vadd.f32 0.0, %v8606
    %v8608 = vpop.f32.mrf.mxu0
    %8609 = vmatprep.mubr.bf16.mxu0 0
    %8610 = vmatmul.mubr.bf16.gmra.mxu0 %v8319
    %v8611 = vpop.f32.mrf.mxu0
    %v8612 = vadd.f32 0.0, %v8611
    %v8613 = vpop.f32.mrf.mxu0
    %v8614 = vpop.f32.mrf.mxu0
    %v8615 = vadd.f32 0.0, %v8614
    %v8616 = vpop.f32.mrf.mxu0
    %8617 = vmatprep.mubr.bf16.mxu0 0
    %8618 = vmatmul.mubr.bf16.gmra.mxu0 %v8320
    %v8619 = vpop.f32.mrf.mxu0
    %v8620 = vadd.f32 0.0, %v8619
    %v8621 = vpop.f32.mrf.mxu0
    %v8622 = vpop.f32.mrf.mxu0
    %v8623 = vadd.f32 0.0, %v8622
    %v8624 = vpop.f32.mrf.mxu0
    %8625 = vmatprep.mubr.bf16.mxu0 0
    %8626 = vmatmul.mubr.bf16.gmra.mxu0 %v8321
    %v8627 = vpop.f32.mrf.mxu0
    %v8628 = vadd.f32 0.0, %v8627
    %v8629 = vpop.f32.mrf.mxu0
    %v8630 = vpop.f32.mrf.mxu0
    %v8631 = vadd.f32 0.0, %v8630
    %v8632 = vpop.f32.mrf.mxu0
    %8633 = vmatprep.mubr.bf16.mxu0 0
    %8634 = vmatmul.mubr.bf16.gmra.mxu0 %v8322
    %v8635 = vpop.f32.mrf.mxu0
    %v8636 = vadd.f32 0.0, %v8635
    %v8637 = vpop.f32.mrf.mxu0
    %v8638 = vpop.f32.mrf.mxu0
    %v8639 = vadd.f32 0.0, %v8638
    %v8640 = vpop.f32.mrf.mxu0
    %8641 = vmatprep.mubr.bf16.mxu0 0
    %8642 = vmatmul.mubr.bf16.gmra.mxu0 %v8323
    %v8643 = vpop.f32.mrf.mxu0
    %v8644 = vadd.f32 0.0, %v8643
    %v8645 = vpop.f32.mrf.mxu0
    %v8646 = vpop.f32.mrf.mxu0
    %v8647 = vadd.f32 0.0, %v8646
    %v8648 = vpop.f32.mrf.mxu0
    %8649 = vmatprep.mubr.bf16.mxu0 0
    %8650 = vmatmul.mubr.bf16.gmra.mxu0 %v8324
    %v8651 = vpop.f32.mrf.mxu0
    %v8652 = vadd.f32 0.0, %v8651
    %v8653 = vpop.f32.mrf.mxu0
    %v8654 = vpop.f32.mrf.mxu0
    %v8655 = vadd.f32 0.0, %v8654
    %v8656 = vpop.f32.mrf.mxu0
    %8657 = vmatprep.mubr.bf16.mxu0 0
    %8658 = vmatmul.mubr.bf16.gmra.mxu0 %v8325
    %v8659 = vpop.f32.mrf.mxu0
    %v8660 = vadd.f32 0.0, %v8659
    %v8661 = vpop.f32.mrf.mxu0
    %v8662 = vpop.f32.mrf.mxu0
    %v8663 = vadd.f32 0.0, %v8662
    %v8664 = vpop.f32.mrf.mxu0
    %8665 = vmatprep.mubr.bf16.mxu0 0
    %8666 = vmatmul.mubr.bf16.gmra.mxu0 %v8326
    %v8667 = vpop.f32.mrf.mxu0
    %v8668 = vadd.f32 0.0, %v8667
    %v8669 = vpop.f32.mrf.mxu0
    %v8670 = vpop.f32.mrf.mxu0
    %v8671 = vadd.f32 0.0, %v8670
    %v8672 = vpop.f32.mrf.mxu0
    %8673 = vmatprep.mubr.bf16.mxu0 0
    %8674 = vmatmul.mubr.bf16.gmra.mxu0 %v8327
    %v8675 = vpop.f32.mrf.mxu0
    %v8676 = vadd.f32 0.0, %v8675
    %v8677 = vpop.f32.mrf.mxu0
    %v8678 = vpop.f32.mrf.mxu0
    %v8679 = vadd.f32 0.0, %v8678
    %v8680 = vpop.f32.mrf.mxu0
    %8681 = vdwg.mxu0
    %v8698 = vunpack.c.l.b16 %v8280
    %v8699 = vunpack.c.l.b16 %v8281
    %v8700 = vunpack.c.l.b16 %v8282
    %v8701 = vunpack.c.l.b16 %v8283
    %v8702 = vunpack.c.l.b16 %v8284
    %v8703 = vunpack.c.l.b16 %v8285
    %v8704 = vunpack.c.l.b16 %v8286
    %v8705 = vunpack.c.l.b16 %v8287
    %v8706 = vunpack.c.l.b16 %v8288
    %v8707 = vunpack.c.l.b16 %v8289
    %v8708 = vunpack.c.l.b16 %v8290
    %v8709 = vunpack.c.l.b16 %v8291
    %v8710 = vunpack.c.l.b16 %v8292
    %v8711 = vunpack.c.l.b16 %v8293
    %v8712 = vunpack.c.l.b16 %v8294
    %v8713 = vunpack.c.l.b16 %v8295
    %v8714 = vpack.c.b16 %v8699, %v8698
    %v8715 = vpack.c.b16 %v8701, %v8700
    %v8716 = vpack.c.b16 %v8703, %v8702
    %v8717 = vpack.c.b16 %v8705, %v8704
    %v8718 = vpack.c.b16 %v8707, %v8706
    %v8719 = vpack.c.b16 %v8709, %v8708
    %v8720 = vpack.c.b16 %v8711, %v8710
    %v8721 = vpack.c.b16 %v8713, %v8712
    %8730 = vmatprep.subr.bf16.mxu0 0
    %8731 = vmatpush1.bf16.msra.mxu0 %v8721
    %8732 = vmatprep.subr.bf16.mxu0 0
    %8733 = vmatpush1.bf16.msra.mxu0 %v8720
    %8734 = vmatprep.subr.bf16.mxu0 0
    %8735 = vmatpush1.bf16.msra.mxu0 %v8719
    %8736 = vmatprep.subr.bf16.mxu0 0
    %8737 = vmatpush1.bf16.msra.mxu0 %v8718
    %8738 = vmatprep.subr.bf16.mxu0 0
    %8739 = vmatpush1.bf16.msra.mxu0 %v8717
    %8740 = vmatprep.subr.bf16.mxu0 0
    %8741 = vmatpush1.bf16.msra.mxu0 %v8716
    %8742 = vmatprep.subr.bf16.mxu0 0
    %8743 = vmatpush1.bf16.msra.mxu0 %v8715
    %8744 = vmatprep.subr.bf16.mxu0 0
    %8745 = vmatpush1.bf16.msra.mxu0 %v8714
    %8746 = vmatprep.subr.bf16.mxu0 0
    %8747 = vmatpush2.bf16.msra.mxu0 0
    %8748 = vmatprep.subr.bf16.mxu0 0
    %8749 = vmatpush2.bf16.msra.mxu0 0
    %8750 = vmatprep.subr.bf16.mxu0 0
    %8751 = vmatpush2.bf16.msra.mxu0 0
    %8752 = vmatprep.subr.bf16.mxu0 0
    %8753 = vmatpush2.bf16.msra.mxu0 0
    %8754 = vmatprep.subr.bf16.mxu0 0
    %8755 = vmatpush2.bf16.msra.mxu0 0
    %8756 = vmatprep.subr.bf16.mxu0 0
    %8757 = vmatpush2.bf16.msra.mxu0 0
    %8758 = vmatprep.subr.bf16.mxu0 0
    %8759 = vmatpush2.bf16.msra.mxu0 0
    %8760 = vmatprep.subr.bf16.mxu0 0
    %8761 = vmatpush2.bf16.msra.mxu0 0
    %8762 = vmatprep.mubr.bf16.mxu0 0
    %8763 = vmatmul.mubr.bf16.gmra.mxu0 %v8247
    %v8764 = vpop.f32.mrf.mxu0
    %v8765 = vadd.f32 %v8428, %v8764
    %v8766 = vpop.f32.mrf.mxu0
    %v8767 = vpop.f32.mrf.mxu0
    %v8768 = vadd.f32 %v8431, %v8767
    %v8769 = vpop.f32.mrf.mxu0
    %8770 = vmatprep.mubr.bf16.mxu0 0
    %8771 = vmatmul.mubr.bf16.gmra.mxu0 %v8248
    %v8772 = vpop.f32.mrf.mxu0
    %v8773 = vadd.f32 %v8436, %v8772
    %v8774 = vpop.f32.mrf.mxu0
    %v8775 = vpop.f32.mrf.mxu0
    %v8776 = vadd.f32 %v8439, %v8775
    %v8777 = vpop.f32.mrf.mxu0
    %8778 = vmatprep.mubr.bf16.mxu0 0
    %8779 = vmatmul.mubr.bf16.gmra.mxu0 %v8249
    %v8780 = vpop.f32.mrf.mxu0
    %v8781 = vadd.f32 %v8444, %v8780
    %v8782 = vpop.f32.mrf.mxu0
    %v8783 = vpop.f32.mrf.mxu0
    %v8784 = vadd.f32 %v8447, %v8783
    %v8785 = vpop.f32.mrf.mxu0
    %8786 = vmatprep.mubr.bf16.mxu0 0
    %8787 = vmatmul.mubr.bf16.gmra.mxu0 %v8250
    %v8788 = vpop.f32.mrf.mxu0
    %v8789 = vadd.f32 %v8452, %v8788
    %v8790 = vpop.f32.mrf.mxu0
    %v8791 = vpop.f32.mrf.mxu0
    %v8792 = vadd.f32 %v8455, %v8791
    %v8793 = vpop.f32.mrf.mxu0
    %8794 = vmatprep.mubr.bf16.mxu0 0
    %8795 = vmatmul.mubr.bf16.gmra.mxu0 %v8251
    %v8796 = vpop.f32.mrf.mxu0
    %v8797 = vadd.f32 %v8460, %v8796
    %v8798 = vpop.f32.mrf.mxu0
    %v8799 = vpop.f32.mrf.mxu0
    %v8800 = vadd.f32 %v8463, %v8799
    %v8801 = vpop.f32.mrf.mxu0
    %8802 = vmatprep.mubr.bf16.mxu0 0
    %8803 = vmatmul.mubr.bf16.gmra.mxu0 %v8252
    %v8804 = vpop.f32.mrf.mxu0
    %v8805 = vadd.f32 %v8468, %v8804
    %v8806 = vpop.f32.mrf.mxu0
    %v8807 = vpop.f32.mrf.mxu0
    %v8808 = vadd.f32 %v8471, %v8807
    %v8809 = vpop.f32.mrf.mxu0
    %8810 = vmatprep.mubr.bf16.mxu0 0
    %8811 = vmatmul.mubr.bf16.gmra.mxu0 %v8253
    %v8812 = vpop.f32.mrf.mxu0
    %v8813 = vadd.f32 %v8476, %v8812
    %v8814 = vpop.f32.mrf.mxu0
    %v8815 = vpop.f32.mrf.mxu0
    %v8816 = vadd.f32 %v8479, %v8815
    %v8817 = vpop.f32.mrf.mxu0
    %8818 = vmatprep.mubr.bf16.mxu0 0
    %8819 = vmatmul.mubr.bf16.gmra.mxu0 %v8254
    %v8820 = vpop.f32.mrf.mxu0
    %v8821 = vadd.f32 %v8484, %v8820
    %v8822 = vpop.f32.mrf.mxu0
    %v8823 = vpop.f32.mrf.mxu0
    %v8824 = vadd.f32 %v8487, %v8823
    %v8825 = vpop.f32.mrf.mxu0
    %8826 = vmatprep.mubr.bf16.mxu0 0
    %8827 = vmatmul.mubr.bf16.gmra.mxu0 %v8255
    %v8828 = vpop.f32.mrf.mxu0
    %v8829 = vadd.f32 %v8492, %v8828
    %v8830 = vpop.f32.mrf.mxu0
    %v8831 = vpop.f32.mrf.mxu0
    %v8832 = vadd.f32 %v8495, %v8831
    %v8833 = vpop.f32.mrf.mxu0
    %8834 = vmatprep.mubr.bf16.mxu0 0
    %8835 = vmatmul.mubr.bf16.gmra.mxu0 %v8256
    %v8836 = vpop.f32.mrf.mxu0
    %v8837 = vadd.f32 %v8500, %v8836
    %v8838 = vpop.f32.mrf.mxu0
    %v8839 = vpop.f32.mrf.mxu0
    %v8840 = vadd.f32 %v8503, %v8839
    %v8841 = vpop.f32.mrf.mxu0
    %8842 = vmatprep.mubr.bf16.mxu0 0
    %8843 = vmatmul.mubr.bf16.gmra.mxu0 %v8257
    %v8844 = vpop.f32.mrf.mxu0
    %v8845 = vadd.f32 %v8508, %v8844
    %v8846 = vpop.f32.mrf.mxu0
    %v8847 = vpop.f32.mrf.mxu0
    %v8848 = vadd.f32 %v8511, %v8847
    %v8849 = vpop.f32.mrf.mxu0
    %8850 = vmatprep.mubr.bf16.mxu0 0
    %8851 = vmatmul.mubr.bf16.gmra.mxu0 %v8258
    %v8852 = vpop.f32.mrf.mxu0
    %v8853 = vadd.f32 %v8516, %v8852
    %v8854 = vpop.f32.mrf.mxu0
    %v8855 = vpop.f32.mrf.mxu0
    %v8856 = vadd.f32 %v8519, %v8855
    %v8857 = vpop.f32.mrf.mxu0
    %8858 = vmatprep.mubr.bf16.mxu0 0
    %8859 = vmatmul.mubr.bf16.gmra.mxu0 %v8259
    %v8860 = vpop.f32.mrf.mxu0
    %v8861 = vadd.f32 %v8524, %v8860
    %v8862 = vpop.f32.mrf.mxu0
    %v8863 = vpop.f32.mrf.mxu0
    %v8864 = vadd.f32 %v8527, %v8863
    %v8865 = vpop.f32.mrf.mxu0
    %8866 = vmatprep.mubr.bf16.mxu0 0
    %8867 = vmatmul.mubr.bf16.gmra.mxu0 %v8260
    %v8868 = vpop.f32.mrf.mxu0
    %v8869 = vadd.f32 %v8532, %v8868
    %v8870 = vpop.f32.mrf.mxu0
    %v8871 = vpop.f32.mrf.mxu0
    %v8872 = vadd.f32 %v8535, %v8871
    %v8873 = vpop.f32.mrf.mxu0
    %8874 = vmatprep.mubr.bf16.mxu0 0
    %8875 = vmatmul.mubr.bf16.gmra.mxu0 %v8261
    %v8876 = vpop.f32.mrf.mxu0
    %v8877 = vadd.f32 %v8540, %v8876
    %v8878 = vpop.f32.mrf.mxu0
    %v8879 = vpop.f32.mrf.mxu0
    %v8880 = vadd.f32 %v8543, %v8879
    %v8881 = vpop.f32.mrf.mxu0
    %8882 = vmatprep.mubr.bf16.mxu0 0
    %8883 = vmatmul.mubr.bf16.gmra.mxu0 %v8262
    %v8884 = vpop.f32.mrf.mxu0
    %v8885 = vadd.f32 %v8548, %v8884
    %v8886 = vpop.f32.mrf.mxu0
    %v8887 = vpop.f32.mrf.mxu0
    %v8888 = vadd.f32 %v8551, %v8887
    %v8889 = vpop.f32.mrf.mxu0
    %8890 = vmatprep.mubr.bf16.mxu0 0
    %8891 = vmatmul.mubr.bf16.gmra.mxu0 %v8263
    %v8892 = vpop.f32.mrf.mxu0
    %v8893 = vadd.f32 %v8556, %v8892
    %v8894 = vpop.f32.mrf.mxu0
    %v8895 = vpop.f32.mrf.mxu0
    %v8896 = vadd.f32 %v8559, %v8895
    %v8897 = vpop.f32.mrf.mxu0
    %8898 = vmatprep.mubr.bf16.mxu0 0
    %8899 = vmatmul.mubr.bf16.gmra.mxu0 %v8264
    %v8900 = vpop.f32.mrf.mxu0
    %v8901 = vadd.f32 %v8564, %v8900
    %v8902 = vpop.f32.mrf.mxu0
    %v8903 = vpop.f32.mrf.mxu0
    %v8904 = vadd.f32 %v8567, %v8903
    %v8905 = vpop.f32.mrf.mxu0
    %8906 = vmatprep.mubr.bf16.mxu0 0
    %8907 = vmatmul.mubr.bf16.gmra.mxu0 %v8265
    %v8908 = vpop.f32.mrf.mxu0
    %v8909 = vadd.f32 %v8572, %v8908
    %v8910 = vpop.f32.mrf.mxu0
    %v8911 = vpop.f32.mrf.mxu0
    %v8912 = vadd.f32 %v8575, %v8911
    %v8913 = vpop.f32.mrf.mxu0
    %8914 = vmatprep.mubr.bf16.mxu0 0
    %8915 = vmatmul.mubr.bf16.gmra.mxu0 %v8266
    %v8916 = vpop.f32.mrf.mxu0
    %v8917 = vadd.f32 %v8580, %v8916
    %v8918 = vpop.f32.mrf.mxu0
    %v8919 = vpop.f32.mrf.mxu0
    %v8920 = vadd.f32 %v8583, %v8919
    %v8921 = vpop.f32.mrf.mxu0
    %8922 = vmatprep.mubr.bf16.mxu0 0
    %8923 = vmatmul.mubr.bf16.gmra.mxu0 %v8267
    %v8924 = vpop.f32.mrf.mxu0
    %v8925 = vadd.f32 %v8588, %v8924
    %v8926 = vpop.f32.mrf.mxu0
    %v8927 = vpop.f32.mrf.mxu0
    %v8928 = vadd.f32 %v8591, %v8927
    %v8929 = vpop.f32.mrf.mxu0
    %8930 = vmatprep.mubr.bf16.mxu0 0
    %8931 = vmatmul.mubr.bf16.gmra.mxu0 %v8268
    %v8932 = vpop.f32.mrf.mxu0
    %v8933 = vadd.f32 %v8596, %v8932
    %v8934 = vpop.f32.mrf.mxu0
    %v8935 = vpop.f32.mrf.mxu0
    %v8936 = vadd.f32 %v8599, %v8935
    %v8937 = vpop.f32.mrf.mxu0
    %8938 = vmatprep.mubr.bf16.mxu0 0
    %8939 = vmatmul.mubr.bf16.gmra.mxu0 %v8269
    %v8940 = vpop.f32.mrf.mxu0
    %v8941 = vadd.f32 %v8604, %v8940
    %v8942 = vpop.f32.mrf.mxu0
    %v8943 = vpop.f32.mrf.mxu0
    %v8944 = vadd.f32 %v8607, %v8943
    %v8945 = vpop.f32.mrf.mxu0
    %8946 = vmatprep.mubr.bf16.mxu0 0
    %8947 = vmatmul.mubr.bf16.gmra.mxu0 %v8270
    %v8948 = vpop.f32.mrf.mxu0
    %v8949 = vadd.f32 %v8612, %v8948
    %v8950 = vpop.f32.mrf.mxu0
    %v8951 = vpop.f32.mrf.mxu0
    %v8952 = vadd.f32 %v8615, %v8951
    %v8953 = vpop.f32.mrf.mxu0
    %8954 = vmatprep.mubr.bf16.mxu0 0
    %8955 = vmatmul.mubr.bf16.gmra.mxu0 %v8271
    %v8956 = vpop.f32.mrf.mxu0
    %v8957 = vadd.f32 %v8620, %v8956
    %v8958 = vpop.f32.mrf.mxu0
    %v8959 = vpop.f32.mrf.mxu0
    %v8960 = vadd.f32 %v8623, %v8959
    %v8961 = vpop.f32.mrf.mxu0
    %8962 = vmatprep.mubr.bf16.mxu0 0
    %8963 = vmatmul.mubr.bf16.gmra.mxu0 %v8272
    %v8964 = vpop.f32.mrf.mxu0
    %v8965 = vadd.f32 %v8628, %v8964
    %v8966 = vpop.f32.mrf.mxu0
    %v8967 = vpop.f32.mrf.mxu0
    %v8968 = vadd.f32 %v8631, %v8967
    %v8969 = vpop.f32.mrf.mxu0
    %8970 = vmatprep.mubr.bf16.mxu0 0
    %8971 = vmatmul.mubr.bf16.gmra.mxu0 %v8273
    %v8972 = vpop.f32.mrf.mxu0
    %v8973 = vadd.f32 %v8636, %v8972
    %v8974 = vpop.f32.mrf.mxu0
    %v8975 = vpop.f32.mrf.mxu0
    %v8976 = vadd.f32 %v8639, %v8975
    %v8977 = vpop.f32.mrf.mxu0
    %8978 = vmatprep.mubr.bf16.mxu0 0
    %8979 = vmatmul.mubr.bf16.gmra.mxu0 %v8274
    %v8980 = vpop.f32.mrf.mxu0
    %v8981 = vadd.f32 %v8644, %v8980
    %v8982 = vpop.f32.mrf.mxu0
    %v8983 = vpop.f32.mrf.mxu0
    %v8984 = vadd.f32 %v8647, %v8983
    %v8985 = vpop.f32.mrf.mxu0
    %8986 = vmatprep.mubr.bf16.mxu0 0
    %8987 = vmatmul.mubr.bf16.gmra.mxu0 %v8275
    %v8988 = vpop.f32.mrf.mxu0
    %v8989 = vadd.f32 %v8652, %v8988
    %v8990 = vpop.f32.mrf.mxu0
    %v8991 = vpop.f32.mrf.mxu0
    %v8992 = vadd.f32 %v8655, %v8991
    %v8993 = vpop.f32.mrf.mxu0
    %8994 = vmatprep.mubr.bf16.mxu0 0
    %8995 = vmatmul.mubr.bf16.gmra.mxu0 %v8276
    %v8996 = vpop.f32.mrf.mxu0
    %v8997 = vadd.f32 %v8660, %v8996
    %v8998 = vpop.f32.mrf.mxu0
    %v8999 = vpop.f32.mrf.mxu0
    %v9000 = vadd.f32 %v8663, %v8999
    %v9001 = vpop.f32.mrf.mxu0
    %9002 = vmatprep.mubr.bf16.mxu0 0
    %9003 = vmatmul.mubr.bf16.gmra.mxu0 %v8277
    %v9004 = vpop.f32.mrf.mxu0
    %v9005 = vadd.f32 %v8668, %v9004
    %v9006 = vpop.f32.mrf.mxu0
    %v9007 = vpop.f32.mrf.mxu0
    %v9008 = vadd.f32 %v8671, %v9007
    %v9009 = vpop.f32.mrf.mxu0
    %9010 = vmatprep.mubr.bf16.mxu0 0
    %9011 = vmatmul.mubr.bf16.gmra.mxu0 %v8278
    %v9012 = vpop.f32.mrf.mxu0
    %v9013 = vadd.f32 %v8676, %v9012
    %v9014 = vpop.f32.mrf.mxu0
    %v9015 = vpop.f32.mrf.mxu0
    %v9016 = vadd.f32 %v8679, %v9015
    %v9017 = vpop.f32.mrf.mxu0
    %9018 = vdwg.mxu0
    %v9019 = vrot.slane %v7798, 2
    %v9020 = vrot.slane %v7799, 2
    %v9021 = vrot.slane %v7800, 2
    %v9022 = vrot.slane %v7801, 2
    %v9023 = vrot.slane %v7802, 2
    %v9024 = vrot.slane %v7803, 2
    %v9025 = vrot.slane %v7804, 2
    %v9026 = vrot.slane %v7805, 2
    %v9027 = vrot.slane %v7806, 2
    %v9028 = vrot.slane %v7807, 2
    %v9029 = vrot.slane %v7808, 2
    %v9030 = vrot.slane %v7809, 2
    %v9031 = vrot.slane %v7810, 2
    %v9032 = vrot.slane %v7811, 2
    %v9033 = vrot.slane %v7812, 2
    %v9034 = vrot.slane %v7813, 2
    %v9035 = vrot.slane %v7814, 2
    %v9036 = vrot.slane %v7815, 2
    %v9037 = vrot.slane %v7816, 2
    %v9038 = vrot.slane %v7817, 2
    %v9039 = vrot.slane %v7818, 2
    %v9040 = vrot.slane %v7819, 2
    %v9041 = vrot.slane %v7820, 2
    %v9042 = vrot.slane %v7821, 2
    %v9043 = vrot.slane %v7822, 2
    %v9044 = vrot.slane %v7823, 2
    %v9045 = vrot.slane %v7824, 2
    %v9046 = vrot.slane %v7825, 2
    %v9047 = vrot.slane %v7826, 2
    %v9048 = vrot.slane %v7827, 2
    %v9049 = vrot.slane %v7828, 2
    %v9050 = vrot.slane %v7829, 2
    %v9051 = vrot.slane %v7830, 2
    %v9052 = vrot.slane %v7831, 2
    %v9053 = vrot.slane %v7832, 2
    %v9054 = vrot.slane %v7833, 2
    %v9055 = vrot.slane %v7834, 2
    %v9056 = vrot.slane %v7835, 2
    %v9057 = vrot.slane %v7836, 2
    %v9058 = vrot.slane %v7837, 2
    %v9059 = vrot.slane %v7838, 2
    %v9060 = vrot.slane %v7839, 2
    %v9061 = vrot.slane %v7840, 2
    %v9062 = vrot.slane %v7841, 2
    %v9063 = vrot.slane %v7842, 2
    %v9064 = vrot.slane %v7843, 2
    %v9065 = vrot.slane %v7844, 2
    %v9066 = vrot.slane %v7845, 2
    %v9067 = vrot.slane %v7846, 2
    %v9068 = vrot.slane %v7847, 2
    %v9069 = vrot.slane %v7848, 2
    %v9070 = vrot.slane %v7849, 2
    %v9071 = vrot.slane %v7850, 2
    %v9072 = vrot.slane %v7851, 2
    %v9073 = vrot.slane %v7852, 2
    %v9074 = vrot.slane %v7853, 2
    %v9075 = vrot.slane %v7854, 2
    %v9076 = vrot.slane %v7855, 2
    %v9077 = vrot.slane %v7856, 2
    %v9078 = vrot.slane %v7857, 2
    %v9079 = vrot.slane %v7858, 2
    %v9080 = vrot.slane %v7859, 2
    %v9081 = vrot.slane %v7860, 2
    %v9082 = vrot.slane %v7861, 2
    %vm9083 = vcmp.lt.s32.totalorder %v45, 6
    %v9084 = vsel %vm9083, %v9081, %v9082
    %v9085 = vsel %vm9083, %v9080, %v9081
    %v9086 = vsel %vm9083, %v9079, %v9080
    %v9087 = vsel %vm9083, %v9078, %v9079
    %v9088 = vsel %vm9083, %v9077, %v9078
    %v9089 = vsel %vm9083, %v9076, %v9077
    %v9090 = vsel %vm9083, %v9075, %v9076
    %v9091 = vsel %vm9083, %v9074, %v9075
    %v9092 = vsel %vm9083, %v9073, %v9074
    %v9093 = vsel %vm9083, %v9072, %v9073
    %v9094 = vsel %vm9083, %v9071, %v9072
    %v9095 = vsel %vm9083, %v9070, %v9071
    %v9096 = vsel %vm9083, %v9069, %v9070
    %v9097 = vsel %vm9083, %v9068, %v9069
    %v9098 = vsel %vm9083, %v9067, %v9068
    %v9099 = vsel %vm9083, %v9066, %v9067
    %v9100 = vsel %vm9083, %v9065, %v9066
    %v9101 = vsel %vm9083, %v9064, %v9065
    %v9102 = vsel %vm9083, %v9063, %v9064
    %v9103 = vsel %vm9083, %v9062, %v9063
    %v9104 = vsel %vm9083, %v9061, %v9062
    %v9105 = vsel %vm9083, %v9060, %v9061
    %v9106 = vsel %vm9083, %v9059, %v9060
    %v9107 = vsel %vm9083, %v9058, %v9059
    %v9108 = vsel %vm9083, %v9057, %v9058
    %v9109 = vsel %vm9083, %v9056, %v9057
    %v9110 = vsel %vm9083, %v9055, %v9056
    %v9111 = vsel %vm9083, %v9054, %v9055
    %v9112 = vsel %vm9083, %v9053, %v9054
    %v9113 = vsel %vm9083, %v9052, %v9053
    %v9114 = vsel %vm9083, %v9051, %v9052
    %v9115 = vsel %vm9083, %v9050, %v9051
    %v9116 = vsel %vm9083, %v9049, %v9050
    %v9117 = vsel %vm9083, %v9048, %v9049
    %v9118 = vsel %vm9083, %v9047, %v9048
    %v9119 = vsel %vm9083, %v9046, %v9047
    %v9120 = vsel %vm9083, %v9045, %v9046
    %v9121 = vsel %vm9083, %v9044, %v9045
    %v9122 = vsel %vm9083, %v9043, %v9044
    %v9123 = vsel %vm9083, %v9042, %v9043
    %v9124 = vsel %vm9083, %v9041, %v9042
    %v9125 = vsel %vm9083, %v9040, %v9041
    %v9126 = vsel %vm9083, %v9039, %v9040
    %v9127 = vsel %vm9083, %v9038, %v9039
    %v9128 = vsel %vm9083, %v9037, %v9038
    %v9129 = vsel %vm9083, %v9036, %v9037
    %v9130 = vsel %vm9083, %v9035, %v9036
    %v9131 = vsel %vm9083, %v9034, %v9035
    %v9132 = vsel %vm9083, %v9033, %v9034
    %v9133 = vsel %vm9083, %v9032, %v9033
    %v9134 = vsel %vm9083, %v9031, %v9032
    %v9135 = vsel %vm9083, %v9030, %v9031
    %v9136 = vsel %vm9083, %v9029, %v9030
    %v9137 = vsel %vm9083, %v9028, %v9029
    %v9138 = vsel %vm9083, %v9027, %v9028
    %v9139 = vsel %vm9083, %v9026, %v9027
    %v9140 = vsel %vm9083, %v9025, %v9026
    %v9141 = vsel %vm9083, %v9024, %v9025
    %v9142 = vsel %vm9083, %v9023, %v9024
    %v9143 = vsel %vm9083, %v9022, %v9023
    %v9144 = vsel %vm9083, %v9021, %v9022
    %v9145 = vsel %vm9083, %v9020, %v9021
    %v9146 = vsel %vm9083, %v9019, %v9020
    %v9147 = vsel %vm9083, %v9082, %v9019
    %vm9148 = vcmp.lt.s32.totalorder %v1581, 14
    %vm9149 = vcmp.lt.s32.totalorder %v1582, 14
    %vm9150 = vcmp.lt.s32.totalorder %v1583, 14
    %vm9151 = vcmp.lt.s32.totalorder %v1584, 14
    %vm9152 = vcmp.lt.s32.totalorder %v1585, 14
    %vm9153 = vcmp.lt.s32.totalorder %v1586, 14
    %vm9154 = vcmp.lt.s32.totalorder %v1587, 14
    %vm9155 = vcmp.lt.s32.totalorder %v1588, 14
    %vm9156 = vcmp.lt.s32.totalorder %v1589, 14
    %vm9157 = vcmp.lt.s32.totalorder %v1590, 14
    %vm9158 = vcmp.lt.s32.totalorder %v1591, 14
    %vm9159 = vcmp.lt.s32.totalorder %v1592, 14
    %vm9160 = vcmp.lt.s32.totalorder %v1593, 14
    %vm9161 = vcmp.lt.s32.totalorder %v1594, 14
    %vm9162 = vcmp.lt.s32.totalorder %v1595, 14
    %vm9163 = vcmp.lt.s32.totalorder %v1596, 14
    %vm9164 = vcmp.lt.s32.totalorder %v1597, 14
    %vm9165 = vcmp.lt.s32.totalorder %v1598, 14
    %vm9166 = vcmp.lt.s32.totalorder %v1599, 14
    %vm9167 = vcmp.lt.s32.totalorder %v1600, 14
    %vm9168 = vcmp.lt.s32.totalorder %v1601, 14
    %vm9169 = vcmp.lt.s32.totalorder %v1602, 14
    %vm9170 = vcmp.lt.s32.totalorder %v1603, 14
    %vm9171 = vcmp.lt.s32.totalorder %v1604, 14
    %vm9172 = vcmp.lt.s32.totalorder %v1605, 14
    %vm9173 = vcmp.lt.s32.totalorder %v1606, 14
    %vm9174 = vcmp.lt.s32.totalorder %v1607, 14
    %vm9175 = vcmp.lt.s32.totalorder %v1608, 14
    %vm9176 = vcmp.lt.s32.totalorder %v1609, 14
    %vm9177 = vcmp.lt.s32.totalorder %v1610, 14
    %vm9178 = vcmp.lt.s32.totalorder %v1611, 14
    %vm9179 = vcmp.lt.s32.totalorder %v1612, 14
    %vm9180 = vcmp.lt.s32.totalorder %v1613, 14
    %vm9181 = vcmp.lt.s32.totalorder %v1614, 14
    %vm9182 = vcmp.lt.s32.totalorder %v1615, 14
    %vm9183 = vcmp.lt.s32.totalorder %v1616, 14
    %vm9184 = vcmp.lt.s32.totalorder %v1617, 14
    %vm9185 = vcmp.lt.s32.totalorder %v1618, 14
    %vm9186 = vcmp.lt.s32.totalorder %v1619, 14
    %vm9187 = vcmp.lt.s32.totalorder %v1620, 14
    %vm9188 = vcmp.lt.s32.totalorder %v1621, 14
    %vm9189 = vcmp.lt.s32.totalorder %v1622, 14
    %vm9190 = vcmp.lt.s32.totalorder %v1623, 14
    %vm9191 = vcmp.lt.s32.totalorder %v1624, 14
    %vm9192 = vcmp.lt.s32.totalorder %v1625, 14
    %vm9193 = vcmp.lt.s32.totalorder %v1626, 14
    %vm9194 = vcmp.lt.s32.totalorder %v1627, 14
    %vm9195 = vcmp.lt.s32.totalorder %v1628, 14
    %vm9196 = vcmp.lt.s32.totalorder %v1629, 14
    %vm9197 = vcmp.lt.s32.totalorder %v1630, 14
    %vm9198 = vcmp.lt.s32.totalorder %v1631, 14
    %vm9199 = vcmp.lt.s32.totalorder %v1632, 14
    %vm9200 = vcmp.lt.s32.totalorder %v1633, 14
    %vm9201 = vcmp.lt.s32.totalorder %v1634, 14
    %vm9202 = vcmp.lt.s32.totalorder %v1635, 14
    %vm9203 = vcmp.lt.s32.totalorder %v1636, 14
    %vm9204 = vcmp.lt.s32.totalorder %v1637, 14
    %vm9205 = vcmp.lt.s32.totalorder %v1638, 14
    %vm9206 = vcmp.lt.s32.totalorder %v1639, 14
    %vm9207 = vcmp.lt.s32.totalorder %v1640, 14
    %vm9208 = vcmp.lt.s32.totalorder %v1641, 14
    %vm9209 = vcmp.lt.s32.totalorder %v1642, 14
    %vm9210 = vcmp.lt.s32.totalorder %v1643, 14
    %vm9211 = vcmp.lt.s32.totalorder %v1644, 14
    %v9212 = vsel %vm9148, 1, 0
    %v9213 = vsel %vm9149, 1, 0
    %v9214 = vsel %vm9150, 1, 0
    %v9215 = vsel %vm9151, 1, 0
    %v9216 = vsel %vm9152, 1, 0
    %v9217 = vsel %vm9153, 1, 0
    %v9218 = vsel %vm9154, 1, 0
    %v9219 = vsel %vm9155, 1, 0
    %v9220 = vsel %vm9156, 1, 0
    %v9221 = vsel %vm9157, 1, 0
    %v9222 = vsel %vm9158, 1, 0
    %v9223 = vsel %vm9159, 1, 0
    %v9224 = vsel %vm9160, 1, 0
    %v9225 = vsel %vm9161, 1, 0
    %v9226 = vsel %vm9162, 1, 0
    %v9227 = vsel %vm9163, 1, 0
    %v9228 = vsel %vm9164, 1, 0
    %v9229 = vsel %vm9165, 1, 0
    %v9230 = vsel %vm9166, 1, 0
    %v9231 = vsel %vm9167, 1, 0
    %v9232 = vsel %vm9168, 1, 0
    %v9233 = vsel %vm9169, 1, 0
    %v9234 = vsel %vm9170, 1, 0
    %v9235 = vsel %vm9171, 1, 0
    %v9236 = vsel %vm9172, 1, 0
    %v9237 = vsel %vm9173, 1, 0
    %v9238 = vsel %vm9174, 1, 0
    %v9239 = vsel %vm9175, 1, 0
    %v9240 = vsel %vm9176, 1, 0
    %v9241 = vsel %vm9177, 1, 0
    %v9242 = vsel %vm9178, 1, 0
    %v9243 = vsel %vm9179, 1, 0
    %v9244 = vsel %vm9180, 1, 0
    %v9245 = vsel %vm9181, 1, 0
    %v9246 = vsel %vm9182, 1, 0
    %v9247 = vsel %vm9183, 1, 0
    %v9248 = vsel %vm9184, 1, 0
    %v9249 = vsel %vm9185, 1, 0
    %v9250 = vsel %vm9186, 1, 0
    %v9251 = vsel %vm9187, 1, 0
    %v9252 = vsel %vm9188, 1, 0
    %v9253 = vsel %vm9189, 1, 0
    %v9254 = vsel %vm9190, 1, 0
    %v9255 = vsel %vm9191, 1, 0
    %v9256 = vsel %vm9192, 1, 0
    %v9257 = vsel %vm9193, 1, 0
    %v9258 = vsel %vm9194, 1, 0
    %v9259 = vsel %vm9195, 1, 0
    %v9260 = vsel %vm9196, 1, 0
    %v9261 = vsel %vm9197, 1, 0
    %v9262 = vsel %vm9198, 1, 0
    %v9263 = vsel %vm9199, 1, 0
    %v9264 = vsel %vm9200, 1, 0
    %v9265 = vsel %vm9201, 1, 0
    %v9266 = vsel %vm9202, 1, 0
    %v9267 = vsel %vm9203, 1, 0
    %v9268 = vsel %vm9204, 1, 0
    %v9269 = vsel %vm9205, 1, 0
    %v9270 = vsel %vm9206, 1, 0
    %v9271 = vsel %vm9207, 1, 0
    %v9272 = vsel %vm9208, 1, 0
    %v9273 = vsel %vm9209, 1, 0
    %v9274 = vsel %vm9210, 1, 0
    %v9275 = vsel %vm9211, 1, 0
    %v9276 = vcvt.s32.f32 %v9212
    %v9277 = vcvt.s32.f32 %v9213
    %v9278 = vcvt.s32.f32 %v9214
    %v9279 = vcvt.s32.f32 %v9215
    %v9280 = vcvt.s32.f32 %v9216
    %v9281 = vcvt.s32.f32 %v9217
    %v9282 = vcvt.s32.f32 %v9218
    %v9283 = vcvt.s32.f32 %v9219
    %v9284 = vcvt.s32.f32 %v9220
    %v9285 = vcvt.s32.f32 %v9221
    %v9286 = vcvt.s32.f32 %v9222
    %v9287 = vcvt.s32.f32 %v9223
    %v9288 = vcvt.s32.f32 %v9224
    %v9289 = vcvt.s32.f32 %v9225
    %v9290 = vcvt.s32.f32 %v9226
    %v9291 = vcvt.s32.f32 %v9227
    %v9292 = vcvt.s32.f32 %v9228
    %v9293 = vcvt.s32.f32 %v9229
    %v9294 = vcvt.s32.f32 %v9230
    %v9295 = vcvt.s32.f32 %v9231
    %v9296 = vcvt.s32.f32 %v9232
    %v9297 = vcvt.s32.f32 %v9233
    %v9298 = vcvt.s32.f32 %v9234
    %v9299 = vcvt.s32.f32 %v9235
    %v9300 = vcvt.s32.f32 %v9236
    %v9301 = vcvt.s32.f32 %v9237
    %v9302 = vcvt.s32.f32 %v9238
    %v9303 = vcvt.s32.f32 %v9239
    %v9304 = vcvt.s32.f32 %v9240
    %v9305 = vcvt.s32.f32 %v9241
    %v9306 = vcvt.s32.f32 %v9242
    %v9307 = vcvt.s32.f32 %v9243
    %v9308 = vcvt.s32.f32 %v9244
    %v9309 = vcvt.s32.f32 %v9245
    %v9310 = vcvt.s32.f32 %v9246
    %v9311 = vcvt.s32.f32 %v9247
    %v9312 = vcvt.s32.f32 %v9248
    %v9313 = vcvt.s32.f32 %v9249
    %v9314 = vcvt.s32.f32 %v9250
    %v9315 = vcvt.s32.f32 %v9251
    %v9316 = vcvt.s32.f32 %v9252
    %v9317 = vcvt.s32.f32 %v9253
    %v9318 = vcvt.s32.f32 %v9254
    %v9319 = vcvt.s32.f32 %v9255
    %v9320 = vcvt.s32.f32 %v9256
    %v9321 = vcvt.s32.f32 %v9257
    %v9322 = vcvt.s32.f32 %v9258
    %v9323 = vcvt.s32.f32 %v9259
    %v9324 = vcvt.s32.f32 %v9260
    %v9325 = vcvt.s32.f32 %v9261
    %v9326 = vcvt.s32.f32 %v9262
    %v9327 = vcvt.s32.f32 %v9263
    %v9328 = vcvt.s32.f32 %v9264
    %v9329 = vcvt.s32.f32 %v9265
    %v9330 = vcvt.s32.f32 %v9266
    %v9331 = vcvt.s32.f32 %v9267
    %v9332 = vcvt.s32.f32 %v9268
    %v9333 = vcvt.s32.f32 %v9269
    %v9334 = vcvt.s32.f32 %v9270
    %v9335 = vcvt.s32.f32 %v9271
    %v9336 = vcvt.s32.f32 %v9272
    %v9337 = vcvt.s32.f32 %v9273
    %v9338 = vcvt.s32.f32 %v9274
    %v9339 = vcvt.s32.f32 %v9275
    %v9340 = vmul.f32 %v9146, %v9276
    %v9341 = vmul.f32 %v9145, %v9277
    %v9342 = vmul.f32 %v9144, %v9278
    %v9343 = vmul.f32 %v9143, %v9279
    %v9344 = vmul.f32 %v9142, %v9280
    %v9345 = vmul.f32 %v9141, %v9281
    %v9346 = vmul.f32 %v9140, %v9282
    %v9347 = vmul.f32 %v9139, %v9283
    %v9348 = vmul.f32 %v9138, %v9284
    %v9349 = vmul.f32 %v9137, %v9285
    %v9350 = vmul.f32 %v9136, %v9286
    %v9351 = vmul.f32 %v9135, %v9287
    %v9352 = vmul.f32 %v9134, %v9288
    %v9353 = vmul.f32 %v9133, %v9289
    %v9354 = vmul.f32 %v9132, %v9290
    %v9355 = vmul.f32 %v9131, %v9291
    %v9356 = vmul.f32 %v9130, %v9292
    %v9357 = vmul.f32 %v9129, %v9293
    %v9358 = vmul.f32 %v9128, %v9294
    %v9359 = vmul.f32 %v9127, %v9295
    %v9360 = vmul.f32 %v9126, %v9296
    %v9361 = vmul.f32 %v9125, %v9297
    %v9362 = vmul.f32 %v9124, %v9298
    %v9363 = vmul.f32 %v9123, %v9299
    %v9364 = vmul.f32 %v9122, %v9300
    %v9365 = vmul.f32 %v9121, %v9301
    %v9366 = vmul.f32 %v9120, %v9302
    %v9367 = vmul.f32 %v9119, %v9303
    %v9368 = vmul.f32 %v9118, %v9304
    %v9369 = vmul.f32 %v9117, %v9305
    %v9370 = vmul.f32 %v9116, %v9306
    %v9371 = vmul.f32 %v9115, %v9307
    %v9372 = vmul.f32 %v9114, %v9308
    %v9373 = vmul.f32 %v9113, %v9309
    %v9374 = vmul.f32 %v9112, %v9310
    %v9375 = vmul.f32 %v9111, %v9311
    %v9376 = vmul.f32 %v9110, %v9312
    %v9377 = vmul.f32 %v9109, %v9313
    %v9378 = vmul.f32 %v9108, %v9314
    %v9379 = vmul.f32 %v9107, %v9315
    %v9380 = vmul.f32 %v9106, %v9316
    %v9381 = vmul.f32 %v9105, %v9317
    %v9382 = vmul.f32 %v9104, %v9318
    %v9383 = vmul.f32 %v9103, %v9319
    %v9384 = vmul.f32 %v9102, %v9320
    %v9385 = vmul.f32 %v9101, %v9321
    %v9386 = vmul.f32 %v9100, %v9322
    %v9387 = vmul.f32 %v9099, %v9323
    %v9388 = vmul.f32 %v9098, %v9324
    %v9389 = vmul.f32 %v9097, %v9325
    %v9390 = vmul.f32 %v9096, %v9326
    %v9391 = vmul.f32 %v9095, %v9327
    %v9392 = vmul.f32 %v9094, %v9328
    %v9393 = vmul.f32 %v9093, %v9329
    %v9394 = vmul.f32 %v9092, %v9330
    %v9395 = vmul.f32 %v9091, %v9331
    %v9396 = vmul.f32 %v9090, %v9332
    %v9397 = vmul.f32 %v9089, %v9333
    %v9398 = vmul.f32 %v9088, %v9334
    %v9399 = vmul.f32 %v9087, %v9335
    %v9400 = vmul.f32 %v9086, %v9336
    %v9401 = vmul.f32 %v9085, %v9337
    %v9402 = vmul.f32 %v9084, %v9338
    %v9403 = vmul.f32 %v9147, %v9339
    %v9404 = vpack.c.bf16 %v9341, %v9340
    %v9405 = vpack.c.bf16 %v9343, %v9342
    %v9406 = vpack.c.bf16 %v9345, %v9344
    %v9407 = vpack.c.bf16 %v9347, %v9346
    %v9408 = vpack.c.bf16 %v9349, %v9348
    %v9409 = vpack.c.bf16 %v9351, %v9350
    %v9410 = vpack.c.bf16 %v9353, %v9352
    %v9411 = vpack.c.bf16 %v9355, %v9354
    %v9412 = vpack.c.bf16 %v9357, %v9356
    %v9413 = vpack.c.bf16 %v9359, %v9358
    %v9414 = vpack.c.bf16 %v9361, %v9360
    %v9415 = vpack.c.bf16 %v9363, %v9362
    %v9416 = vpack.c.bf16 %v9365, %v9364
    %v9417 = vpack.c.bf16 %v9367, %v9366
    %v9418 = vpack.c.bf16 %v9369, %v9368
    %v9419 = vpack.c.bf16 %v9371, %v9370
    %v9420 = vpack.c.bf16 %v9373, %v9372
    %v9421 = vpack.c.bf16 %v9375, %v9374
    %v9422 = vpack.c.bf16 %v9377, %v9376
    %v9423 = vpack.c.bf16 %v9379, %v9378
    %v9424 = vpack.c.bf16 %v9381, %v9380
    %v9425 = vpack.c.bf16 %v9383, %v9382
    %v9426 = vpack.c.bf16 %v9385, %v9384
    %v9427 = vpack.c.bf16 %v9387, %v9386
    %v9428 = vpack.c.bf16 %v9389, %v9388
    %v9429 = vpack.c.bf16 %v9391, %v9390
    %v9430 = vpack.c.bf16 %v9393, %v9392
    %v9431 = vpack.c.bf16 %v9395, %v9394
    %v9432 = vpack.c.bf16 %v9397, %v9396
    %v9433 = vpack.c.bf16 %v9399, %v9398
    %v9434 = vpack.c.bf16 %v9401, %v9400
    %v9435 = vpack.c.bf16 %v9403, %v9402
    %s9436 = scalar_lea.vmem [#allocation5], 704
    %v9437 = vld [vmem:[%s9436] sm:$0xf]
    %v9438 = vld [vmem:[%s9436 + $0x4] sm:$0xf]
    %v9439 = vld [vmem:[%s9436 + $0x8] sm:$0xf]
    %v9440 = vld [vmem:[%s9436 + $0xc] sm:$0xf]
    %v9441 = vld [vmem:[%s9436 + $0x10] sm:$0xf]
    %v9442 = vld [vmem:[%s9436 + $0x14] sm:$0xf]
    %v9443 = vld [vmem:[%s9436 + $0x18] sm:$0xf]
    %v9444 = vld [vmem:[%s9436 + $0x1c] sm:$0xf]
    %v9445 = vld [vmem:[%s9436 + $0x20] sm:$0xf]
    %v9446 = vld [vmem:[%s9436 + $0x24] sm:$0xf]
    %v9447 = vld [vmem:[%s9436 + $0x28] sm:$0xf]
    %v9448 = vld [vmem:[%s9436 + $0x2c] sm:$0xf]
    %v9449 = vld [vmem:[%s9436 + $0x30] sm:$0xf]
    %v9450 = vld [vmem:[%s9436 + $0x34] sm:$0xf]
    %v9451 = vld [vmem:[%s9436 + $0x38] sm:$0xf]
    %v9452 = vld [vmem:[%s9436 + $0x3c] sm:$0xf]
    %v9469 = vunpack.c.l.b16 %v9437
    %v9470 = vunpack.c.l.b16 %v9438
    %v9471 = vunpack.c.l.b16 %v9439
    %v9472 = vunpack.c.l.b16 %v9440
    %v9473 = vunpack.c.l.b16 %v9441
    %v9474 = vunpack.c.l.b16 %v9442
    %v9475 = vunpack.c.l.b16 %v9443
    %v9476 = vunpack.c.l.b16 %v9444
    %v9477 = vunpack.c.l.b16 %v9445
    %v9478 = vunpack.c.l.b16 %v9446
    %v9479 = vunpack.c.l.b16 %v9447
    %v9480 = vunpack.c.l.b16 %v9448
    %v9481 = vunpack.c.l.b16 %v9449
    %v9482 = vunpack.c.l.b16 %v9450
    %v9483 = vunpack.c.l.b16 %v9451
    %v9484 = vunpack.c.l.b16 %v9452
    %v9485 = vpack.c.b16 %v9470, %v9469
    %v9486 = vpack.c.b16 %v9472, %v9471
    %v9487 = vpack.c.b16 %v9474, %v9473
    %v9488 = vpack.c.b16 %v9476, %v9475
    %v9489 = vpack.c.b16 %v9478, %v9477
    %v9490 = vpack.c.b16 %v9480, %v9479
    %v9491 = vpack.c.b16 %v9482, %v9481
    %v9492 = vpack.c.b16 %v9484, %v9483
    %9501 = vmatprep.subr.bf16.mxu0 0
    %9502 = vmatpush1.bf16.msra.mxu0 %v9492
    %9503 = vmatprep.subr.bf16.mxu0 0
    %9504 = vmatpush1.bf16.msra.mxu0 %v9491
    %9505 = vmatprep.subr.bf16.mxu0 0
    %9506 = vmatpush1.bf16.msra.mxu0 %v9490
    %9507 = vmatprep.subr.bf16.mxu0 0
    %9508 = vmatpush1.bf16.msra.mxu0 %v9489
    %9509 = vmatprep.subr.bf16.mxu0 0
    %9510 = vmatpush1.bf16.msra.mxu0 %v9488
    %9511 = vmatprep.subr.bf16.mxu0 0
    %9512 = vmatpush1.bf16.msra.mxu0 %v9487
    %9513 = vmatprep.subr.bf16.mxu0 0
    %9514 = vmatpush1.bf16.msra.mxu0 %v9486
    %9515 = vmatprep.subr.bf16.mxu0 0
    %9516 = vmatpush1.bf16.msra.mxu0 %v9485
    %9517 = vmatprep.subr.bf16.mxu0 0
    %9518 = vmatpush2.bf16.msra.mxu0 0
    %9519 = vmatprep.subr.bf16.mxu0 0
    %9520 = vmatpush2.bf16.msra.mxu0 0
    %9521 = vmatprep.subr.bf16.mxu0 0
    %9522 = vmatpush2.bf16.msra.mxu0 0
    %9523 = vmatprep.subr.bf16.mxu0 0
    %9524 = vmatpush2.bf16.msra.mxu0 0
    %9525 = vmatprep.subr.bf16.mxu0 0
    %9526 = vmatpush2.bf16.msra.mxu0 0
    %9527 = vmatprep.subr.bf16.mxu0 0
    %9528 = vmatpush2.bf16.msra.mxu0 0
    %9529 = vmatprep.subr.bf16.mxu0 0
    %9530 = vmatpush2.bf16.msra.mxu0 0
    %9531 = vmatprep.subr.bf16.mxu0 0
    %9532 = vmatpush2.bf16.msra.mxu0 0
    %9533 = vmatprep.mubr.bf16.mxu0 0
    %9534 = vmatmul.mubr.bf16.gmra.mxu0 %v9404
    %v9535 = vpop.f32.mrf.mxu0
    %v9536 = vadd.f32 0.0, %v9535
    %v9537 = vpop.f32.mrf.mxu0
    %v9538 = vpop.f32.mrf.mxu0
    %v9539 = vadd.f32 0.0, %v9538
    %v9540 = vpop.f32.mrf.mxu0
    %9541 = vmatprep.mubr.bf16.mxu0 0
    %9542 = vmatmul.mubr.bf16.gmra.mxu0 %v9405
    %v9543 = vpop.f32.mrf.mxu0
    %v9544 = vadd.f32 0.0, %v9543
    %v9545 = vpop.f32.mrf.mxu0
    %v9546 = vpop.f32.mrf.mxu0
    %v9547 = vadd.f32 0.0, %v9546
    %v9548 = vpop.f32.mrf.mxu0
    %9549 = vmatprep.mubr.bf16.mxu0 0
    %9550 = vmatmul.mubr.bf16.gmra.mxu0 %v9406
    %v9551 = vpop.f32.mrf.mxu0
    %v9552 = vadd.f32 0.0, %v9551
    %v9553 = vpop.f32.mrf.mxu0
    %v9554 = vpop.f32.mrf.mxu0
    %v9555 = vadd.f32 0.0, %v9554
    %v9556 = vpop.f32.mrf.mxu0
    %9557 = vmatprep.mubr.bf16.mxu0 0
    %9558 = vmatmul.mubr.bf16.gmra.mxu0 %v9407
    %v9559 = vpop.f32.mrf.mxu0
    %v9560 = vadd.f32 0.0, %v9559
    %v9561 = vpop.f32.mrf.mxu0
    %v9562 = vpop.f32.mrf.mxu0
    %v9563 = vadd.f32 0.0, %v9562
    %v9564 = vpop.f32.mrf.mxu0
    %9565 = vmatprep.mubr.bf16.mxu0 0
    %9566 = vmatmul.mubr.bf16.gmra.mxu0 %v9408
    %v9567 = vpop.f32.mrf.mxu0
    %v9568 = vadd.f32 0.0, %v9567
    %v9569 = vpop.f32.mrf.mxu0
    %v9570 = vpop.f32.mrf.mxu0
    %v9571 = vadd.f32 0.0, %v9570
    %v9572 = vpop.f32.mrf.mxu0
    %9573 = vmatprep.mubr.bf16.mxu0 0
    %9574 = vmatmul.mubr.bf16.gmra.mxu0 %v9409
    %v9575 = vpop.f32.mrf.mxu0
    %v9576 = vadd.f32 0.0, %v9575
    %v9577 = vpop.f32.mrf.mxu0
    %v9578 = vpop.f32.mrf.mxu0
    %v9579 = vadd.f32 0.0, %v9578
    %v9580 = vpop.f32.mrf.mxu0
    %9581 = vmatprep.mubr.bf16.mxu0 0
    %9582 = vmatmul.mubr.bf16.gmra.mxu0 %v9410
    %v9583 = vpop.f32.mrf.mxu0
    %v9584 = vadd.f32 0.0, %v9583
    %v9585 = vpop.f32.mrf.mxu0
    %v9586 = vpop.f32.mrf.mxu0
    %v9587 = vadd.f32 0.0, %v9586
    %v9588 = vpop.f32.mrf.mxu0
    %9589 = vmatprep.mubr.bf16.mxu0 0
    %9590 = vmatmul.mubr.bf16.gmra.mxu0 %v9411
    %v9591 = vpop.f32.mrf.mxu0
    %v9592 = vadd.f32 0.0, %v9591
    %v9593 = vpop.f32.mrf.mxu0
    %v9594 = vpop.f32.mrf.mxu0
    %v9595 = vadd.f32 0.0, %v9594
    %v9596 = vpop.f32.mrf.mxu0
    %9597 = vmatprep.mubr.bf16.mxu0 0
    %9598 = vmatmul.mubr.bf16.gmra.mxu0 %v9412
    %v9599 = vpop.f32.mrf.mxu0
    %v9600 = vadd.f32 0.0, %v9599
    %v9601 = vpop.f32.mrf.mxu0
    %v9602 = vpop.f32.mrf.mxu0
    %v9603 = vadd.f32 0.0, %v9602
    %v9604 = vpop.f32.mrf.mxu0
    %9605 = vmatprep.mubr.bf16.mxu0 0
    %9606 = vmatmul.mubr.bf16.gmra.mxu0 %v9413
    %v9607 = vpop.f32.mrf.mxu0
    %v9608 = vadd.f32 0.0, %v9607
    %v9609 = vpop.f32.mrf.mxu0
    %v9610 = vpop.f32.mrf.mxu0
    %v9611 = vadd.f32 0.0, %v9610
    %v9612 = vpop.f32.mrf.mxu0
    %9613 = vmatprep.mubr.bf16.mxu0 0
    %9614 = vmatmul.mubr.bf16.gmra.mxu0 %v9414
    %v9615 = vpop.f32.mrf.mxu0
    %v9616 = vadd.f32 0.0, %v9615
    %v9617 = vpop.f32.mrf.mxu0
    %v9618 = vpop.f32.mrf.mxu0
    %v9619 = vadd.f32 0.0, %v9618
    %v9620 = vpop.f32.mrf.mxu0
    %9621 = vmatprep.mubr.bf16.mxu0 0
    %9622 = vmatmul.mubr.bf16.gmra.mxu0 %v9415
    %v9623 = vpop.f32.mrf.mxu0
    %v9624 = vadd.f32 0.0, %v9623
    %v9625 = vpop.f32.mrf.mxu0
    %v9626 = vpop.f32.mrf.mxu0
    %v9627 = vadd.f32 0.0, %v9626
    %v9628 = vpop.f32.mrf.mxu0
    %9629 = vmatprep.mubr.bf16.mxu0 0
    %9630 = vmatmul.mubr.bf16.gmra.mxu0 %v9416
    %v9631 = vpop.f32.mrf.mxu0
    %v9632 = vadd.f32 0.0, %v9631
    %v9633 = vpop.f32.mrf.mxu0
    %v9634 = vpop.f32.mrf.mxu0
    %v9635 = vadd.f32 0.0, %v9634
    %v9636 = vpop.f32.mrf.mxu0
    %9637 = vmatprep.mubr.bf16.mxu0 0
    %9638 = vmatmul.mubr.bf16.gmra.mxu0 %v9417
    %v9639 = vpop.f32.mrf.mxu0
    %v9640 = vadd.f32 0.0, %v9639
    %v9641 = vpop.f32.mrf.mxu0
    %v9642 = vpop.f32.mrf.mxu0
    %v9643 = vadd.f32 0.0, %v9642
    %v9644 = vpop.f32.mrf.mxu0
    %9645 = vmatprep.mubr.bf16.mxu0 0
    %9646 = vmatmul.mubr.bf16.gmra.mxu0 %v9418
    %v9647 = vpop.f32.mrf.mxu0
    %v9648 = vadd.f32 0.0, %v9647
    %v9649 = vpop.f32.mrf.mxu0
    %v9650 = vpop.f32.mrf.mxu0
    %v9651 = vadd.f32 0.0, %v9650
    %v9652 = vpop.f32.mrf.mxu0
    %9653 = vmatprep.mubr.bf16.mxu0 0
    %9654 = vmatmul.mubr.bf16.gmra.mxu0 %v9419
    %v9655 = vpop.f32.mrf.mxu0
    %v9656 = vadd.f32 0.0, %v9655
    %v9657 = vpop.f32.mrf.mxu0
    %v9658 = vpop.f32.mrf.mxu0
    %v9659 = vadd.f32 0.0, %v9658
    %v9660 = vpop.f32.mrf.mxu0
    %9661 = vmatprep.mubr.bf16.mxu0 0
    %9662 = vmatmul.mubr.bf16.gmra.mxu0 %v9420
    %v9663 = vpop.f32.mrf.mxu0
    %v9664 = vadd.f32 0.0, %v9663
    %v9665 = vpop.f32.mrf.mxu0
    %v9666 = vpop.f32.mrf.mxu0
    %v9667 = vadd.f32 0.0, %v9666
    %v9668 = vpop.f32.mrf.mxu0
    %9669 = vmatprep.mubr.bf16.mxu0 0
    %9670 = vmatmul.mubr.bf16.gmra.mxu0 %v9421
    %v9671 = vpop.f32.mrf.mxu0
    %v9672 = vadd.f32 0.0, %v9671
    %v9673 = vpop.f32.mrf.mxu0
    %v9674 = vpop.f32.mrf.mxu0
    %v9675 = vadd.f32 0.0, %v9674
    %v9676 = vpop.f32.mrf.mxu0
    %9677 = vmatprep.mubr.bf16.mxu0 0
    %9678 = vmatmul.mubr.bf16.gmra.mxu0 %v9422
    %v9679 = vpop.f32.mrf.mxu0
    %v9680 = vadd.f32 0.0, %v9679
    %v9681 = vpop.f32.mrf.mxu0
    %v9682 = vpop.f32.mrf.mxu0
    %v9683 = vadd.f32 0.0, %v9682
    %v9684 = vpop.f32.mrf.mxu0
    %9685 = vmatprep.mubr.bf16.mxu0 0
    %9686 = vmatmul.mubr.bf16.gmra.mxu0 %v9423
    %v9687 = vpop.f32.mrf.mxu0
    %v9688 = vadd.f32 0.0, %v9687
    %v9689 = vpop.f32.mrf.mxu0
    %v9690 = vpop.f32.mrf.mxu0
    %v9691 = vadd.f32 0.0, %v9690
    %v9692 = vpop.f32.mrf.mxu0
    %9693 = vmatprep.mubr.bf16.mxu0 0
    %9694 = vmatmul.mubr.bf16.gmra.mxu0 %v9424
    %v9695 = vpop.f32.mrf.mxu0
    %v9696 = vadd.f32 0.0, %v9695
    %v9697 = vpop.f32.mrf.mxu0
    %v9698 = vpop.f32.mrf.mxu0
    %v9699 = vadd.f32 0.0, %v9698
    %v9700 = vpop.f32.mrf.mxu0
    %9701 = vmatprep.mubr.bf16.mxu0 0
    %9702 = vmatmul.mubr.bf16.gmra.mxu0 %v9425
    %v9703 = vpop.f32.mrf.mxu0
    %v9704 = vadd.f32 0.0, %v9703
    %v9705 = vpop.f32.mrf.mxu0
    %v9706 = vpop.f32.mrf.mxu0
    %v9707 = vadd.f32 0.0, %v9706
    %v9708 = vpop.f32.mrf.mxu0
    %9709 = vmatprep.mubr.bf16.mxu0 0
    %9710 = vmatmul.mubr.bf16.gmra.mxu0 %v9426
    %v9711 = vpop.f32.mrf.mxu0
    %v9712 = vadd.f32 0.0, %v9711
    %v9713 = vpop.f32.mrf.mxu0
    %v9714 = vpop.f32.mrf.mxu0
    %v9715 = vadd.f32 0.0, %v9714
    %v9716 = vpop.f32.mrf.mxu0
    %9717 = vmatprep.mubr.bf16.mxu0 0
    %9718 = vmatmul.mubr.bf16.gmra.mxu0 %v9427
    %v9719 = vpop.f32.mrf.mxu0
    %v9720 = vadd.f32 0.0, %v9719
    %v9721 = vpop.f32.mrf.mxu0
    %v9722 = vpop.f32.mrf.mxu0
    %v9723 = vadd.f32 0.0, %v9722
    %v9724 = vpop.f32.mrf.mxu0
    %9725 = vmatprep.mubr.bf16.mxu0 0
    %9726 = vmatmul.mubr.bf16.gmra.mxu0 %v9428
    %v9727 = vpop.f32.mrf.mxu0
    %v9728 = vadd.f32 0.0, %v9727
    %v9729 = vpop.f32.mrf.mxu0
    %v9730 = vpop.f32.mrf.mxu0
    %v9731 = vadd.f32 0.0, %v9730
    %v9732 = vpop.f32.mrf.mxu0
    %9733 = vmatprep.mubr.bf16.mxu0 0
    %9734 = vmatmul.mubr.bf16.gmra.mxu0 %v9429
    %v9735 = vpop.f32.mrf.mxu0
    %v9736 = vadd.f32 0.0, %v9735
    %v9737 = vpop.f32.mrf.mxu0
    %v9738 = vpop.f32.mrf.mxu0
    %v9739 = vadd.f32 0.0, %v9738
    %v9740 = vpop.f32.mrf.mxu0
    %9741 = vmatprep.mubr.bf16.mxu0 0
    %9742 = vmatmul.mubr.bf16.gmra.mxu0 %v9430
    %v9743 = vpop.f32.mrf.mxu0
    %v9744 = vadd.f32 0.0, %v9743
    %v9745 = vpop.f32.mrf.mxu0
    %v9746 = vpop.f32.mrf.mxu0
    %v9747 = vadd.f32 0.0, %v9746
    %v9748 = vpop.f32.mrf.mxu0
    %9749 = vmatprep.mubr.bf16.mxu0 0
    %9750 = vmatmul.mubr.bf16.gmra.mxu0 %v9431
    %v9751 = vpop.f32.mrf.mxu0
    %v9752 = vadd.f32 0.0, %v9751
    %v9753 = vpop.f32.mrf.mxu0
    %v9754 = vpop.f32.mrf.mxu0
    %v9755 = vadd.f32 0.0, %v9754
    %v9756 = vpop.f32.mrf.mxu0
    %9757 = vmatprep.mubr.bf16.mxu0 0
    %9758 = vmatmul.mubr.bf16.gmra.mxu0 %v9432
    %v9759 = vpop.f32.mrf.mxu0
    %v9760 = vadd.f32 0.0, %v9759
    %v9761 = vpop.f32.mrf.mxu0
    %v9762 = vpop.f32.mrf.mxu0
    %v9763 = vadd.f32 0.0, %v9762
    %v9764 = vpop.f32.mrf.mxu0
    %9765 = vmatprep.mubr.bf16.mxu0 0
    %9766 = vmatmul.mubr.bf16.gmra.mxu0 %v9433
    %v9767 = vpop.f32.mrf.mxu0
    %v9768 = vadd.f32 0.0, %v9767
    %v9769 = vpop.f32.mrf.mxu0
    %v9770 = vpop.f32.mrf.mxu0
    %v9771 = vadd.f32 0.0, %v9770
    %v9772 = vpop.f32.mrf.mxu0
    %9773 = vmatprep.mubr.bf16.mxu0 0
    %9774 = vmatmul.mubr.bf16.gmra.mxu0 %v9434
    %v9775 = vpop.f32.mrf.mxu0
    %v9776 = vadd.f32 0.0, %v9775
    %v9777 = vpop.f32.mrf.mxu0
    %v9778 = vpop.f32.mrf.mxu0
    %v9779 = vadd.f32 0.0, %v9778
    %v9780 = vpop.f32.mrf.mxu0
    %9781 = vmatprep.mubr.bf16.mxu0 0
    %9782 = vmatmul.mubr.bf16.gmra.mxu0 %v9435
    %v9783 = vpop.f32.mrf.mxu0
    %v9784 = vadd.f32 0.0, %v9783
    %v9785 = vpop.f32.mrf.mxu0
    %v9786 = vpop.f32.mrf.mxu0
    %v9787 = vadd.f32 0.0, %v9786
    %v9788 = vpop.f32.mrf.mxu0
    %9789 = vdwg.mxu0
    %v9790 = vadd.f32 %v8765, %v9536
    %v9791 = vadd.f32 %v8768, %v9539
    %v9792 = vadd.f32 %v8773, %v9544
    %v9793 = vadd.f32 %v8776, %v9547
    %v9794 = vadd.f32 %v8781, %v9552
    %v9795 = vadd.f32 %v8784, %v9555
    %v9796 = vadd.f32 %v8789, %v9560
    %v9797 = vadd.f32 %v8792, %v9563
    %v9798 = vadd.f32 %v8797, %v9568
    %v9799 = vadd.f32 %v8800, %v9571
    %v9800 = vadd.f32 %v8805, %v9576
    %v9801 = vadd.f32 %v8808, %v9579
    %v9802 = vadd.f32 %v8813, %v9584
    %v9803 = vadd.f32 %v8816, %v9587
    %v9804 = vadd.f32 %v8821, %v9592
    %v9805 = vadd.f32 %v8824, %v9595
    %v9806 = vadd.f32 %v8829, %v9600
    %v9807 = vadd.f32 %v8832, %v9603
    %v9808 = vadd.f32 %v8837, %v9608
    %v9809 = vadd.f32 %v8840, %v9611
    %v9810 = vadd.f32 %v8845, %v9616
    %v9811 = vadd.f32 %v8848, %v9619
    %v9812 = vadd.f32 %v8853, %v9624
    %v9813 = vadd.f32 %v8856, %v9627
    %v9814 = vadd.f32 %v8861, %v9632
    %v9815 = vadd.f32 %v8864, %v9635
    %v9816 = vadd.f32 %v8869, %v9640
    %v9817 = vadd.f32 %v8872, %v9643
    %v9818 = vadd.f32 %v8877, %v9648
    %v9819 = vadd.f32 %v8880, %v9651
    %v9820 = vadd.f32 %v8885, %v9656
    %v9821 = vadd.f32 %v8888, %v9659
    %v9822 = vadd.f32 %v8893, %v9664
    %v9823 = vadd.f32 %v8896, %v9667
    %v9824 = vadd.f32 %v8901, %v9672
    %v9825 = vadd.f32 %v8904, %v9675
    %v9826 = vadd.f32 %v8909, %v9680
    %v9827 = vadd.f32 %v8912, %v9683
    %v9828 = vadd.f32 %v8917, %v9688
    %v9829 = vadd.f32 %v8920, %v9691
    %v9830 = vadd.f32 %v8925, %v9696
    %v9831 = vadd.f32 %v8928, %v9699
    %v9832 = vadd.f32 %v8933, %v9704
    %v9833 = vadd.f32 %v8936, %v9707
    %v9834 = vadd.f32 %v8941, %v9712
    %v9835 = vadd.f32 %v8944, %v9715
    %v9836 = vadd.f32 %v8949, %v9720
    %v9837 = vadd.f32 %v8952, %v9723
    %v9838 = vadd.f32 %v8957, %v9728
    %v9839 = vadd.f32 %v8960, %v9731
    %v9840 = vadd.f32 %v8965, %v9736
    %v9841 = vadd.f32 %v8968, %v9739
    %v9842 = vadd.f32 %v8973, %v9744
    %v9843 = vadd.f32 %v8976, %v9747
    %v9844 = vadd.f32 %v8981, %v9752
    %v9845 = vadd.f32 %v8984, %v9755
    %v9846 = vadd.f32 %v8989, %v9760
    %v9847 = vadd.f32 %v8992, %v9763
    %v9848 = vadd.f32 %v8997, %v9768
    %v9849 = vadd.f32 %v9000, %v9771
    %v9850 = vadd.f32 %v9005, %v9776
    %v9851 = vadd.f32 %v9008, %v9779
    %v9852 = vadd.f32 %v9013, %v9784
    %v9853 = vadd.f32 %v9016, %v9787
    %v9854 = vlaneseq
    %v9855 = vshrl.u32 %v9854, 7
    %v9856 = vsub.s32 0, %v9855
    %v9857 = vrot.slane %v1649, %v9856
    %v9858 = vmul.f32 %v9790, %v9857
    %v9859 = vmul.f32 %v9791, %v9857
    %v9860 = vmul.f32 %v9792, %v9857
    %v9861 = vmul.f32 %v9793, %v9857
    %v9862 = vmul.f32 %v9794, %v9857
    %v9863 = vmul.f32 %v9795, %v9857
    %v9864 = vmul.f32 %v9796, %v9857
    %v9865 = vmul.f32 %v9797, %v9857
    %v9866 = vmul.f32 %v9798, %v9857
    %v9867 = vmul.f32 %v9799, %v9857
    %v9868 = vmul.f32 %v9800, %v9857
    %v9869 = vmul.f32 %v9801, %v9857
    %v9870 = vmul.f32 %v9802, %v9857
    %v9871 = vmul.f32 %v9803, %v9857
    %v9872 = vmul.f32 %v9804, %v9857
    %v9873 = vmul.f32 %v9805, %v9857
    %v9874 = vmul.f32 %v9806, %v9857
    %v9875 = vmul.f32 %v9807, %v9857
    %v9876 = vmul.f32 %v9808, %v9857
    %v9877 = vmul.f32 %v9809, %v9857
    %v9878 = vmul.f32 %v9810, %v9857
    %v9879 = vmul.f32 %v9811, %v9857
    %v9880 = vmul.f32 %v9812, %v9857
    %v9881 = vmul.f32 %v9813, %v9857
    %v9882 = vmul.f32 %v9814, %v9857
    %v9883 = vmul.f32 %v9815, %v9857
    %v9884 = vmul.f32 %v9816, %v9857
    %v9885 = vmul.f32 %v9817, %v9857
    %v9886 = vmul.f32 %v9818, %v9857
    %v9887 = vmul.f32 %v9819, %v9857
    %v9888 = vmul.f32 %v9820, %v9857
    %v9889 = vmul.f32 %v9821, %v9857
    %v9890 = vmul.f32 %v9822, %v9857
    %v9891 = vmul.f32 %v9823, %v9857
    %v9892 = vmul.f32 %v9824, %v9857
    %v9893 = vmul.f32 %v9825, %v9857
    %v9894 = vmul.f32 %v9826, %v9857
    %v9895 = vmul.f32 %v9827, %v9857
    %v9896 = vmul.f32 %v9828, %v9857
    %v9897 = vmul.f32 %v9829, %v9857
    %v9898 = vmul.f32 %v9830, %v9857
    %v9899 = vmul.f32 %v9831, %v9857
    %v9900 = vmul.f32 %v9832, %v9857
    %v9901 = vmul.f32 %v9833, %v9857
    %v9902 = vmul.f32 %v9834, %v9857
    %v9903 = vmul.f32 %v9835, %v9857
    %v9904 = vmul.f32 %v9836, %v9857
    %v9905 = vmul.f32 %v9837, %v9857
    %v9906 = vmul.f32 %v9838, %v9857
    %v9907 = vmul.f32 %v9839, %v9857
    %v9908 = vmul.f32 %v9840, %v9857
    %v9909 = vmul.f32 %v9841, %v9857
    %v9910 = vmul.f32 %v9842, %v9857
    %v9911 = vmul.f32 %v9843, %v9857
    %v9912 = vmul.f32 %v9844, %v9857
    %v9913 = vmul.f32 %v9845, %v9857
    %v9914 = vmul.f32 %v9846, %v9857
    %v9915 = vmul.f32 %v9847, %v9857
    %v9916 = vmul.f32 %v9848, %v9857
    %v9917 = vmul.f32 %v9849, %v9857
    %v9918 = vmul.f32 %v9850, %v9857
    %v9919 = vmul.f32 %v9851, %v9857
    %v9920 = vmul.f32 %v9852, %v9857
    %v9921 = vmul.f32 %v9853, %v9857
    %v9922 = vlaneseq
    %v9923 = vshrl.u32 %v9922, 7
    %v9924 = vsub.s32 0, %v9923
    %v9925 = vrot.slane %v1650, %v9924
    %v9926 = vadd.f32 %v9858, %v9925
    %v9927 = vadd.f32 %v9859, %v9925
    %v9928 = vadd.f32 %v9860, %v9925
    %v9929 = vadd.f32 %v9861, %v9925
    %v9930 = vadd.f32 %v9862, %v9925
    %v9931 = vadd.f32 %v9863, %v9925
    %v9932 = vadd.f32 %v9864, %v9925
    %v9933 = vadd.f32 %v9865, %v9925
    %v9934 = vadd.f32 %v9866, %v9925
    %v9935 = vadd.f32 %v9867, %v9925
    %v9936 = vadd.f32 %v9868, %v9925
    %v9937 = vadd.f32 %v9869, %v9925
    %v9938 = vadd.f32 %v9870, %v9925
    %v9939 = vadd.f32 %v9871, %v9925
    %v9940 = vadd.f32 %v9872, %v9925
    %v9941 = vadd.f32 %v9873, %v9925
    %v9942 = vadd.f32 %v9874, %v9925
    %v9943 = vadd.f32 %v9875, %v9925
    %v9944 = vadd.f32 %v9876, %v9925
    %v9945 = vadd.f32 %v9877, %v9925
    %v9946 = vadd.f32 %v9878, %v9925
    %v9947 = vadd.f32 %v9879, %v9925
    %v9948 = vadd.f32 %v9880, %v9925
    %v9949 = vadd.f32 %v9881, %v9925
    %v9950 = vadd.f32 %v9882, %v9925
    %v9951 = vadd.f32 %v9883, %v9925
    %v9952 = vadd.f32 %v9884, %v9925
    %v9953 = vadd.f32 %v9885, %v9925
    %v9954 = vadd.f32 %v9886, %v9925
    %v9955 = vadd.f32 %v9887, %v9925
    %v9956 = vadd.f32 %v9888, %v9925
    %v9957 = vadd.f32 %v9889, %v9925
    %v9958 = vadd.f32 %v9890, %v9925
    %v9959 = vadd.f32 %v9891, %v9925
    %v9960 = vadd.f32 %v9892, %v9925
    %v9961 = vadd.f32 %v9893, %v9925
    %v9962 = vadd.f32 %v9894, %v9925
    %v9963 = vadd.f32 %v9895, %v9925
    %v9964 = vadd.f32 %v9896, %v9925
    %v9965 = vadd.f32 %v9897, %v9925
    %v9966 = vadd.f32 %v9898, %v9925
    %v9967 = vadd.f32 %v9899, %v9925
    %v9968 = vadd.f32 %v9900, %v9925
    %v9969 = vadd.f32 %v9901, %v9925
    %v9970 = vadd.f32 %v9902, %v9925
    %v9971 = vadd.f32 %v9903, %v9925
    %v9972 = vadd.f32 %v9904, %v9925
    %v9973 = vadd.f32 %v9905, %v9925
    %v9974 = vadd.f32 %v9906, %v9925
    %v9975 = vadd.f32 %v9907, %v9925
    %v9976 = vadd.f32 %v9908, %v9925
    %v9977 = vadd.f32 %v9909, %v9925
    %v9978 = vadd.f32 %v9910, %v9925
    %v9979 = vadd.f32 %v9911, %v9925
    %v9980 = vadd.f32 %v9912, %v9925
    %v9981 = vadd.f32 %v9913, %v9925
    %v9982 = vadd.f32 %v9914, %v9925
    %v9983 = vadd.f32 %v9915, %v9925
    %v9984 = vadd.f32 %v9916, %v9925
    %v9985 = vadd.f32 %v9917, %v9925
    %v9986 = vadd.f32 %v9918, %v9925
    %v9987 = vadd.f32 %v9919, %v9925
    %v9988 = vadd.f32 %v9920, %v9925
    %v9989 = vadd.f32 %v9921, %v9925
    %v9990 = vadd.f32 %v9926, %v1715
    %v9991 = vadd.f32 %v9927, %v1716
    %v9992 = vadd.f32 %v9928, %v1717
    %v9993 = vadd.f32 %v9929, %v1718
    %v9994 = vadd.f32 %v9930, %v1719
    %v9995 = vadd.f32 %v9931, %v1720
    %v9996 = vadd.f32 %v9932, %v1721
    %v9997 = vadd.f32 %v9933, %v1722
    %v9998 = vadd.f32 %v9934, %v1723
    %v9999 = vadd.f32 %v9935, %v1724
    %v10000 = vadd.f32 %v9936, %v1725
    %v10001 = vadd.f32 %v9937, %v1726
    %v10002 = vadd.f32 %v9938, %v1727
    %v10003 = vadd.f32 %v9939, %v1728
    %v10004 = vadd.f32 %v9940, %v1729
    %v10005 = vadd.f32 %v9941, %v1730
    %v10006 = vadd.f32 %v9942, %v1731
    %v10007 = vadd.f32 %v9943, %v1732
    %v10008 = vadd.f32 %v9944, %v1733
    %v10009 = vadd.f32 %v9945, %v1734
    %v10010 = vadd.f32 %v9946, %v1735
    %v10011 = vadd.f32 %v9947, %v1736
    %v10012 = vadd.f32 %v9948, %v1737
    %v10013 = vadd.f32 %v9949, %v1738
    %v10014 = vadd.f32 %v9950, %v1739
    %v10015 = vadd.f32 %v9951, %v1740
    %v10016 = vadd.f32 %v9952, %v1741
    %v10017 = vadd.f32 %v9953, %v1742
    %v10018 = vadd.f32 %v9954, %v1743
    %v10019 = vadd.f32 %v9955, %v1744
    %v10020 = vadd.f32 %v9956, %v1745
    %v10021 = vadd.f32 %v9957, %v1746
    %v10022 = vadd.f32 %v9958, %v1747
    %v10023 = vadd.f32 %v9959, %v1748
    %v10024 = vadd.f32 %v9960, %v1749
    %v10025 = vadd.f32 %v9961, %v1750
    %v10026 = vadd.f32 %v9962, %v1751
    %v10027 = vadd.f32 %v9963, %v1752
    %v10028 = vadd.f32 %v9964, %v1753
    %v10029 = vadd.f32 %v9965, %v1754
    %v10030 = vadd.f32 %v9966, %v1755
    %v10031 = vadd.f32 %v9967, %v1756
    %v10032 = vadd.f32 %v9968, %v1757
    %v10033 = vadd.f32 %v9969, %v1758
    %v10034 = vadd.f32 %v9970, %v1759
    %v10035 = vadd.f32 %v9971, %v1760
    %v10036 = vadd.f32 %v9972, %v1761
    %v10037 = vadd.f32 %v9973, %v1762
    %v10038 = vadd.f32 %v9974, %v1763
    %v10039 = vadd.f32 %v9975, %v1764
    %v10040 = vadd.f32 %v9976, %v1765
    %v10041 = vadd.f32 %v9977, %v1766
    %v10042 = vadd.f32 %v9978, %v1767
    %v10043 = vadd.f32 %v9979, %v1768
    %v10044 = vadd.f32 %v9980, %v1769
    %v10045 = vadd.f32 %v9981, %v1770
    %v10046 = vadd.f32 %v9982, %v1771
    %v10047 = vadd.f32 %v9983, %v1772
    %v10048 = vadd.f32 %v9984, %v1773
    %v10049 = vadd.f32 %v9985, %v1774
    %v10050 = vadd.f32 %v9986, %v1775
    %v10051 = vadd.f32 %v9987, %v1776
    %v10052 = vadd.f32 %v9988, %v1777
    %v10053 = vadd.f32 %v9989, %v1778
    %v10054 = vmax.f32 %v9990, 0.0
    %v10055 = vmax.f32 %v9991, 0.0
    %v10056 = vmax.f32 %v9992, 0.0
    %v10057 = vmax.f32 %v9993, 0.0
    %v10058 = vmax.f32 %v9994, 0.0
    %v10059 = vmax.f32 %v9995, 0.0
    %v10060 = vmax.f32 %v9996, 0.0
    %v10061 = vmax.f32 %v9997, 0.0
    %v10062 = vmax.f32 %v9998, 0.0
    %v10063 = vmax.f32 %v9999, 0.0
    %v10064 = vmax.f32 %v10000, 0.0
    %v10065 = vmax.f32 %v10001, 0.0
    %v10066 = vmax.f32 %v10002, 0.0
    %v10067 = vmax.f32 %v10003, 0.0
    %v10068 = vmax.f32 %v10004, 0.0
    %v10069 = vmax.f32 %v10005, 0.0
    %v10070 = vmax.f32 %v10006, 0.0
    %v10071 = vmax.f32 %v10007, 0.0
    %v10072 = vmax.f32 %v10008, 0.0
    %v10073 = vmax.f32 %v10009, 0.0
    %v10074 = vmax.f32 %v10010, 0.0
    %v10075 = vmax.f32 %v10011, 0.0
    %v10076 = vmax.f32 %v10012, 0.0
    %v10077 = vmax.f32 %v10013, 0.0
    %v10078 = vmax.f32 %v10014, 0.0
    %v10079 = vmax.f32 %v10015, 0.0
    %v10080 = vmax.f32 %v10016, 0.0
    %v10081 = vmax.f32 %v10017, 0.0
    %v10082 = vmax.f32 %v10018, 0.0
    %v10083 = vmax.f32 %v10019, 0.0
    %v10084 = vmax.f32 %v10020, 0.0
    %v10085 = vmax.f32 %v10021, 0.0
    %v10086 = vmax.f32 %v10022, 0.0
    %v10087 = vmax.f32 %v10023, 0.0
    %v10088 = vmax.f32 %v10024, 0.0
    %v10089 = vmax.f32 %v10025, 0.0
    %v10090 = vmax.f32 %v10026, 0.0
    %v10091 = vmax.f32 %v10027, 0.0
    %v10092 = vmax.f32 %v10028, 0.0
    %v10093 = vmax.f32 %v10029, 0.0
    %v10094 = vmax.f32 %v10030, 0.0
    %v10095 = vmax.f32 %v10031, 0.0
    %v10096 = vmax.f32 %v10032, 0.0
    %v10097 = vmax.f32 %v10033, 0.0
    %v10098 = vmax.f32 %v10034, 0.0
    %v10099 = vmax.f32 %v10035, 0.0
    %v10100 = vmax.f32 %v10036, 0.0
    %v10101 = vmax.f32 %v10037, 0.0
    %v10102 = vmax.f32 %v10038, 0.0
    %v10103 = vmax.f32 %v10039, 0.0
    %v10104 = vmax.f32 %v10040, 0.0
    %v10105 = vmax.f32 %v10041, 0.0
    %v10106 = vmax.f32 %v10042, 0.0
    %v10107 = vmax.f32 %v10043, 0.0
    %v10108 = vmax.f32 %v10044, 0.0
    %v10109 = vmax.f32 %v10045, 0.0
    %v10110 = vmax.f32 %v10046, 0.0
    %v10111 = vmax.f32 %v10047, 0.0
    %v10112 = vmax.f32 %v10048, 0.0
    %v10113 = vmax.f32 %v10049, 0.0
    %v10114 = vmax.f32 %v10050, 0.0
    %v10115 = vmax.f32 %v10051, 0.0
    %v10116 = vmax.f32 %v10052, 0.0
    %v10117 = vmax.f32 %v10053, 0.0
    %v10118 = vpack.c.bf16 %v10055, %v10054
    %v10119 = vpack.c.bf16 %v10057, %v10056
    %v10120 = vpack.c.bf16 %v10059, %v10058
    %v10121 = vpack.c.bf16 %v10061, %v10060
    %v10122 = vpack.c.bf16 %v10063, %v10062
    %v10123 = vpack.c.bf16 %v10065, %v10064
    %v10124 = vpack.c.bf16 %v10067, %v10066
    %v10125 = vpack.c.bf16 %v10069, %v10068
    %v10126 = vpack.c.bf16 %v10071, %v10070
    %v10127 = vpack.c.bf16 %v10073, %v10072
    %v10128 = vpack.c.bf16 %v10075, %v10074
    %v10129 = vpack.c.bf16 %v10077, %v10076
    %v10130 = vpack.c.bf16 %v10079, %v10078
    %v10131 = vpack.c.bf16 %v10081, %v10080
    %v10132 = vpack.c.bf16 %v10083, %v10082
    %v10133 = vpack.c.bf16 %v10085, %v10084
    %v10134 = vpack.c.bf16 %v10087, %v10086
    %v10135 = vpack.c.bf16 %v10089, %v10088
    %v10136 = vpack.c.bf16 %v10091, %v10090
    %v10137 = vpack.c.bf16 %v10093, %v10092
    %v10138 = vpack.c.bf16 %v10095, %v10094
    %v10139 = vpack.c.bf16 %v10097, %v10096
    %v10140 = vpack.c.bf16 %v10099, %v10098
    %v10141 = vpack.c.bf16 %v10101, %v10100
    %v10142 = vpack.c.bf16 %v10103, %v10102
    %v10143 = vpack.c.bf16 %v10105, %v10104
    %v10144 = vpack.c.bf16 %v10107, %v10106
    %v10145 = vpack.c.bf16 %v10109, %v10108
    %v10146 = vpack.c.bf16 %v10111, %v10110
    %v10147 = vpack.c.bf16 %v10113, %v10112
    %v10148 = vpack.c.bf16 %v10115, %v10114
    %v10149 = vpack.c.bf16 %v10117, %v10116
    %v10182 = vunpack.c.l.b16 %v10118
    %v10183 = vunpack.c.h.b16 %v10118
    %v10184 = vunpack.c.l.b16 %v10119
    %v10185 = vunpack.c.h.b16 %v10119
    %v10186 = vunpack.c.l.b16 %v10120
    %v10187 = vunpack.c.h.b16 %v10120
    %v10188 = vunpack.c.l.b16 %v10121
    %v10189 = vunpack.c.h.b16 %v10121
    %v10190 = vunpack.c.l.b16 %v10122
    %v10191 = vunpack.c.h.b16 %v10122
    %v10192 = vunpack.c.l.b16 %v10123
    %v10193 = vunpack.c.h.b16 %v10123
    %v10194 = vunpack.c.l.b16 %v10124
    %v10195 = vunpack.c.h.b16 %v10124
    %v10196 = vunpack.c.l.b16 %v10125
    %v10197 = vunpack.c.h.b16 %v10125
    %v10198 = vunpack.c.l.b16 %v10126
    %v10199 = vunpack.c.h.b16 %v10126
    %v10200 = vunpack.c.l.b16 %v10127
    %v10201 = vunpack.c.h.b16 %v10127
    %v10202 = vunpack.c.l.b16 %v10128
    %v10203 = vunpack.c.h.b16 %v10128
    %v10204 = vunpack.c.l.b16 %v10129
    %v10205 = vunpack.c.h.b16 %v10129
    %v10206 = vunpack.c.l.b16 %v10130
    %v10207 = vunpack.c.h.b16 %v10130
    %v10208 = vunpack.c.l.b16 %v10131
    %v10209 = vunpack.c.h.b16 %v10131
    %v10210 = vunpack.c.l.b16 %v10132
    %v10211 = vunpack.c.h.b16 %v10132
    %v10212 = vunpack.c.l.b16 %v10133
    %v10213 = vunpack.c.h.b16 %v10133
    %v10214 = vunpack.c.l.b16 %v10134
    %v10215 = vunpack.c.h.b16 %v10134
    %v10216 = vunpack.c.l.b16 %v10135
    %v10217 = vunpack.c.h.b16 %v10135
    %v10218 = vunpack.c.l.b16 %v10136
    %v10219 = vunpack.c.h.b16 %v10136
    %v10220 = vunpack.c.l.b16 %v10137
    %v10221 = vunpack.c.h.b16 %v10137
    %v10222 = vunpack.c.l.b16 %v10138
    %v10223 = vunpack.c.h.b16 %v10138
    %v10224 = vunpack.c.l.b16 %v10139
    %v10225 = vunpack.c.h.b16 %v10139
    %v10226 = vunpack.c.l.b16 %v10140
    %v10227 = vunpack.c.h.b16 %v10140
    %v10228 = vunpack.c.l.b16 %v10141
    %v10229 = vunpack.c.h.b16 %v10141
    %v10230 = vunpack.c.l.b16 %v10142
    %v10231 = vunpack.c.h.b16 %v10142
    %v10232 = vunpack.c.l.b16 %v10143
    %v10233 = vunpack.c.h.b16 %v10143
    %v10234 = vunpack.c.l.b16 %v10144
    %v10235 = vunpack.c.h.b16 %v10144
    %v10236 = vunpack.c.l.b16 %v10145
    %v10237 = vunpack.c.h.b16 %v10145
    %v10238 = vunpack.c.l.b16 %v10146
    %v10239 = vunpack.c.h.b16 %v10146
    %v10240 = vunpack.c.l.b16 %v10147
    %v10241 = vunpack.c.h.b16 %v10147
    %v10242 = vunpack.c.l.b16 %v10148
    %v10243 = vunpack.c.h.b16 %v10148
    %v10244 = vunpack.c.l.b16 %v10149
    %v10245 = vunpack.c.h.b16 %v10149
    %v10246 = vpack.c.b16 %v10182, %v10182
    %v10247 = vpack.c.b16 %v10183, %v10183
    %v10248 = vpack.c.b16 %v10184, %v10184
    %v10249 = vpack.c.b16 %v10185, %v10185
    %v10250 = vpack.c.b16 %v10186, %v10186
    %v10251 = vpack.c.b16 %v10187, %v10187
    %v10252 = vpack.c.b16 %v10188, %v10188
    %v10253 = vpack.c.b16 %v10189, %v10189
    %v10254 = vpack.c.b16 %v10190, %v10190
    %v10255 = vpack.c.b16 %v10191, %v10191
    %v10256 = vpack.c.b16 %v10192, %v10192
    %v10257 = vpack.c.b16 %v10193, %v10193
    %v10258 = vpack.c.b16 %v10194, %v10194
    %v10259 = vpack.c.b16 %v10195, %v10195
    %v10260 = vpack.c.b16 %v10196, %v10196
    %v10261 = vpack.c.b16 %v10197, %v10197
    %v10262 = vpack.c.b16 %v10198, %v10198
    %v10263 = vpack.c.b16 %v10199, %v10199
    %v10264 = vpack.c.b16 %v10200, %v10200
    %v10265 = vpack.c.b16 %v10201, %v10201
    %v10266 = vpack.c.b16 %v10202, %v10202
    %v10267 = vpack.c.b16 %v10203, %v10203
    %v10268 = vpack.c.b16 %v10204, %v10204
    %v10269 = vpack.c.b16 %v10205, %v10205
    %v10270 = vpack.c.b16 %v10206, %v10206
    %v10271 = vpack.c.b16 %v10207, %v10207
    %v10272 = vpack.c.b16 %v10208, %v10208
    %v10273 = vpack.c.b16 %v10209, %v10209
    %v10274 = vpack.c.b16 %v10210, %v10210
    %v10275 = vpack.c.b16 %v10211, %v10211
    %v10276 = vpack.c.b16 %v10212, %v10212
    %v10277 = vpack.c.b16 %v10213, %v10213
    %v10278 = vpack.c.b16 %v10214, %v10214
    %v10279 = vpack.c.b16 %v10215, %v10215
    %v10280 = vpack.c.b16 %v10216, %v10216
    %v10281 = vpack.c.b16 %v10217, %v10217
    %v10282 = vpack.c.b16 %v10218, %v10218
    %v10283 = vpack.c.b16 %v10219, %v10219
    %v10284 = vpack.c.b16 %v10220, %v10220
    %v10285 = vpack.c.b16 %v10221, %v10221
    %v10286 = vpack.c.b16 %v10222, %v10222
    %v10287 = vpack.c.b16 %v10223, %v10223
    %v10288 = vpack.c.b16 %v10224, %v10224
    %v10289 = vpack.c.b16 %v10225, %v10225
    %v10290 = vpack.c.b16 %v10226, %v10226
    %v10291 = vpack.c.b16 %v10227, %v10227
    %v10292 = vpack.c.b16 %v10228, %v10228
    %v10293 = vpack.c.b16 %v10229, %v10229
    %v10294 = vpack.c.b16 %v10230, %v10230
    %v10295 = vpack.c.b16 %v10231, %v10231
    %v10296 = vpack.c.b16 %v10232, %v10232
    %v10297 = vpack.c.b16 %v10233, %v10233
    %v10298 = vpack.c.b16 %v10234, %v10234
    %v10299 = vpack.c.b16 %v10235, %v10235
    %v10300 = vpack.c.b16 %v10236, %v10236
    %v10301 = vpack.c.b16 %v10237, %v10237
    %v10302 = vpack.c.b16 %v10238, %v10238
    %v10303 = vpack.c.b16 %v10239, %v10239
    %v10304 = vpack.c.b16 %v10240, %v10240
    %v10305 = vpack.c.b16 %v10241, %v10241
    %v10306 = vpack.c.b16 %v10242, %v10242
    %v10307 = vpack.c.b16 %v10243, %v10243
    %v10308 = vpack.c.b16 %v10244, %v10244
    %v10309 = vpack.c.b16 %v10245, %v10245
    %10374 = vst [vmem:[#allocation7] sm:$0xf] %v10246
    %10375 = vst [vmem:[#allocation7 + $0x4] sm:$0xf] %v10247
    %10376 = vst [vmem:[#allocation7 + $0x8] sm:$0xf] %v10248
    %10377 = vst [vmem:[#allocation7 + $0xc] sm:$0xf] %v10249
    %10378 = vst [vmem:[#allocation7 + $0x10] sm:$0xf] %v10250
    %10379 = vst [vmem:[#allocation7 + $0x14] sm:$0xf] %v10251
    %10380 = vst [vmem:[#allocation7 + $0x18] sm:$0xf] %v10252
    %10381 = vst [vmem:[#allocation7 + $0x1c] sm:$0xf] %v10253
    %10382 = vst [vmem:[#allocation7 + $0x20] sm:$0xf] %v10254
    %10383 = vst [vmem:[#allocation7 + $0x24] sm:$0xf] %v10255
    %10384 = vst [vmem:[#allocation7 + $0x28] sm:$0xf] %v10256
    %10385 = vst [vmem:[#allocation7 + $0x2c] sm:$0xf] %v10257
    %10386 = vst [vmem:[#allocation7 + $0x30] sm:$0xf] %v10258
    %10387 = vst [vmem:[#allocation7 + $0x34] sm:$0xf] %v10259
    %10388 = vst [vmem:[#allocation7 + $0x38] sm:$0xf] %v10260
    %10389 = vst [vmem:[#allocation7 + $0x3c] sm:$0xf] %v10261
    %10390 = vst [vmem:[#allocation7 + $0x40] sm:$0xf] %v10262
    %10391 = vst [vmem:[#allocation7 + $0x44] sm:$0xf] %v10263
    %10392 = vst [vmem:[#allocation7 + $0x48] sm:$0xf] %v10264
    %10393 = vst [vmem:[#allocation7 + $0x4c] sm:$0xf] %v10265
    %10394 = vst [vmem:[#allocation7 + $0x50] sm:$0xf] %v10266
    %10395 = vst [vmem:[#allocation7 + $0x54] sm:$0xf] %v10267
    %10396 = vst [vmem:[#allocation7 + $0x58] sm:$0xf] %v10268
    %10397 = vst [vmem:[#allocation7 + $0x5c] sm:$0xf] %v10269
    %10398 = vst [vmem:[#allocation7 + $0x60] sm:$0xf] %v10270
    %10399 = vst [vmem:[#allocation7 + $0x64] sm:$0xf] %v10271
    %10400 = vst [vmem:[#allocation7 + $0x68] sm:$0xf] %v10272
    %10401 = vst [vmem:[#allocation7 + $0x6c] sm:$0xf] %v10273
    %10402 = vst [vmem:[#allocation7 + $0x70] sm:$0xf] %v10274
    %10403 = vst [vmem:[#allocation7 + $0x74] sm:$0xf] %v10275
    %10404 = vst [vmem:[#allocation7 + $0x78] sm:$0xf] %v10276
    %10405 = vst [vmem:[#allocation7 + $0x7c] sm:$0xf] %v10277
    %10406 = vst [vmem:[#allocation7 + $0x80] sm:$0xf] %v10278
    %10407 = vst [vmem:[#allocation7 + $0x84] sm:$0xf] %v10279
    %10408 = vst [vmem:[#allocation7 + $0x88] sm:$0xf] %v10280
    %10409 = vst [vmem:[#allocation7 + $0x8c] sm:$0xf] %v10281
    %10410 = vst [vmem:[#allocation7 + $0x90] sm:$0xf] %v10282
    %10411 = vst [vmem:[#allocation7 + $0x94] sm:$0xf] %v10283
    %10412 = vst [vmem:[#allocation7 + $0x98] sm:$0xf] %v10284
    %10413 = vst [vmem:[#allocation7 + $0x9c] sm:$0xf] %v10285
    %10414 = vst [vmem:[#allocation7 + $0xa0] sm:$0xf] %v10286
    %10415 = vst [vmem:[#allocation7 + $0xa4] sm:$0xf] %v10287
    %10416 = vst [vmem:[#allocation7 + $0xa8] sm:$0xf] %v10288
    %10417 = vst [vmem:[#allocation7 + $0xac] sm:$0xf] %v10289
    %10418 = vst [vmem:[#allocation7 + $0xb0] sm:$0xf] %v10290
    %10419 = vst [vmem:[#allocation7 + $0xb4] sm:$0xf] %v10291
    %10420 = vst [vmem:[#allocation7 + $0xb8] sm:$0xf] %v10292
    %10421 = vst [vmem:[#allocation7 + $0xbc] sm:$0xf] %v10293
    %10422 = vst [vmem:[#allocation7 + $0xc0] sm:$0xf] %v10294
    %10423 = vst [vmem:[#allocation7 + $0xc4] sm:$0xf] %v10295
    %10424 = vst [vmem:[#allocation7 + $0xc8] sm:$0xf] %v10296
    %10425 = vst [vmem:[#allocation7 + $0xcc] sm:$0xf] %v10297
    %10426 = vst [vmem:[#allocation7 + $0xd0] sm:$0xf] %v10298
    %10427 = vst [vmem:[#allocation7 + $0xd4] sm:$0xf] %v10299
    %10428 = vst [vmem:[#allocation7 + $0xd8] sm:$0xf] %v10300
    %10429 = vst [vmem:[#allocation7 + $0xdc] sm:$0xf] %v10301
    %10430 = vst [vmem:[#allocation7 + $0xe0] sm:$0xf] %v10302
    %10431 = vst [vmem:[#allocation7 + $0xe4] sm:$0xf] %v10303
    %10432 = vst [vmem:[#allocation7 + $0xe8] sm:$0xf] %v10304
    %10433 = vst [vmem:[#allocation7 + $0xec] sm:$0xf] %v10305
    %10434 = vst [vmem:[#allocation7 + $0xf0] sm:$0xf] %v10306
    %10435 = vst [vmem:[#allocation7 + $0xf4] sm:$0xf] %v10307
    %10436 = vst [vmem:[#allocation7 + $0xf8] sm:$0xf] %v10308
    %10437 = vst [vmem:[#allocation7 + $0xfc] sm:$0xf] %v10309
    // Predicated region
    $region22: #{tpu_custom_call.1} parent=1 // pred_check
      _
    $region23: #{tpu_custom_call.1} parent=1 // pred_check_branch
      %10439 = sbr.rel (0) target = $region25
    $region24: #{tpu_custom_call.1} parent=1 // pred_region
      %s10441 = ssub.s32 4096, 4096
      %10442 = vsyncadd [#allocation4], %s10441
      %s10443 = sshll.u32 [#allocation7], 4
      %s10444 = int_to_ptr.vmem [resolvable:$true] %s10443
      %10449 = dma.vmem_to_hbm [thread:$0]  %s10444, 4096, %s3, [#allocation4], 64, 64, 4
    $region25: #{tpu_custom_call.1} parent=1 // pred_fallthru
      _
    // Predicated region
    $region26: #{tpu_custom_call.1} parent=1 // pred_check
      _
    $region27: #{tpu_custom_call.1} parent=1 // pred_check_branch
      %10451 = sbr.rel (0) target = $region29
    $region28: #{tpu_custom_call.1} parent=1 // pred_region
      %10452 = dma.done [#allocation4], 4096
    $region29: #{tpu_custom_call.1} parent=1 // pred_fallthru
      _
    %10453 = vsyncpa [#allocation3], 1
    %10454 = vsyncpa [#allocation6], 1
    %10455 = vsyncpa [#allocation4], 1

</llo_original>
